<compile_context>
chip_gen: v5e
topology: v5e:2x2
jax: 0.10.0
libtpu: 0.0.40
codegen_flags: <defaults>
</compile_context>

<pallas_src>
import math

import jax
import jax.numpy as jnp
from jax.experimental import pallas as pl
from jax.experimental.pallas import tpu as pltpu


# ---------------------------------------------------------------------------
# Fused kernel builder
# ---------------------------------------------------------------------------
def _make_fused_kernel(feat_hw, gather_impl):
    """Fused Detr3dTransformer forward body.

    gather_impl: "take_along" | "take" | "onehot"
    Ref order:
      inputs : pos, query, proj, ref_w, ref_b, out_w, out_b, feat_0..feat_{L-1}
      outputs: out, reference_points
      scratch: wsum, msum, sig
    """
    num_levels = len(feat_hw)

    def kernel(*refs):
        (pos_ref, query_ref, proj_ref,
         refw_ref, refb_ref, outw_ref, outb_ref) = refs[:7]
        feat_refs = refs[7:7 + num_levels]
        out_ref, refp_ref, wsum_ref, msum_ref, sig_ref = refs[7 + num_levels:]

        v = pl.program_id(2)
        nv = pl.num_programs(2)

        pos = pos_ref[...]                         # (qt, Dp) f32
        qt = pos.shape[0]
        c = outw_ref.shape[0]

        # ---- per-(batch, tile) init: reference-points 1x1 conv + acc reset --
        @pl.when(v == 0)
        def _():
            # ConvModule2d(embed_dims -> 3, k=1).  Columns >=3 of ref_w/ref_b
            # are zero host-side padding so the MXU output and the store are
            # lane-dense (128 lanes).
            raw = jnp.dot(pos, refw_ref[...],
                          preferred_element_type=jnp.float32) + refb_ref[...]
            # The reference module returns the raw (pre-sigmoid) conv output as
            # `reference_points`; sigmoid is only applied inside the sampler.
            refp_ref[0] = raw.astype(refp_ref.dtype)
            # sigmoid via EUP exp + approx reciprocal.
            sig_ref[...] = pl.reciprocal(1.0 + jnp.exp(-raw[:, 0:3]), approx=True)
            wsum_ref[...] = jnp.zeros_like(wsum_ref)
            msum_ref[...] = jnp.zeros_like(msum_ref)

        sig = sig_ref[...]                         # (qt, 3)

        # ---- FeatureSampler for this view: project + bilinear sample --------
        for lvl in range(num_levels):
            hf, wf = feat_hw[lvl]
            hw = hf * wf
            feat = feat_refs[lvl][0]               # (HW, C) f32
            p = proj_ref[0, 0, lvl]                # (4,4); BEV + level scale folded

            cam = (sig[:, 0:1] * p[0:1, :] + sig[:, 1:2] * p[1:2, :]
                   + sig[:, 2:3] * p[2:3, :] + p[3:4, :])           # (qt, 4)
            z = jnp.maximum(cam[:, 2:3], 0.05)     # clamp as in the reference
            rz = pl.reciprocal(z, approx=True)
            xs = cam[:, 0:1] * rz
            ys = cam[:, 1:2] * rz
            inb = ((xs >= 0.0) & (xs < float(wf))
                   & (ys >= 0.0) & (ys < float(hf))).astype(jnp.float32)  # (qt,1)

            x0f = jnp.floor(xs)
            y0f = jnp.floor(ys)
            fx = xs - x0f
            fy = ys - y0f
            x0 = x0f.astype(jnp.int32)
            y0 = y0f.astype(jnp.int32)
            flat00 = y0 * wf + x0                  # (qt, 1), other corners derived

            corners = ((0, 0, (1.0 - fx) * (1.0 - fy)),
                       (1, 0, fx * (1.0 - fy)),
                       (0, 1, (1.0 - fx) * fy),
                       (1, 1, fx * fy))

            if gather_impl in ("take_along", "take"):
                val = jnp.zeros((qt, c), jnp.float32)
                for dx, dy, w in corners:
                    xi = x0 + dx
                    yi = y0 + dy
                    cin = ((xi >= 0) & (xi < wf)
                           & (yi >= 0) & (yi < hf)).astype(jnp.float32)
                    wc = w * cin * inb                               # (qt, 1)
                    idx = jnp.clip(flat00 + (dy * wf + dx), 0, hw - 1)
                    if gather_impl == "take_along":
                        rows = jnp.take_along_axis(
                            feat, jnp.broadcast_to(idx, (qt, c)), axis=0)
                    else:
                        rows = jnp.take(feat, idx[:, 0], axis=0, mode="clip")
                    val = val + wc * rows
                wsum_ref[...] = wsum_ref[...] + val
            else:
                # Fused one-hot fallback: single (qt, HW) weight matrix per
                # (view, level) with bounds + view mask folded in, one bf16 dot.
                lane = jax.lax.broadcasted_iota(jnp.int32, (qt, hw), 1)
                wmat = jnp.zeros((qt, hw), jnp.float32)
                for dx, dy, w in corners:
                    xi = x0 + dx
                    yi = y0 + dy
                    cin = (xi >= 0) & (xi < wf) & (yi >= 0) & (yi < hf)
                    flat = flat00 + (dy * wf + dx)
                    wmat = wmat + jnp.where((lane == flat) & cin, w, 0.0)
                wmat = wmat * inb
                val = jnp.dot(wmat.astype(jnp.bfloat16),
                              feat.astype(jnp.bfloat16),
                              preferred_element_type=jnp.float32)
                wsum_ref[...] = wsum_ref[...] + val

            msum_ref[...] = msum_ref[...] + inb

        # ---- decoder stand-in: masked mean + output projection + residual ---
        @pl.when(v == nv - 1)
        def _():
            agg = wsum_ref[...] * pl.reciprocal(msum_ref[...] + 1e-6, approx=True)
            dec = jnp.dot(agg, outw_ref[...],
                          preferred_element_type=jnp.float32) + outb_ref[...]
            out_ref[0] = (query_ref[0] + pos + dec).astype(out_ref.dtype)

    return kernel


# ---------------------------------------------------------------------------
# Host-side metadata folding: level homography scaling + BEV range folding.
# ---------------------------------------------------------------------------
def _build_projection(ego2img, feat_hw, orig_hw, bev_range, num_views, dtype):
    """(bs, V, L, 4, 4) matrices P with the per-level homography scaling and
    the BEV-range scale/offset folded in so that, in-kernel,
        cam_j = sum_k sigmoid_k * P[k, j] + P[3, j]
    equals  [sig*scale + off, 1] @ (view_scale @ ego2img)^T.
    """
    ego2img = jnp.asarray(ego2img, dtype=jnp.float32)
    scale = jnp.asarray([bev_range[3] - bev_range[0],
                         bev_range[4] - bev_range[1],
                         bev_range[5] - bev_range[2]], dtype=jnp.float32)
    off = jnp.asarray(bev_range[:3], dtype=jnp.float32)
    mats = []
    for hf, wf in feat_hw:
        view = jnp.diag(jnp.asarray([wf / orig_hw[1], hf / orig_hw[0], 1.0, 1.0],
                                    dtype=jnp.float32))
        homo = jnp.einsum('ij,njk->nik', view, ego2img)             # (N, 4, 4)
        ht = jnp.swapaxes(homo, -1, -2)                             # ht[n,k,j]=homo[n,j,k]
        top = scale[None, :, None] * ht[:, :3, :]                   # (N, 3, 4)
        bot = jnp.einsum('k,nkj->nj', off, ht[:, :3, :]) + ht[:, 3, :]
        mats.append(jnp.concatenate([top, bot[:, None, :]], axis=1))
    proj = jnp.stack(mats, axis=1).astype(dtype)                    # (N, L, 4, 4)
    n = proj.shape[0]
    return proj.reshape(n // num_views, num_views, len(feat_hw), 4, 4)


def _round_up(x, m):
    return ((x + m - 1) // m) * m


def _pick_row_tile(nq_pad):
    # Prefer >=2 sublane-aligned query-row tiles so the tile axis can be split
    # across TensorCores (v7x megacore).
    for t in (1024, 512, 256, 128, 64, 32, 16, 8):
        if nq_pad % t == 0 and nq_pad // t >= 2:
            return t
    return nq_pad


# ---------------------------------------------------------------------------
# Detr3dTransformer forward (single fused pallas_call)
# ---------------------------------------------------------------------------
def detr3d_transformer_forward(feats, query_embed, pos_embed, meta, bev_range,
                               params, num_views):
    num_levels = len(feats)
    n_cam, c_feat = int(feats[0].shape[0]), int(feats[0].shape[1])
    bs = n_cam // num_views
    _, d, hq, wq = (int(s) for s in pos_embed.shape)
    nq = hq * wq
    dtype = pos_embed.dtype

    # Lane-dense / sublane-aligned padding of the query-row and embed dims.
    d_pad = _round_up(d, 128)
    nq_pad = _round_up(nq, 8)

    # One layout conversion at the module boundary; channel-last inside.
    pos2d = jnp.transpose(pos_embed, (0, 2, 3, 1)).reshape(nq, d)
    query = jnp.transpose(query_embed, (0, 2, 3, 1)).reshape(bs, nq, d)
    pos2d = jnp.pad(pos2d, ((0, nq_pad - nq), (0, d_pad - d)))
    query = jnp.pad(query, ((0, 0), (0, nq_pad - nq), (0, d_pad - d)))

    feat_hw = [(int(f.shape[2]), int(f.shape[3])) for f in feats]
    feat_slabs = [jnp.transpose(f, (0, 2, 3, 1)).reshape(n_cam, h * w, c_feat)
                  for f, (h, w) in zip(feats, feat_hw)]

    proj = _build_projection(meta['ego2img'], feat_hw, meta['orig_hw'],
                             bev_range, num_views, dtype)           # (bs,V,L,4,4)

    # Zero-padded weights: padded rows/cols contribute exactly zero.
    ref_w = jnp.zeros((d_pad, 128), dtype).at[:d, :3].set(
        jnp.transpose(params['ref_w']).astype(dtype))
    ref_b = jnp.zeros((1, 128), dtype).at[0, :3].set(params['ref_b'].astype(dtype))
    out_w = jnp.zeros((c_feat, d_pad), dtype).at[:, :d].set(
        jnp.transpose(params['out_w']).astype(dtype))
    out_b = jnp.zeros((1, d_pad), dtype).at[0, :d].set(params['out_b'].astype(dtype))

    qt = _pick_row_tile(nq_pad)
    grid = (bs, nq_pad // qt, num_views)

    const = lambda b, t, v: (0, 0)

    def make_specs(single_buffer_weights):
        pm = ({'pipeline_mode': pl.Buffered(1)} if single_buffer_weights else {})
        in_specs = [
            pl.BlockSpec((qt, d_pad), lambda b, t, v: (t, 0)),           # pos rows
            pl.BlockSpec((1, qt, d_pad), lambda b, t, v: (b, t, 0)),     # query rows
            pl.BlockSpec((1, 1, num_levels, 4, 4),
                         lambda b, t, v: (b, v, 0, 0, 0)),               # folded homographies
            pl.BlockSpec((d_pad, 128), const, **pm),                     # ref_w
            pl.BlockSpec((1, 128), const, **pm),                         # ref_b
            pl.BlockSpec((c_feat, d_pad), const, **pm),                  # out_w
            pl.BlockSpec((1, d_pad), const, **pm),                       # out_b
        ] + [pl.BlockSpec((1, h * w, c_feat),
                          lambda b, t, v: (b * num_views + v, 0, 0))     # one view resident
             for (h, w) in feat_hw]
        out_specs = [
            pl.BlockSpec((1, qt, d_pad), lambda b, t, v: (b, t, 0)),
            pl.BlockSpec((1, qt, 128), lambda b, t, v: (b, t, 0)),
        ]
        return in_specs, out_specs

    scratch = [pltpu.VMEM((qt, c_feat), jnp.float32),    # wsum (view/level acc)
               pltpu.VMEM((qt, 1), jnp.float32),         # msum (mask count)
               pltpu.VMEM((qt, 3), jnp.float32)]         # sigmoid(reference)

    # VMEM budget: double-buffered blocks (lane dims padded to 128) + headroom.
    def _bytes(shape):
        return math.prod(shape) * 4

    block_bytes = (
        2 * (_bytes((qt, d_pad)) * 2                      # pos, query
             + _bytes((1, 1, num_levels, 8, 128))         # proj (padded)
             + _bytes((d_pad, 128)) + _bytes((8, 128))    # ref_w, ref_b
             + _bytes((max(c_feat, 8), d_pad)) + _bytes((8, d_pad))  # out_w/b
             + sum(_bytes((h * w, max(c_feat, 128))) for (h, w) in feat_hw)
             + _bytes((qt, d_pad)) + _bytes((qt, 128)))   # outputs
        + _bytes((qt, 128)) * 3)                          # scratch (padded)
    vmem_limit = min(block_bytes + (16 << 20), 96 << 20)

    qv = bs * num_views * num_levels * nq_pad
    cost = pl.CostEstimate(
        flops=int(2 * nq_pad * d_pad * 128
                  + 2 * bs * nq_pad * c_feat * d_pad
                  + qv * (40 + 12 * c_feat)),
        transcendentals=int(nq_pad * 3 + qv * 2),
        bytes_accessed=int(sum(f.size for f in feat_slabs) * 4
                           + (pos2d.size + query.size) * 4
                           + bs * nq_pad * (d_pad + 128) * 4))

    def run(gather_impl, single_buffer_weights):
        in_specs, out_specs = make_specs(single_buffer_weights)
        fn = pl.pallas_call(
            _make_fused_kernel(feat_hw, gather_impl),
            out_shape=(jax.ShapeDtypeStruct((bs, nq_pad, d_pad), dtype),
                       jax.ShapeDtypeStruct((bs, nq_pad, 128), dtype)),
            grid=grid,
            in_specs=in_specs,
            out_specs=out_specs,
            scratch_shapes=scratch,
            compiler_params=pltpu.CompilerParams(
                dimension_semantics=("parallel", "parallel", "arbitrary"),
                vmem_limit_bytes=vmem_limit),
            cost_estimate=cost,
        )
        o, r = fn(pos2d, query, proj, ref_w, ref_b, out_w, out_b, *feat_slabs)
        jax.block_until_ready((o, r))
        return o, r

    # Preferred: row-gather sampling + single-buffered constant weights.
    # Fallbacks keep the kernel running on jaxlib builds where the in-kernel
    # gather or Buffered(1) do not lower (last resort: fused one-hot bf16 dot).
    configs = (("take_along", True), ("take", True), ("take_along", False),
               ("onehot", True), ("onehot", False))
    last_err = None
    for cfg in configs:
        try:
            out, ref_pts = run(*cfg)
            break
        except Exception as e:  # noqa: BLE001 - fall through to next config
            last_err = e
    else:
        raise last_err

    # Strip padding, back to the module's NCHW boundary (tiny tensors).
    out = out[:, :nq, :d]
    ref_pts = ref_pts[:, :nq, :3]
    out_nchw = jnp.transpose(out.reshape(bs, hq, wq, d), (0, 3, 1, 2))
    ref_nchw = jnp.transpose(ref_pts.reshape(bs, hq, wq, 3), (0, 3, 1, 2))
    return out_nchw, ref_nchw


if __name__ == "__main__":
    key = jax.random.PRNGKey(0)
    embed_dims = 32
    num_views = 2
    bs = 2
    n = bs * num_views
    hq, wq = 8, 8
    c_feat = 8
    feat_shapes = [(16, 16), (8, 8)]
    orig_hw = (64.0, 64.0)
    bev_range = (-51.2, -51.2, -5.0, 51.2, 51.2, 3.0)

    keys = jax.random.split(key, 12)
    feats = [jax.random.normal(keys[i], (n, c_feat, h, w), dtype=jnp.float32)
             for i, (h, w) in enumerate(feat_shapes)]
    pos_embed = jax.random.normal(keys[2], (1, embed_dims, hq, wq),
                                  dtype=jnp.float32)
    query_embed = jax.random.normal(keys[3], (bs, embed_dims, hq, wq),
                                    dtype=jnp.float32)

    # Synthetic ego->image homographies: camera-like intrinsics on top of a
    # small perturbation of identity extrinsics.
    exts = jnp.stack(
        [jnp.eye(4, dtype=jnp.float32)
         + 0.01 * jax.random.normal(keys[4 + i], (4, 4), dtype=jnp.float32)
         for i in range(n)], axis=0)
    intrin = jnp.array([[30.0, 0.0, 32.0, 0.0],
                        [0.0, 30.0, 32.0, 0.0],
                        [0.0, 0.0, 1.0, 0.0],
                        [0.0, 0.0, 0.0, 1.0]], dtype=jnp.float32)
    homo = jnp.einsum('ij,njk->nik', intrin, exts)
    meta = {'ego2img': homo, 'orig_hw': orig_hw}

    # Deterministic synthetic parameters (shapes from the module __init__).
    params = {
        'ref_w': 0.1 * jax.random.normal(keys[8], (3, embed_dims),
                                         dtype=jnp.float32),
        'ref_b': jnp.zeros((3,), dtype=jnp.float32),
        'out_w': 0.1 * jax.random.normal(keys[9], (embed_dims, c_feat),
                                         dtype=jnp.float32),
        'out_b': jnp.zeros((embed_dims,), dtype=jnp.float32),
    }

    out, ref_pts = detr3d_transformer_forward(
        feats, query_embed, pos_embed, meta, bev_range, params, num_views)
    jax.block_until_ready((out, ref_pts))
    assert out.shape == (bs, embed_dims, hq, wq)
    assert ref_pts.shape == (bs, 3, hq, wq)
    assert bool(jnp.all(jnp.isfinite(out)))
    assert bool(jnp.all(jnp.isfinite(ref_pts)))
    print("KERNEL_OK")
</pallas_src>

<mosaic_0001>
module attributes {stable_mosaic.version = 11 : i64} {
  func.func @kernel(%arg0: i32, %arg1: i32, %arg2: i32, %arg3: memref<32x128xf32, #tpu.memory_space<vmem>>, %arg4: memref<1x32x128xf32, #tpu.memory_space<vmem>>, %arg5: memref<1x1x2x4x4xf32, #tpu.memory_space<vmem>>, %arg6: memref<128x128xf32, #tpu.memory_space<vmem>>, %arg7: memref<1x128xf32, #tpu.memory_space<vmem>>, %arg8: memref<8x128xf32, #tpu.memory_space<vmem>>, %arg9: memref<1x128xf32, #tpu.memory_space<vmem>>, %arg10: memref<1x256x8xf32, #tpu.memory_space<vmem>>, %arg11: memref<1x64x8xf32, #tpu.memory_space<vmem>>, %arg12: memref<1x32x128xf32, #tpu.memory_space<vmem>>, %arg13: memref<1x32x128xf32, #tpu.memory_space<vmem>>, %arg14: memref<32x8xf32, #tpu.memory_space<vmem>>, %arg15: memref<32x1xf32, #tpu.memory_space<vmem>>, %arg16: memref<32x3xf32, #tpu.memory_space<vmem>>) attributes {dimension_semantics = [#tpu.dimension_semantics<parallel>, #tpu.dimension_semantics<parallel>, #tpu.dimension_semantics<arbitrary>], iteration_bounds = array<i64: 2, 2, 2>, scalar_prefetch = 0 : i64, scratch_operands = 3 : i64, tpu.core_type = #tpu.core_type<tc>, window_params = [{transform_indices = @transform_0, window_bounds = array<i64: 32, 128>}, {transform_indices = @transform_1, window_bounds = array<i64: 1, 32, 128>}, {transform_indices = @transform_2, window_bounds = array<i64: 1, 1, 2, 4, 4>}, {pipeline_mode = #tpu.pipeline_mode<synchronous>, transform_indices = @transform_3, window_bounds = array<i64: 128, 128>}, {pipeline_mode = #tpu.pipeline_mode<synchronous>, transform_indices = @transform_4, window_bounds = array<i64: 1, 128>}, {pipeline_mode = #tpu.pipeline_mode<synchronous>, transform_indices = @transform_5, window_bounds = array<i64: 8, 128>}, {pipeline_mode = #tpu.pipeline_mode<synchronous>, transform_indices = @transform_6, window_bounds = array<i64: 1, 128>}, {transform_indices = @transform_7, window_bounds = array<i64: 1, 256, 8>}, {transform_indices = @transform_8, window_bounds = array<i64: 1, 64, 8>}, {transform_indices = @transform_9, window_bounds = array<i64: 1, 32, 128>}, {transform_indices = @transform_10, window_bounds = array<i64: 1, 32, 128>}]} {
    %c0 = arith.constant 0 : index
    %c0_0 = arith.constant 0 : index
    %0 = vector.load %arg3[%c0, %c0_0] : memref<32x128xf32, #tpu.memory_space<vmem>>, vector<32x128xf32>
    %c0_i32 = arith.constant 0 : i32
    %1 = arith.cmpi eq, %arg2, %c0_i32 : i32
    %2 = arith.extui %1 : i1 to i32
    %c0_i32_1 = arith.constant 0 : i32
    %3 = arith.cmpi ne, %2, %c0_i32_1 : i32
    scf.if %3 {
      %c0_137 = arith.constant 0 : index
      %c0_138 = arith.constant 0 : index
      %458 = vector.load %arg6[%c0_137, %c0_138] : memref<128x128xf32, #tpu.memory_space<vmem>>, vector<128x128xf32>
      %cst_139 = arith.constant dense<0.000000e+00> : vector<32x128xf32>
      %459 = tpu.matmul %0, %458, %cst_139 {dimension_numbers = #tpu.dot_dimension_numbers<[1], [0], [0], [1], [0, 0, 1, 1], [], []>} : vector<32x128xf32>, vector<128x128xf32>, vector<32x128xf32> -> vector<32x128xf32>
      %c0_140 = arith.constant 0 : index
      %c0_141 = arith.constant 0 : index
      %460 = vector.load %arg7[%c0_140, %c0_141] : memref<1x128xf32, #tpu.memory_space<vmem>>, vector<1x128xf32>
      %461 = vector.broadcast %460 : vector<1x128xf32> to vector<32x128xf32>
      %462 = arith.addf %459, %461 : vector<32x128xf32>
      %c0_142 = arith.constant 0 : index
      %c0_143 = arith.constant 0 : index
      %c0_144 = arith.constant 0 : index
      %463 = vector.load %arg13[%c0_142, %c0_143, %c0_144] : memref<1x32x128xf32, #tpu.memory_space<vmem>>, vector<1x32x128xf32>
      %464 = vector.shape_cast %463 : vector<1x32x128xf32> to vector<32x128xf32>
      %465 = vector.shape_cast %462 : vector<32x128xf32> to vector<1x32x128xf32>
      tpu.vector_store %arg13[%c0_142, %c0_143, %c0_144], %465 {strides = array<i32>} : memref<1x32x128xf32, #tpu.memory_space<vmem>>, vector<1x32x128xf32>,
      %466 = vector.extract_strided_slice %462 {offsets = [0, 0], sizes = [32, 3], strides = [1, 1]} : vector<32x128xf32> to vector<32x3xf32>
      %cst_145 = arith.constant 0.000000e+00 : f32
      %467 = vector.broadcast %cst_145 : f32 to vector<32x3xf32>
      %468 = arith.subf %467, %466 : vector<32x3xf32>
      %469 = math.exp %468 : vector<32x3xf32>
      %cst_146 = arith.constant 1.000000e+00 : f32
      %470 = vector.broadcast %cst_146 : f32 to vector<32x3xf32>
      %471 = arith.addf %470, %469 : vector<32x3xf32>
      %472 = tpu.reciprocal %471 {approx = true} : vector<32x3xf32> -> vector<32x3xf32>
      %c0_147 = arith.constant 0 : index
      %c0_148 = arith.constant 0 : index
      %473 = vector.load %arg16[%c0_147, %c0_148] : memref<32x3xf32, #tpu.memory_space<vmem>>, vector<32x3xf32>
      tpu.vector_store %arg16[%c0_147, %c0_148], %472 {strides = array<i32>} : memref<32x3xf32, #tpu.memory_space<vmem>>, vector<32x3xf32>,
      %cst_149 = arith.constant 0.000000e+00 : f32
      %474 = vector.broadcast %cst_149 : f32 to vector<32x8xf32>
      %c0_150 = arith.constant 0 : index
      %c0_151 = arith.constant 0 : index
      %475 = vector.load %arg14[%c0_150, %c0_151] : memref<32x8xf32, #tpu.memory_space<vmem>>, vector<32x8xf32>
      tpu.vector_store %arg14[%c0_150, %c0_151], %474 {strides = array<i32>} : memref<32x8xf32, #tpu.memory_space<vmem>>, vector<32x8xf32>,
      %cst_152 = arith.constant 0.000000e+00 : f32
      %476 = vector.broadcast %cst_152 : f32 to vector<32x1xf32>
      %c0_153 = arith.constant 0 : index
      %c0_154 = arith.constant 0 : index
      %477 = vector.load %arg15[%c0_153, %c0_154] : memref<32x1xf32, #tpu.memory_space<vmem>>, vector<32x1xf32>
      tpu.vector_store %arg15[%c0_153, %c0_154], %476 {strides = array<i32>} : memref<32x1xf32, #tpu.memory_space<vmem>>, vector<32x1xf32>,
    } else {
    }
    %c0_2 = arith.constant 0 : index
    %c0_3 = arith.constant 0 : index
    %4 = vector.load %arg16[%c0_2, %c0_3] : memref<32x3xf32, #tpu.memory_space<vmem>>, vector<32x3xf32>
    %c0_4 = arith.constant 0 : index
    %c0_5 = arith.constant 0 : index
    %c0_6 = arith.constant 0 : index
    %5 = vector.load %arg10[%c0_4, %c0_5, %c0_6] : memref<1x256x8xf32, #tpu.memory_space<vmem>>, vector<1x256x8xf32>
    %6 = vector.shape_cast %5 : vector<1x256x8xf32> to vector<256x8xf32>
    %c0_7 = arith.constant 0 : index
    %c0_8 = arith.constant 0 : index
    %c0_9 = arith.constant 0 : index
    %c0_10 = arith.constant 0 : index
    %c0_11 = arith.constant 0 : index
    %7 = vector.load %arg5[%c0_7, %c0_8, %c0_9, %c0_10, %c0_11] : memref<1x1x2x4x4xf32, #tpu.memory_space<vmem>>, vector<1x1x1x4x4xf32>
    %8 = vector.shape_cast %7 : vector<1x1x1x4x4xf32> to vector<4x4xf32>
    %9 = vector.extract_strided_slice %4 {offsets = [0, 0], sizes = [32, 1], strides = [1, 1]} : vector<32x3xf32> to vector<32x1xf32>
    %10 = vector.extract_strided_slice %8 {offsets = [0, 0], sizes = [1, 4], strides = [1, 1]} : vector<4x4xf32> to vector<1x4xf32>
    %11 = vector.broadcast %9 : vector<32x1xf32> to vector<32x4xf32>
    %12 = vector.broadcast %10 : vector<1x4xf32> to vector<32x4xf32>
    %13 = arith.mulf %11, %12 : vector<32x4xf32>
    %14 = vector.extract_strided_slice %4 {offsets = [0, 1], sizes = [32, 1], strides = [1, 1]} : vector<32x3xf32> to vector<32x1xf32>
    %15 = vector.extract_strided_slice %8 {offsets = [1, 0], sizes = [1, 4], strides = [1, 1]} : vector<4x4xf32> to vector<1x4xf32>
    %16 = vector.broadcast %14 : vector<32x1xf32> to vector<32x4xf32>
    %17 = vector.broadcast %15 : vector<1x4xf32> to vector<32x4xf32>
    %18 = arith.mulf %16, %17 : vector<32x4xf32>
    %19 = arith.addf %13, %18 : vector<32x4xf32>
    %20 = vector.extract_strided_slice %4 {offsets = [0, 2], sizes = [32, 1], strides = [1, 1]} : vector<32x3xf32> to vector<32x1xf32>
    %21 = vector.extract_strided_slice %8 {offsets = [2, 0], sizes = [1, 4], strides = [1, 1]} : vector<4x4xf32> to vector<1x4xf32>
    %22 = vector.broadcast %20 : vector<32x1xf32> to vector<32x4xf32>
    %23 = vector.broadcast %21 : vector<1x4xf32> to vector<32x4xf32>
    %24 = arith.mulf %22, %23 : vector<32x4xf32>
    %25 = arith.addf %19, %24 : vector<32x4xf32>
    %26 = vector.extract_strided_slice %8 {offsets = [3, 0], sizes = [1, 4], strides = [1, 1]} : vector<4x4xf32> to vector<1x4xf32>
    %27 = vector.broadcast %26 : vector<1x4xf32> to vector<32x4xf32>
    %28 = arith.addf %25, %27 : vector<32x4xf32>
    %29 = vector.extract_strided_slice %28 {offsets = [0, 2], sizes = [32, 1], strides = [1, 1]} : vector<32x4xf32> to vector<32x1xf32>
    %cst = arith.constant 5.000000e-02 : f32
    %30 = vector.broadcast %cst : f32 to vector<32x1xf32>
    %31 = arith.maximumf %29, %30 : vector<32x1xf32>
    %32 = tpu.reciprocal %31 {approx = true} : vector<32x1xf32> -> vector<32x1xf32>
    %33 = vector.extract_strided_slice %28 {offsets = [0, 0], sizes = [32, 1], strides = [1, 1]} : vector<32x4xf32> to vector<32x1xf32>
    %34 = arith.mulf %33, %32 : vector<32x1xf32>
    %35 = vector.extract_strided_slice %28 {offsets = [0, 1], sizes = [32, 1], strides = [1, 1]} : vector<32x4xf32> to vector<32x1xf32>
    %36 = arith.mulf %35, %32 : vector<32x1xf32>
    %cst_12 = arith.constant 0.000000e+00 : f32
    %37 = vector.broadcast %cst_12 : f32 to vector<32x1xf32>
    %38 = arith.cmpf oge, %34, %37 : vector<32x1xf32>
    %cst_13 = arith.constant 1.600000e+01 : f32
    %39 = vector.broadcast %cst_13 : f32 to vector<32x1xf32>
    %40 = arith.cmpf olt, %34, %39 : vector<32x1xf32>
    %41 = arith.andi %38, %40 : vector<32x1xi1>
    %cst_14 = arith.constant 0.000000e+00 : f32
    %42 = vector.broadcast %cst_14 : f32 to vector<32x1xf32>
    %43 = arith.cmpf oge, %36, %42 : vector<32x1xf32>
    %44 = arith.andi %41, %43 : vector<32x1xi1>
    %cst_15 = arith.constant 1.600000e+01 : f32
    %45 = vector.broadcast %cst_15 : f32 to vector<32x1xf32>
    %46 = arith.cmpf olt, %36, %45 : vector<32x1xf32>
    %47 = arith.andi %44, %46 : vector<32x1xi1>
    %48 = arith.extui %47 : vector<32x1xi1> to vector<32x1xi32>
    %49 = arith.sitofp %48 : vector<32x1xi32> to vector<32x1xf32>
    %50 = math.floor %34 : vector<32x1xf32>
    %51 = math.floor %36 : vector<32x1xf32>
    %52 = arith.subf %34, %50 : vector<32x1xf32>
    %53 = arith.subf %36, %51 : vector<32x1xf32>
    %54 = arith.fptosi %50 : vector<32x1xf32> to vector<32x1xi32>
    %55 = arith.fptosi %51 : vector<32x1xf32> to vector<32x1xi32>
    %c16_i32 = arith.constant 16 : i32
    %56 = vector.broadcast %c16_i32 : i32 to vector<32x1xi32>
    %57 = arith.muli %55, %56 : vector<32x1xi32>
    %58 = arith.addi %57, %54 : vector<32x1xi32>
    %cst_16 = arith.constant 1.000000e+00 : f32
    %59 = vector.broadcast %cst_16 : f32 to vector<32x1xf32>
    %60 = arith.subf %59, %52 : vector<32x1xf32>
    %cst_17 = arith.constant 1.000000e+00 : f32
    %61 = vector.broadcast %cst_17 : f32 to vector<32x1xf32>
    %62 = arith.subf %61, %53 : vector<32x1xf32>
    %63 = arith.mulf %60, %62 : vector<32x1xf32>
    %cst_18 = arith.constant 1.000000e+00 : f32
    %64 = vector.broadcast %cst_18 : f32 to vector<32x1xf32>
    %65 = arith.subf %64, %53 : vector<32x1xf32>
    %66 = arith.mulf %52, %65 : vector<32x1xf32>
    %cst_19 = arith.constant 1.000000e+00 : f32
    %67 = vector.broadcast %cst_19 : f32 to vector<32x1xf32>
    %68 = arith.subf %67, %52 : vector<32x1xf32>
    %69 = arith.mulf %68, %53 : vector<32x1xf32>
    %70 = arith.mulf %52, %53 : vector<32x1xf32>
    %cst_20 = arith.constant 0.000000e+00 : f32
    %71 = vector.broadcast %cst_20 : f32 to vector<32x8xf32>
    %c0_i32_21 = arith.constant 0 : i32
    %72 = vector.broadcast %c0_i32_21 : i32 to vector<32x1xi32>
    %73 = arith.addi %54, %72 : vector<32x1xi32>
    %c0_i32_22 = arith.constant 0 : i32
    %74 = vector.broadcast %c0_i32_22 : i32 to vector<32x1xi32>
    %75 = arith.addi %55, %74 : vector<32x1xi32>
    %c0_i32_23 = arith.constant 0 : i32
    %76 = vector.broadcast %c0_i32_23 : i32 to vector<32x1xi32>
    %77 = arith.cmpi sge, %73, %76 : vector<32x1xi32>
    %c16_i32_24 = arith.constant 16 : i32
    %78 = vector.broadcast %c16_i32_24 : i32 to vector<32x1xi32>
    %79 = arith.cmpi slt, %73, %78 : vector<32x1xi32>
    %80 = arith.andi %77, %79 : vector<32x1xi1>
    %c0_i32_25 = arith.constant 0 : i32
    %81 = vector.broadcast %c0_i32_25 : i32 to vector<32x1xi32>
    %82 = arith.cmpi sge, %75, %81 : vector<32x1xi32>
    %83 = arith.andi %80, %82 : vector<32x1xi1>
    %c16_i32_26 = arith.constant 16 : i32
    %84 = vector.broadcast %c16_i32_26 : i32 to vector<32x1xi32>
    %85 = arith.cmpi slt, %75, %84 : vector<32x1xi32>
    %86 = arith.andi %83, %85 : vector<32x1xi1>
    %87 = arith.extui %86 : vector<32x1xi1> to vector<32x1xi32>
    %88 = arith.sitofp %87 : vector<32x1xi32> to vector<32x1xf32>
    %89 = arith.mulf %63, %88 : vector<32x1xf32>
    %90 = arith.mulf %89, %49 : vector<32x1xf32>
    %c0_i32_27 = arith.constant 0 : i32
    %91 = vector.broadcast %c0_i32_27 : i32 to vector<32x1xi32>
    %92 = arith.addi %58, %91 : vector<32x1xi32>
    %c0_i32_28 = arith.constant 0 : i32
    %c255_i32 = arith.constant 255 : i32
    %93 = vector.broadcast %c0_i32_28 : i32 to vector<32x1xi32>
    %94 = arith.maxsi %93, %92 : vector<32x1xi32>
    %95 = vector.broadcast %c255_i32 : i32 to vector<32x1xi32>
    %96 = arith.minsi %95, %94 : vector<32x1xi32>
    %97 = vector.shape_cast %96 : vector<32x1xi32> to vector<32x1xi32>
    %98 = vector.broadcast %97 : vector<32x1xi32> to vector<32x8xi32>
    %c0_i32_29 = arith.constant 0 : i32
    %99 = vector.broadcast %c0_i32_29 : i32 to vector<32x8xi32>
    %100 = arith.cmpi slt, %98, %99 : vector<32x8xi32>
    %c256_i32 = arith.constant 256 : i32
    %101 = vector.broadcast %c256_i32 : i32 to vector<32x8xi32>
    %102 = arith.addi %98, %101 : vector<32x8xi32>
    %103 = arith.select %100, %102, %98 : vector<32x8xi1>, vector<32x8xi32>
    %104 = vector.shape_cast %103 : vector<32x8xi32> to vector<32x8x1xi32>
    %105 = vector.shape_cast %104 : vector<32x8x1xi32> to vector<32x8xi32>
    %106 = tpu.dynamic_gather %6[%105] in [0] : vector<256x8xf32>, vector<32x8xi32> -> vector<32x8xf32>
    %107 = vector.broadcast %90 : vector<32x1xf32> to vector<32x8xf32>
    %108 = arith.mulf %107, %106 : vector<32x8xf32>
    %109 = arith.addf %71, %108 : vector<32x8xf32>
    %c1_i32 = arith.constant 1 : i32
    %110 = vector.broadcast %c1_i32 : i32 to vector<32x1xi32>
    %111 = arith.addi %54, %110 : vector<32x1xi32>
    %c0_i32_30 = arith.constant 0 : i32
    %112 = vector.broadcast %c0_i32_30 : i32 to vector<32x1xi32>
    %113 = arith.addi %55, %112 : vector<32x1xi32>
    %c0_i32_31 = arith.constant 0 : i32
    %114 = vector.broadcast %c0_i32_31 : i32 to vector<32x1xi32>
    %115 = arith.cmpi sge, %111, %114 : vector<32x1xi32>
    %c16_i32_32 = arith.constant 16 : i32
    %116 = vector.broadcast %c16_i32_32 : i32 to vector<32x1xi32>
    %117 = arith.cmpi slt, %111, %116 : vector<32x1xi32>
    %118 = arith.andi %115, %117 : vector<32x1xi1>
    %c0_i32_33 = arith.constant 0 : i32
    %119 = vector.broadcast %c0_i32_33 : i32 to vector<32x1xi32>
    %120 = arith.cmpi sge, %113, %119 : vector<32x1xi32>
    %121 = arith.andi %118, %120 : vector<32x1xi1>
    %c16_i32_34 = arith.constant 16 : i32
    %122 = vector.broadcast %c16_i32_34 : i32 to vector<32x1xi32>
    %123 = arith.cmpi slt, %113, %122 : vector<32x1xi32>
    %124 = arith.andi %121, %123 : vector<32x1xi1>
    %125 = arith.extui %124 : vector<32x1xi1> to vector<32x1xi32>
    %126 = arith.sitofp %125 : vector<32x1xi32> to vector<32x1xf32>
    %127 = arith.mulf %66, %126 : vector<32x1xf32>
    %128 = arith.mulf %127, %49 : vector<32x1xf32>
    %c1_i32_35 = arith.constant 1 : i32
    %129 = vector.broadcast %c1_i32_35 : i32 to vector<32x1xi32>
    %130 = arith.addi %58, %129 : vector<32x1xi32>
    %c0_i32_36 = arith.constant 0 : i32
    %c255_i32_37 = arith.constant 255 : i32
    %131 = vector.broadcast %c0_i32_36 : i32 to vector<32x1xi32>
    %132 = arith.maxsi %131, %130 : vector<32x1xi32>
    %133 = vector.broadcast %c255_i32_37 : i32 to vector<32x1xi32>
    %134 = arith.minsi %133, %132 : vector<32x1xi32>
    %135 = vector.shape_cast %134 : vector<32x1xi32> to vector<32x1xi32>
    %136 = vector.broadcast %135 : vector<32x1xi32> to vector<32x8xi32>
    %c0_i32_38 = arith.constant 0 : i32
    %137 = vector.broadcast %c0_i32_38 : i32 to vector<32x8xi32>
    %138 = arith.cmpi slt, %136, %137 : vector<32x8xi32>
    %c256_i32_39 = arith.constant 256 : i32
    %139 = vector.broadcast %c256_i32_39 : i32 to vector<32x8xi32>
    %140 = arith.addi %136, %139 : vector<32x8xi32>
    %141 = arith.select %138, %140, %136 : vector<32x8xi1>, vector<32x8xi32>
    %142 = vector.shape_cast %141 : vector<32x8xi32> to vector<32x8x1xi32>
    %143 = vector.shape_cast %142 : vector<32x8x1xi32> to vector<32x8xi32>
    %144 = tpu.dynamic_gather %6[%143] in [0] : vector<256x8xf32>, vector<32x8xi32> -> vector<32x8xf32>
    %145 = vector.broadcast %128 : vector<32x1xf32> to vector<32x8xf32>
    %146 = arith.mulf %145, %144 : vector<32x8xf32>
    %147 = arith.addf %109, %146 : vector<32x8xf32>
    %c0_i32_40 = arith.constant 0 : i32
    %148 = vector.broadcast %c0_i32_40 : i32 to vector<32x1xi32>
    %149 = arith.addi %54, %148 : vector<32x1xi32>
    %c1_i32_41 = arith.constant 1 : i32
    %150 = vector.broadcast %c1_i32_41 : i32 to vector<32x1xi32>
    %151 = arith.addi %55, %150 : vector<32x1xi32>
    %c0_i32_42 = arith.constant 0 : i32
    %152 = vector.broadcast %c0_i32_42 : i32 to vector<32x1xi32>
    %153 = arith.cmpi sge, %149, %152 : vector<32x1xi32>
    %c16_i32_43 = arith.constant 16 : i32
    %154 = vector.broadcast %c16_i32_43 : i32 to vector<32x1xi32>
    %155 = arith.cmpi slt, %149, %154 : vector<32x1xi32>
    %156 = arith.andi %153, %155 : vector<32x1xi1>
    %c0_i32_44 = arith.constant 0 : i32
    %157 = vector.broadcast %c0_i32_44 : i32 to vector<32x1xi32>
    %158 = arith.cmpi sge, %151, %157 : vector<32x1xi32>
    %159 = arith.andi %156, %158 : vector<32x1xi1>
    %c16_i32_45 = arith.constant 16 : i32
    %160 = vector.broadcast %c16_i32_45 : i32 to vector<32x1xi32>
    %161 = arith.cmpi slt, %151, %160 : vector<32x1xi32>
    %162 = arith.andi %159, %161 : vector<32x1xi1>
    %163 = arith.extui %162 : vector<32x1xi1> to vector<32x1xi32>
    %164 = arith.sitofp %163 : vector<32x1xi32> to vector<32x1xf32>
    %165 = arith.mulf %69, %164 : vector<32x1xf32>
    %166 = arith.mulf %165, %49 : vector<32x1xf32>
    %c16_i32_46 = arith.constant 16 : i32
    %167 = vector.broadcast %c16_i32_46 : i32 to vector<32x1xi32>
    %168 = arith.addi %58, %167 : vector<32x1xi32>
    %c0_i32_47 = arith.constant 0 : i32
    %c255_i32_48 = arith.constant 255 : i32
    %169 = vector.broadcast %c0_i32_47 : i32 to vector<32x1xi32>
    %170 = arith.maxsi %169, %168 : vector<32x1xi32>
    %171 = vector.broadcast %c255_i32_48 : i32 to vector<32x1xi32>
    %172 = arith.minsi %171, %170 : vector<32x1xi32>
    %173 = vector.shape_cast %172 : vector<32x1xi32> to vector<32x1xi32>
    %174 = vector.broadcast %173 : vector<32x1xi32> to vector<32x8xi32>
    %c0_i32_49 = arith.constant 0 : i32
    %175 = vector.broadcast %c0_i32_49 : i32 to vector<32x8xi32>
    %176 = arith.cmpi slt, %174, %175 : vector<32x8xi32>
    %c256_i32_50 = arith.constant 256 : i32
    %177 = vector.broadcast %c256_i32_50 : i32 to vector<32x8xi32>
    %178 = arith.addi %174, %177 : vector<32x8xi32>
    %179 = arith.select %176, %178, %174 : vector<32x8xi1>, vector<32x8xi32>
    %180 = vector.shape_cast %179 : vector<32x8xi32> to vector<32x8x1xi32>
    %181 = vector.shape_cast %180 : vector<32x8x1xi32> to vector<32x8xi32>
    %182 = tpu.dynamic_gather %6[%181] in [0] : vector<256x8xf32>, vector<32x8xi32> -> vector<32x8xf32>
    %183 = vector.broadcast %166 : vector<32x1xf32> to vector<32x8xf32>
    %184 = arith.mulf %183, %182 : vector<32x8xf32>
    %185 = arith.addf %147, %184 : vector<32x8xf32>
    %c1_i32_51 = arith.constant 1 : i32
    %186 = vector.broadcast %c1_i32_51 : i32 to vector<32x1xi32>
    %187 = arith.addi %54, %186 : vector<32x1xi32>
    %c1_i32_52 = arith.constant 1 : i32
    %188 = vector.broadcast %c1_i32_52 : i32 to vector<32x1xi32>
    %189 = arith.addi %55, %188 : vector<32x1xi32>
    %c0_i32_53 = arith.constant 0 : i32
    %190 = vector.broadcast %c0_i32_53 : i32 to vector<32x1xi32>
    %191 = arith.cmpi sge, %187, %190 : vector<32x1xi32>
    %c16_i32_54 = arith.constant 16 : i32
    %192 = vector.broadcast %c16_i32_54 : i32 to vector<32x1xi32>
    %193 = arith.cmpi slt, %187, %192 : vector<32x1xi32>
    %194 = arith.andi %191, %193 : vector<32x1xi1>
    %c0_i32_55 = arith.constant 0 : i32
    %195 = vector.broadcast %c0_i32_55 : i32 to vector<32x1xi32>
    %196 = arith.cmpi sge, %189, %195 : vector<32x1xi32>
    %197 = arith.andi %194, %196 : vector<32x1xi1>
    %c16_i32_56 = arith.constant 16 : i32
    %198 = vector.broadcast %c16_i32_56 : i32 to vector<32x1xi32>
    %199 = arith.cmpi slt, %189, %198 : vector<32x1xi32>
    %200 = arith.andi %197, %199 : vector<32x1xi1>
    %201 = arith.extui %200 : vector<32x1xi1> to vector<32x1xi32>
    %202 = arith.sitofp %201 : vector<32x1xi32> to vector<32x1xf32>
    %203 = arith.mulf %70, %202 : vector<32x1xf32>
    %204 = arith.mulf %203, %49 : vector<32x1xf32>
    %c17_i32 = arith.constant 17 : i32
    %205 = vector.broadcast %c17_i32 : i32 to vector<32x1xi32>
    %206 = arith.addi %58, %205 : vector<32x1xi32>
    %c0_i32_57 = arith.constant 0 : i32
    %c255_i32_58 = arith.constant 255 : i32
    %207 = vector.broadcast %c0_i32_57 : i32 to vector<32x1xi32>
    %208 = arith.maxsi %207, %206 : vector<32x1xi32>
    %209 = vector.broadcast %c255_i32_58 : i32 to vector<32x1xi32>
    %210 = arith.minsi %209, %208 : vector<32x1xi32>
    %211 = vector.shape_cast %210 : vector<32x1xi32> to vector<32x1xi32>
    %212 = vector.broadcast %211 : vector<32x1xi32> to vector<32x8xi32>
    %c0_i32_59 = arith.constant 0 : i32
    %213 = vector.broadcast %c0_i32_59 : i32 to vector<32x8xi32>
    %214 = arith.cmpi slt, %212, %213 : vector<32x8xi32>
    %c256_i32_60 = arith.constant 256 : i32
    %215 = vector.broadcast %c256_i32_60 : i32 to vector<32x8xi32>
    %216 = arith.addi %212, %215 : vector<32x8xi32>
    %217 = arith.select %214, %216, %212 : vector<32x8xi1>, vector<32x8xi32>
    %218 = vector.shape_cast %217 : vector<32x8xi32> to vector<32x8x1xi32>
    %219 = vector.shape_cast %218 : vector<32x8x1xi32> to vector<32x8xi32>
    %220 = tpu.dynamic_gather %6[%219] in [0] : vector<256x8xf32>, vector<32x8xi32> -> vector<32x8xf32>
    %221 = vector.broadcast %204 : vector<32x1xf32> to vector<32x8xf32>
    %222 = arith.mulf %221, %220 : vector<32x8xf32>
    %223 = arith.addf %185, %222 : vector<32x8xf32>
    %c0_61 = arith.constant 0 : index
    %c0_62 = arith.constant 0 : index
    %224 = vector.load %arg14[%c0_61, %c0_62] : memref<32x8xf32, #tpu.memory_space<vmem>>, vector<32x8xf32>
    %225 = arith.addf %224, %223 : vector<32x8xf32>
    %c0_63 = arith.constant 0 : index
    %c0_64 = arith.constant 0 : index
    %226 = vector.load %arg14[%c0_63, %c0_64] : memref<32x8xf32, #tpu.memory_space<vmem>>, vector<32x8xf32>
    tpu.vector_store %arg14[%c0_63, %c0_64], %225 {strides = array<i32>} : memref<32x8xf32, #tpu.memory_space<vmem>>, vector<32x8xf32>,
    %c0_65 = arith.constant 0 : index
    %c0_66 = arith.constant 0 : index
    %227 = vector.load %arg15[%c0_65, %c0_66] : memref<32x1xf32, #tpu.memory_space<vmem>>, vector<32x1xf32>
    %228 = arith.addf %227, %49 : vector<32x1xf32>
    %c0_67 = arith.constant 0 : index
    %c0_68 = arith.constant 0 : index
    %229 = vector.load %arg15[%c0_67, %c0_68] : memref<32x1xf32, #tpu.memory_space<vmem>>, vector<32x1xf32>
    tpu.vector_store %arg15[%c0_67, %c0_68], %228 {strides = array<i32>} : memref<32x1xf32, #tpu.memory_space<vmem>>, vector<32x1xf32>,
    %c0_69 = arith.constant 0 : index
    %c0_70 = arith.constant 0 : index
    %c0_71 = arith.constant 0 : index
    %230 = vector.load %arg11[%c0_69, %c0_70, %c0_71] : memref<1x64x8xf32, #tpu.memory_space<vmem>>, vector<1x64x8xf32>
    %231 = vector.shape_cast %230 : vector<1x64x8xf32> to vector<64x8xf32>
    %c0_72 = arith.constant 0 : index
    %c0_73 = arith.constant 0 : index
    %c1 = arith.constant 1 : index
    %c0_74 = arith.constant 0 : index
    %c0_75 = arith.constant 0 : index
    %232 = vector.load %arg5[%c0_72, %c0_73, %c1, %c0_74, %c0_75] : memref<1x1x2x4x4xf32, #tpu.memory_space<vmem>>, vector<1x1x1x4x4xf32>
    %233 = vector.shape_cast %232 : vector<1x1x1x4x4xf32> to vector<4x4xf32>
    %234 = vector.extract_strided_slice %4 {offsets = [0, 0], sizes = [32, 1], strides = [1, 1]} : vector<32x3xf32> to vector<32x1xf32>
    %235 = vector.extract_strided_slice %233 {offsets = [0, 0], sizes = [1, 4], strides = [1, 1]} : vector<4x4xf32> to vector<1x4xf32>
    %236 = vector.broadcast %234 : vector<32x1xf32> to vector<32x4xf32>
    %237 = vector.broadcast %235 : vector<1x4xf32> to vector<32x4xf32>
    %238 = arith.mulf %236, %237 : vector<32x4xf32>
    %239 = vector.extract_strided_slice %4 {offsets = [0, 1], sizes = [32, 1], strides = [1, 1]} : vector<32x3xf32> to vector<32x1xf32>
    %240 = vector.extract_strided_slice %233 {offsets = [1, 0], sizes = [1, 4], strides = [1, 1]} : vector<4x4xf32> to vector<1x4xf32>
    %241 = vector.broadcast %239 : vector<32x1xf32> to vector<32x4xf32>
    %242 = vector.broadcast %240 : vector<1x4xf32> to vector<32x4xf32>
    %243 = arith.mulf %241, %242 : vector<32x4xf32>
    %244 = arith.addf %238, %243 : vector<32x4xf32>
    %245 = vector.extract_strided_slice %4 {offsets = [0, 2], sizes = [32, 1], strides = [1, 1]} : vector<32x3xf32> to vector<32x1xf32>
    %246 = vector.extract_strided_slice %233 {offsets = [2, 0], sizes = [1, 4], strides = [1, 1]} : vector<4x4xf32> to vector<1x4xf32>
    %247 = vector.broadcast %245 : vector<32x1xf32> to vector<32x4xf32>
    %248 = vector.broadcast %246 : vector<1x4xf32> to vector<32x4xf32>
    %249 = arith.mulf %247, %248 : vector<32x4xf32>
    %250 = arith.addf %244, %249 : vector<32x4xf32>
    %251 = vector.extract_strided_slice %233 {offsets = [3, 0], sizes = [1, 4], strides = [1, 1]} : vector<4x4xf32> to vector<1x4xf32>
    %252 = vector.broadcast %251 : vector<1x4xf32> to vector<32x4xf32>
    %253 = arith.addf %250, %252 : vector<32x4xf32>
    %254 = vector.extract_strided_slice %253 {offsets = [0, 2], sizes = [32, 1], strides = [1, 1]} : vector<32x4xf32> to vector<32x1xf32>
    %cst_76 = arith.constant 5.000000e-02 : f32
    %255 = vector.broadcast %cst_76 : f32 to vector<32x1xf32>
    %256 = arith.maximumf %254, %255 : vector<32x1xf32>
    %257 = tpu.reciprocal %256 {approx = true} : vector<32x1xf32> -> vector<32x1xf32>
    %258 = vector.extract_strided_slice %253 {offsets = [0, 0], sizes = [32, 1], strides = [1, 1]} : vector<32x4xf32> to vector<32x1xf32>
    %259 = arith.mulf %258, %257 : vector<32x1xf32>
    %260 = vector.extract_strided_slice %253 {offsets = [0, 1], sizes = [32, 1], strides = [1, 1]} : vector<32x4xf32> to vector<32x1xf32>
    %261 = arith.mulf %260, %257 : vector<32x1xf32>
    %cst_77 = arith.constant 0.000000e+00 : f32
    %262 = vector.broadcast %cst_77 : f32 to vector<32x1xf32>
    %263 = arith.cmpf oge, %259, %262 : vector<32x1xf32>
    %cst_78 = arith.constant 8.000000e+00 : f32
    %264 = vector.broadcast %cst_78 : f32 to vector<32x1xf32>
    %265 = arith.cmpf olt, %259, %264 : vector<32x1xf32>
    %266 = arith.andi %263, %265 : vector<32x1xi1>
    %cst_79 = arith.constant 0.000000e+00 : f32
    %267 = vector.broadcast %cst_79 : f32 to vector<32x1xf32>
    %268 = arith.cmpf oge, %261, %267 : vector<32x1xf32>
    %269 = arith.andi %266, %268 : vector<32x1xi1>
    %cst_80 = arith.constant 8.000000e+00 : f32
    %270 = vector.broadcast %cst_80 : f32 to vector<32x1xf32>
    %271 = arith.cmpf olt, %261, %270 : vector<32x1xf32>
    %272 = arith.andi %269, %271 : vector<32x1xi1>
    %273 = arith.extui %272 : vector<32x1xi1> to vector<32x1xi32>
    %274 = arith.sitofp %273 : vector<32x1xi32> to vector<32x1xf32>
    %275 = math.floor %259 : vector<32x1xf32>
    %276 = math.floor %261 : vector<32x1xf32>
    %277 = arith.subf %259, %275 : vector<32x1xf32>
    %278 = arith.subf %261, %276 : vector<32x1xf32>
    %279 = arith.fptosi %275 : vector<32x1xf32> to vector<32x1xi32>
    %280 = arith.fptosi %276 : vector<32x1xf32> to vector<32x1xi32>
    %c8_i32 = arith.constant 8 : i32
    %281 = vector.broadcast %c8_i32 : i32 to vector<32x1xi32>
    %282 = arith.muli %280, %281 : vector<32x1xi32>
    %283 = arith.addi %282, %279 : vector<32x1xi32>
    %cst_81 = arith.constant 1.000000e+00 : f32
    %284 = vector.broadcast %cst_81 : f32 to vector<32x1xf32>
    %285 = arith.subf %284, %277 : vector<32x1xf32>
    %cst_82 = arith.constant 1.000000e+00 : f32
    %286 = vector.broadcast %cst_82 : f32 to vector<32x1xf32>
    %287 = arith.subf %286, %278 : vector<32x1xf32>
    %288 = arith.mulf %285, %287 : vector<32x1xf32>
    %cst_83 = arith.constant 1.000000e+00 : f32
    %289 = vector.broadcast %cst_83 : f32 to vector<32x1xf32>
    %290 = arith.subf %289, %278 : vector<32x1xf32>
    %291 = arith.mulf %277, %290 : vector<32x1xf32>
    %cst_84 = arith.constant 1.000000e+00 : f32
    %292 = vector.broadcast %cst_84 : f32 to vector<32x1xf32>
    %293 = arith.subf %292, %277 : vector<32x1xf32>
    %294 = arith.mulf %293, %278 : vector<32x1xf32>
    %295 = arith.mulf %277, %278 : vector<32x1xf32>
    %cst_85 = arith.constant 0.000000e+00 : f32
    %296 = vector.broadcast %cst_85 : f32 to vector<32x8xf32>
    %c0_i32_86 = arith.constant 0 : i32
    %297 = vector.broadcast %c0_i32_86 : i32 to vector<32x1xi32>
    %298 = arith.addi %279, %297 : vector<32x1xi32>
    %c0_i32_87 = arith.constant 0 : i32
    %299 = vector.broadcast %c0_i32_87 : i32 to vector<32x1xi32>
    %300 = arith.addi %280, %299 : vector<32x1xi32>
    %c0_i32_88 = arith.constant 0 : i32
    %301 = vector.broadcast %c0_i32_88 : i32 to vector<32x1xi32>
    %302 = arith.cmpi sge, %298, %301 : vector<32x1xi32>
    %c8_i32_89 = arith.constant 8 : i32
    %303 = vector.broadcast %c8_i32_89 : i32 to vector<32x1xi32>
    %304 = arith.cmpi slt, %298, %303 : vector<32x1xi32>
    %305 = arith.andi %302, %304 : vector<32x1xi1>
    %c0_i32_90 = arith.constant 0 : i32
    %306 = vector.broadcast %c0_i32_90 : i32 to vector<32x1xi32>
    %307 = arith.cmpi sge, %300, %306 : vector<32x1xi32>
    %308 = arith.andi %305, %307 : vector<32x1xi1>
    %c8_i32_91 = arith.constant 8 : i32
    %309 = vector.broadcast %c8_i32_91 : i32 to vector<32x1xi32>
    %310 = arith.cmpi slt, %300, %309 : vector<32x1xi32>
    %311 = arith.andi %308, %310 : vector<32x1xi1>
    %312 = arith.extui %311 : vector<32x1xi1> to vector<32x1xi32>
    %313 = arith.sitofp %312 : vector<32x1xi32> to vector<32x1xf32>
    %314 = arith.mulf %288, %313 : vector<32x1xf32>
    %315 = arith.mulf %314, %274 : vector<32x1xf32>
    %c0_i32_92 = arith.constant 0 : i32
    %316 = vector.broadcast %c0_i32_92 : i32 to vector<32x1xi32>
    %317 = arith.addi %283, %316 : vector<32x1xi32>
    %c0_i32_93 = arith.constant 0 : i32
    %c63_i32 = arith.constant 63 : i32
    %318 = vector.broadcast %c0_i32_93 : i32 to vector<32x1xi32>
    %319 = arith.maxsi %318, %317 : vector<32x1xi32>
    %320 = vector.broadcast %c63_i32 : i32 to vector<32x1xi32>
    %321 = arith.minsi %320, %319 : vector<32x1xi32>
    %322 = vector.shape_cast %321 : vector<32x1xi32> to vector<32x1xi32>
    %323 = vector.broadcast %322 : vector<32x1xi32> to vector<32x8xi32>
    %c0_i32_94 = arith.constant 0 : i32
    %324 = vector.broadcast %c0_i32_94 : i32 to vector<32x8xi32>
    %325 = arith.cmpi slt, %323, %324 : vector<32x8xi32>
    %c64_i32 = arith.constant 64 : i32
    %326 = vector.broadcast %c64_i32 : i32 to vector<32x8xi32>
    %327 = arith.addi %323, %326 : vector<32x8xi32>
    %328 = arith.select %325, %327, %323 : vector<32x8xi1>, vector<32x8xi32>
    %329 = vector.shape_cast %328 : vector<32x8xi32> to vector<32x8x1xi32>
    %330 = vector.shape_cast %329 : vector<32x8x1xi32> to vector<32x8xi32>
    %331 = tpu.dynamic_gather %231[%330] in [0] : vector<64x8xf32>, vector<32x8xi32> -> vector<32x8xf32>
    %332 = vector.broadcast %315 : vector<32x1xf32> to vector<32x8xf32>
    %333 = arith.mulf %332, %331 : vector<32x8xf32>
    %334 = arith.addf %296, %333 : vector<32x8xf32>
    %c1_i32_95 = arith.constant 1 : i32
    %335 = vector.broadcast %c1_i32_95 : i32 to vector<32x1xi32>
    %336 = arith.addi %279, %335 : vector<32x1xi32>
    %c0_i32_96 = arith.constant 0 : i32
    %337 = vector.broadcast %c0_i32_96 : i32 to vector<32x1xi32>
    %338 = arith.addi %280, %337 : vector<32x1xi32>
    %c0_i32_97 = arith.constant 0 : i32
    %339 = vector.broadcast %c0_i32_97 : i32 to vector<32x1xi32>
    %340 = arith.cmpi sge, %336, %339 : vector<32x1xi32>
    %c8_i32_98 = arith.constant 8 : i32
    %341 = vector.broadcast %c8_i32_98 : i32 to vector<32x1xi32>
    %342 = arith.cmpi slt, %336, %341 : vector<32x1xi32>
    %343 = arith.andi %340, %342 : vector<32x1xi1>
    %c0_i32_99 = arith.constant 0 : i32
    %344 = vector.broadcast %c0_i32_99 : i32 to vector<32x1xi32>
    %345 = arith.cmpi sge, %338, %344 : vector<32x1xi32>
    %346 = arith.andi %343, %345 : vector<32x1xi1>
    %c8_i32_100 = arith.constant 8 : i32
    %347 = vector.broadcast %c8_i32_100 : i32 to vector<32x1xi32>
    %348 = arith.cmpi slt, %338, %347 : vector<32x1xi32>
    %349 = arith.andi %346, %348 : vector<32x1xi1>
    %350 = arith.extui %349 : vector<32x1xi1> to vector<32x1xi32>
    %351 = arith.sitofp %350 : vector<32x1xi32> to vector<32x1xf32>
    %352 = arith.mulf %291, %351 : vector<32x1xf32>
    %353 = arith.mulf %352, %274 : vector<32x1xf32>
    %c1_i32_101 = arith.constant 1 : i32
    %354 = vector.broadcast %c1_i32_101 : i32 to vector<32x1xi32>
    %355 = arith.addi %283, %354 : vector<32x1xi32>
    %c0_i32_102 = arith.constant 0 : i32
    %c63_i32_103 = arith.constant 63 : i32
    %356 = vector.broadcast %c0_i32_102 : i32 to vector<32x1xi32>
    %357 = arith.maxsi %356, %355 : vector<32x1xi32>
    %358 = vector.broadcast %c63_i32_103 : i32 to vector<32x1xi32>
    %359 = arith.minsi %358, %357 : vector<32x1xi32>
    %360 = vector.shape_cast %359 : vector<32x1xi32> to vector<32x1xi32>
    %361 = vector.broadcast %360 : vector<32x1xi32> to vector<32x8xi32>
    %c0_i32_104 = arith.constant 0 : i32
    %362 = vector.broadcast %c0_i32_104 : i32 to vector<32x8xi32>
    %363 = arith.cmpi slt, %361, %362 : vector<32x8xi32>
    %c64_i32_105 = arith.constant 64 : i32
    %364 = vector.broadcast %c64_i32_105 : i32 to vector<32x8xi32>
    %365 = arith.addi %361, %364 : vector<32x8xi32>
    %366 = arith.select %363, %365, %361 : vector<32x8xi1>, vector<32x8xi32>
    %367 = vector.shape_cast %366 : vector<32x8xi32> to vector<32x8x1xi32>
    %368 = vector.shape_cast %367 : vector<32x8x1xi32> to vector<32x8xi32>
    %369 = tpu.dynamic_gather %231[%368] in [0] : vector<64x8xf32>, vector<32x8xi32> -> vector<32x8xf32>
    %370 = vector.broadcast %353 : vector<32x1xf32> to vector<32x8xf32>
    %371 = arith.mulf %370, %369 : vector<32x8xf32>
    %372 = arith.addf %334, %371 : vector<32x8xf32>
    %c0_i32_106 = arith.constant 0 : i32
    %373 = vector.broadcast %c0_i32_106 : i32 to vector<32x1xi32>
    %374 = arith.addi %279, %373 : vector<32x1xi32>
    %c1_i32_107 = arith.constant 1 : i32
    %375 = vector.broadcast %c1_i32_107 : i32 to vector<32x1xi32>
    %376 = arith.addi %280, %375 : vector<32x1xi32>
    %c0_i32_108 = arith.constant 0 : i32
    %377 = vector.broadcast %c0_i32_108 : i32 to vector<32x1xi32>
    %378 = arith.cmpi sge, %374, %377 : vector<32x1xi32>
    %c8_i32_109 = arith.constant 8 : i32
    %379 = vector.broadcast %c8_i32_109 : i32 to vector<32x1xi32>
    %380 = arith.cmpi slt, %374, %379 : vector<32x1xi32>
    %381 = arith.andi %378, %380 : vector<32x1xi1>
    %c0_i32_110 = arith.constant 0 : i32
    %382 = vector.broadcast %c0_i32_110 : i32 to vector<32x1xi32>
    %383 = arith.cmpi sge, %376, %382 : vector<32x1xi32>
    %384 = arith.andi %381, %383 : vector<32x1xi1>
    %c8_i32_111 = arith.constant 8 : i32
    %385 = vector.broadcast %c8_i32_111 : i32 to vector<32x1xi32>
    %386 = arith.cmpi slt, %376, %385 : vector<32x1xi32>
    %387 = arith.andi %384, %386 : vector<32x1xi1>
    %388 = arith.extui %387 : vector<32x1xi1> to vector<32x1xi32>
    %389 = arith.sitofp %388 : vector<32x1xi32> to vector<32x1xf32>
    %390 = arith.mulf %294, %389 : vector<32x1xf32>
    %391 = arith.mulf %390, %274 : vector<32x1xf32>
    %c8_i32_112 = arith.constant 8 : i32
    %392 = vector.broadcast %c8_i32_112 : i32 to vector<32x1xi32>
    %393 = arith.addi %283, %392 : vector<32x1xi32>
    %c0_i32_113 = arith.constant 0 : i32
    %c63_i32_114 = arith.constant 63 : i32
    %394 = vector.broadcast %c0_i32_113 : i32 to vector<32x1xi32>
    %395 = arith.maxsi %394, %393 : vector<32x1xi32>
    %396 = vector.broadcast %c63_i32_114 : i32 to vector<32x1xi32>
    %397 = arith.minsi %396, %395 : vector<32x1xi32>
    %398 = vector.shape_cast %397 : vector<32x1xi32> to vector<32x1xi32>
    %399 = vector.broadcast %398 : vector<32x1xi32> to vector<32x8xi32>
    %c0_i32_115 = arith.constant 0 : i32
    %400 = vector.broadcast %c0_i32_115 : i32 to vector<32x8xi32>
    %401 = arith.cmpi slt, %399, %400 : vector<32x8xi32>
    %c64_i32_116 = arith.constant 64 : i32
    %402 = vector.broadcast %c64_i32_116 : i32 to vector<32x8xi32>
    %403 = arith.addi %399, %402 : vector<32x8xi32>
    %404 = arith.select %401, %403, %399 : vector<32x8xi1>, vector<32x8xi32>
    %405 = vector.shape_cast %404 : vector<32x8xi32> to vector<32x8x1xi32>
    %406 = vector.shape_cast %405 : vector<32x8x1xi32> to vector<32x8xi32>
    %407 = tpu.dynamic_gather %231[%406] in [0] : vector<64x8xf32>, vector<32x8xi32> -> vector<32x8xf32>
    %408 = vector.broadcast %391 : vector<32x1xf32> to vector<32x8xf32>
    %409 = arith.mulf %408, %407 : vector<32x8xf32>
    %410 = arith.addf %372, %409 : vector<32x8xf32>
    %c1_i32_117 = arith.constant 1 : i32
    %411 = vector.broadcast %c1_i32_117 : i32 to vector<32x1xi32>
    %412 = arith.addi %279, %411 : vector<32x1xi32>
    %c1_i32_118 = arith.constant 1 : i32
    %413 = vector.broadcast %c1_i32_118 : i32 to vector<32x1xi32>
    %414 = arith.addi %280, %413 : vector<32x1xi32>
    %c0_i32_119 = arith.constant 0 : i32
    %415 = vector.broadcast %c0_i32_119 : i32 to vector<32x1xi32>
    %416 = arith.cmpi sge, %412, %415 : vector<32x1xi32>
    %c8_i32_120 = arith.constant 8 : i32
    %417 = vector.broadcast %c8_i32_120 : i32 to vector<32x1xi32>
    %418 = arith.cmpi slt, %412, %417 : vector<32x1xi32>
    %419 = arith.andi %416, %418 : vector<32x1xi1>
    %c0_i32_121 = arith.constant 0 : i32
    %420 = vector.broadcast %c0_i32_121 : i32 to vector<32x1xi32>
    %421 = arith.cmpi sge, %414, %420 : vector<32x1xi32>
    %422 = arith.andi %419, %421 : vector<32x1xi1>
    %c8_i32_122 = arith.constant 8 : i32
    %423 = vector.broadcast %c8_i32_122 : i32 to vector<32x1xi32>
    %424 = arith.cmpi slt, %414, %423 : vector<32x1xi32>
    %425 = arith.andi %422, %424 : vector<32x1xi1>
    %426 = arith.extui %425 : vector<32x1xi1> to vector<32x1xi32>
    %427 = arith.sitofp %426 : vector<32x1xi32> to vector<32x1xf32>
    %428 = arith.mulf %295, %427 : vector<32x1xf32>
    %429 = arith.mulf %428, %274 : vector<32x1xf32>
    %c9_i32 = arith.constant 9 : i32
    %430 = vector.broadcast %c9_i32 : i32 to vector<32x1xi32>
    %431 = arith.addi %283, %430 : vector<32x1xi32>
    %c0_i32_123 = arith.constant 0 : i32
    %c63_i32_124 = arith.constant 63 : i32
    %432 = vector.broadcast %c0_i32_123 : i32 to vector<32x1xi32>
    %433 = arith.maxsi %432, %431 : vector<32x1xi32>
    %434 = vector.broadcast %c63_i32_124 : i32 to vector<32x1xi32>
    %435 = arith.minsi %434, %433 : vector<32x1xi32>
    %436 = vector.shape_cast %435 : vector<32x1xi32> to vector<32x1xi32>
    %437 = vector.broadcast %436 : vector<32x1xi32> to vector<32x8xi32>
    %c0_i32_125 = arith.constant 0 : i32
    %438 = vector.broadcast %c0_i32_125 : i32 to vector<32x8xi32>
    %439 = arith.cmpi slt, %437, %438 : vector<32x8xi32>
    %c64_i32_126 = arith.constant 64 : i32
    %440 = vector.broadcast %c64_i32_126 : i32 to vector<32x8xi32>
    %441 = arith.addi %437, %440 : vector<32x8xi32>
    %442 = arith.select %439, %441, %437 : vector<32x8xi1>, vector<32x8xi32>
    %443 = vector.shape_cast %442 : vector<32x8xi32> to vector<32x8x1xi32>
    %444 = vector.shape_cast %443 : vector<32x8x1xi32> to vector<32x8xi32>
    %445 = tpu.dynamic_gather %231[%444] in [0] : vector<64x8xf32>, vector<32x8xi32> -> vector<32x8xf32>
    %446 = vector.broadcast %429 : vector<32x1xf32> to vector<32x8xf32>
    %447 = arith.mulf %446, %445 : vector<32x8xf32>
    %448 = arith.addf %410, %447 : vector<32x8xf32>
    %c0_127 = arith.constant 0 : index
    %c0_128 = arith.constant 0 : index
    %449 = vector.load %arg14[%c0_127, %c0_128] : memref<32x8xf32, #tpu.memory_space<vmem>>, vector<32x8xf32>
    %450 = arith.addf %449, %448 : vector<32x8xf32>
    %c0_129 = arith.constant 0 : index
    %c0_130 = arith.constant 0 : index
    %451 = vector.load %arg14[%c0_129, %c0_130] : memref<32x8xf32, #tpu.memory_space<vmem>>, vector<32x8xf32>
    tpu.vector_store %arg14[%c0_129, %c0_130], %450 {strides = array<i32>} : memref<32x8xf32, #tpu.memory_space<vmem>>, vector<32x8xf32>,
    %c0_131 = arith.constant 0 : index
    %c0_132 = arith.constant 0 : index
    %452 = vector.load %arg15[%c0_131, %c0_132] : memref<32x1xf32, #tpu.memory_space<vmem>>, vector<32x1xf32>
    %453 = arith.addf %452, %274 : vector<32x1xf32>
    %c0_133 = arith.constant 0 : index
    %c0_134 = arith.constant 0 : index
    %454 = vector.load %arg15[%c0_133, %c0_134] : memref<32x1xf32, #tpu.memory_space<vmem>>, vector<32x1xf32>
    tpu.vector_store %arg15[%c0_133, %c0_134], %453 {strides = array<i32>} : memref<32x1xf32, #tpu.memory_space<vmem>>, vector<32x1xf32>,
    %c1_i32_135 = arith.constant 1 : i32
    %455 = arith.cmpi eq, %arg2, %c1_i32_135 : i32
    %456 = arith.extui %455 : i1 to i32
    %c0_i32_136 = arith.constant 0 : i32
    %457 = arith.cmpi ne, %456, %c0_i32_136 : i32
    scf.if %457 {
      %c0_137 = arith.constant 0 : index
      %c0_138 = arith.constant 0 : index
      %458 = vector.load %arg14[%c0_137, %c0_138] : memref<32x8xf32, #tpu.memory_space<vmem>>, vector<32x8xf32>
      %c0_139 = arith.constant 0 : index
      %c0_140 = arith.constant 0 : index
      %459 = vector.load %arg15[%c0_139, %c0_140] : memref<32x1xf32, #tpu.memory_space<vmem>>, vector<32x1xf32>
      %cst_141 = arith.constant 9.99999997E-7 : f32
      %460 = vector.broadcast %cst_141 : f32 to vector<32x1xf32>
      %461 = arith.addf %459, %460 : vector<32x1xf32>
      %462 = tpu.reciprocal %461 {approx = true} : vector<32x1xf32> -> vector<32x1xf32>
      %463 = vector.broadcast %462 : vector<32x1xf32> to vector<32x8xf32>
      %464 = arith.mulf %458, %463 : vector<32x8xf32>
      %c0_142 = arith.constant 0 : index
      %c0_143 = arith.constant 0 : index
      %465 = vector.load %arg8[%c0_142, %c0_143] : memref<8x128xf32, #tpu.memory_space<vmem>>, vector<8x128xf32>
      %cst_144 = arith.constant dense<0.000000e+00> : vector<32x128xf32>
      %466 = tpu.matmul %464, %465, %cst_144 {dimension_numbers = #tpu.dot_dimension_numbers<[1], [0], [0], [1], [0, 0, 1, 1], [], []>} : vector<32x8xf32>, vector<8x128xf32>, vector<32x128xf32> -> vector<32x128xf32>
      %c0_145 = arith.constant 0 : index
      %c0_146 = arith.constant 0 : index
      %467 = vector.load %arg9[%c0_145, %c0_146] : memref<1x128xf32, #tpu.memory_space<vmem>>, vector<1x128xf32>
      %468 = vector.broadcast %467 : vector<1x128xf32> to vector<32x128xf32>
      %469 = arith.addf %466, %468 : vector<32x128xf32>
      %c0_147 = arith.constant 0 : index
      %c0_148 = arith.constant 0 : index
      %c0_149 = arith.constant 0 : index
      %470 = vector.load %arg4[%c0_147, %c0_148, %c0_149] : memref<1x32x128xf32, #tpu.memory_space<vmem>>, vector<1x32x128xf32>
      %471 = vector.shape_cast %470 : vector<1x32x128xf32> to vector<32x128xf32>
      %472 = arith.addf %471, %0 : vector<32x128xf32>
      %473 = arith.addf %472, %469 : vector<32x128xf32>
      %c0_150 = arith.constant 0 : index
      %c0_151 = arith.constant 0 : index
      %c0_152 = arith.constant 0 : index
      %474 = vector.load %arg12[%c0_150, %c0_151, %c0_152] : memref<1x32x128xf32, #tpu.memory_space<vmem>>, vector<1x32x128xf32>
      %475 = vector.shape_cast %474 : vector<1x32x128xf32> to vector<32x128xf32>
      %476 = vector.shape_cast %473 : vector<32x128xf32> to vector<1x32x128xf32>
      tpu.vector_store %arg12[%c0_150, %c0_151, %c0_152], %476 {strides = array<i32>} : memref<1x32x128xf32, #tpu.memory_space<vmem>>, vector<1x32x128xf32>,
    } else {
    }
    return
  }
  func.func @transform_0(%arg0: i32, %arg1: i32, %arg2: i32) -> (i32, i32) {
    %c0_i32 = arith.constant 0 : i32
    %c0_i32_0 = arith.constant 0 : i32
    return %arg1, %c0_i32 : i32, i32
  }
  func.func @transform_1(%arg0: i32, %arg1: i32, %arg2: i32) -> (i32, i32, i32) {
    %c0_i32 = arith.constant 0 : i32
    %c0_i32_0 = arith.constant 0 : i32
    return %arg0, %arg1, %c0_i32 : i32, i32, i32
  }
  func.func @transform_2(%arg0: i32, %arg1: i32, %arg2: i32) -> (i32, i32, i32, i32, i32) {
    %c0_i32 = arith.constant 0 : i32
    %c0_i32_0 = arith.constant 0 : i32
    %c0_i32_1 = arith.constant 0 : i32
    %c0_i32_2 = arith.constant 0 : i32
    return %arg0, %arg2, %c0_i32, %c0_i32_0, %c0_i32_1 : i32, i32, i32, i32, i32
  }
  func.func @transform_3(%arg0: i32, %arg1: i32, %arg2: i32) -> (i32, i32) {
    %c0_i32 = arith.constant 0 : i32
    %c0_i32_0 = arith.constant 0 : i32
    %c0_i32_1 = arith.constant 0 : i32
    return %c0_i32, %c0_i32_0 : i32, i32
  }
  func.func @transform_4(%arg0: i32, %arg1: i32, %arg2: i32) -> (i32, i32) {
    %c0_i32 = arith.constant 0 : i32
    %c0_i32_0 = arith.constant 0 : i32
    %c0_i32_1 = arith.constant 0 : i32
    return %c0_i32, %c0_i32_0 : i32, i32
  }
  func.func @transform_5(%arg0: i32, %arg1: i32, %arg2: i32) -> (i32, i32) {
    %c0_i32 = arith.constant 0 : i32
    %c0_i32_0 = arith.constant 0 : i32
    %c0_i32_1 = arith.constant 0 : i32
    return %c0_i32, %c0_i32_0 : i32, i32
  }
  func.func @transform_6(%arg0: i32, %arg1: i32, %arg2: i32) -> (i32, i32) {
    %c0_i32 = arith.constant 0 : i32
    %c0_i32_0 = arith.constant 0 : i32
    %c0_i32_1 = arith.constant 0 : i32
    return %c0_i32, %c0_i32_0 : i32, i32
  }
  func.func @transform_7(%arg0: i32, %arg1: i32, %arg2: i32) -> (i32, i32, i32) {
    %c2_i32 = arith.constant 2 : i32
    %0 = arith.muli %arg0, %c2_i32 : i32
    %1 = arith.addi %0, %arg2 : i32
    %c0_i32 = arith.constant 0 : i32
    %c0_i32_0 = arith.constant 0 : i32
    %c0_i32_1 = arith.constant 0 : i32
    return %1, %c0_i32, %c0_i32_0 : i32, i32, i32
  }
  func.func @transform_8(%arg0: i32, %arg1: i32, %arg2: i32) -> (i32, i32, i32) {
    %c2_i32 = arith.constant 2 : i32
    %0 = arith.muli %arg0, %c2_i32 : i32
    %1 = arith.addi %0, %arg2 : i32
    %c0_i32 = arith.constant 0 : i32
    %c0_i32_0 = arith.constant 0 : i32
    %c0_i32_1 = arith.constant 0 : i32
    return %1, %c0_i32, %c0_i32_0 : i32, i32, i32
  }
  func.func @transform_9(%arg0: i32, %arg1: i32, %arg2: i32) -> (i32, i32, i32) {
    %c0_i32 = arith.constant 0 : i32
    %c0_i32_0 = arith.constant 0 : i32
    return %arg0, %arg1, %c0_i32 : i32, i32, i32
  }
  func.func @transform_10(%arg0: i32, %arg1: i32, %arg2: i32) -> (i32, i32, i32) {
    %c0_i32 = arith.constant 0 : i32
    %c0_i32_0 = arith.constant 0 : i32
    return %arg0, %arg1, %c0_i32 : i32, i32, i32
  }
}

module attributes {stable_mosaic.version = 11 : i64} {
  func.func @kernel(%arg0: i32, %arg1: i32, %arg2: i32, %arg3: memref<32x128xf32, #tpu.memory_space<vmem>>, %arg4: memref<1x32x128xf32, #tpu.memory_space<vmem>>, %arg5: memref<1x1x2x4x4xf32, #tpu.memory_space<vmem>>, %arg6: memref<128x128xf32, #tpu.memory_space<vmem>>, %arg7: memref<1x128xf32, #tpu.memory_space<vmem>>, %arg8: memref<8x128xf32, #tpu.memory_space<vmem>>, %arg9: memref<1x128xf32, #tpu.memory_space<vmem>>, %arg10: memref<1x256x8xf32, #tpu.memory_space<vmem>>, %arg11: memref<1x64x8xf32, #tpu.memory_space<vmem>>, %arg12: memref<1x32x128xf32, #tpu.memory_space<vmem>>, %arg13: memref<1x32x128xf32, #tpu.memory_space<vmem>>, %arg14: memref<32x8xf32, #tpu.memory_space<vmem>>, %arg15: memref<32x1xf32, #tpu.memory_space<vmem>>, %arg16: memref<32x3xf32, #tpu.memory_space<vmem>>) attributes {dimension_semantics = [#tpu.dimension_semantics<parallel>, #tpu.dimension_semantics<parallel>, #tpu.dimension_semantics<arbitrary>], iteration_bounds = array<i64: 2, 2, 2>, scalar_prefetch = 0 : i64, scratch_operands = 3 : i64, tpu.core_type = #tpu.core_type<tc>, window_params = [{transform_indices = @transform_0, window_bounds = array<i64: 32, 128>}, {transform_indices = @transform_1, window_bounds = array<i64: 1, 32, 128>}, {transform_indices = @transform_2, window_bounds = array<i64: 1, 1, 2, 4, 4>}, {pipeline_mode = #tpu.pipeline_mode<synchronous>, transform_indices = @transform_3, window_bounds = array<i64: 128, 128>}, {pipeline_mode = #tpu.pipeline_mode<synchronous>, transform_indices = @transform_4, window_bounds = array<i64: 1, 128>}, {pipeline_mode = #tpu.pipeline_mode<synchronous>, transform_indices = @transform_5, window_bounds = array<i64: 8, 128>}, {pipeline_mode = #tpu.pipeline_mode<synchronous>, transform_indices = @transform_6, window_bounds = array<i64: 1, 128>}, {transform_indices = @transform_7, window_bounds = array<i64: 1, 256, 8>}, {transform_indices = @transform_8, window_bounds = array<i64: 1, 64, 8>}, {transform_indices = @transform_9, window_bounds = array<i64: 1, 32, 128>}, {transform_indices = @transform_10, window_bounds = array<i64: 1, 32, 128>}]} {
    %c0 = arith.constant 0 : index
    %c0_0 = arith.constant 0 : index
    %0 = vector.load %arg3[%c0, %c0_0] : memref<32x128xf32, #tpu.memory_space<vmem>>, vector<32x128xf32>
    %c0_i32 = arith.constant 0 : i32
    %1 = arith.cmpi eq, %arg2, %c0_i32 : i32
    %2 = arith.extui %1 : i1 to i32
    %c0_i32_1 = arith.constant 0 : i32
    %3 = arith.cmpi ne, %2, %c0_i32_1 : i32
    scf.if %3 {
      %c0_137 = arith.constant 0 : index
      %c0_138 = arith.constant 0 : index
      %458 = vector.load %arg6[%c0_137, %c0_138] : memref<128x128xf32, #tpu.memory_space<vmem>>, vector<128x128xf32>
      %cst_139 = arith.constant dense<0.000000e+00> : vector<32x128xf32>
      %459 = tpu.matmul %0, %458, %cst_139 {dimension_numbers = #tpu.dot_dimension_numbers<[1], [0], [0], [1], [0, 0, 1, 1], [], []>} : vector<32x128xf32>, vector<128x128xf32>, vector<32x128xf32> -> vector<32x128xf32>
      %c0_140 = arith.constant 0 : index
      %c0_141 = arith.constant 0 : index
      %460 = vector.load %arg7[%c0_140, %c0_141] : memref<1x128xf32, #tpu.memory_space<vmem>>, vector<1x128xf32>
      %461 = vector.broadcast %460 : vector<1x128xf32> to vector<32x128xf32>
      %462 = arith.addf %459, %461 : vector<32x128xf32>
      %c0_142 = arith.constant 0 : index
      %c0_143 = arith.constant 0 : index
      %c0_144 = arith.constant 0 : index
      %463 = vector.load %arg13[%c0_142, %c0_143, %c0_144] : memref<1x32x128xf32, #tpu.memory_space<vmem>>, vector<1x32x128xf32>
      %464 = vector.shape_cast %463 : vector<1x32x128xf32> to vector<32x128xf32>
      %465 = vector.shape_cast %462 : vector<32x128xf32> to vector<1x32x128xf32>
      tpu.vector_store %arg13[%c0_142, %c0_143, %c0_144], %465 {strides = array<i32>} : memref<1x32x128xf32, #tpu.memory_space<vmem>>, vector<1x32x128xf32>,
      %466 = vector.extract_strided_slice %462 {offsets = [0, 0], sizes = [32, 3], strides = [1, 1]} : vector<32x128xf32> to vector<32x3xf32>
      %cst_145 = arith.constant 0.000000e+00 : f32
      %467 = vector.broadcast %cst_145 : f32 to vector<32x3xf32>
      %468 = arith.subf %467, %466 : vector<32x3xf32>
      %469 = math.exp %468 : vector<32x3xf32>
      %cst_146 = arith.constant 1.000000e+00 : f32
      %470 = vector.broadcast %cst_146 : f32 to vector<32x3xf32>
      %471 = arith.addf %470, %469 : vector<32x3xf32>
      %472 = tpu.reciprocal %471 {approx = true} : vector<32x3xf32> -> vector<32x3xf32>
      %c0_147 = arith.constant 0 : index
      %c0_148 = arith.constant 0 : index
      %473 = vector.load %arg16[%c0_147, %c0_148] : memref<32x3xf32, #tpu.memory_space<vmem>>, vector<32x3xf32>
      tpu.vector_store %arg16[%c0_147, %c0_148], %472 {strides = array<i32>} : memref<32x3xf32, #tpu.memory_space<vmem>>, vector<32x3xf32>,
      %cst_149 = arith.constant 0.000000e+00 : f32
      %474 = vector.broadcast %cst_149 : f32 to vector<32x8xf32>
      %c0_150 = arith.constant 0 : index
      %c0_151 = arith.constant 0 : index
      %475 = vector.load %arg14[%c0_150, %c0_151] : memref<32x8xf32, #tpu.memory_space<vmem>>, vector<32x8xf32>
      tpu.vector_store %arg14[%c0_150, %c0_151], %474 {strides = array<i32>} : memref<32x8xf32, #tpu.memory_space<vmem>>, vector<32x8xf32>,
      %cst_152 = arith.constant 0.000000e+00 : f32
      %476 = vector.broadcast %cst_152 : f32 to vector<32x1xf32>
      %c0_153 = arith.constant 0 : index
      %c0_154 = arith.constant 0 : index
      %477 = vector.load %arg15[%c0_153, %c0_154] : memref<32x1xf32, #tpu.memory_space<vmem>>, vector<32x1xf32>
      tpu.vector_store %arg15[%c0_153, %c0_154], %476 {strides = array<i32>} : memref<32x1xf32, #tpu.memory_space<vmem>>, vector<32x1xf32>,
    } else {
    }
    %c0_2 = arith.constant 0 : index
    %c0_3 = arith.constant 0 : index
    %4 = vector.load %arg16[%c0_2, %c0_3] : memref<32x3xf32, #tpu.memory_space<vmem>>, vector<32x3xf32>
    %c0_4 = arith.constant 0 : index
    %c0_5 = arith.constant 0 : index
    %c0_6 = arith.constant 0 : index
    %5 = vector.load %arg10[%c0_4, %c0_5, %c0_6] : memref<1x256x8xf32, #tpu.memory_space<vmem>>, vector<1x256x8xf32>
    %6 = vector.shape_cast %5 : vector<1x256x8xf32> to vector<256x8xf32>
    %c0_7 = arith.constant 0 : index
    %c0_8 = arith.constant 0 : index
    %c0_9 = arith.constant 0 : index
    %c0_10 = arith.constant 0 : index
    %c0_11 = arith.constant 0 : index
    %7 = vector.load %arg5[%c0_7, %c0_8, %c0_9, %c0_10, %c0_11] : memref<1x1x2x4x4xf32, #tpu.memory_space<vmem>>, vector<1x1x1x4x4xf32>
    %8 = vector.shape_cast %7 : vector<1x1x1x4x4xf32> to vector<4x4xf32>
    %9 = vector.extract_strided_slice %4 {offsets = [0, 0], sizes = [32, 1], strides = [1, 1]} : vector<32x3xf32> to vector<32x1xf32>
    %10 = vector.extract_strided_slice %8 {offsets = [0, 0], sizes = [1, 4], strides = [1, 1]} : vector<4x4xf32> to vector<1x4xf32>
    %11 = vector.broadcast %9 : vector<32x1xf32> to vector<32x4xf32>
    %12 = vector.broadcast %10 : vector<1x4xf32> to vector<32x4xf32>
    %13 = arith.mulf %11, %12 : vector<32x4xf32>
    %14 = vector.extract_strided_slice %4 {offsets = [0, 1], sizes = [32, 1], strides = [1, 1]} : vector<32x3xf32> to vector<32x1xf32>
    %15 = vector.extract_strided_slice %8 {offsets = [1, 0], sizes = [1, 4], strides = [1, 1]} : vector<4x4xf32> to vector<1x4xf32>
    %16 = vector.broadcast %14 : vector<32x1xf32> to vector<32x4xf32>
    %17 = vector.broadcast %15 : vector<1x4xf32> to vector<32x4xf32>
    %18 = arith.mulf %16, %17 : vector<32x4xf32>
    %19 = arith.addf %13, %18 : vector<32x4xf32>
    %20 = vector.extract_strided_slice %4 {offsets = [0, 2], sizes = [32, 1], strides = [1, 1]} : vector<32x3xf32> to vector<32x1xf32>
    %21 = vector.extract_strided_slice %8 {offsets = [2, 0], sizes = [1, 4], strides = [1, 1]} : vector<4x4xf32> to vector<1x4xf32>
    %22 = vector.broadcast %20 : vector<32x1xf32> to vector<32x4xf32>
    %23 = vector.broadcast %21 : vector<1x4xf32> to vector<32x4xf32>
    %24 = arith.mulf %22, %23 : vector<32x4xf32>
    %25 = arith.addf %19, %24 : vector<32x4xf32>
    %26 = vector.extract_strided_slice %8 {offsets = [3, 0], sizes = [1, 4], strides = [1, 1]} : vector<4x4xf32> to vector<1x4xf32>
    %27 = vector.broadcast %26 : vector<1x4xf32> to vector<32x4xf32>
    %28 = arith.addf %25, %27 : vector<32x4xf32>
    %29 = vector.extract_strided_slice %28 {offsets = [0, 2], sizes = [32, 1], strides = [1, 1]} : vector<32x4xf32> to vector<32x1xf32>
    %cst = arith.constant 5.000000e-02 : f32
    %30 = vector.broadcast %cst : f32 to vector<32x1xf32>
    %31 = arith.maximumf %29, %30 : vector<32x1xf32>
    %32 = tpu.reciprocal %31 {approx = true} : vector<32x1xf32> -> vector<32x1xf32>
    %33 = vector.extract_strided_slice %28 {offsets = [0, 0], sizes = [32, 1], strides = [1, 1]} : vector<32x4xf32> to vector<32x1xf32>
    %34 = arith.mulf %33, %32 : vector<32x1xf32>
    %35 = vector.extract_strided_slice %28 {offsets = [0, 1], sizes = [32, 1], strides = [1, 1]} : vector<32x4xf32> to vector<32x1xf32>
    %36 = arith.mulf %35, %32 : vector<32x1xf32>
    %cst_12 = arith.constant 0.000000e+00 : f32
    %37 = vector.broadcast %cst_12 : f32 to vector<32x1xf32>
    %38 = arith.cmpf oge, %34, %37 : vector<32x1xf32>
    %cst_13 = arith.constant 1.600000e+01 : f32
    %39 = vector.broadcast %cst_13 : f32 to vector<32x1xf32>
    %40 = arith.cmpf olt, %34, %39 : vector<32x1xf32>
    %41 = arith.andi %38, %40 : vector<32x1xi1>
    %cst_14 = arith.constant 0.000000e+00 : f32
    %42 = vector.broadcast %cst_14 : f32 to vector<32x1xf32>
    %43 = arith.cmpf oge, %36, %42 : vector<32x1xf32>
    %44 = arith.andi %41, %43 : vector<32x1xi1>
    %cst_15 = arith.constant 1.600000e+01 : f32
    %45 = vector.broadcast %cst_15 : f32 to vector<32x1xf32>
    %46 = arith.cmpf olt, %36, %45 : vector<32x1xf32>
    %47 = arith.andi %44, %46 : vector<32x1xi1>
    %48 = arith.extui %47 : vector<32x1xi1> to vector<32x1xi32>
    %49 = arith.sitofp %48 : vector<32x1xi32> to vector<32x1xf32>
    %50 = math.floor %34 : vector<32x1xf32>
    %51 = math.floor %36 : vector<32x1xf32>
    %52 = arith.subf %34, %50 : vector<32x1xf32>
    %53 = arith.subf %36, %51 : vector<32x1xf32>
    %54 = arith.fptosi %50 : vector<32x1xf32> to vector<32x1xi32>
    %55 = arith.fptosi %51 : vector<32x1xf32> to vector<32x1xi32>
    %c16_i32 = arith.constant 16 : i32
    %56 = vector.broadcast %c16_i32 : i32 to vector<32x1xi32>
    %57 = arith.muli %55, %56 : vector<32x1xi32>
    %58 = arith.addi %57, %54 : vector<32x1xi32>
    %cst_16 = arith.constant 1.000000e+00 : f32
    %59 = vector.broadcast %cst_16 : f32 to vector<32x1xf32>
    %60 = arith.subf %59, %52 : vector<32x1xf32>
    %cst_17 = arith.constant 1.000000e+00 : f32
    %61 = vector.broadcast %cst_17 : f32 to vector<32x1xf32>
    %62 = arith.subf %61, %53 : vector<32x1xf32>
    %63 = arith.mulf %60, %62 : vector<32x1xf32>
    %cst_18 = arith.constant 1.000000e+00 : f32
    %64 = vector.broadcast %cst_18 : f32 to vector<32x1xf32>
    %65 = arith.subf %64, %53 : vector<32x1xf32>
    %66 = arith.mulf %52, %65 : vector<32x1xf32>
    %cst_19 = arith.constant 1.000000e+00 : f32
    %67 = vector.broadcast %cst_19 : f32 to vector<32x1xf32>
    %68 = arith.subf %67, %52 : vector<32x1xf32>
    %69 = arith.mulf %68, %53 : vector<32x1xf32>
    %70 = arith.mulf %52, %53 : vector<32x1xf32>
    %cst_20 = arith.constant 0.000000e+00 : f32
    %71 = vector.broadcast %cst_20 : f32 to vector<32x8xf32>
    %c0_i32_21 = arith.constant 0 : i32
    %72 = vector.broadcast %c0_i32_21 : i32 to vector<32x1xi32>
    %73 = arith.addi %54, %72 : vector<32x1xi32>
    %c0_i32_22 = arith.constant 0 : i32
    %74 = vector.broadcast %c0_i32_22 : i32 to vector<32x1xi32>
    %75 = arith.addi %55, %74 : vector<32x1xi32>
    %c0_i32_23 = arith.constant 0 : i32
    %76 = vector.broadcast %c0_i32_23 : i32 to vector<32x1xi32>
    %77 = arith.cmpi sge, %73, %76 : vector<32x1xi32>
    %c16_i32_24 = arith.constant 16 : i32
    %78 = vector.broadcast %c16_i32_24 : i32 to vector<32x1xi32>
    %79 = arith.cmpi slt, %73, %78 : vector<32x1xi32>
    %80 = arith.andi %77, %79 : vector<32x1xi1>
    %c0_i32_25 = arith.constant 0 : i32
    %81 = vector.broadcast %c0_i32_25 : i32 to vector<32x1xi32>
    %82 = arith.cmpi sge, %75, %81 : vector<32x1xi32>
    %83 = arith.andi %80, %82 : vector<32x1xi1>
    %c16_i32_26 = arith.constant 16 : i32
    %84 = vector.broadcast %c16_i32_26 : i32 to vector<32x1xi32>
    %85 = arith.cmpi slt, %75, %84 : vector<32x1xi32>
    %86 = arith.andi %83, %85 : vector<32x1xi1>
    %87 = arith.extui %86 : vector<32x1xi1> to vector<32x1xi32>
    %88 = arith.sitofp %87 : vector<32x1xi32> to vector<32x1xf32>
    %89 = arith.mulf %63, %88 : vector<32x1xf32>
    %90 = arith.mulf %89, %49 : vector<32x1xf32>
    %c0_i32_27 = arith.constant 0 : i32
    %91 = vector.broadcast %c0_i32_27 : i32 to vector<32x1xi32>
    %92 = arith.addi %58, %91 : vector<32x1xi32>
    %c0_i32_28 = arith.constant 0 : i32
    %c255_i32 = arith.constant 255 : i32
    %93 = vector.broadcast %c0_i32_28 : i32 to vector<32x1xi32>
    %94 = arith.maxsi %93, %92 : vector<32x1xi32>
    %95 = vector.broadcast %c255_i32 : i32 to vector<32x1xi32>
    %96 = arith.minsi %95, %94 : vector<32x1xi32>
    %97 = vector.shape_cast %96 : vector<32x1xi32> to vector<32x1xi32>
    %98 = vector.broadcast %97 : vector<32x1xi32> to vector<32x8xi32>
    %c0_i32_29 = arith.constant 0 : i32
    %99 = vector.broadcast %c0_i32_29 : i32 to vector<32x8xi32>
    %100 = arith.cmpi slt, %98, %99 : vector<32x8xi32>
    %c256_i32 = arith.constant 256 : i32
    %101 = vector.broadcast %c256_i32 : i32 to vector<32x8xi32>
    %102 = arith.addi %98, %101 : vector<32x8xi32>
    %103 = arith.select %100, %102, %98 : vector<32x8xi1>, vector<32x8xi32>
    %104 = vector.shape_cast %103 : vector<32x8xi32> to vector<32x8x1xi32>
    %105 = vector.shape_cast %104 : vector<32x8x1xi32> to vector<32x8xi32>
    %106 = tpu.dynamic_gather %6[%105] in [0] : vector<256x8xf32>, vector<32x8xi32> -> vector<32x8xf32>
    %107 = vector.broadcast %90 : vector<32x1xf32> to vector<32x8xf32>
    %108 = arith.mulf %107, %106 : vector<32x8xf32>
    %109 = arith.addf %71, %108 : vector<32x8xf32>
    %c1_i32 = arith.constant 1 : i32
    %110 = vector.broadcast %c1_i32 : i32 to vector<32x1xi32>
    %111 = arith.addi %54, %110 : vector<32x1xi32>
    %c0_i32_30 = arith.constant 0 : i32
    %112 = vector.broadcast %c0_i32_30 : i32 to vector<32x1xi32>
    %113 = arith.addi %55, %112 : vector<32x1xi32>
    %c0_i32_31 = arith.constant 0 : i32
    %114 = vector.broadcast %c0_i32_31 : i32 to vector<32x1xi32>
    %115 = arith.cmpi sge, %111, %114 : vector<32x1xi32>
    %c16_i32_32 = arith.constant 16 : i32
    %116 = vector.broadcast %c16_i32_32 : i32 to vector<32x1xi32>
    %117 = arith.cmpi slt, %111, %116 : vector<32x1xi32>
    %118 = arith.andi %115, %117 : vector<32x1xi1>
    %c0_i32_33 = arith.constant 0 : i32
    %119 = vector.broadcast %c0_i32_33 : i32 to vector<32x1xi32>
    %120 = arith.cmpi sge, %113, %119 : vector<32x1xi32>
    %121 = arith.andi %118, %120 : vector<32x1xi1>
    %c16_i32_34 = arith.constant 16 : i32
    %122 = vector.broadcast %c16_i32_34 : i32 to vector<32x1xi32>
    %123 = arith.cmpi slt, %113, %122 : vector<32x1xi32>
    %124 = arith.andi %121, %123 : vector<32x1xi1>
    %125 = arith.extui %124 : vector<32x1xi1> to vector<32x1xi32>
    %126 = arith.sitofp %125 : vector<32x1xi32> to vector<32x1xf32>
    %127 = arith.mulf %66, %126 : vector<32x1xf32>
    %128 = arith.mulf %127, %49 : vector<32x1xf32>
    %c1_i32_35 = arith.constant 1 : i32
    %129 = vector.broadcast %c1_i32_35 : i32 to vector<32x1xi32>
    %130 = arith.addi %58, %129 : vector<32x1xi32>
    %c0_i32_36 = arith.constant 0 : i32
    %c255_i32_37 = arith.constant 255 : i32
    %131 = vector.broadcast %c0_i32_36 : i32 to vector<32x1xi32>
    %132 = arith.maxsi %131, %130 : vector<32x1xi32>
    %133 = vector.broadcast %c255_i32_37 : i32 to vector<32x1xi32>
    %134 = arith.minsi %133, %132 : vector<32x1xi32>
    %135 = vector.shape_cast %134 : vector<32x1xi32> to vector<32x1xi32>
    %136 = vector.broadcast %135 : vector<32x1xi32> to vector<32x8xi32>
    %c0_i32_38 = arith.constant 0 : i32
    %137 = vector.broadcast %c0_i32_38 : i32 to vector<32x8xi32>
    %138 = arith.cmpi slt, %136, %137 : vector<32x8xi32>
    %c256_i32_39 = arith.constant 256 : i32
    %139 = vector.broadcast %c256_i32_39 : i32 to vector<32x8xi32>
    %140 = arith.addi %136, %139 : vector<32x8xi32>
    %141 = arith.select %138, %140, %136 : vector<32x8xi1>, vector<32x8xi32>
    %142 = vector.shape_cast %141 : vector<32x8xi32> to vector<32x8x1xi32>
    %143 = vector.shape_cast %142 : vector<32x8x1xi32> to vector<32x8xi32>
    %144 = tpu.dynamic_gather %6[%143] in [0] : vector<256x8xf32>, vector<32x8xi32> -> vector<32x8xf32>
    %145 = vector.broadcast %128 : vector<32x1xf32> to vector<32x8xf32>
    %146 = arith.mulf %145, %144 : vector<32x8xf32>
    %147 = arith.addf %109, %146 : vector<32x8xf32>
    %c0_i32_40 = arith.constant 0 : i32
    %148 = vector.broadcast %c0_i32_40 : i32 to vector<32x1xi32>
    %149 = arith.addi %54, %148 : vector<32x1xi32>
    %c1_i32_41 = arith.constant 1 : i32
    %150 = vector.broadcast %c1_i32_41 : i32 to vector<32x1xi32>
    %151 = arith.addi %55, %150 : vector<32x1xi32>
    %c0_i32_42 = arith.constant 0 : i32
    %152 = vector.broadcast %c0_i32_42 : i32 to vector<32x1xi32>
    %153 = arith.cmpi sge, %149, %152 : vector<32x1xi32>
    %c16_i32_43 = arith.constant 16 : i32
    %154 = vector.broadcast %c16_i32_43 : i32 to vector<32x1xi32>
    %155 = arith.cmpi slt, %149, %154 : vector<32x1xi32>
    %156 = arith.andi %153, %155 : vector<32x1xi1>
    %c0_i32_44 = arith.constant 0 : i32
    %157 = vector.broadcast %c0_i32_44 : i32 to vector<32x1xi32>
    %158 = arith.cmpi sge, %151, %157 : vector<32x1xi32>
    %159 = arith.andi %156, %158 : vector<32x1xi1>
    %c16_i32_45 = arith.constant 16 : i32
    %160 = vector.broadcast %c16_i32_45 : i32 to vector<32x1xi32>
    %161 = arith.cmpi slt, %151, %160 : vector<32x1xi32>
    %162 = arith.andi %159, %161 : vector<32x1xi1>
    %163 = arith.extui %162 : vector<32x1xi1> to vector<32x1xi32>
    %164 = arith.sitofp %163 : vector<32x1xi32> to vector<32x1xf32>
    %165 = arith.mulf %69, %164 : vector<32x1xf32>
    %166 = arith.mulf %165, %49 : vector<32x1xf32>
    %c16_i32_46 = arith.constant 16 : i32
    %167 = vector.broadcast %c16_i32_46 : i32 to vector<32x1xi32>
    %168 = arith.addi %58, %167 : vector<32x1xi32>
    %c0_i32_47 = arith.constant 0 : i32
    %c255_i32_48 = arith.constant 255 : i32
    %169 = vector.broadcast %c0_i32_47 : i32 to vector<32x1xi32>
    %170 = arith.maxsi %169, %168 : vector<32x1xi32>
    %171 = vector.broadcast %c255_i32_48 : i32 to vector<32x1xi32>
    %172 = arith.minsi %171, %170 : vector<32x1xi32>
    %173 = vector.shape_cast %172 : vector<32x1xi32> to vector<32x1xi32>
    %174 = vector.broadcast %173 : vector<32x1xi32> to vector<32x8xi32>
    %c0_i32_49 = arith.constant 0 : i32
    %175 = vector.broadcast %c0_i32_49 : i32 to vector<32x8xi32>
    %176 = arith.cmpi slt, %174, %175 : vector<32x8xi32>
    %c256_i32_50 = arith.constant 256 : i32
    %177 = vector.broadcast %c256_i32_50 : i32 to vector<32x8xi32>
    %178 = arith.addi %174, %177 : vector<32x8xi32>
    %179 = arith.select %176, %178, %174 : vector<32x8xi1>, vector<32x8xi32>
    %180 = vector.shape_cast %179 : vector<32x8xi32> to vector<32x8x1xi32>
    %181 = vector.shape_cast %180 : vector<32x8x1xi32> to vector<32x8xi32>
    %182 = tpu.dynamic_gather %6[%181] in [0] : vector<256x8xf32>, vector<32x8xi32> -> vector<32x8xf32>
    %183 = vector.broadcast %166 : vector<32x1xf32> to vector<32x8xf32>
    %184 = arith.mulf %183, %182 : vector<32x8xf32>
    %185 = arith.addf %147, %184 : vector<32x8xf32>
    %c1_i32_51 = arith.constant 1 : i32
    %186 = vector.broadcast %c1_i32_51 : i32 to vector<32x1xi32>
    %187 = arith.addi %54, %186 : vector<32x1xi32>
    %c1_i32_52 = arith.constant 1 : i32
    %188 = vector.broadcast %c1_i32_52 : i32 to vector<32x1xi32>
    %189 = arith.addi %55, %188 : vector<32x1xi32>
    %c0_i32_53 = arith.constant 0 : i32
    %190 = vector.broadcast %c0_i32_53 : i32 to vector<32x1xi32>
    %191 = arith.cmpi sge, %187, %190 : vector<32x1xi32>
    %c16_i32_54 = arith.constant 16 : i32
    %192 = vector.broadcast %c16_i32_54 : i32 to vector<32x1xi32>
    %193 = arith.cmpi slt, %187, %192 : vector<32x1xi32>
    %194 = arith.andi %191, %193 : vector<32x1xi1>
    %c0_i32_55 = arith.constant 0 : i32
    %195 = vector.broadcast %c0_i32_55 : i32 to vector<32x1xi32>
    %196 = arith.cmpi sge, %189, %195 : vector<32x1xi32>
    %197 = arith.andi %194, %196 : vector<32x1xi1>
    %c16_i32_56 = arith.constant 16 : i32
    %198 = vector.broadcast %c16_i32_56 : i32 to vector<32x1xi32>
    %199 = arith.cmpi slt, %189, %198 : vector<32x1xi32>
    %200 = arith.andi %197, %199 : vector<32x1xi1>
    %201 = arith.extui %200 : vector<32x1xi1> to vector<32x1xi32>
    %202 = arith.sitofp %201 : vector<32x1xi32> to vector<32x1xf32>
    %203 = arith.mulf %70, %202 : vector<32x1xf32>
    %204 = arith.mulf %203, %49 : vector<32x1xf32>
    %c17_i32 = arith.constant 17 : i32
    %205 = vector.broadcast %c17_i32 : i32 to vector<32x1xi32>
    %206 = arith.addi %58, %205 : vector<32x1xi32>
    %c0_i32_57 = arith.constant 0 : i32
    %c255_i32_58 = arith.constant 255 : i32
    %207 = vector.broadcast %c0_i32_57 : i32 to vector<32x1xi32>
    %208 = arith.maxsi %207, %206 : vector<32x1xi32>
    %209 = vector.broadcast %c255_i32_58 : i32 to vector<32x1xi32>
    %210 = arith.minsi %209, %208 : vector<32x1xi32>
    %211 = vector.shape_cast %210 : vector<32x1xi32> to vector<32x1xi32>
    %212 = vector.broadcast %211 : vector<32x1xi32> to vector<32x8xi32>
    %c0_i32_59 = arith.constant 0 : i32
    %213 = vector.broadcast %c0_i32_59 : i32 to vector<32x8xi32>
    %214 = arith.cmpi slt, %212, %213 : vector<32x8xi32>
    %c256_i32_60 = arith.constant 256 : i32
    %215 = vector.broadcast %c256_i32_60 : i32 to vector<32x8xi32>
    %216 = arith.addi %212, %215 : vector<32x8xi32>
    %217 = arith.select %214, %216, %212 : vector<32x8xi1>, vector<32x8xi32>
    %218 = vector.shape_cast %217 : vector<32x8xi32> to vector<32x8x1xi32>
    %219 = vector.shape_cast %218 : vector<32x8x1xi32> to vector<32x8xi32>
    %220 = tpu.dynamic_gather %6[%219] in [0] : vector<256x8xf32>, vector<32x8xi32> -> vector<32x8xf32>
    %221 = vector.broadcast %204 : vector<32x1xf32> to vector<32x8xf32>
    %222 = arith.mulf %221, %220 : vector<32x8xf32>
    %223 = arith.addf %185, %222 : vector<32x8xf32>
    %c0_61 = arith.constant 0 : index
    %c0_62 = arith.constant 0 : index
    %224 = vector.load %arg14[%c0_61, %c0_62] : memref<32x8xf32, #tpu.memory_space<vmem>>, vector<32x8xf32>
    %225 = arith.addf %224, %223 : vector<32x8xf32>
    %c0_63 = arith.constant 0 : index
    %c0_64 = arith.constant 0 : index
    %226 = vector.load %arg14[%c0_63, %c0_64] : memref<32x8xf32, #tpu.memory_space<vmem>>, vector<32x8xf32>
    tpu.vector_store %arg14[%c0_63, %c0_64], %225 {strides = array<i32>} : memref<32x8xf32, #tpu.memory_space<vmem>>, vector<32x8xf32>,
    %c0_65 = arith.constant 0 : index
    %c0_66 = arith.constant 0 : index
    %227 = vector.load %arg15[%c0_65, %c0_66] : memref<32x1xf32, #tpu.memory_space<vmem>>, vector<32x1xf32>
    %228 = arith.addf %227, %49 : vector<32x1xf32>
    %c0_67 = arith.constant 0 : index
    %c0_68 = arith.constant 0 : index
    %229 = vector.load %arg15[%c0_67, %c0_68] : memref<32x1xf32, #tpu.memory_space<vmem>>, vector<32x1xf32>
    tpu.vector_store %arg15[%c0_67, %c0_68], %228 {strides = array<i32>} : memref<32x1xf32, #tpu.memory_space<vmem>>, vector<32x1xf32>,
    %c0_69 = arith.constant 0 : index
    %c0_70 = arith.constant 0 : index
    %c0_71 = arith.constant 0 : index
    %230 = vector.load %arg11[%c0_69, %c0_70, %c0_71] : memref<1x64x8xf32, #tpu.memory_space<vmem>>, vector<1x64x8xf32>
    %231 = vector.shape_cast %230 : vector<1x64x8xf32> to vector<64x8xf32>
    %c0_72 = arith.constant 0 : index
    %c0_73 = arith.constant 0 : index
    %c1 = arith.constant 1 : index
    %c0_74 = arith.constant 0 : index
    %c0_75 = arith.constant 0 : index
    %232 = vector.load %arg5[%c0_72, %c0_73, %c1, %c0_74, %c0_75] : memref<1x1x2x4x4xf32, #tpu.memory_space<vmem>>, vector<1x1x1x4x4xf32>
    %233 = vector.shape_cast %232 : vector<1x1x1x4x4xf32> to vector<4x4xf32>
    %234 = vector.extract_strided_slice %4 {offsets = [0, 0], sizes = [32, 1], strides = [1, 1]} : vector<32x3xf32> to vector<32x1xf32>
    %235 = vector.extract_strided_slice %233 {offsets = [0, 0], sizes = [1, 4], strides = [1, 1]} : vector<4x4xf32> to vector<1x4xf32>
    %236 = vector.broadcast %234 : vector<32x1xf32> to vector<32x4xf32>
    %237 = vector.broadcast %235 : vector<1x4xf32> to vector<32x4xf32>
    %238 = arith.mulf %236, %237 : vector<32x4xf32>
    %239 = vector.extract_strided_slice %4 {offsets = [0, 1], sizes = [32, 1], strides = [1, 1]} : vector<32x3xf32> to vector<32x1xf32>
    %240 = vector.extract_strided_slice %233 {offsets = [1, 0], sizes = [1, 4], strides = [1, 1]} : vector<4x4xf32> to vector<1x4xf32>
    %241 = vector.broadcast %239 : vector<32x1xf32> to vector<32x4xf32>
    %242 = vector.broadcast %240 : vector<1x4xf32> to vector<32x4xf32>
    %243 = arith.mulf %241, %242 : vector<32x4xf32>
    %244 = arith.addf %238, %243 : vector<32x4xf32>
    %245 = vector.extract_strided_slice %4 {offsets = [0, 2], sizes = [32, 1], strides = [1, 1]} : vector<32x3xf32> to vector<32x1xf32>
    %246 = vector.extract_strided_slice %233 {offsets = [2, 0], sizes = [1, 4], strides = [1, 1]} : vector<4x4xf32> to vector<1x4xf32>
    %247 = vector.broadcast %245 : vector<32x1xf32> to vector<32x4xf32>
    %248 = vector.broadcast %246 : vector<1x4xf32> to vector<32x4xf32>
    %249 = arith.mulf %247, %248 : vector<32x4xf32>
    %250 = arith.addf %244, %249 : vector<32x4xf32>
    %251 = vector.extract_strided_slice %233 {offsets = [3, 0], sizes = [1, 4], strides = [1, 1]} : vector<4x4xf32> to vector<1x4xf32>
    %252 = vector.broadcast %251 : vector<1x4xf32> to vector<32x4xf32>
    %253 = arith.addf %250, %252 : vector<32x4xf32>
    %254 = vector.extract_strided_slice %253 {offsets = [0, 2], sizes = [32, 1], strides = [1, 1]} : vector<32x4xf32> to vector<32x1xf32>
    %cst_76 = arith.constant 5.000000e-02 : f32
    %255 = vector.broadcast %cst_76 : f32 to vector<32x1xf32>
    %256 = arith.maximumf %254, %255 : vector<32x1xf32>
    %257 = tpu.reciprocal %256 {approx = true} : vector<32x1xf32> -> vector<32x1xf32>
    %258 = vector.extract_strided_slice %253 {offsets = [0, 0], sizes = [32, 1], strides = [1, 1]} : vector<32x4xf32> to vector<32x1xf32>
    %259 = arith.mulf %258, %257 : vector<32x1xf32>
    %260 = vector.extract_strided_slice %253 {offsets = [0, 1], sizes = [32, 1], strides = [1, 1]} : vector<32x4xf32> to vector<32x1xf32>
    %261 = arith.mulf %260, %257 : vector<32x1xf32>
    %cst_77 = arith.constant 0.000000e+00 : f32
    %262 = vector.broadcast %cst_77 : f32 to vector<32x1xf32>
    %263 = arith.cmpf oge, %259, %262 : vector<32x1xf32>
    %cst_78 = arith.constant 8.000000e+00 : f32
    %264 = vector.broadcast %cst_78 : f32 to vector<32x1xf32>
    %265 = arith.cmpf olt, %259, %264 : vector<32x1xf32>
    %266 = arith.andi %263, %265 : vector<32x1xi1>
    %cst_79 = arith.constant 0.000000e+00 : f32
    %267 = vector.broadcast %cst_79 : f32 to vector<32x1xf32>
    %268 = arith.cmpf oge, %261, %267 : vector<32x1xf32>
    %269 = arith.andi %266, %268 : vector<32x1xi1>
    %cst_80 = arith.constant 8.000000e+00 : f32
    %270 = vector.broadcast %cst_80 : f32 to vector<32x1xf32>
    %271 = arith.cmpf olt, %261, %270 : vector<32x1xf32>
    %272 = arith.andi %269, %271 : vector<32x1xi1>
    %273 = arith.extui %272 : vector<32x1xi1> to vector<32x1xi32>
    %274 = arith.sitofp %273 : vector<32x1xi32> to vector<32x1xf32>
    %275 = math.floor %259 : vector<32x1xf32>
    %276 = math.floor %261 : vector<32x1xf32>
    %277 = arith.subf %259, %275 : vector<32x1xf32>
    %278 = arith.subf %261, %276 : vector<32x1xf32>
    %279 = arith.fptosi %275 : vector<32x1xf32> to vector<32x1xi32>
    %280 = arith.fptosi %276 : vector<32x1xf32> to vector<32x1xi32>
    %c8_i32 = arith.constant 8 : i32
    %281 = vector.broadcast %c8_i32 : i32 to vector<32x1xi32>
    %282 = arith.muli %280, %281 : vector<32x1xi32>
    %283 = arith.addi %282, %279 : vector<32x1xi32>
    %cst_81 = arith.constant 1.000000e+00 : f32
    %284 = vector.broadcast %cst_81 : f32 to vector<32x1xf32>
    %285 = arith.subf %284, %277 : vector<32x1xf32>
    %cst_82 = arith.constant 1.000000e+00 : f32
    %286 = vector.broadcast %cst_82 : f32 to vector<32x1xf32>
    %287 = arith.subf %286, %278 : vector<32x1xf32>
    %288 = arith.mulf %285, %287 : vector<32x1xf32>
    %cst_83 = arith.constant 1.000000e+00 : f32
    %289 = vector.broadcast %cst_83 : f32 to vector<32x1xf32>
    %290 = arith.subf %289, %278 : vector<32x1xf32>
    %291 = arith.mulf %277, %290 : vector<32x1xf32>
    %cst_84 = arith.constant 1.000000e+00 : f32
    %292 = vector.broadcast %cst_84 : f32 to vector<32x1xf32>
    %293 = arith.subf %292, %277 : vector<32x1xf32>
    %294 = arith.mulf %293, %278 : vector<32x1xf32>
    %295 = arith.mulf %277, %278 : vector<32x1xf32>
    %cst_85 = arith.constant 0.000000e+00 : f32
    %296 = vector.broadcast %cst_85 : f32 to vector<32x8xf32>
    %c0_i32_86 = arith.constant 0 : i32
    %297 = vector.broadcast %c0_i32_86 : i32 to vector<32x1xi32>
    %298 = arith.addi %279, %297 : vector<32x1xi32>
    %c0_i32_87 = arith.constant 0 : i32
    %299 = vector.broadcast %c0_i32_87 : i32 to vector<32x1xi32>
    %300 = arith.addi %280, %299 : vector<32x1xi32>
    %c0_i32_88 = arith.constant 0 : i32
    %301 = vector.broadcast %c0_i32_88 : i32 to vector<32x1xi32>
    %302 = arith.cmpi sge, %298, %301 : vector<32x1xi32>
    %c8_i32_89 = arith.constant 8 : i32
    %303 = vector.broadcast %c8_i32_89 : i32 to vector<32x1xi32>
    %304 = arith.cmpi slt, %298, %303 : vector<32x1xi32>
    %305 = arith.andi %302, %304 : vector<32x1xi1>
    %c0_i32_90 = arith.constant 0 : i32
    %306 = vector.broadcast %c0_i32_90 : i32 to vector<32x1xi32>
    %307 = arith.cmpi sge, %300, %306 : vector<32x1xi32>
    %308 = arith.andi %305, %307 : vector<32x1xi1>
    %c8_i32_91 = arith.constant 8 : i32
    %309 = vector.broadcast %c8_i32_91 : i32 to vector<32x1xi32>
    %310 = arith.cmpi slt, %300, %309 : vector<32x1xi32>
    %311 = arith.andi %308, %310 : vector<32x1xi1>
    %312 = arith.extui %311 : vector<32x1xi1> to vector<32x1xi32>
    %313 = arith.sitofp %312 : vector<32x1xi32> to vector<32x1xf32>
    %314 = arith.mulf %288, %313 : vector<32x1xf32>
    %315 = arith.mulf %314, %274 : vector<32x1xf32>
    %c0_i32_92 = arith.constant 0 : i32
    %316 = vector.broadcast %c0_i32_92 : i32 to vector<32x1xi32>
    %317 = arith.addi %283, %316 : vector<32x1xi32>
    %c0_i32_93 = arith.constant 0 : i32
    %c63_i32 = arith.constant 63 : i32
    %318 = vector.broadcast %c0_i32_93 : i32 to vector<32x1xi32>
    %319 = arith.maxsi %318, %317 : vector<32x1xi32>
    %320 = vector.broadcast %c63_i32 : i32 to vector<32x1xi32>
    %321 = arith.minsi %320, %319 : vector<32x1xi32>
    %322 = vector.shape_cast %321 : vector<32x1xi32> to vector<32x1xi32>
    %323 = vector.broadcast %322 : vector<32x1xi32> to vector<32x8xi32>
    %c0_i32_94 = arith.constant 0 : i32
    %324 = vector.broadcast %c0_i32_94 : i32 to vector<32x8xi32>
    %325 = arith.cmpi slt, %323, %324 : vector<32x8xi32>
    %c64_i32 = arith.constant 64 : i32
    %326 = vector.broadcast %c64_i32 : i32 to vector<32x8xi32>
    %327 = arith.addi %323, %326 : vector<32x8xi32>
    %328 = arith.select %325, %327, %323 : vector<32x8xi1>, vector<32x8xi32>
    %329 = vector.shape_cast %328 : vector<32x8xi32> to vector<32x8x1xi32>
    %330 = vector.shape_cast %329 : vector<32x8x1xi32> to vector<32x8xi32>
    %331 = tpu.dynamic_gather %231[%330] in [0] : vector<64x8xf32>, vector<32x8xi32> -> vector<32x8xf32>
    %332 = vector.broadcast %315 : vector<32x1xf32> to vector<32x8xf32>
    %333 = arith.mulf %332, %331 : vector<32x8xf32>
    %334 = arith.addf %296, %333 : vector<32x8xf32>
    %c1_i32_95 = arith.constant 1 : i32
    %335 = vector.broadcast %c1_i32_95 : i32 to vector<32x1xi32>
    %336 = arith.addi %279, %335 : vector<32x1xi32>
    %c0_i32_96 = arith.constant 0 : i32
    %337 = vector.broadcast %c0_i32_96 : i32 to vector<32x1xi32>
    %338 = arith.addi %280, %337 : vector<32x1xi32>
    %c0_i32_97 = arith.constant 0 : i32
    %339 = vector.broadcast %c0_i32_97 : i32 to vector<32x1xi32>
    %340 = arith.cmpi sge, %336, %339 : vector<32x1xi32>
    %c8_i32_98 = arith.constant 8 : i32
    %341 = vector.broadcast %c8_i32_98 : i32 to vector<32x1xi32>
    %342 = arith.cmpi slt, %336, %341 : vector<32x1xi32>
    %343 = arith.andi %340, %342 : vector<32x1xi1>
    %c0_i32_99 = arith.constant 0 : i32
    %344 = vector.broadcast %c0_i32_99 : i32 to vector<32x1xi32>
    %345 = arith.cmpi sge, %338, %344 : vector<32x1xi32>
    %346 = arith.andi %343, %345 : vector<32x1xi1>
    %c8_i32_100 = arith.constant 8 : i32
    %347 = vector.broadcast %c8_i32_100 : i32 to vector<32x1xi32>
    %348 = arith.cmpi slt, %338, %347 : vector<32x1xi32>
    %349 = arith.andi %346, %348 : vector<32x1xi1>
    %350 = arith.extui %349 : vector<32x1xi1> to vector<32x1xi32>
    %351 = arith.sitofp %350 : vector<32x1xi32> to vector<32x1xf32>
    %352 = arith.mulf %291, %351 : vector<32x1xf32>
    %353 = arith.mulf %352, %274 : vector<32x1xf32>
    %c1_i32_101 = arith.constant 1 : i32
    %354 = vector.broadcast %c1_i32_101 : i32 to vector<32x1xi32>
    %355 = arith.addi %283, %354 : vector<32x1xi32>
    %c0_i32_102 = arith.constant 0 : i32
    %c63_i32_103 = arith.constant 63 : i32
    %356 = vector.broadcast %c0_i32_102 : i32 to vector<32x1xi32>
    %357 = arith.maxsi %356, %355 : vector<32x1xi32>
    %358 = vector.broadcast %c63_i32_103 : i32 to vector<32x1xi32>
    %359 = arith.minsi %358, %357 : vector<32x1xi32>
    %360 = vector.shape_cast %359 : vector<32x1xi32> to vector<32x1xi32>
    %361 = vector.broadcast %360 : vector<32x1xi32> to vector<32x8xi32>
    %c0_i32_104 = arith.constant 0 : i32
    %362 = vector.broadcast %c0_i32_104 : i32 to vector<32x8xi32>
    %363 = arith.cmpi slt, %361, %362 : vector<32x8xi32>
    %c64_i32_105 = arith.constant 64 : i32
    %364 = vector.broadcast %c64_i32_105 : i32 to vector<32x8xi32>
    %365 = arith.addi %361, %364 : vector<32x8xi32>
    %366 = arith.select %363, %365, %361 : vector<32x8xi1>, vector<32x8xi32>
    %367 = vector.shape_cast %366 : vector<32x8xi32> to vector<32x8x1xi32>
    %368 = vector.shape_cast %367 : vector<32x8x1xi32> to vector<32x8xi32>
    %369 = tpu.dynamic_gather %231[%368] in [0] : vector<64x8xf32>, vector<32x8xi32> -> vector<32x8xf32>
    %370 = vector.broadcast %353 : vector<32x1xf32> to vector<32x8xf32>
    %371 = arith.mulf %370, %369 : vector<32x8xf32>
    %372 = arith.addf %334, %371 : vector<32x8xf32>
    %c0_i32_106 = arith.constant 0 : i32
    %373 = vector.broadcast %c0_i32_106 : i32 to vector<32x1xi32>
    %374 = arith.addi %279, %373 : vector<32x1xi32>
    %c1_i32_107 = arith.constant 1 : i32
    %375 = vector.broadcast %c1_i32_107 : i32 to vector<32x1xi32>
    %376 = arith.addi %280, %375 : vector<32x1xi32>
    %c0_i32_108 = arith.constant 0 : i32
    %377 = vector.broadcast %c0_i32_108 : i32 to vector<32x1xi32>
    %378 = arith.cmpi sge, %374, %377 : vector<32x1xi32>
    %c8_i32_109 = arith.constant 8 : i32
    %379 = vector.broadcast %c8_i32_109 : i32 to vector<32x1xi32>
    %380 = arith.cmpi slt, %374, %379 : vector<32x1xi32>
    %381 = arith.andi %378, %380 : vector<32x1xi1>
    %c0_i32_110 = arith.constant 0 : i32
    %382 = vector.broadcast %c0_i32_110 : i32 to vector<32x1xi32>
    %383 = arith.cmpi sge, %376, %382 : vector<32x1xi32>
    %384 = arith.andi %381, %383 : vector<32x1xi1>
    %c8_i32_111 = arith.constant 8 : i32
    %385 = vector.broadcast %c8_i32_111 : i32 to vector<32x1xi32>
    %386 = arith.cmpi slt, %376, %385 : vector<32x1xi32>
    %387 = arith.andi %384, %386 : vector<32x1xi1>
    %388 = arith.extui %387 : vector<32x1xi1> to vector<32x1xi32>
    %389 = arith.sitofp %388 : vector<32x1xi32> to vector<32x1xf32>
    %390 = arith.mulf %294, %389 : vector<32x1xf32>
    %391 = arith.mulf %390, %274 : vector<32x1xf32>
    %c8_i32_112 = arith.constant 8 : i32
    %392 = vector.broadcast %c8_i32_112 : i32 to vector<32x1xi32>
    %393 = arith.addi %283, %392 : vector<32x1xi32>
    %c0_i32_113 = arith.constant 0 : i32
    %c63_i32_114 = arith.constant 63 : i32
    %394 = vector.broadcast %c0_i32_113 : i32 to vector<32x1xi32>
    %395 = arith.maxsi %394, %393 : vector<32x1xi32>
    %396 = vector.broadcast %c63_i32_114 : i32 to vector<32x1xi32>
    %397 = arith.minsi %396, %395 : vector<32x1xi32>
    %398 = vector.shape_cast %397 : vector<32x1xi32> to vector<32x1xi32>
    %399 = vector.broadcast %398 : vector<32x1xi32> to vector<32x8xi32>
    %c0_i32_115 = arith.constant 0 : i32
    %400 = vector.broadcast %c0_i32_115 : i32 to vector<32x8xi32>
    %401 = arith.cmpi slt, %399, %400 : vector<32x8xi32>
    %c64_i32_116 = arith.constant 64 : i32
    %402 = vector.broadcast %c64_i32_116 : i32 to vector<32x8xi32>
    %403 = arith.addi %399, %402 : vector<32x8xi32>
    %404 = arith.select %401, %403, %399 : vector<32x8xi1>, vector<32x8xi32>
    %405 = vector.shape_cast %404 : vector<32x8xi32> to vector<32x8x1xi32>
    %406 = vector.shape_cast %405 : vector<32x8x1xi32> to vector<32x8xi32>
    %407 = tpu.dynamic_gather %231[%406] in [0] : vector<64x8xf32>, vector<32x8xi32> -> vector<32x8xf32>
    %408 = vector.broadcast %391 : vector<32x1xf32> to vector<32x8xf32>
    %409 = arith.mulf %408, %407 : vector<32x8xf32>
    %410 = arith.addf %372, %409 : vector<32x8xf32>
    %c1_i32_117 = arith.constant 1 : i32
    %411 = vector.broadcast %c1_i32_117 : i32 to vector<32x1xi32>
    %412 = arith.addi %279, %411 : vector<32x1xi32>
    %c1_i32_118 = arith.constant 1 : i32
    %413 = vector.broadcast %c1_i32_118 : i32 to vector<32x1xi32>
    %414 = arith.addi %280, %413 : vector<32x1xi32>
    %c0_i32_119 = arith.constant 0 : i32
    %415 = vector.broadcast %c0_i32_119 : i32 to vector<32x1xi32>
    %416 = arith.cmpi sge, %412, %415 : vector<32x1xi32>
    %c8_i32_120 = arith.constant 8 : i32
    %417 = vector.broadcast %c8_i32_120 : i32 to vector<32x1xi32>
    %418 = arith.cmpi slt, %412, %417 : vector<32x1xi32>
    %419 = arith.andi %416, %418 : vector<32x1xi1>
    %c0_i32_121 = arith.constant 0 : i32
    %420 = vector.broadcast %c0_i32_121 : i32 to vector<32x1xi32>
    %421 = arith.cmpi sge, %414, %420 : vector<32x1xi32>
    %422 = arith.andi %419, %421 : vector<32x1xi1>
    %c8_i32_122 = arith.constant 8 : i32
    %423 = vector.broadcast %c8_i32_122 : i32 to vector<32x1xi32>
    %424 = arith.cmpi slt, %414, %423 : vector<32x1xi32>
    %425 = arith.andi %422, %424 : vector<32x1xi1>
    %426 = arith.extui %425 : vector<32x1xi1> to vector<32x1xi32>
    %427 = arith.sitofp %426 : vector<32x1xi32> to vector<32x1xf32>
    %428 = arith.mulf %295, %427 : vector<32x1xf32>
    %429 = arith.mulf %428, %274 : vector<32x1xf32>
    %c9_i32 = arith.constant 9 : i32
    %430 = vector.broadcast %c9_i32 : i32 to vector<32x1xi32>
    %431 = arith.addi %283, %430 : vector<32x1xi32>
    %c0_i32_123 = arith.constant 0 : i32
    %c63_i32_124 = arith.constant 63 : i32
    %432 = vector.broadcast %c0_i32_123 : i32 to vector<32x1xi32>
    %433 = arith.maxsi %432, %431 : vector<32x1xi32>
    %434 = vector.broadcast %c63_i32_124 : i32 to vector<32x1xi32>
    %435 = arith.minsi %434, %433 : vector<32x1xi32>
    %436 = vector.shape_cast %435 : vector<32x1xi32> to vector<32x1xi32>
    %437 = vector.broadcast %436 : vector<32x1xi32> to vector<32x8xi32>
    %c0_i32_125 = arith.constant 0 : i32
    %438 = vector.broadcast %c0_i32_125 : i32 to vector<32x8xi32>
    %439 = arith.cmpi slt, %437, %438 : vector<32x8xi32>
    %c64_i32_126 = arith.constant 64 : i32
    %440 = vector.broadcast %c64_i32_126 : i32 to vector<32x8xi32>
    %441 = arith.addi %437, %440 : vector<32x8xi32>
    %442 = arith.select %439, %441, %437 : vector<32x8xi1>, vector<32x8xi32>
    %443 = vector.shape_cast %442 : vector<32x8xi32> to vector<32x8x1xi32>
    %444 = vector.shape_cast %443 : vector<32x8x1xi32> to vector<32x8xi32>
    %445 = tpu.dynamic_gather %231[%444] in [0] : vector<64x8xf32>, vector<32x8xi32> -> vector<32x8xf32>
    %446 = vector.broadcast %429 : vector<32x1xf32> to vector<32x8xf32>
    %447 = arith.mulf %446, %445 : vector<32x8xf32>
    %448 = arith.addf %410, %447 : vector<32x8xf32>
    %c0_127 = arith.constant 0 : index
    %c0_128 = arith.constant 0 : index
    %449 = vector.load %arg14[%c0_127, %c0_128] : memref<32x8xf32, #tpu.memory_space<vmem>>, vector<32x8xf32>
    %450 = arith.addf %449, %448 : vector<32x8xf32>
    %c0_129 = arith.constant 0 : index
    %c0_130 = arith.constant 0 : index
    %451 = vector.load %arg14[%c0_129, %c0_130] : memref<32x8xf32, #tpu.memory_space<vmem>>, vector<32x8xf32>
    tpu.vector_store %arg14[%c0_129, %c0_130], %450 {strides = array<i32>} : memref<32x8xf32, #tpu.memory_space<vmem>>, vector<32x8xf32>,
    %c0_131 = arith.constant 0 : index
    %c0_132 = arith.constant 0 : index
    %452 = vector.load %arg15[%c0_131, %c0_132] : memref<32x1xf32, #tpu.memory_space<vmem>>, vector<32x1xf32>
    %453 = arith.addf %452, %274 : vector<32x1xf32>
    %c0_133 = arith.constant 0 : index
    %c0_134 = arith.constant 0 : index
    %454 = vector.load %arg15[%c0_133, %c0_134] : memref<32x1xf32, #tpu.memory_space<vmem>>, vector<32x1xf32>
    tpu.vector_store %arg15[%c0_133, %c0_134], %453 {strides = array<i32>} : memref<32x1xf32, #tpu.memory_space<vmem>>, vector<32x1xf32>,
    %c1_i32_135 = arith.constant 1 : i32
    %455 = arith.cmpi eq, %arg2, %c1_i32_135 : i32
    %456 = arith.extui %455 : i1 to i32
    %c0_i32_136 = arith.constant 0 : i32
    %457 = arith.cmpi ne, %456, %c0_i32_136 : i32
    scf.if %457 {
      %c0_137 = arith.constant 0 : index
      %c0_138 = arith.constant 0 : index
      %458 = vector.load %arg14[%c0_137, %c0_138] : memref<32x8xf32, #tpu.memory_space<vmem>>, vector<32x8xf32>
      %c0_139 = arith.constant 0 : index
      %c0_140 = arith.constant 0 : index
      %459 = vector.load %arg15[%c0_139, %c0_140] : memref<32x1xf32, #tpu.memory_space<vmem>>, vector<32x1xf32>
      %cst_141 = arith.constant 9.99999997E-7 : f32
      %460 = vector.broadcast %cst_141 : f32 to vector<32x1xf32>
      %461 = arith.addf %459, %460 : vector<32x1xf32>
      %462 = tpu.reciprocal %461 {approx = true} : vector<32x1xf32> -> vector<32x1xf32>
      %463 = vector.broadcast %462 : vector<32x1xf32> to vector<32x8xf32>
      %464 = arith.mulf %458, %463 : vector<32x8xf32>
      %c0_142 = arith.constant 0 : index
      %c0_143 = arith.constant 0 : index
      %465 = vector.load %arg8[%c0_142, %c0_143] : memref<8x128xf32, #tpu.memory_space<vmem>>, vector<8x128xf32>
      %cst_144 = arith.constant dense<0.000000e+00> : vector<32x128xf32>
      %466 = tpu.matmul %464, %465, %cst_144 {dimension_numbers = #tpu.dot_dimension_numbers<[1], [0], [0], [1], [0, 0, 1, 1], [], []>} : vector<32x8xf32>, vector<8x128xf32>, vector<32x128xf32> -> vector<32x128xf32>
      %c0_145 = arith.constant 0 : index
      %c0_146 = arith.constant 0 : index
      %467 = vector.load %arg9[%c0_145, %c0_146] : memref<1x128xf32, #tpu.memory_space<vmem>>, vector<1x128xf32>
      %468 = vector.broadcast %467 : vector<1x128xf32> to vector<32x128xf32>
      %469 = arith.addf %466, %468 : vector<32x128xf32>
      %c0_147 = arith.constant 0 : index
      %c0_148 = arith.constant 0 : index
      %c0_149 = arith.constant 0 : index
      %470 = vector.load %arg4[%c0_147, %c0_148, %c0_149] : memref<1x32x128xf32, #tpu.memory_space<vmem>>, vector<1x32x128xf32>
      %471 = vector.shape_cast %470 : vector<1x32x128xf32> to vector<32x128xf32>
      %472 = arith.addf %471, %0 : vector<32x128xf32>
      %473 = arith.addf %472, %469 : vector<32x128xf32>
      %c0_150 = arith.constant 0 : index
      %c0_151 = arith.constant 0 : index
      %c0_152 = arith.constant 0 : index
      %474 = vector.load %arg12[%c0_150, %c0_151, %c0_152] : memref<1x32x128xf32, #tpu.memory_space<vmem>>, vector<1x32x128xf32>
      %475 = vector.shape_cast %474 : vector<1x32x128xf32> to vector<32x128xf32>
      %476 = vector.shape_cast %473 : vector<32x128xf32> to vector<1x32x128xf32>
      tpu.vector_store %arg12[%c0_150, %c0_151, %c0_152], %476 {strides = array<i32>} : memref<1x32x128xf32, #tpu.memory_space<vmem>>, vector<1x32x128xf32>,
    } else {
    }
    return
  }
  func.func @transform_0(%arg0: i32, %arg1: i32, %arg2: i32) -> (i32, i32) {
    %c0_i32 = arith.constant 0 : i32
    %c0_i32_0 = arith.constant 0 : i32
    return %arg1, %c0_i32 : i32, i32
  }
  func.func @transform_1(%arg0: i32, %arg1: i32, %arg2: i32) -> (i32, i32, i32) {
    %c0_i32 = arith.constant 0 : i32
    %c0_i32_0 = arith.constant 0 : i32
    return %arg0, %arg1, %c0_i32 : i32, i32, i32
  }
  func.func @transform_2(%arg0: i32, %arg1: i32, %arg2: i32) -> (i32, i32, i32, i32, i32) {
    %c0_i32 = arith.constant 0 : i32
    %c0_i32_0 = arith.constant 0 : i32
    %c0_i32_1 = arith.constant 0 : i32
    %c0_i32_2 = arith.constant 0 : i32
    return %arg0, %arg2, %c0_i32, %c0_i32_0, %c0_i32_1 : i32, i32, i32, i32, i32
  }
  func.func @transform_3(%arg0: i32, %arg1: i32, %arg2: i32) -> (i32, i32) {
    %c0_i32 = arith.constant 0 : i32
    %c0_i32_0 = arith.constant 0 : i32
    %c0_i32_1 = arith.constant 0 : i32
    return %c0_i32, %c0_i32_0 : i32, i32
  }
  func.func @transform_4(%arg0: i32, %arg1: i32, %arg2: i32) -> (i32, i32) {
    %c0_i32 = arith.constant 0 : i32
    %c0_i32_0 = arith.constant 0 : i32
    %c0_i32_1 = arith.constant 0 : i32
    return %c0_i32, %c0_i32_0 : i32, i32
  }
  func.func @transform_5(%arg0: i32, %arg1: i32, %arg2: i32) -> (i32, i32) {
    %c0_i32 = arith.constant 0 : i32
    %c0_i32_0 = arith.constant 0 : i32
    %c0_i32_1 = arith.constant 0 : i32
    return %c0_i32, %c0_i32_0 : i32, i32
  }
  func.func @transform_6(%arg0: i32, %arg1: i32, %arg2: i32) -> (i32, i32) {
    %c0_i32 = arith.constant 0 : i32
    %c0_i32_0 = arith.constant 0 : i32
    %c0_i32_1 = arith.constant 0 : i32
    return %c0_i32, %c0_i32_0 : i32, i32
  }
  func.func @transform_7(%arg0: i32, %arg1: i32, %arg2: i32) -> (i32, i32, i32) {
    %c2_i32 = arith.constant 2 : i32
    %0 = arith.muli %arg0, %c2_i32 : i32
    %1 = arith.addi %0, %arg2 : i32
    %c0_i32 = arith.constant 0 : i32
    %c0_i32_0 = arith.constant 0 : i32
    %c0_i32_1 = arith.constant 0 : i32
    return %1, %c0_i32, %c0_i32_0 : i32, i32, i32
  }
  func.func @transform_8(%arg0: i32, %arg1: i32, %arg2: i32) -> (i32, i32, i32) {
    %c2_i32 = arith.constant 2 : i32
    %0 = arith.muli %arg0, %c2_i32 : i32
    %1 = arith.addi %0, %arg2 : i32
    %c0_i32 = arith.constant 0 : i32
    %c0_i32_0 = arith.constant 0 : i32
    %c0_i32_1 = arith.constant 0 : i32
    return %1, %c0_i32, %c0_i32_0 : i32, i32, i32
  }
  func.func @transform_9(%arg0: i32, %arg1: i32, %arg2: i32) -> (i32, i32, i32) {
    %c0_i32 = arith.constant 0 : i32
    %c0_i32_0 = arith.constant 0 : i32
    return %arg0, %arg1, %c0_i32 : i32, i32, i32
  }
  func.func @transform_10(%arg0: i32, %arg1: i32, %arg2: i32) -> (i32, i32, i32) {
    %c0_i32 = arith.constant 0 : i32
    %c0_i32_0 = arith.constant 0 : i32
    return %arg0, %arg1, %c0_i32 : i32, i32, i32
  }
}

module attributes {stable_mosaic.version = 11 : i64} {
  func.func @kernel(%arg0: i32, %arg1: i32, %arg2: i32, %arg3: memref<32x128xf32, #tpu.memory_space<vmem>>, %arg4: memref<1x32x128xf32, #tpu.memory_space<vmem>>, %arg5: memref<1x1x2x4x4xf32, #tpu.memory_space<vmem>>, %arg6: memref<128x128xf32, #tpu.memory_space<vmem>>, %arg7: memref<1x128xf32, #tpu.memory_space<vmem>>, %arg8: memref<8x128xf32, #tpu.memory_space<vmem>>, %arg9: memref<1x128xf32, #tpu.memory_space<vmem>>, %arg10: memref<1x256x8xf32, #tpu.memory_space<vmem>>, %arg11: memref<1x64x8xf32, #tpu.memory_space<vmem>>, %arg12: memref<1x32x128xf32, #tpu.memory_space<vmem>>, %arg13: memref<1x32x128xf32, #tpu.memory_space<vmem>>, %arg14: memref<32x8xf32, #tpu.memory_space<vmem>>, %arg15: memref<32x1xf32, #tpu.memory_space<vmem>>, %arg16: memref<32x3xf32, #tpu.memory_space<vmem>>) attributes {dimension_semantics = [#tpu.dimension_semantics<parallel>, #tpu.dimension_semantics<parallel>, #tpu.dimension_semantics<arbitrary>], iteration_bounds = array<i64: 2, 2, 2>, scalar_prefetch = 0 : i64, scratch_operands = 3 : i64, tpu.core_type = #tpu.core_type<tc>, window_params = [{transform_indices = @transform_0, window_bounds = array<i64: 32, 128>}, {transform_indices = @transform_1, window_bounds = array<i64: 1, 32, 128>}, {transform_indices = @transform_2, window_bounds = array<i64: 1, 1, 2, 4, 4>}, {pipeline_mode = #tpu.pipeline_mode<synchronous>, transform_indices = @transform_3, window_bounds = array<i64: 128, 128>}, {pipeline_mode = #tpu.pipeline_mode<synchronous>, transform_indices = @transform_4, window_bounds = array<i64: 1, 128>}, {pipeline_mode = #tpu.pipeline_mode<synchronous>, transform_indices = @transform_5, window_bounds = array<i64: 8, 128>}, {pipeline_mode = #tpu.pipeline_mode<synchronous>, transform_indices = @transform_6, window_bounds = array<i64: 1, 128>}, {transform_indices = @transform_7, window_bounds = array<i64: 1, 256, 8>}, {transform_indices = @transform_8, window_bounds = array<i64: 1, 64, 8>}, {transform_indices = @transform_9, window_bounds = array<i64: 1, 32, 128>}, {transform_indices = @transform_10, window_bounds = array<i64: 1, 32, 128>}]} {
    %c0 = arith.constant 0 : index
    %c0_0 = arith.constant 0 : index
    %0 = vector.load %arg3[%c0, %c0_0] : memref<32x128xf32, #tpu.memory_space<vmem>>, vector<32x128xf32>
    %c0_i32 = arith.constant 0 : i32
    %1 = arith.cmpi eq, %arg2, %c0_i32 : i32
    %2 = arith.extui %1 : i1 to i32
    %c0_i32_1 = arith.constant 0 : i32
    %3 = arith.cmpi ne, %2, %c0_i32_1 : i32
    scf.if %3 {
      %c0_119 = arith.constant 0 : index
      %c0_120 = arith.constant 0 : index
      %374 = vector.load %arg6[%c0_119, %c0_120] : memref<128x128xf32, #tpu.memory_space<vmem>>, vector<128x128xf32>
      %cst_121 = arith.constant dense<0.000000e+00> : vector<32x128xf32>
      %375 = tpu.matmul %0, %374, %cst_121 {dimension_numbers = #tpu.dot_dimension_numbers<[1], [0], [0], [1], [0, 0, 1, 1], [], []>} : vector<32x128xf32>, vector<128x128xf32>, vector<32x128xf32> -> vector<32x128xf32>
      %c0_122 = arith.constant 0 : index
      %c0_123 = arith.constant 0 : index
      %376 = vector.load %arg7[%c0_122, %c0_123] : memref<1x128xf32, #tpu.memory_space<vmem>>, vector<1x128xf32>
      %377 = vector.broadcast %376 : vector<1x128xf32> to vector<32x128xf32>
      %378 = arith.addf %375, %377 : vector<32x128xf32>
      %c0_124 = arith.constant 0 : index
      %c0_125 = arith.constant 0 : index
      %c0_126 = arith.constant 0 : index
      %379 = vector.load %arg13[%c0_124, %c0_125, %c0_126] : memref<1x32x128xf32, #tpu.memory_space<vmem>>, vector<1x32x128xf32>
      %380 = vector.shape_cast %379 : vector<1x32x128xf32> to vector<32x128xf32>
      %381 = vector.shape_cast %378 : vector<32x128xf32> to vector<1x32x128xf32>
      tpu.vector_store %arg13[%c0_124, %c0_125, %c0_126], %381 {strides = array<i32>} : memref<1x32x128xf32, #tpu.memory_space<vmem>>, vector<1x32x128xf32>,
      %382 = vector.extract_strided_slice %378 {offsets = [0, 0], sizes = [32, 3], strides = [1, 1]} : vector<32x128xf32> to vector<32x3xf32>
      %cst_127 = arith.constant 0.000000e+00 : f32
      %383 = vector.broadcast %cst_127 : f32 to vector<32x3xf32>
      %384 = arith.subf %383, %382 : vector<32x3xf32>
      %385 = math.exp %384 : vector<32x3xf32>
      %cst_128 = arith.constant 1.000000e+00 : f32
      %386 = vector.broadcast %cst_128 : f32 to vector<32x3xf32>
      %387 = arith.addf %386, %385 : vector<32x3xf32>
      %388 = tpu.reciprocal %387 {approx = true} : vector<32x3xf32> -> vector<32x3xf32>
      %c0_129 = arith.constant 0 : index
      %c0_130 = arith.constant 0 : index
      %389 = vector.load %arg16[%c0_129, %c0_130] : memref<32x3xf32, #tpu.memory_space<vmem>>, vector<32x3xf32>
      tpu.vector_store %arg16[%c0_129, %c0_130], %388 {strides = array<i32>} : memref<32x3xf32, #tpu.memory_space<vmem>>, vector<32x3xf32>,
      %cst_131 = arith.constant 0.000000e+00 : f32
      %390 = vector.broadcast %cst_131 : f32 to vector<32x8xf32>
      %c0_132 = arith.constant 0 : index
      %c0_133 = arith.constant 0 : index
      %391 = vector.load %arg14[%c0_132, %c0_133] : memref<32x8xf32, #tpu.memory_space<vmem>>, vector<32x8xf32>
      tpu.vector_store %arg14[%c0_132, %c0_133], %390 {strides = array<i32>} : memref<32x8xf32, #tpu.memory_space<vmem>>, vector<32x8xf32>,
      %cst_134 = arith.constant 0.000000e+00 : f32
      %392 = vector.broadcast %cst_134 : f32 to vector<32x1xf32>
      %c0_135 = arith.constant 0 : index
      %c0_136 = arith.constant 0 : index
      %393 = vector.load %arg15[%c0_135, %c0_136] : memref<32x1xf32, #tpu.memory_space<vmem>>, vector<32x1xf32>
      tpu.vector_store %arg15[%c0_135, %c0_136], %392 {strides = array<i32>} : memref<32x1xf32, #tpu.memory_space<vmem>>, vector<32x1xf32>,
    } else {
    }
    %c0_2 = arith.constant 0 : index
    %c0_3 = arith.constant 0 : index
    %4 = vector.load %arg16[%c0_2, %c0_3] : memref<32x3xf32, #tpu.memory_space<vmem>>, vector<32x3xf32>
    %c0_4 = arith.constant 0 : index
    %c0_5 = arith.constant 0 : index
    %c0_6 = arith.constant 0 : index
    %5 = vector.load %arg10[%c0_4, %c0_5, %c0_6] : memref<1x256x8xf32, #tpu.memory_space<vmem>>, vector<1x256x8xf32>
    %6 = vector.shape_cast %5 : vector<1x256x8xf32> to vector<256x8xf32>
    %c0_7 = arith.constant 0 : index
    %c0_8 = arith.constant 0 : index
    %c0_9 = arith.constant 0 : index
    %c0_10 = arith.constant 0 : index
    %c0_11 = arith.constant 0 : index
    %7 = vector.load %arg5[%c0_7, %c0_8, %c0_9, %c0_10, %c0_11] : memref<1x1x2x4x4xf32, #tpu.memory_space<vmem>>, vector<1x1x1x4x4xf32>
    %8 = vector.shape_cast %7 : vector<1x1x1x4x4xf32> to vector<4x4xf32>
    %9 = vector.extract_strided_slice %4 {offsets = [0, 0], sizes = [32, 1], strides = [1, 1]} : vector<32x3xf32> to vector<32x1xf32>
    %10 = vector.extract_strided_slice %8 {offsets = [0, 0], sizes = [1, 4], strides = [1, 1]} : vector<4x4xf32> to vector<1x4xf32>
    %11 = vector.broadcast %9 : vector<32x1xf32> to vector<32x4xf32>
    %12 = vector.broadcast %10 : vector<1x4xf32> to vector<32x4xf32>
    %13 = arith.mulf %11, %12 : vector<32x4xf32>
    %14 = vector.extract_strided_slice %4 {offsets = [0, 1], sizes = [32, 1], strides = [1, 1]} : vector<32x3xf32> to vector<32x1xf32>
    %15 = vector.extract_strided_slice %8 {offsets = [1, 0], sizes = [1, 4], strides = [1, 1]} : vector<4x4xf32> to vector<1x4xf32>
    %16 = vector.broadcast %14 : vector<32x1xf32> to vector<32x4xf32>
    %17 = vector.broadcast %15 : vector<1x4xf32> to vector<32x4xf32>
    %18 = arith.mulf %16, %17 : vector<32x4xf32>
    %19 = arith.addf %13, %18 : vector<32x4xf32>
    %20 = vector.extract_strided_slice %4 {offsets = [0, 2], sizes = [32, 1], strides = [1, 1]} : vector<32x3xf32> to vector<32x1xf32>
    %21 = vector.extract_strided_slice %8 {offsets = [2, 0], sizes = [1, 4], strides = [1, 1]} : vector<4x4xf32> to vector<1x4xf32>
    %22 = vector.broadcast %20 : vector<32x1xf32> to vector<32x4xf32>
    %23 = vector.broadcast %21 : vector<1x4xf32> to vector<32x4xf32>
    %24 = arith.mulf %22, %23 : vector<32x4xf32>
    %25 = arith.addf %19, %24 : vector<32x4xf32>
    %26 = vector.extract_strided_slice %8 {offsets = [3, 0], sizes = [1, 4], strides = [1, 1]} : vector<4x4xf32> to vector<1x4xf32>
    %27 = vector.broadcast %26 : vector<1x4xf32> to vector<32x4xf32>
    %28 = arith.addf %25, %27 : vector<32x4xf32>
    %29 = vector.extract_strided_slice %28 {offsets = [0, 2], sizes = [32, 1], strides = [1, 1]} : vector<32x4xf32> to vector<32x1xf32>
    %cst = arith.constant 5.000000e-02 : f32
    %30 = vector.broadcast %cst : f32 to vector<32x1xf32>
    %31 = arith.maximumf %29, %30 : vector<32x1xf32>
    %32 = tpu.reciprocal %31 {approx = true} : vector<32x1xf32> -> vector<32x1xf32>
    %33 = vector.extract_strided_slice %28 {offsets = [0, 0], sizes = [32, 1], strides = [1, 1]} : vector<32x4xf32> to vector<32x1xf32>
    %34 = arith.mulf %33, %32 : vector<32x1xf32>
    %35 = vector.extract_strided_slice %28 {offsets = [0, 1], sizes = [32, 1], strides = [1, 1]} : vector<32x4xf32> to vector<32x1xf32>
    %36 = arith.mulf %35, %32 : vector<32x1xf32>
    %cst_12 = arith.constant 0.000000e+00 : f32
    %37 = vector.broadcast %cst_12 : f32 to vector<32x1xf32>
    %38 = arith.cmpf oge, %34, %37 : vector<32x1xf32>
    %cst_13 = arith.constant 1.600000e+01 : f32
    %39 = vector.broadcast %cst_13 : f32 to vector<32x1xf32>
    %40 = arith.cmpf olt, %34, %39 : vector<32x1xf32>
    %41 = arith.andi %38, %40 : vector<32x1xi1>
    %cst_14 = arith.constant 0.000000e+00 : f32
    %42 = vector.broadcast %cst_14 : f32 to vector<32x1xf32>
    %43 = arith.cmpf oge, %36, %42 : vector<32x1xf32>
    %44 = arith.andi %41, %43 : vector<32x1xi1>
    %cst_15 = arith.constant 1.600000e+01 : f32
    %45 = vector.broadcast %cst_15 : f32 to vector<32x1xf32>
    %46 = arith.cmpf olt, %36, %45 : vector<32x1xf32>
    %47 = arith.andi %44, %46 : vector<32x1xi1>
    %48 = arith.extui %47 : vector<32x1xi1> to vector<32x1xi32>
    %49 = arith.sitofp %48 : vector<32x1xi32> to vector<32x1xf32>
    %50 = math.floor %34 : vector<32x1xf32>
    %51 = math.floor %36 : vector<32x1xf32>
    %52 = arith.subf %34, %50 : vector<32x1xf32>
    %53 = arith.subf %36, %51 : vector<32x1xf32>
    %54 = arith.fptosi %50 : vector<32x1xf32> to vector<32x1xi32>
    %55 = arith.fptosi %51 : vector<32x1xf32> to vector<32x1xi32>
    %c16_i32 = arith.constant 16 : i32
    %56 = vector.broadcast %c16_i32 : i32 to vector<32x1xi32>
    %57 = arith.muli %55, %56 : vector<32x1xi32>
    %58 = arith.addi %57, %54 : vector<32x1xi32>
    %cst_16 = arith.constant 1.000000e+00 : f32
    %59 = vector.broadcast %cst_16 : f32 to vector<32x1xf32>
    %60 = arith.subf %59, %52 : vector<32x1xf32>
    %cst_17 = arith.constant 1.000000e+00 : f32
    %61 = vector.broadcast %cst_17 : f32 to vector<32x1xf32>
    %62 = arith.subf %61, %53 : vector<32x1xf32>
    %63 = arith.mulf %60, %62 : vector<32x1xf32>
    %cst_18 = arith.constant 1.000000e+00 : f32
    %64 = vector.broadcast %cst_18 : f32 to vector<32x1xf32>
    %65 = arith.subf %64, %53 : vector<32x1xf32>
    %66 = arith.mulf %52, %65 : vector<32x1xf32>
    %cst_19 = arith.constant 1.000000e+00 : f32
    %67 = vector.broadcast %cst_19 : f32 to vector<32x1xf32>
    %68 = arith.subf %67, %52 : vector<32x1xf32>
    %69 = arith.mulf %68, %53 : vector<32x1xf32>
    %70 = arith.mulf %52, %53 : vector<32x1xf32>
    %71 = tpu.iota {dimensions = array<i32: 1>} : vector<32x256xi32>
    %cst_20 = arith.constant 0.000000e+00 : f32
    %72 = vector.broadcast %cst_20 : f32 to vector<32x256xf32>
    %c0_i32_21 = arith.constant 0 : i32
    %73 = vector.broadcast %c0_i32_21 : i32 to vector<32x1xi32>
    %74 = arith.addi %54, %73 : vector<32x1xi32>
    %c0_i32_22 = arith.constant 0 : i32
    %75 = vector.broadcast %c0_i32_22 : i32 to vector<32x1xi32>
    %76 = arith.addi %55, %75 : vector<32x1xi32>
    %c0_i32_23 = arith.constant 0 : i32
    %77 = vector.broadcast %c0_i32_23 : i32 to vector<32x1xi32>
    %78 = arith.cmpi sge, %74, %77 : vector<32x1xi32>
    %c16_i32_24 = arith.constant 16 : i32
    %79 = vector.broadcast %c16_i32_24 : i32 to vector<32x1xi32>
    %80 = arith.cmpi slt, %74, %79 : vector<32x1xi32>
    %81 = arith.andi %78, %80 : vector<32x1xi1>
    %c0_i32_25 = arith.constant 0 : i32
    %82 = vector.broadcast %c0_i32_25 : i32 to vector<32x1xi32>
    %83 = arith.cmpi sge, %76, %82 : vector<32x1xi32>
    %84 = arith.andi %81, %83 : vector<32x1xi1>
    %c16_i32_26 = arith.constant 16 : i32
    %85 = vector.broadcast %c16_i32_26 : i32 to vector<32x1xi32>
    %86 = arith.cmpi slt, %76, %85 : vector<32x1xi32>
    %87 = arith.andi %84, %86 : vector<32x1xi1>
    %c0_i32_27 = arith.constant 0 : i32
    %88 = vector.broadcast %c0_i32_27 : i32 to vector<32x1xi32>
    %89 = arith.addi %58, %88 : vector<32x1xi32>
    %90 = vector.broadcast %89 : vector<32x1xi32> to vector<32x256xi32>
    %91 = arith.cmpi eq, %71, %90 : vector<32x256xi32>
    %92 = vector.broadcast %87 : vector<32x1xi1> to vector<32x256xi1>
    %93 = arith.andi %91, %92 : vector<32x256xi1>
    %cst_28 = arith.constant 0.000000e+00 : f32
    %94 = vector.shape_cast %63 : vector<32x1xf32> to vector<32x1xf32>
    %95 = vector.broadcast %94 : vector<32x1xf32> to vector<32x256xf32>
    %96 = vector.broadcast %cst_28 : f32 to vector<32x256xf32>
    %97 = arith.select %93, %95, %96 : vector<32x256xi1>, vector<32x256xf32>
    %98 = arith.addf %72, %97 : vector<32x256xf32>
    %c1_i32 = arith.constant 1 : i32
    %99 = vector.broadcast %c1_i32 : i32 to vector<32x1xi32>
    %100 = arith.addi %54, %99 : vector<32x1xi32>
    %c0_i32_29 = arith.constant 0 : i32
    %101 = vector.broadcast %c0_i32_29 : i32 to vector<32x1xi32>
    %102 = arith.addi %55, %101 : vector<32x1xi32>
    %c0_i32_30 = arith.constant 0 : i32
    %103 = vector.broadcast %c0_i32_30 : i32 to vector<32x1xi32>
    %104 = arith.cmpi sge, %100, %103 : vector<32x1xi32>
    %c16_i32_31 = arith.constant 16 : i32
    %105 = vector.broadcast %c16_i32_31 : i32 to vector<32x1xi32>
    %106 = arith.cmpi slt, %100, %105 : vector<32x1xi32>
    %107 = arith.andi %104, %106 : vector<32x1xi1>
    %c0_i32_32 = arith.constant 0 : i32
    %108 = vector.broadcast %c0_i32_32 : i32 to vector<32x1xi32>
    %109 = arith.cmpi sge, %102, %108 : vector<32x1xi32>
    %110 = arith.andi %107, %109 : vector<32x1xi1>
    %c16_i32_33 = arith.constant 16 : i32
    %111 = vector.broadcast %c16_i32_33 : i32 to vector<32x1xi32>
    %112 = arith.cmpi slt, %102, %111 : vector<32x1xi32>
    %113 = arith.andi %110, %112 : vector<32x1xi1>
    %c1_i32_34 = arith.constant 1 : i32
    %114 = vector.broadcast %c1_i32_34 : i32 to vector<32x1xi32>
    %115 = arith.addi %58, %114 : vector<32x1xi32>
    %116 = vector.broadcast %115 : vector<32x1xi32> to vector<32x256xi32>
    %117 = arith.cmpi eq, %71, %116 : vector<32x256xi32>
    %118 = vector.broadcast %113 : vector<32x1xi1> to vector<32x256xi1>
    %119 = arith.andi %117, %118 : vector<32x256xi1>
    %cst_35 = arith.constant 0.000000e+00 : f32
    %120 = vector.shape_cast %66 : vector<32x1xf32> to vector<32x1xf32>
    %121 = vector.broadcast %120 : vector<32x1xf32> to vector<32x256xf32>
    %122 = vector.broadcast %cst_35 : f32 to vector<32x256xf32>
    %123 = arith.select %119, %121, %122 : vector<32x256xi1>, vector<32x256xf32>
    %124 = arith.addf %98, %123 : vector<32x256xf32>
    %c0_i32_36 = arith.constant 0 : i32
    %125 = vector.broadcast %c0_i32_36 : i32 to vector<32x1xi32>
    %126 = arith.addi %54, %125 : vector<32x1xi32>
    %c1_i32_37 = arith.constant 1 : i32
    %127 = vector.broadcast %c1_i32_37 : i32 to vector<32x1xi32>
    %128 = arith.addi %55, %127 : vector<32x1xi32>
    %c0_i32_38 = arith.constant 0 : i32
    %129 = vector.broadcast %c0_i32_38 : i32 to vector<32x1xi32>
    %130 = arith.cmpi sge, %126, %129 : vector<32x1xi32>
    %c16_i32_39 = arith.constant 16 : i32
    %131 = vector.broadcast %c16_i32_39 : i32 to vector<32x1xi32>
    %132 = arith.cmpi slt, %126, %131 : vector<32x1xi32>
    %133 = arith.andi %130, %132 : vector<32x1xi1>
    %c0_i32_40 = arith.constant 0 : i32
    %134 = vector.broadcast %c0_i32_40 : i32 to vector<32x1xi32>
    %135 = arith.cmpi sge, %128, %134 : vector<32x1xi32>
    %136 = arith.andi %133, %135 : vector<32x1xi1>
    %c16_i32_41 = arith.constant 16 : i32
    %137 = vector.broadcast %c16_i32_41 : i32 to vector<32x1xi32>
    %138 = arith.cmpi slt, %128, %137 : vector<32x1xi32>
    %139 = arith.andi %136, %138 : vector<32x1xi1>
    %c16_i32_42 = arith.constant 16 : i32
    %140 = vector.broadcast %c16_i32_42 : i32 to vector<32x1xi32>
    %141 = arith.addi %58, %140 : vector<32x1xi32>
    %142 = vector.broadcast %141 : vector<32x1xi32> to vector<32x256xi32>
    %143 = arith.cmpi eq, %71, %142 : vector<32x256xi32>
    %144 = vector.broadcast %139 : vector<32x1xi1> to vector<32x256xi1>
    %145 = arith.andi %143, %144 : vector<32x256xi1>
    %cst_43 = arith.constant 0.000000e+00 : f32
    %146 = vector.shape_cast %69 : vector<32x1xf32> to vector<32x1xf32>
    %147 = vector.broadcast %146 : vector<32x1xf32> to vector<32x256xf32>
    %148 = vector.broadcast %cst_43 : f32 to vector<32x256xf32>
    %149 = arith.select %145, %147, %148 : vector<32x256xi1>, vector<32x256xf32>
    %150 = arith.addf %124, %149 : vector<32x256xf32>
    %c1_i32_44 = arith.constant 1 : i32
    %151 = vector.broadcast %c1_i32_44 : i32 to vector<32x1xi32>
    %152 = arith.addi %54, %151 : vector<32x1xi32>
    %c1_i32_45 = arith.constant 1 : i32
    %153 = vector.broadcast %c1_i32_45 : i32 to vector<32x1xi32>
    %154 = arith.addi %55, %153 : vector<32x1xi32>
    %c0_i32_46 = arith.constant 0 : i32
    %155 = vector.broadcast %c0_i32_46 : i32 to vector<32x1xi32>
    %156 = arith.cmpi sge, %152, %155 : vector<32x1xi32>
    %c16_i32_47 = arith.constant 16 : i32
    %157 = vector.broadcast %c16_i32_47 : i32 to vector<32x1xi32>
    %158 = arith.cmpi slt, %152, %157 : vector<32x1xi32>
    %159 = arith.andi %156, %158 : vector<32x1xi1>
    %c0_i32_48 = arith.constant 0 : i32
    %160 = vector.broadcast %c0_i32_48 : i32 to vector<32x1xi32>
    %161 = arith.cmpi sge, %154, %160 : vector<32x1xi32>
    %162 = arith.andi %159, %161 : vector<32x1xi1>
    %c16_i32_49 = arith.constant 16 : i32
    %163 = vector.broadcast %c16_i32_49 : i32 to vector<32x1xi32>
    %164 = arith.cmpi slt, %154, %163 : vector<32x1xi32>
    %165 = arith.andi %162, %164 : vector<32x1xi1>
    %c17_i32 = arith.constant 17 : i32
    %166 = vector.broadcast %c17_i32 : i32 to vector<32x1xi32>
    %167 = arith.addi %58, %166 : vector<32x1xi32>
    %168 = vector.broadcast %167 : vector<32x1xi32> to vector<32x256xi32>
    %169 = arith.cmpi eq, %71, %168 : vector<32x256xi32>
    %170 = vector.broadcast %165 : vector<32x1xi1> to vector<32x256xi1>
    %171 = arith.andi %169, %170 : vector<32x256xi1>
    %cst_50 = arith.constant 0.000000e+00 : f32
    %172 = vector.shape_cast %70 : vector<32x1xf32> to vector<32x1xf32>
    %173 = vector.broadcast %172 : vector<32x1xf32> to vector<32x256xf32>
    %174 = vector.broadcast %cst_50 : f32 to vector<32x256xf32>
    %175 = arith.select %171, %173, %174 : vector<32x256xi1>, vector<32x256xf32>
    %176 = arith.addf %150, %175 : vector<32x256xf32>
    %177 = vector.broadcast %49 : vector<32x1xf32> to vector<32x256xf32>
    %178 = arith.mulf %176, %177 : vector<32x256xf32>
    %179 = arith.truncf %178 : vector<32x256xf32> to vector<32x256xbf16>
    %180 = arith.truncf %6 : vector<256x8xf32> to vector<256x8xbf16>
    %cst_51 = arith.constant dense<0.000000e+00> : vector<32x8xf32>
    %181 = tpu.matmul %179, %180, %cst_51 {dimension_numbers = #tpu.dot_dimension_numbers<[1], [0], [0], [1], [0, 0, 1, 1], [], []>} : vector<32x256xbf16>, vector<256x8xbf16>, vector<32x8xf32> -> vector<32x8xf32>
    %c0_52 = arith.constant 0 : index
    %c0_53 = arith.constant 0 : index
    %182 = vector.load %arg14[%c0_52, %c0_53] : memref<32x8xf32, #tpu.memory_space<vmem>>, vector<32x8xf32>
    %183 = arith.addf %182, %181 : vector<32x8xf32>
    %c0_54 = arith.constant 0 : index
    %c0_55 = arith.constant 0 : index
    %184 = vector.load %arg14[%c0_54, %c0_55] : memref<32x8xf32, #tpu.memory_space<vmem>>, vector<32x8xf32>
    tpu.vector_store %arg14[%c0_54, %c0_55], %183 {strides = array<i32>} : memref<32x8xf32, #tpu.memory_space<vmem>>, vector<32x8xf32>,
    %c0_56 = arith.constant 0 : index
    %c0_57 = arith.constant 0 : index
    %185 = vector.load %arg15[%c0_56, %c0_57] : memref<32x1xf32, #tpu.memory_space<vmem>>, vector<32x1xf32>
    %186 = arith.addf %185, %49 : vector<32x1xf32>
    %c0_58 = arith.constant 0 : index
    %c0_59 = arith.constant 0 : index
    %187 = vector.load %arg15[%c0_58, %c0_59] : memref<32x1xf32, #tpu.memory_space<vmem>>, vector<32x1xf32>
    tpu.vector_store %arg15[%c0_58, %c0_59], %186 {strides = array<i32>} : memref<32x1xf32, #tpu.memory_space<vmem>>, vector<32x1xf32>,
    %c0_60 = arith.constant 0 : index
    %c0_61 = arith.constant 0 : index
    %c0_62 = arith.constant 0 : index
    %188 = vector.load %arg11[%c0_60, %c0_61, %c0_62] : memref<1x64x8xf32, #tpu.memory_space<vmem>>, vector<1x64x8xf32>
    %189 = vector.shape_cast %188 : vector<1x64x8xf32> to vector<64x8xf32>
    %c0_63 = arith.constant 0 : index
    %c0_64 = arith.constant 0 : index
    %c1 = arith.constant 1 : index
    %c0_65 = arith.constant 0 : index
    %c0_66 = arith.constant 0 : index
    %190 = vector.load %arg5[%c0_63, %c0_64, %c1, %c0_65, %c0_66] : memref<1x1x2x4x4xf32, #tpu.memory_space<vmem>>, vector<1x1x1x4x4xf32>
    %191 = vector.shape_cast %190 : vector<1x1x1x4x4xf32> to vector<4x4xf32>
    %192 = vector.extract_strided_slice %4 {offsets = [0, 0], sizes = [32, 1], strides = [1, 1]} : vector<32x3xf32> to vector<32x1xf32>
    %193 = vector.extract_strided_slice %191 {offsets = [0, 0], sizes = [1, 4], strides = [1, 1]} : vector<4x4xf32> to vector<1x4xf32>
    %194 = vector.broadcast %192 : vector<32x1xf32> to vector<32x4xf32>
    %195 = vector.broadcast %193 : vector<1x4xf32> to vector<32x4xf32>
    %196 = arith.mulf %194, %195 : vector<32x4xf32>
    %197 = vector.extract_strided_slice %4 {offsets = [0, 1], sizes = [32, 1], strides = [1, 1]} : vector<32x3xf32> to vector<32x1xf32>
    %198 = vector.extract_strided_slice %191 {offsets = [1, 0], sizes = [1, 4], strides = [1, 1]} : vector<4x4xf32> to vector<1x4xf32>
    %199 = vector.broadcast %197 : vector<32x1xf32> to vector<32x4xf32>
    %200 = vector.broadcast %198 : vector<1x4xf32> to vector<32x4xf32>
    %201 = arith.mulf %199, %200 : vector<32x4xf32>
    %202 = arith.addf %196, %201 : vector<32x4xf32>
    %203 = vector.extract_strided_slice %4 {offsets = [0, 2], sizes = [32, 1], strides = [1, 1]} : vector<32x3xf32> to vector<32x1xf32>
    %204 = vector.extract_strided_slice %191 {offsets = [2, 0], sizes = [1, 4], strides = [1, 1]} : vector<4x4xf32> to vector<1x4xf32>
    %205 = vector.broadcast %203 : vector<32x1xf32> to vector<32x4xf32>
    %206 = vector.broadcast %204 : vector<1x4xf32> to vector<32x4xf32>
    %207 = arith.mulf %205, %206 : vector<32x4xf32>
    %208 = arith.addf %202, %207 : vector<32x4xf32>
    %209 = vector.extract_strided_slice %191 {offsets = [3, 0], sizes = [1, 4], strides = [1, 1]} : vector<4x4xf32> to vector<1x4xf32>
    %210 = vector.broadcast %209 : vector<1x4xf32> to vector<32x4xf32>
    %211 = arith.addf %208, %210 : vector<32x4xf32>
    %212 = vector.extract_strided_slice %211 {offsets = [0, 2], sizes = [32, 1], strides = [1, 1]} : vector<32x4xf32> to vector<32x1xf32>
    %cst_67 = arith.constant 5.000000e-02 : f32
    %213 = vector.broadcast %cst_67 : f32 to vector<32x1xf32>
    %214 = arith.maximumf %212, %213 : vector<32x1xf32>
    %215 = tpu.reciprocal %214 {approx = true} : vector<32x1xf32> -> vector<32x1xf32>
    %216 = vector.extract_strided_slice %211 {offsets = [0, 0], sizes = [32, 1], strides = [1, 1]} : vector<32x4xf32> to vector<32x1xf32>
    %217 = arith.mulf %216, %215 : vector<32x1xf32>
    %218 = vector.extract_strided_slice %211 {offsets = [0, 1], sizes = [32, 1], strides = [1, 1]} : vector<32x4xf32> to vector<32x1xf32>
    %219 = arith.mulf %218, %215 : vector<32x1xf32>
    %cst_68 = arith.constant 0.000000e+00 : f32
    %220 = vector.broadcast %cst_68 : f32 to vector<32x1xf32>
    %221 = arith.cmpf oge, %217, %220 : vector<32x1xf32>
    %cst_69 = arith.constant 8.000000e+00 : f32
    %222 = vector.broadcast %cst_69 : f32 to vector<32x1xf32>
    %223 = arith.cmpf olt, %217, %222 : vector<32x1xf32>
    %224 = arith.andi %221, %223 : vector<32x1xi1>
    %cst_70 = arith.constant 0.000000e+00 : f32
    %225 = vector.broadcast %cst_70 : f32 to vector<32x1xf32>
    %226 = arith.cmpf oge, %219, %225 : vector<32x1xf32>
    %227 = arith.andi %224, %226 : vector<32x1xi1>
    %cst_71 = arith.constant 8.000000e+00 : f32
    %228 = vector.broadcast %cst_71 : f32 to vector<32x1xf32>
    %229 = arith.cmpf olt, %219, %228 : vector<32x1xf32>
    %230 = arith.andi %227, %229 : vector<32x1xi1>
    %231 = arith.extui %230 : vector<32x1xi1> to vector<32x1xi32>
    %232 = arith.sitofp %231 : vector<32x1xi32> to vector<32x1xf32>
    %233 = math.floor %217 : vector<32x1xf32>
    %234 = math.floor %219 : vector<32x1xf32>
    %235 = arith.subf %217, %233 : vector<32x1xf32>
    %236 = arith.subf %219, %234 : vector<32x1xf32>
    %237 = arith.fptosi %233 : vector<32x1xf32> to vector<32x1xi32>
    %238 = arith.fptosi %234 : vector<32x1xf32> to vector<32x1xi32>
    %c8_i32 = arith.constant 8 : i32
    %239 = vector.broadcast %c8_i32 : i32 to vector<32x1xi32>
    %240 = arith.muli %238, %239 : vector<32x1xi32>
    %241 = arith.addi %240, %237 : vector<32x1xi32>
    %cst_72 = arith.constant 1.000000e+00 : f32
    %242 = vector.broadcast %cst_72 : f32 to vector<32x1xf32>
    %243 = arith.subf %242, %235 : vector<32x1xf32>
    %cst_73 = arith.constant 1.000000e+00 : f32
    %244 = vector.broadcast %cst_73 : f32 to vector<32x1xf32>
    %245 = arith.subf %244, %236 : vector<32x1xf32>
    %246 = arith.mulf %243, %245 : vector<32x1xf32>
    %cst_74 = arith.constant 1.000000e+00 : f32
    %247 = vector.broadcast %cst_74 : f32 to vector<32x1xf32>
    %248 = arith.subf %247, %236 : vector<32x1xf32>
    %249 = arith.mulf %235, %248 : vector<32x1xf32>
    %cst_75 = arith.constant 1.000000e+00 : f32
    %250 = vector.broadcast %cst_75 : f32 to vector<32x1xf32>
    %251 = arith.subf %250, %235 : vector<32x1xf32>
    %252 = arith.mulf %251, %236 : vector<32x1xf32>
    %253 = arith.mulf %235, %236 : vector<32x1xf32>
    %254 = tpu.iota {dimensions = array<i32: 1>} : vector<32x64xi32>
    %cst_76 = arith.constant 0.000000e+00 : f32
    %255 = vector.broadcast %cst_76 : f32 to vector<32x64xf32>
    %c0_i32_77 = arith.constant 0 : i32
    %256 = vector.broadcast %c0_i32_77 : i32 to vector<32x1xi32>
    %257 = arith.addi %237, %256 : vector<32x1xi32>
    %c0_i32_78 = arith.constant 0 : i32
    %258 = vector.broadcast %c0_i32_78 : i32 to vector<32x1xi32>
    %259 = arith.addi %238, %258 : vector<32x1xi32>
    %c0_i32_79 = arith.constant 0 : i32
    %260 = vector.broadcast %c0_i32_79 : i32 to vector<32x1xi32>
    %261 = arith.cmpi sge, %257, %260 : vector<32x1xi32>
    %c8_i32_80 = arith.constant 8 : i32
    %262 = vector.broadcast %c8_i32_80 : i32 to vector<32x1xi32>
    %263 = arith.cmpi slt, %257, %262 : vector<32x1xi32>
    %264 = arith.andi %261, %263 : vector<32x1xi1>
    %c0_i32_81 = arith.constant 0 : i32
    %265 = vector.broadcast %c0_i32_81 : i32 to vector<32x1xi32>
    %266 = arith.cmpi sge, %259, %265 : vector<32x1xi32>
    %267 = arith.andi %264, %266 : vector<32x1xi1>
    %c8_i32_82 = arith.constant 8 : i32
    %268 = vector.broadcast %c8_i32_82 : i32 to vector<32x1xi32>
    %269 = arith.cmpi slt, %259, %268 : vector<32x1xi32>
    %270 = arith.andi %267, %269 : vector<32x1xi1>
    %c0_i32_83 = arith.constant 0 : i32
    %271 = vector.broadcast %c0_i32_83 : i32 to vector<32x1xi32>
    %272 = arith.addi %241, %271 : vector<32x1xi32>
    %273 = vector.broadcast %272 : vector<32x1xi32> to vector<32x64xi32>
    %274 = arith.cmpi eq, %254, %273 : vector<32x64xi32>
    %275 = vector.broadcast %270 : vector<32x1xi1> to vector<32x64xi1>
    %276 = arith.andi %274, %275 : vector<32x64xi1>
    %cst_84 = arith.constant 0.000000e+00 : f32
    %277 = vector.shape_cast %246 : vector<32x1xf32> to vector<32x1xf32>
    %278 = vector.broadcast %277 : vector<32x1xf32> to vector<32x64xf32>
    %279 = vector.broadcast %cst_84 : f32 to vector<32x64xf32>
    %280 = arith.select %276, %278, %279 : vector<32x64xi1>, vector<32x64xf32>
    %281 = arith.addf %255, %280 : vector<32x64xf32>
    %c1_i32_85 = arith.constant 1 : i32
    %282 = vector.broadcast %c1_i32_85 : i32 to vector<32x1xi32>
    %283 = arith.addi %237, %282 : vector<32x1xi32>
    %c0_i32_86 = arith.constant 0 : i32
    %284 = vector.broadcast %c0_i32_86 : i32 to vector<32x1xi32>
    %285 = arith.addi %238, %284 : vector<32x1xi32>
    %c0_i32_87 = arith.constant 0 : i32
    %286 = vector.broadcast %c0_i32_87 : i32 to vector<32x1xi32>
    %287 = arith.cmpi sge, %283, %286 : vector<32x1xi32>
    %c8_i32_88 = arith.constant 8 : i32
    %288 = vector.broadcast %c8_i32_88 : i32 to vector<32x1xi32>
    %289 = arith.cmpi slt, %283, %288 : vector<32x1xi32>
    %290 = arith.andi %287, %289 : vector<32x1xi1>
    %c0_i32_89 = arith.constant 0 : i32
    %291 = vector.broadcast %c0_i32_89 : i32 to vector<32x1xi32>
    %292 = arith.cmpi sge, %285, %291 : vector<32x1xi32>
    %293 = arith.andi %290, %292 : vector<32x1xi1>
    %c8_i32_90 = arith.constant 8 : i32
    %294 = vector.broadcast %c8_i32_90 : i32 to vector<32x1xi32>
    %295 = arith.cmpi slt, %285, %294 : vector<32x1xi32>
    %296 = arith.andi %293, %295 : vector<32x1xi1>
    %c1_i32_91 = arith.constant 1 : i32
    %297 = vector.broadcast %c1_i32_91 : i32 to vector<32x1xi32>
    %298 = arith.addi %241, %297 : vector<32x1xi32>
    %299 = vector.broadcast %298 : vector<32x1xi32> to vector<32x64xi32>
    %300 = arith.cmpi eq, %254, %299 : vector<32x64xi32>
    %301 = vector.broadcast %296 : vector<32x1xi1> to vector<32x64xi1>
    %302 = arith.andi %300, %301 : vector<32x64xi1>
    %cst_92 = arith.constant 0.000000e+00 : f32
    %303 = vector.shape_cast %249 : vector<32x1xf32> to vector<32x1xf32>
    %304 = vector.broadcast %303 : vector<32x1xf32> to vector<32x64xf32>
    %305 = vector.broadcast %cst_92 : f32 to vector<32x64xf32>
    %306 = arith.select %302, %304, %305 : vector<32x64xi1>, vector<32x64xf32>
    %307 = arith.addf %281, %306 : vector<32x64xf32>
    %c0_i32_93 = arith.constant 0 : i32
    %308 = vector.broadcast %c0_i32_93 : i32 to vector<32x1xi32>
    %309 = arith.addi %237, %308 : vector<32x1xi32>
    %c1_i32_94 = arith.constant 1 : i32
    %310 = vector.broadcast %c1_i32_94 : i32 to vector<32x1xi32>
    %311 = arith.addi %238, %310 : vector<32x1xi32>
    %c0_i32_95 = arith.constant 0 : i32
    %312 = vector.broadcast %c0_i32_95 : i32 to vector<32x1xi32>
    %313 = arith.cmpi sge, %309, %312 : vector<32x1xi32>
    %c8_i32_96 = arith.constant 8 : i32
    %314 = vector.broadcast %c8_i32_96 : i32 to vector<32x1xi32>
    %315 = arith.cmpi slt, %309, %314 : vector<32x1xi32>
    %316 = arith.andi %313, %315 : vector<32x1xi1>
    %c0_i32_97 = arith.constant 0 : i32
    %317 = vector.broadcast %c0_i32_97 : i32 to vector<32x1xi32>
    %318 = arith.cmpi sge, %311, %317 : vector<32x1xi32>
    %319 = arith.andi %316, %318 : vector<32x1xi1>
    %c8_i32_98 = arith.constant 8 : i32
    %320 = vector.broadcast %c8_i32_98 : i32 to vector<32x1xi32>
    %321 = arith.cmpi slt, %311, %320 : vector<32x1xi32>
    %322 = arith.andi %319, %321 : vector<32x1xi1>
    %c8_i32_99 = arith.constant 8 : i32
    %323 = vector.broadcast %c8_i32_99 : i32 to vector<32x1xi32>
    %324 = arith.addi %241, %323 : vector<32x1xi32>
    %325 = vector.broadcast %324 : vector<32x1xi32> to vector<32x64xi32>
    %326 = arith.cmpi eq, %254, %325 : vector<32x64xi32>
    %327 = vector.broadcast %322 : vector<32x1xi1> to vector<32x64xi1>
    %328 = arith.andi %326, %327 : vector<32x64xi1>
    %cst_100 = arith.constant 0.000000e+00 : f32
    %329 = vector.shape_cast %252 : vector<32x1xf32> to vector<32x1xf32>
    %330 = vector.broadcast %329 : vector<32x1xf32> to vector<32x64xf32>
    %331 = vector.broadcast %cst_100 : f32 to vector<32x64xf32>
    %332 = arith.select %328, %330, %331 : vector<32x64xi1>, vector<32x64xf32>
    %333 = arith.addf %307, %332 : vector<32x64xf32>
    %c1_i32_101 = arith.constant 1 : i32
    %334 = vector.broadcast %c1_i32_101 : i32 to vector<32x1xi32>
    %335 = arith.addi %237, %334 : vector<32x1xi32>
    %c1_i32_102 = arith.constant 1 : i32
    %336 = vector.broadcast %c1_i32_102 : i32 to vector<32x1xi32>
    %337 = arith.addi %238, %336 : vector<32x1xi32>
    %c0_i32_103 = arith.constant 0 : i32
    %338 = vector.broadcast %c0_i32_103 : i32 to vector<32x1xi32>
    %339 = arith.cmpi sge, %335, %338 : vector<32x1xi32>
    %c8_i32_104 = arith.constant 8 : i32
    %340 = vector.broadcast %c8_i32_104 : i32 to vector<32x1xi32>
    %341 = arith.cmpi slt, %335, %340 : vector<32x1xi32>
    %342 = arith.andi %339, %341 : vector<32x1xi1>
    %c0_i32_105 = arith.constant 0 : i32
    %343 = vector.broadcast %c0_i32_105 : i32 to vector<32x1xi32>
    %344 = arith.cmpi sge, %337, %343 : vector<32x1xi32>
    %345 = arith.andi %342, %344 : vector<32x1xi1>
    %c8_i32_106 = arith.constant 8 : i32
    %346 = vector.broadcast %c8_i32_106 : i32 to vector<32x1xi32>
    %347 = arith.cmpi slt, %337, %346 : vector<32x1xi32>
    %348 = arith.andi %345, %347 : vector<32x1xi1>
    %c9_i32 = arith.constant 9 : i32
    %349 = vector.broadcast %c9_i32 : i32 to vector<32x1xi32>
    %350 = arith.addi %241, %349 : vector<32x1xi32>
    %351 = vector.broadcast %350 : vector<32x1xi32> to vector<32x64xi32>
    %352 = arith.cmpi eq, %254, %351 : vector<32x64xi32>
    %353 = vector.broadcast %348 : vector<32x1xi1> to vector<32x64xi1>
    %354 = arith.andi %352, %353 : vector<32x64xi1>
    %cst_107 = arith.constant 0.000000e+00 : f32
    %355 = vector.shape_cast %253 : vector<32x1xf32> to vector<32x1xf32>
    %356 = vector.broadcast %355 : vector<32x1xf32> to vector<32x64xf32>
    %357 = vector.broadcast %cst_107 : f32 to vector<32x64xf32>
    %358 = arith.select %354, %356, %357 : vector<32x64xi1>, vector<32x64xf32>
    %359 = arith.addf %333, %358 : vector<32x64xf32>
    %360 = vector.broadcast %232 : vector<32x1xf32> to vector<32x64xf32>
    %361 = arith.mulf %359, %360 : vector<32x64xf32>
    %362 = arith.truncf %361 : vector<32x64xf32> to vector<32x64xbf16>
    %363 = arith.truncf %189 : vector<64x8xf32> to vector<64x8xbf16>
    %cst_108 = arith.constant dense<0.000000e+00> : vector<32x8xf32>
    %364 = tpu.matmul %362, %363, %cst_108 {dimension_numbers = #tpu.dot_dimension_numbers<[1], [0], [0], [1], [0, 0, 1, 1], [], []>} : vector<32x64xbf16>, vector<64x8xbf16>, vector<32x8xf32> -> vector<32x8xf32>
    %c0_109 = arith.constant 0 : index
    %c0_110 = arith.constant 0 : index
    %365 = vector.load %arg14[%c0_109, %c0_110] : memref<32x8xf32, #tpu.memory_space<vmem>>, vector<32x8xf32>
    %366 = arith.addf %365, %364 : vector<32x8xf32>
    %c0_111 = arith.constant 0 : index
    %c0_112 = arith.constant 0 : index
    %367 = vector.load %arg14[%c0_111, %c0_112] : memref<32x8xf32, #tpu.memory_space<vmem>>, vector<32x8xf32>
    tpu.vector_store %arg14[%c0_111, %c0_112], %366 {strides = array<i32>} : memref<32x8xf32, #tpu.memory_space<vmem>>, vector<32x8xf32>,
    %c0_113 = arith.constant 0 : index
    %c0_114 = arith.constant 0 : index
    %368 = vector.load %arg15[%c0_113, %c0_114] : memref<32x1xf32, #tpu.memory_space<vmem>>, vector<32x1xf32>
    %369 = arith.addf %368, %232 : vector<32x1xf32>
    %c0_115 = arith.constant 0 : index
    %c0_116 = arith.constant 0 : index
    %370 = vector.load %arg15[%c0_115, %c0_116] : memref<32x1xf32, #tpu.memory_space<vmem>>, vector<32x1xf32>
    tpu.vector_store %arg15[%c0_115, %c0_116], %369 {strides = array<i32>} : memref<32x1xf32, #tpu.memory_space<vmem>>, vector<32x1xf32>,
    %c1_i32_117 = arith.constant 1 : i32
    %371 = arith.cmpi eq, %arg2, %c1_i32_117 : i32
    %372 = arith.extui %371 : i1 to i32
    %c0_i32_118 = arith.constant 0 : i32
    %373 = arith.cmpi ne, %372, %c0_i32_118 : i32
    scf.if %373 {
      %c0_119 = arith.constant 0 : index
      %c0_120 = arith.constant 0 : index
      %374 = vector.load %arg14[%c0_119, %c0_120] : memref<32x8xf32, #tpu.memory_space<vmem>>, vector<32x8xf32>
      %c0_121 = arith.constant 0 : index
      %c0_122 = arith.constant 0 : index
      %375 = vector.load %arg15[%c0_121, %c0_122] : memref<32x1xf32, #tpu.memory_space<vmem>>, vector<32x1xf32>
      %cst_123 = arith.constant 9.99999997E-7 : f32
      %376 = vector.broadcast %cst_123 : f32 to vector<32x1xf32>
      %377 = arith.addf %375, %376 : vector<32x1xf32>
      %378 = tpu.reciprocal %377 {approx = true} : vector<32x1xf32> -> vector<32x1xf32>
      %379 = vector.broadcast %378 : vector<32x1xf32> to vector<32x8xf32>
      %380 = arith.mulf %374, %379 : vector<32x8xf32>
      %c0_124 = arith.constant 0 : index
      %c0_125 = arith.constant 0 : index
      %381 = vector.load %arg8[%c0_124, %c0_125] : memref<8x128xf32, #tpu.memory_space<vmem>>, vector<8x128xf32>
      %cst_126 = arith.constant dense<0.000000e+00> : vector<32x128xf32>
      %382 = tpu.matmul %380, %381, %cst_126 {dimension_numbers = #tpu.dot_dimension_numbers<[1], [0], [0], [1], [0, 0, 1, 1], [], []>} : vector<32x8xf32>, vector<8x128xf32>, vector<32x128xf32> -> vector<32x128xf32>
      %c0_127 = arith.constant 0 : index
      %c0_128 = arith.constant 0 : index
      %383 = vector.load %arg9[%c0_127, %c0_128] : memref<1x128xf32, #tpu.memory_space<vmem>>, vector<1x128xf32>
      %384 = vector.broadcast %383 : vector<1x128xf32> to vector<32x128xf32>
      %385 = arith.addf %382, %384 : vector<32x128xf32>
      %c0_129 = arith.constant 0 : index
      %c0_130 = arith.constant 0 : index
      %c0_131 = arith.constant 0 : index
      %386 = vector.load %arg4[%c0_129, %c0_130, %c0_131] : memref<1x32x128xf32, #tpu.memory_space<vmem>>, vector<1x32x128xf32>
      %387 = vector.shape_cast %386 : vector<1x32x128xf32> to vector<32x128xf32>
      %388 = arith.addf %387, %0 : vector<32x128xf32>
      %389 = arith.addf %388, %385 : vector<32x128xf32>
      %c0_132 = arith.constant 0 : index
      %c0_133 = arith.constant 0 : index
      %c0_134 = arith.constant 0 : index
      %390 = vector.load %arg12[%c0_132, %c0_133, %c0_134] : memref<1x32x128xf32, #tpu.memory_space<vmem>>, vector<1x32x128xf32>
      %391 = vector.shape_cast %390 : vector<1x32x128xf32> to vector<32x128xf32>
      %392 = vector.shape_cast %389 : vector<32x128xf32> to vector<1x32x128xf32>
      tpu.vector_store %arg12[%c0_132, %c0_133, %c0_134], %392 {strides = array<i32>} : memref<1x32x128xf32, #tpu.memory_space<vmem>>, vector<1x32x128xf32>,
    } else {
    }
    return
  }
  func.func @transform_0(%arg0: i32, %arg1: i32, %arg2: i32) -> (i32, i32) {
    %c0_i32 = arith.constant 0 : i32
    %c0_i32_0 = arith.constant 0 : i32
    return %arg1, %c0_i32 : i32, i32
  }
  func.func @transform_1(%arg0: i32, %arg1: i32, %arg2: i32) -> (i32, i32, i32) {
    %c0_i32 = arith.constant 0 : i32
    %c0_i32_0 = arith.constant 0 : i32
    return %arg0, %arg1, %c0_i32 : i32, i32, i32
  }
  func.func @transform_2(%arg0: i32, %arg1: i32, %arg2: i32) -> (i32, i32, i32, i32, i32) {
    %c0_i32 = arith.constant 0 : i32
    %c0_i32_0 = arith.constant 0 : i32
    %c0_i32_1 = arith.constant 0 : i32
    %c0_i32_2 = arith.constant 0 : i32
    return %arg0, %arg2, %c0_i32, %c0_i32_0, %c0_i32_1 : i32, i32, i32, i32, i32
  }
  func.func @transform_3(%arg0: i32, %arg1: i32, %arg2: i32) -> (i32, i32) {
    %c0_i32 = arith.constant 0 : i32
    %c0_i32_0 = arith.constant 0 : i32
    %c0_i32_1 = arith.constant 0 : i32
    return %c0_i32, %c0_i32_0 : i32, i32
  }
  func.func @transform_4(%arg0: i32, %arg1: i32, %arg2: i32) -> (i32, i32) {
    %c0_i32 = arith.constant 0 : i32
    %c0_i32_0 = arith.constant 0 : i32
    %c0_i32_1 = arith.constant 0 : i32
    return %c0_i32, %c0_i32_0 : i32, i32
  }
  func.func @transform_5(%arg0: i32, %arg1: i32, %arg2: i32) -> (i32, i32) {
    %c0_i32 = arith.constant 0 : i32
    %c0_i32_0 = arith.constant 0 : i32
    %c0_i32_1 = arith.constant 0 : i32
    return %c0_i32, %c0_i32_0 : i32, i32
  }
  func.func @transform_6(%arg0: i32, %arg1: i32, %arg2: i32) -> (i32, i32) {
    %c0_i32 = arith.constant 0 : i32
    %c0_i32_0 = arith.constant 0 : i32
    %c0_i32_1 = arith.constant 0 : i32
    return %c0_i32, %c0_i32_0 : i32, i32
  }
  func.func @transform_7(%arg0: i32, %arg1: i32, %arg2: i32) -> (i32, i32, i32) {
    %c2_i32 = arith.constant 2 : i32
    %0 = arith.muli %arg0, %c2_i32 : i32
    %1 = arith.addi %0, %arg2 : i32
    %c0_i32 = arith.constant 0 : i32
    %c0_i32_0 = arith.constant 0 : i32
    %c0_i32_1 = arith.constant 0 : i32
    return %1, %c0_i32, %c0_i32_0 : i32, i32, i32
  }
  func.func @transform_8(%arg0: i32, %arg1: i32, %arg2: i32) -> (i32, i32, i32) {
    %c2_i32 = arith.constant 2 : i32
    %0 = arith.muli %arg0, %c2_i32 : i32
    %1 = arith.addi %0, %arg2 : i32
    %c0_i32 = arith.constant 0 : i32
    %c0_i32_0 = arith.constant 0 : i32
    %c0_i32_1 = arith.constant 0 : i32
    return %1, %c0_i32, %c0_i32_0 : i32, i32, i32
  }
  func.func @transform_9(%arg0: i32, %arg1: i32, %arg2: i32) -> (i32, i32, i32) {
    %c0_i32 = arith.constant 0 : i32
    %c0_i32_0 = arith.constant 0 : i32
    return %arg0, %arg1, %c0_i32 : i32, i32, i32
  }
  func.func @transform_10(%arg0: i32, %arg1: i32, %arg2: i32) -> (i32, i32, i32) {
    %c0_i32 = arith.constant 0 : i32
    %c0_i32_0 = arith.constant 0 : i32
    return %arg0, %arg1, %c0_i32 : i32, i32, i32
  }
}

module attributes {stable_mosaic.version = 11 : i64} {
  func.func @kernel(%arg0: i32, %arg1: i32, %arg2: i32, %arg3: memref<32x128xf32, #tpu.memory_space<vmem>>, %arg4: memref<1x32x128xf32, #tpu.memory_space<vmem>>, %arg5: memref<1x1x2x4x4xf32, #tpu.memory_space<vmem>>, %arg6: memref<128x128xf32, #tpu.memory_space<vmem>>, %arg7: memref<1x128xf32, #tpu.memory_space<vmem>>, %arg8: memref<8x128xf32, #tpu.memory_space<vmem>>, %arg9: memref<1x128xf32, #tpu.memory_space<vmem>>, %arg10: memref<1x256x8xf32, #tpu.memory_space<vmem>>, %arg11: memref<1x64x8xf32, #tpu.memory_space<vmem>>, %arg12: memref<1x32x128xf32, #tpu.memory_space<vmem>>, %arg13: memref<1x32x128xf32, #tpu.memory_space<vmem>>, %arg14: memref<32x8xf32, #tpu.memory_space<vmem>>, %arg15: memref<32x1xf32, #tpu.memory_space<vmem>>, %arg16: memref<32x3xf32, #tpu.memory_space<vmem>>) attributes {dimension_semantics = [#tpu.dimension_semantics<parallel>, #tpu.dimension_semantics<parallel>, #tpu.dimension_semantics<arbitrary>], iteration_bounds = array<i64: 2, 2, 2>, scalar_prefetch = 0 : i64, scratch_operands = 3 : i64, tpu.core_type = #tpu.core_type<tc>, window_params = [{transform_indices = @transform_0, window_bounds = array<i64: 32, 128>}, {transform_indices = @transform_1, window_bounds = array<i64: 1, 32, 128>}, {transform_indices = @transform_2, window_bounds = array<i64: 1, 1, 2, 4, 4>}, {pipeline_mode = #tpu.pipeline_mode<synchronous>, transform_indices = @transform_3, window_bounds = array<i64: 128, 128>}, {pipeline_mode = #tpu.pipeline_mode<synchronous>, transform_indices = @transform_4, window_bounds = array<i64: 1, 128>}, {pipeline_mode = #tpu.pipeline_mode<synchronous>, transform_indices = @transform_5, window_bounds = array<i64: 8, 128>}, {pipeline_mode = #tpu.pipeline_mode<synchronous>, transform_indices = @transform_6, window_bounds = array<i64: 1, 128>}, {transform_indices = @transform_7, window_bounds = array<i64: 1, 256, 8>}, {transform_indices = @transform_8, window_bounds = array<i64: 1, 64, 8>}, {transform_indices = @transform_9, window_bounds = array<i64: 1, 32, 128>}, {transform_indices = @transform_10, window_bounds = array<i64: 1, 32, 128>}]} {
    %c0 = arith.constant 0 : index
    %c0_0 = arith.constant 0 : index
    %0 = vector.load %arg3[%c0, %c0_0] : memref<32x128xf32, #tpu.memory_space<vmem>>, vector<32x128xf32>
    %c0_i32 = arith.constant 0 : i32
    %1 = arith.cmpi eq, %arg2, %c0_i32 : i32
    %2 = arith.extui %1 : i1 to i32
    %c0_i32_1 = arith.constant 0 : i32
    %3 = arith.cmpi ne, %2, %c0_i32_1 : i32
    scf.if %3 {
      %c0_119 = arith.constant 0 : index
      %c0_120 = arith.constant 0 : index
      %374 = vector.load %arg6[%c0_119, %c0_120] : memref<128x128xf32, #tpu.memory_space<vmem>>, vector<128x128xf32>
      %cst_121 = arith.constant dense<0.000000e+00> : vector<32x128xf32>
      %375 = tpu.matmul %0, %374, %cst_121 {dimension_numbers = #tpu.dot_dimension_numbers<[1], [0], [0], [1], [0, 0, 1, 1], [], []>} : vector<32x128xf32>, vector<128x128xf32>, vector<32x128xf32> -> vector<32x128xf32>
      %c0_122 = arith.constant 0 : index
      %c0_123 = arith.constant 0 : index
      %376 = vector.load %arg7[%c0_122, %c0_123] : memref<1x128xf32, #tpu.memory_space<vmem>>, vector<1x128xf32>
      %377 = vector.broadcast %376 : vector<1x128xf32> to vector<32x128xf32>
      %378 = arith.addf %375, %377 : vector<32x128xf32>
      %c0_124 = arith.constant 0 : index
      %c0_125 = arith.constant 0 : index
      %c0_126 = arith.constant 0 : index
      %379 = vector.load %arg13[%c0_124, %c0_125, %c0_126] : memref<1x32x128xf32, #tpu.memory_space<vmem>>, vector<1x32x128xf32>
      %380 = vector.shape_cast %379 : vector<1x32x128xf32> to vector<32x128xf32>
      %381 = vector.shape_cast %378 : vector<32x128xf32> to vector<1x32x128xf32>
      tpu.vector_store %arg13[%c0_124, %c0_125, %c0_126], %381 {strides = array<i32>} : memref<1x32x128xf32, #tpu.memory_space<vmem>>, vector<1x32x128xf32>,
      %382 = vector.extract_strided_slice %378 {offsets = [0, 0], sizes = [32, 3], strides = [1, 1]} : vector<32x128xf32> to vector<32x3xf32>
      %cst_127 = arith.constant 0.000000e+00 : f32
      %383 = vector.broadcast %cst_127 : f32 to vector<32x3xf32>
      %384 = arith.subf %383, %382 : vector<32x3xf32>
      %385 = math.exp %384 : vector<32x3xf32>
      %cst_128 = arith.constant 1.000000e+00 : f32
      %386 = vector.broadcast %cst_128 : f32 to vector<32x3xf32>
      %387 = arith.addf %386, %385 : vector<32x3xf32>
      %388 = tpu.reciprocal %387 {approx = true} : vector<32x3xf32> -> vector<32x3xf32>
      %c0_129 = arith.constant 0 : index
      %c0_130 = arith.constant 0 : index
      %389 = vector.load %arg16[%c0_129, %c0_130] : memref<32x3xf32, #tpu.memory_space<vmem>>, vector<32x3xf32>
      tpu.vector_store %arg16[%c0_129, %c0_130], %388 {strides = array<i32>} : memref<32x3xf32, #tpu.memory_space<vmem>>, vector<32x3xf32>,
      %cst_131 = arith.constant 0.000000e+00 : f32
      %390 = vector.broadcast %cst_131 : f32 to vector<32x8xf32>
      %c0_132 = arith.constant 0 : index
      %c0_133 = arith.constant 0 : index
      %391 = vector.load %arg14[%c0_132, %c0_133] : memref<32x8xf32, #tpu.memory_space<vmem>>, vector<32x8xf32>
      tpu.vector_store %arg14[%c0_132, %c0_133], %390 {strides = array<i32>} : memref<32x8xf32, #tpu.memory_space<vmem>>, vector<32x8xf32>,
      %cst_134 = arith.constant 0.000000e+00 : f32
      %392 = vector.broadcast %cst_134 : f32 to vector<32x1xf32>
      %c0_135 = arith.constant 0 : index
      %c0_136 = arith.constant 0 : index
      %393 = vector.load %arg15[%c0_135, %c0_136] : memref<32x1xf32, #tpu.memory_space<vmem>>, vector<32x1xf32>
      tpu.vector_store %arg15[%c0_135, %c0_136], %392 {strides = array<i32>} : memref<32x1xf32, #tpu.memory_space<vmem>>, vector<32x1xf32>,
    } else {
    }
    %c0_2 = arith.constant 0 : index
    %c0_3 = arith.constant 0 : index
    %4 = vector.load %arg16[%c0_2, %c0_3] : memref<32x3xf32, #tpu.memory_space<vmem>>, vector<32x3xf32>
    %c0_4 = arith.constant 0 : index
    %c0_5 = arith.constant 0 : index
    %c0_6 = arith.constant 0 : index
    %5 = vector.load %arg10[%c0_4, %c0_5, %c0_6] : memref<1x256x8xf32, #tpu.memory_space<vmem>>, vector<1x256x8xf32>
    %6 = vector.shape_cast %5 : vector<1x256x8xf32> to vector<256x8xf32>
    %c0_7 = arith.constant 0 : index
    %c0_8 = arith.constant 0 : index
    %c0_9 = arith.constant 0 : index
    %c0_10 = arith.constant 0 : index
    %c0_11 = arith.constant 0 : index
    %7 = vector.load %arg5[%c0_7, %c0_8, %c0_9, %c0_10, %c0_11] : memref<1x1x2x4x4xf32, #tpu.memory_space<vmem>>, vector<1x1x1x4x4xf32>
    %8 = vector.shape_cast %7 : vector<1x1x1x4x4xf32> to vector<4x4xf32>
    %9 = vector.extract_strided_slice %4 {offsets = [0, 0], sizes = [32, 1], strides = [1, 1]} : vector<32x3xf32> to vector<32x1xf32>
    %10 = vector.extract_strided_slice %8 {offsets = [0, 0], sizes = [1, 4], strides = [1, 1]} : vector<4x4xf32> to vector<1x4xf32>
    %11 = vector.broadcast %9 : vector<32x1xf32> to vector<32x4xf32>
    %12 = vector.broadcast %10 : vector<1x4xf32> to vector<32x4xf32>
    %13 = arith.mulf %11, %12 : vector<32x4xf32>
    %14 = vector.extract_strided_slice %4 {offsets = [0, 1], sizes = [32, 1], strides = [1, 1]} : vector<32x3xf32> to vector<32x1xf32>
    %15 = vector.extract_strided_slice %8 {offsets = [1, 0], sizes = [1, 4], strides = [1, 1]} : vector<4x4xf32> to vector<1x4xf32>
    %16 = vector.broadcast %14 : vector<32x1xf32> to vector<32x4xf32>
    %17 = vector.broadcast %15 : vector<1x4xf32> to vector<32x4xf32>
    %18 = arith.mulf %16, %17 : vector<32x4xf32>
    %19 = arith.addf %13, %18 : vector<32x4xf32>
    %20 = vector.extract_strided_slice %4 {offsets = [0, 2], sizes = [32, 1], strides = [1, 1]} : vector<32x3xf32> to vector<32x1xf32>
    %21 = vector.extract_strided_slice %8 {offsets = [2, 0], sizes = [1, 4], strides = [1, 1]} : vector<4x4xf32> to vector<1x4xf32>
    %22 = vector.broadcast %20 : vector<32x1xf32> to vector<32x4xf32>
    %23 = vector.broadcast %21 : vector<1x4xf32> to vector<32x4xf32>
    %24 = arith.mulf %22, %23 : vector<32x4xf32>
    %25 = arith.addf %19, %24 : vector<32x4xf32>
    %26 = vector.extract_strided_slice %8 {offsets = [3, 0], sizes = [1, 4], strides = [1, 1]} : vector<4x4xf32> to vector<1x4xf32>
    %27 = vector.broadcast %26 : vector<1x4xf32> to vector<32x4xf32>
    %28 = arith.addf %25, %27 : vector<32x4xf32>
    %29 = vector.extract_strided_slice %28 {offsets = [0, 2], sizes = [32, 1], strides = [1, 1]} : vector<32x4xf32> to vector<32x1xf32>
    %cst = arith.constant 5.000000e-02 : f32
    %30 = vector.broadcast %cst : f32 to vector<32x1xf32>
    %31 = arith.maximumf %29, %30 : vector<32x1xf32>
    %32 = tpu.reciprocal %31 {approx = true} : vector<32x1xf32> -> vector<32x1xf32>
    %33 = vector.extract_strided_slice %28 {offsets = [0, 0], sizes = [32, 1], strides = [1, 1]} : vector<32x4xf32> to vector<32x1xf32>
    %34 = arith.mulf %33, %32 : vector<32x1xf32>
    %35 = vector.extract_strided_slice %28 {offsets = [0, 1], sizes = [32, 1], strides = [1, 1]} : vector<32x4xf32> to vector<32x1xf32>
    %36 = arith.mulf %35, %32 : vector<32x1xf32>
    %cst_12 = arith.constant 0.000000e+00 : f32
    %37 = vector.broadcast %cst_12 : f32 to vector<32x1xf32>
    %38 = arith.cmpf oge, %34, %37 : vector<32x1xf32>
    %cst_13 = arith.constant 1.600000e+01 : f32
    %39 = vector.broadcast %cst_13 : f32 to vector<32x1xf32>
    %40 = arith.cmpf olt, %34, %39 : vector<32x1xf32>
    %41 = arith.andi %38, %40 : vector<32x1xi1>
    %cst_14 = arith.constant 0.000000e+00 : f32
    %42 = vector.broadcast %cst_14 : f32 to vector<32x1xf32>
    %43 = arith.cmpf oge, %36, %42 : vector<32x1xf32>
    %44 = arith.andi %41, %43 : vector<32x1xi1>
    %cst_15 = arith.constant 1.600000e+01 : f32
    %45 = vector.broadcast %cst_15 : f32 to vector<32x1xf32>
    %46 = arith.cmpf olt, %36, %45 : vector<32x1xf32>
    %47 = arith.andi %44, %46 : vector<32x1xi1>
    %48 = arith.extui %47 : vector<32x1xi1> to vector<32x1xi32>
    %49 = arith.sitofp %48 : vector<32x1xi32> to vector<32x1xf32>
    %50 = math.floor %34 : vector<32x1xf32>
    %51 = math.floor %36 : vector<32x1xf32>
    %52 = arith.subf %34, %50 : vector<32x1xf32>
    %53 = arith.subf %36, %51 : vector<32x1xf32>
    %54 = arith.fptosi %50 : vector<32x1xf32> to vector<32x1xi32>
    %55 = arith.fptosi %51 : vector<32x1xf32> to vector<32x1xi32>
    %c16_i32 = arith.constant 16 : i32
    %56 = vector.broadcast %c16_i32 : i32 to vector<32x1xi32>
    %57 = arith.muli %55, %56 : vector<32x1xi32>
    %58 = arith.addi %57, %54 : vector<32x1xi32>
    %cst_16 = arith.constant 1.000000e+00 : f32
    %59 = vector.broadcast %cst_16 : f32 to vector<32x1xf32>
    %60 = arith.subf %59, %52 : vector<32x1xf32>
    %cst_17 = arith.constant 1.000000e+00 : f32
    %61 = vector.broadcast %cst_17 : f32 to vector<32x1xf32>
    %62 = arith.subf %61, %53 : vector<32x1xf32>
    %63 = arith.mulf %60, %62 : vector<32x1xf32>
    %cst_18 = arith.constant 1.000000e+00 : f32
    %64 = vector.broadcast %cst_18 : f32 to vector<32x1xf32>
    %65 = arith.subf %64, %53 : vector<32x1xf32>
    %66 = arith.mulf %52, %65 : vector<32x1xf32>
    %cst_19 = arith.constant 1.000000e+00 : f32
    %67 = vector.broadcast %cst_19 : f32 to vector<32x1xf32>
    %68 = arith.subf %67, %52 : vector<32x1xf32>
    %69 = arith.mulf %68, %53 : vector<32x1xf32>
    %70 = arith.mulf %52, %53 : vector<32x1xf32>
    %71 = tpu.iota {dimensions = array<i32: 1>} : vector<32x256xi32>
    %cst_20 = arith.constant 0.000000e+00 : f32
    %72 = vector.broadcast %cst_20 : f32 to vector<32x256xf32>
    %c0_i32_21 = arith.constant 0 : i32
    %73 = vector.broadcast %c0_i32_21 : i32 to vector<32x1xi32>
    %74 = arith.addi %54, %73 : vector<32x1xi32>
    %c0_i32_22 = arith.constant 0 : i32
    %75 = vector.broadcast %c0_i32_22 : i32 to vector<32x1xi32>
    %76 = arith.addi %55, %75 : vector<32x1xi32>
    %c0_i32_23 = arith.constant 0 : i32
    %77 = vector.broadcast %c0_i32_23 : i32 to vector<32x1xi32>
    %78 = arith.cmpi sge, %74, %77 : vector<32x1xi32>
    %c16_i32_24 = arith.constant 16 : i32
    %79 = vector.broadcast %c16_i32_24 : i32 to vector<32x1xi32>
    %80 = arith.cmpi slt, %74, %79 : vector<32x1xi32>
    %81 = arith.andi %78, %80 : vector<32x1xi1>
    %c0_i32_25 = arith.constant 0 : i32
    %82 = vector.broadcast %c0_i32_25 : i32 to vector<32x1xi32>
    %83 = arith.cmpi sge, %76, %82 : vector<32x1xi32>
    %84 = arith.andi %81, %83 : vector<32x1xi1>
    %c16_i32_26 = arith.constant 16 : i32
    %85 = vector.broadcast %c16_i32_26 : i32 to vector<32x1xi32>
    %86 = arith.cmpi slt, %76, %85 : vector<32x1xi32>
    %87 = arith.andi %84, %86 : vector<32x1xi1>
    %c0_i32_27 = arith.constant 0 : i32
    %88 = vector.broadcast %c0_i32_27 : i32 to vector<32x1xi32>
    %89 = arith.addi %58, %88 : vector<32x1xi32>
    %90 = vector.broadcast %89 : vector<32x1xi32> to vector<32x256xi32>
    %91 = arith.cmpi eq, %71, %90 : vector<32x256xi32>
    %92 = vector.broadcast %87 : vector<32x1xi1> to vector<32x256xi1>
    %93 = arith.andi %91, %92 : vector<32x256xi1>
    %cst_28 = arith.constant 0.000000e+00 : f32
    %94 = vector.shape_cast %63 : vector<32x1xf32> to vector<32x1xf32>
    %95 = vector.broadcast %94 : vector<32x1xf32> to vector<32x256xf32>
    %96 = vector.broadcast %cst_28 : f32 to vector<32x256xf32>
    %97 = arith.select %93, %95, %96 : vector<32x256xi1>, vector<32x256xf32>
    %98 = arith.addf %72, %97 : vector<32x256xf32>
    %c1_i32 = arith.constant 1 : i32
    %99 = vector.broadcast %c1_i32 : i32 to vector<32x1xi32>
    %100 = arith.addi %54, %99 : vector<32x1xi32>
    %c0_i32_29 = arith.constant 0 : i32
    %101 = vector.broadcast %c0_i32_29 : i32 to vector<32x1xi32>
    %102 = arith.addi %55, %101 : vector<32x1xi32>
    %c0_i32_30 = arith.constant 0 : i32
    %103 = vector.broadcast %c0_i32_30 : i32 to vector<32x1xi32>
    %104 = arith.cmpi sge, %100, %103 : vector<32x1xi32>
    %c16_i32_31 = arith.constant 16 : i32
    %105 = vector.broadcast %c16_i32_31 : i32 to vector<32x1xi32>
    %106 = arith.cmpi slt, %100, %105 : vector<32x1xi32>
    %107 = arith.andi %104, %106 : vector<32x1xi1>
    %c0_i32_32 = arith.constant 0 : i32
    %108 = vector.broadcast %c0_i32_32 : i32 to vector<32x1xi32>
    %109 = arith.cmpi sge, %102, %108 : vector<32x1xi32>
    %110 = arith.andi %107, %109 : vector<32x1xi1>
    %c16_i32_33 = arith.constant 16 : i32
    %111 = vector.broadcast %c16_i32_33 : i32 to vector<32x1xi32>
    %112 = arith.cmpi slt, %102, %111 : vector<32x1xi32>
    %113 = arith.andi %110, %112 : vector<32x1xi1>
    %c1_i32_34 = arith.constant 1 : i32
    %114 = vector.broadcast %c1_i32_34 : i32 to vector<32x1xi32>
    %115 = arith.addi %58, %114 : vector<32x1xi32>
    %116 = vector.broadcast %115 : vector<32x1xi32> to vector<32x256xi32>
    %117 = arith.cmpi eq, %71, %116 : vector<32x256xi32>
    %118 = vector.broadcast %113 : vector<32x1xi1> to vector<32x256xi1>
    %119 = arith.andi %117, %118 : vector<32x256xi1>
    %cst_35 = arith.constant 0.000000e+00 : f32
    %120 = vector.shape_cast %66 : vector<32x1xf32> to vector<32x1xf32>
    %121 = vector.broadcast %120 : vector<32x1xf32> to vector<32x256xf32>
    %122 = vector.broadcast %cst_35 : f32 to vector<32x256xf32>
    %123 = arith.select %119, %121, %122 : vector<32x256xi1>, vector<32x256xf32>
    %124 = arith.addf %98, %123 : vector<32x256xf32>
    %c0_i32_36 = arith.constant 0 : i32
    %125 = vector.broadcast %c0_i32_36 : i32 to vector<32x1xi32>
    %126 = arith.addi %54, %125 : vector<32x1xi32>
    %c1_i32_37 = arith.constant 1 : i32
    %127 = vector.broadcast %c1_i32_37 : i32 to vector<32x1xi32>
    %128 = arith.addi %55, %127 : vector<32x1xi32>
    %c0_i32_38 = arith.constant 0 : i32
    %129 = vector.broadcast %c0_i32_38 : i32 to vector<32x1xi32>
    %130 = arith.cmpi sge, %126, %129 : vector<32x1xi32>
    %c16_i32_39 = arith.constant 16 : i32
    %131 = vector.broadcast %c16_i32_39 : i32 to vector<32x1xi32>
    %132 = arith.cmpi slt, %126, %131 : vector<32x1xi32>
    %133 = arith.andi %130, %132 : vector<32x1xi1>
    %c0_i32_40 = arith.constant 0 : i32
    %134 = vector.broadcast %c0_i32_40 : i32 to vector<32x1xi32>
    %135 = arith.cmpi sge, %128, %134 : vector<32x1xi32>
    %136 = arith.andi %133, %135 : vector<32x1xi1>
    %c16_i32_41 = arith.constant 16 : i32
    %137 = vector.broadcast %c16_i32_41 : i32 to vector<32x1xi32>
    %138 = arith.cmpi slt, %128, %137 : vector<32x1xi32>
    %139 = arith.andi %136, %138 : vector<32x1xi1>
    %c16_i32_42 = arith.constant 16 : i32
    %140 = vector.broadcast %c16_i32_42 : i32 to vector<32x1xi32>
    %141 = arith.addi %58, %140 : vector<32x1xi32>
    %142 = vector.broadcast %141 : vector<32x1xi32> to vector<32x256xi32>
    %143 = arith.cmpi eq, %71, %142 : vector<32x256xi32>
    %144 = vector.broadcast %139 : vector<32x1xi1> to vector<32x256xi1>
    %145 = arith.andi %143, %144 : vector<32x256xi1>
    %cst_43 = arith.constant 0.000000e+00 : f32
    %146 = vector.shape_cast %69 : vector<32x1xf32> to vector<32x1xf32>
    %147 = vector.broadcast %146 : vector<32x1xf32> to vector<32x256xf32>
    %148 = vector.broadcast %cst_43 : f32 to vector<32x256xf32>
    %149 = arith.select %145, %147, %148 : vector<32x256xi1>, vector<32x256xf32>
    %150 = arith.addf %124, %149 : vector<32x256xf32>
    %c1_i32_44 = arith.constant 1 : i32
    %151 = vector.broadcast %c1_i32_44 : i32 to vector<32x1xi32>
    %152 = arith.addi %54, %151 : vector<32x1xi32>
    %c1_i32_45 = arith.constant 1 : i32
    %153 = vector.broadcast %c1_i32_45 : i32 to vector<32x1xi32>
    %154 = arith.addi %55, %153 : vector<32x1xi32>
    %c0_i32_46 = arith.constant 0 : i32
    %155 = vector.broadcast %c0_i32_46 : i32 to vector<32x1xi32>
    %156 = arith.cmpi sge, %152, %155 : vector<32x1xi32>
    %c16_i32_47 = arith.constant 16 : i32
    %157 = vector.broadcast %c16_i32_47 : i32 to vector<32x1xi32>
    %158 = arith.cmpi slt, %152, %157 : vector<32x1xi32>
    %159 = arith.andi %156, %158 : vector<32x1xi1>
    %c0_i32_48 = arith.constant 0 : i32
    %160 = vector.broadcast %c0_i32_48 : i32 to vector<32x1xi32>
    %161 = arith.cmpi sge, %154, %160 : vector<32x1xi32>
    %162 = arith.andi %159, %161 : vector<32x1xi1>
    %c16_i32_49 = arith.constant 16 : i32
    %163 = vector.broadcast %c16_i32_49 : i32 to vector<32x1xi32>
    %164 = arith.cmpi slt, %154, %163 : vector<32x1xi32>
    %165 = arith.andi %162, %164 : vector<32x1xi1>
    %c17_i32 = arith.constant 17 : i32
    %166 = vector.broadcast %c17_i32 : i32 to vector<32x1xi32>
    %167 = arith.addi %58, %166 : vector<32x1xi32>
    %168 = vector.broadcast %167 : vector<32x1xi32> to vector<32x256xi32>
    %169 = arith.cmpi eq, %71, %168 : vector<32x256xi32>
    %170 = vector.broadcast %165 : vector<32x1xi1> to vector<32x256xi1>
    %171 = arith.andi %169, %170 : vector<32x256xi1>
    %cst_50 = arith.constant 0.000000e+00 : f32
    %172 = vector.shape_cast %70 : vector<32x1xf32> to vector<32x1xf32>
    %173 = vector.broadcast %172 : vector<32x1xf32> to vector<32x256xf32>
    %174 = vector.broadcast %cst_50 : f32 to vector<32x256xf32>
    %175 = arith.select %171, %173, %174 : vector<32x256xi1>, vector<32x256xf32>
    %176 = arith.addf %150, %175 : vector<32x256xf32>
    %177 = vector.broadcast %49 : vector<32x1xf32> to vector<32x256xf32>
    %178 = arith.mulf %176, %177 : vector<32x256xf32>
    %179 = arith.truncf %178 : vector<32x256xf32> to vector<32x256xbf16>
    %180 = arith.truncf %6 : vector<256x8xf32> to vector<256x8xbf16>
    %cst_51 = arith.constant dense<0.000000e+00> : vector<32x8xf32>
    %181 = tpu.matmul %179, %180, %cst_51 {dimension_numbers = #tpu.dot_dimension_numbers<[1], [0], [0], [1], [0, 0, 1, 1], [], []>} : vector<32x256xbf16>, vector<256x8xbf16>, vector<32x8xf32> -> vector<32x8xf32>
    %c0_52 = arith.constant 0 : index
    %c0_53 = arith.constant 0 : index
    %182 = vector.load %arg14[%c0_52, %c0_53] : memref<32x8xf32, #tpu.memory_space<vmem>>, vector<32x8xf32>
    %183 = arith.addf %182, %181 : vector<32x8xf32>
    %c0_54 = arith.constant 0 : index
    %c0_55 = arith.constant 0 : index
    %184 = vector.load %arg14[%c0_54, %c0_55] : memref<32x8xf32, #tpu.memory_space<vmem>>, vector<32x8xf32>
    tpu.vector_store %arg14[%c0_54, %c0_55], %183 {strides = array<i32>} : memref<32x8xf32, #tpu.memory_space<vmem>>, vector<32x8xf32>,
    %c0_56 = arith.constant 0 : index
    %c0_57 = arith.constant 0 : index
    %185 = vector.load %arg15[%c0_56, %c0_57] : memref<32x1xf32, #tpu.memory_space<vmem>>, vector<32x1xf32>
    %186 = arith.addf %185, %49 : vector<32x1xf32>
    %c0_58 = arith.constant 0 : index
    %c0_59 = arith.constant 0 : index
    %187 = vector.load %arg15[%c0_58, %c0_59] : memref<32x1xf32, #tpu.memory_space<vmem>>, vector<32x1xf32>
    tpu.vector_store %arg15[%c0_58, %c0_59], %186 {strides = array<i32>} : memref<32x1xf32, #tpu.memory_space<vmem>>, vector<32x1xf32>,
    %c0_60 = arith.constant 0 : index
    %c0_61 = arith.constant 0 : index
    %c0_62 = arith.constant 0 : index
    %188 = vector.load %arg11[%c0_60, %c0_61, %c0_62] : memref<1x64x8xf32, #tpu.memory_space<vmem>>, vector<1x64x8xf32>
    %189 = vector.shape_cast %188 : vector<1x64x8xf32> to vector<64x8xf32>
    %c0_63 = arith.constant 0 : index
    %c0_64 = arith.constant 0 : index
    %c1 = arith.constant 1 : index
    %c0_65 = arith.constant 0 : index
    %c0_66 = arith.constant 0 : index
    %190 = vector.load %arg5[%c0_63, %c0_64, %c1, %c0_65, %c0_66] : memref<1x1x2x4x4xf32, #tpu.memory_space<vmem>>, vector<1x1x1x4x4xf32>
    %191 = vector.shape_cast %190 : vector<1x1x1x4x4xf32> to vector<4x4xf32>
    %192 = vector.extract_strided_slice %4 {offsets = [0, 0], sizes = [32, 1], strides = [1, 1]} : vector<32x3xf32> to vector<32x1xf32>
    %193 = vector.extract_strided_slice %191 {offsets = [0, 0], sizes = [1, 4], strides = [1, 1]} : vector<4x4xf32> to vector<1x4xf32>
    %194 = vector.broadcast %192 : vector<32x1xf32> to vector<32x4xf32>
    %195 = vector.broadcast %193 : vector<1x4xf32> to vector<32x4xf32>
    %196 = arith.mulf %194, %195 : vector<32x4xf32>
    %197 = vector.extract_strided_slice %4 {offsets = [0, 1], sizes = [32, 1], strides = [1, 1]} : vector<32x3xf32> to vector<32x1xf32>
    %198 = vector.extract_strided_slice %191 {offsets = [1, 0], sizes = [1, 4], strides = [1, 1]} : vector<4x4xf32> to vector<1x4xf32>
    %199 = vector.broadcast %197 : vector<32x1xf32> to vector<32x4xf32>
    %200 = vector.broadcast %198 : vector<1x4xf32> to vector<32x4xf32>
    %201 = arith.mulf %199, %200 : vector<32x4xf32>
    %202 = arith.addf %196, %201 : vector<32x4xf32>
    %203 = vector.extract_strided_slice %4 {offsets = [0, 2], sizes = [32, 1], strides = [1, 1]} : vector<32x3xf32> to vector<32x1xf32>
    %204 = vector.extract_strided_slice %191 {offsets = [2, 0], sizes = [1, 4], strides = [1, 1]} : vector<4x4xf32> to vector<1x4xf32>
    %205 = vector.broadcast %203 : vector<32x1xf32> to vector<32x4xf32>
    %206 = vector.broadcast %204 : vector<1x4xf32> to vector<32x4xf32>
    %207 = arith.mulf %205, %206 : vector<32x4xf32>
    %208 = arith.addf %202, %207 : vector<32x4xf32>
    %209 = vector.extract_strided_slice %191 {offsets = [3, 0], sizes = [1, 4], strides = [1, 1]} : vector<4x4xf32> to vector<1x4xf32>
    %210 = vector.broadcast %209 : vector<1x4xf32> to vector<32x4xf32>
    %211 = arith.addf %208, %210 : vector<32x4xf32>
    %212 = vector.extract_strided_slice %211 {offsets = [0, 2], sizes = [32, 1], strides = [1, 1]} : vector<32x4xf32> to vector<32x1xf32>
    %cst_67 = arith.constant 5.000000e-02 : f32
    %213 = vector.broadcast %cst_67 : f32 to vector<32x1xf32>
    %214 = arith.maximumf %212, %213 : vector<32x1xf32>
    %215 = tpu.reciprocal %214 {approx = true} : vector<32x1xf32> -> vector<32x1xf32>
    %216 = vector.extract_strided_slice %211 {offsets = [0, 0], sizes = [32, 1], strides = [1, 1]} : vector<32x4xf32> to vector<32x1xf32>
    %217 = arith.mulf %216, %215 : vector<32x1xf32>
    %218 = vector.extract_strided_slice %211 {offsets = [0, 1], sizes = [32, 1], strides = [1, 1]} : vector<32x4xf32> to vector<32x1xf32>
    %219 = arith.mulf %218, %215 : vector<32x1xf32>
    %cst_68 = arith.constant 0.000000e+00 : f32
    %220 = vector.broadcast %cst_68 : f32 to vector<32x1xf32>
    %221 = arith.cmpf oge, %217, %220 : vector<32x1xf32>
    %cst_69 = arith.constant 8.000000e+00 : f32
    %222 = vector.broadcast %cst_69 : f32 to vector<32x1xf32>
    %223 = arith.cmpf olt, %217, %222 : vector<32x1xf32>
    %224 = arith.andi %221, %223 : vector<32x1xi1>
    %cst_70 = arith.constant 0.000000e+00 : f32
    %225 = vector.broadcast %cst_70 : f32 to vector<32x1xf32>
    %226 = arith.cmpf oge, %219, %225 : vector<32x1xf32>
    %227 = arith.andi %224, %226 : vector<32x1xi1>
    %cst_71 = arith.constant 8.000000e+00 : f32
    %228 = vector.broadcast %cst_71 : f32 to vector<32x1xf32>
    %229 = arith.cmpf olt, %219, %228 : vector<32x1xf32>
    %230 = arith.andi %227, %229 : vector<32x1xi1>
    %231 = arith.extui %230 : vector<32x1xi1> to vector<32x1xi32>
    %232 = arith.sitofp %231 : vector<32x1xi32> to vector<32x1xf32>
    %233 = math.floor %217 : vector<32x1xf32>
    %234 = math.floor %219 : vector<32x1xf32>
    %235 = arith.subf %217, %233 : vector<32x1xf32>
    %236 = arith.subf %219, %234 : vector<32x1xf32>
    %237 = arith.fptosi %233 : vector<32x1xf32> to vector<32x1xi32>
    %238 = arith.fptosi %234 : vector<32x1xf32> to vector<32x1xi32>
    %c8_i32 = arith.constant 8 : i32
    %239 = vector.broadcast %c8_i32 : i32 to vector<32x1xi32>
    %240 = arith.muli %238, %239 : vector<32x1xi32>
    %241 = arith.addi %240, %237 : vector<32x1xi32>
    %cst_72 = arith.constant 1.000000e+00 : f32
    %242 = vector.broadcast %cst_72 : f32 to vector<32x1xf32>
    %243 = arith.subf %242, %235 : vector<32x1xf32>
    %cst_73 = arith.constant 1.000000e+00 : f32
    %244 = vector.broadcast %cst_73 : f32 to vector<32x1xf32>
    %245 = arith.subf %244, %236 : vector<32x1xf32>
    %246 = arith.mulf %243, %245 : vector<32x1xf32>
    %cst_74 = arith.constant 1.000000e+00 : f32
    %247 = vector.broadcast %cst_74 : f32 to vector<32x1xf32>
    %248 = arith.subf %247, %236 : vector<32x1xf32>
    %249 = arith.mulf %235, %248 : vector<32x1xf32>
    %cst_75 = arith.constant 1.000000e+00 : f32
    %250 = vector.broadcast %cst_75 : f32 to vector<32x1xf32>
    %251 = arith.subf %250, %235 : vector<32x1xf32>
    %252 = arith.mulf %251, %236 : vector<32x1xf32>
    %253 = arith.mulf %235, %236 : vector<32x1xf32>
    %254 = tpu.iota {dimensions = array<i32: 1>} : vector<32x64xi32>
    %cst_76 = arith.constant 0.000000e+00 : f32
    %255 = vector.broadcast %cst_76 : f32 to vector<32x64xf32>
    %c0_i32_77 = arith.constant 0 : i32
    %256 = vector.broadcast %c0_i32_77 : i32 to vector<32x1xi32>
    %257 = arith.addi %237, %256 : vector<32x1xi32>
    %c0_i32_78 = arith.constant 0 : i32
    %258 = vector.broadcast %c0_i32_78 : i32 to vector<32x1xi32>
    %259 = arith.addi %238, %258 : vector<32x1xi32>
    %c0_i32_79 = arith.constant 0 : i32
    %260 = vector.broadcast %c0_i32_79 : i32 to vector<32x1xi32>
    %261 = arith.cmpi sge, %257, %260 : vector<32x1xi32>
    %c8_i32_80 = arith.constant 8 : i32
    %262 = vector.broadcast %c8_i32_80 : i32 to vector<32x1xi32>
    %263 = arith.cmpi slt, %257, %262 : vector<32x1xi32>
    %264 = arith.andi %261, %263 : vector<32x1xi1>
    %c0_i32_81 = arith.constant 0 : i32
    %265 = vector.broadcast %c0_i32_81 : i32 to vector<32x1xi32>
    %266 = arith.cmpi sge, %259, %265 : vector<32x1xi32>
    %267 = arith.andi %264, %266 : vector<32x1xi1>
    %c8_i32_82 = arith.constant 8 : i32
    %268 = vector.broadcast %c8_i32_82 : i32 to vector<32x1xi32>
    %269 = arith.cmpi slt, %259, %268 : vector<32x1xi32>
    %270 = arith.andi %267, %269 : vector<32x1xi1>
    %c0_i32_83 = arith.constant 0 : i32
    %271 = vector.broadcast %c0_i32_83 : i32 to vector<32x1xi32>
    %272 = arith.addi %241, %271 : vector<32x1xi32>
    %273 = vector.broadcast %272 : vector<32x1xi32> to vector<32x64xi32>
    %274 = arith.cmpi eq, %254, %273 : vector<32x64xi32>
    %275 = vector.broadcast %270 : vector<32x1xi1> to vector<32x64xi1>
    %276 = arith.andi %274, %275 : vector<32x64xi1>
    %cst_84 = arith.constant 0.000000e+00 : f32
    %277 = vector.shape_cast %246 : vector<32x1xf32> to vector<32x1xf32>
    %278 = vector.broadcast %277 : vector<32x1xf32> to vector<32x64xf32>
    %279 = vector.broadcast %cst_84 : f32 to vector<32x64xf32>
    %280 = arith.select %276, %278, %279 : vector<32x64xi1>, vector<32x64xf32>
    %281 = arith.addf %255, %280 : vector<32x64xf32>
    %c1_i32_85 = arith.constant 1 : i32
    %282 = vector.broadcast %c1_i32_85 : i32 to vector<32x1xi32>
    %283 = arith.addi %237, %282 : vector<32x1xi32>
    %c0_i32_86 = arith.constant 0 : i32
    %284 = vector.broadcast %c0_i32_86 : i32 to vector<32x1xi32>
    %285 = arith.addi %238, %284 : vector<32x1xi32>
    %c0_i32_87 = arith.constant 0 : i32
    %286 = vector.broadcast %c0_i32_87 : i32 to vector<32x1xi32>
    %287 = arith.cmpi sge, %283, %286 : vector<32x1xi32>
    %c8_i32_88 = arith.constant 8 : i32
    %288 = vector.broadcast %c8_i32_88 : i32 to vector<32x1xi32>
    %289 = arith.cmpi slt, %283, %288 : vector<32x1xi32>
    %290 = arith.andi %287, %289 : vector<32x1xi1>
    %c0_i32_89 = arith.constant 0 : i32
    %291 = vector.broadcast %c0_i32_89 : i32 to vector<32x1xi32>
    %292 = arith.cmpi sge, %285, %291 : vector<32x1xi32>
    %293 = arith.andi %290, %292 : vector<32x1xi1>
    %c8_i32_90 = arith.constant 8 : i32
    %294 = vector.broadcast %c8_i32_90 : i32 to vector<32x1xi32>
    %295 = arith.cmpi slt, %285, %294 : vector<32x1xi32>
    %296 = arith.andi %293, %295 : vector<32x1xi1>
    %c1_i32_91 = arith.constant 1 : i32
    %297 = vector.broadcast %c1_i32_91 : i32 to vector<32x1xi32>
    %298 = arith.addi %241, %297 : vector<32x1xi32>
    %299 = vector.broadcast %298 : vector<32x1xi32> to vector<32x64xi32>
    %300 = arith.cmpi eq, %254, %299 : vector<32x64xi32>
    %301 = vector.broadcast %296 : vector<32x1xi1> to vector<32x64xi1>
    %302 = arith.andi %300, %301 : vector<32x64xi1>
    %cst_92 = arith.constant 0.000000e+00 : f32
    %303 = vector.shape_cast %249 : vector<32x1xf32> to vector<32x1xf32>
    %304 = vector.broadcast %303 : vector<32x1xf32> to vector<32x64xf32>
    %305 = vector.broadcast %cst_92 : f32 to vector<32x64xf32>
    %306 = arith.select %302, %304, %305 : vector<32x64xi1>, vector<32x64xf32>
    %307 = arith.addf %281, %306 : vector<32x64xf32>
    %c0_i32_93 = arith.constant 0 : i32
    %308 = vector.broadcast %c0_i32_93 : i32 to vector<32x1xi32>
    %309 = arith.addi %237, %308 : vector<32x1xi32>
    %c1_i32_94 = arith.constant 1 : i32
    %310 = vector.broadcast %c1_i32_94 : i32 to vector<32x1xi32>
    %311 = arith.addi %238, %310 : vector<32x1xi32>
    %c0_i32_95 = arith.constant 0 : i32
    %312 = vector.broadcast %c0_i32_95 : i32 to vector<32x1xi32>
    %313 = arith.cmpi sge, %309, %312 : vector<32x1xi32>
    %c8_i32_96 = arith.constant 8 : i32
    %314 = vector.broadcast %c8_i32_96 : i32 to vector<32x1xi32>
    %315 = arith.cmpi slt, %309, %314 : vector<32x1xi32>
    %316 = arith.andi %313, %315 : vector<32x1xi1>
    %c0_i32_97 = arith.constant 0 : i32
    %317 = vector.broadcast %c0_i32_97 : i32 to vector<32x1xi32>
    %318 = arith.cmpi sge, %311, %317 : vector<32x1xi32>
    %319 = arith.andi %316, %318 : vector<32x1xi1>
    %c8_i32_98 = arith.constant 8 : i32
    %320 = vector.broadcast %c8_i32_98 : i32 to vector<32x1xi32>
    %321 = arith.cmpi slt, %311, %320 : vector<32x1xi32>
    %322 = arith.andi %319, %321 : vector<32x1xi1>
    %c8_i32_99 = arith.constant 8 : i32
    %323 = vector.broadcast %c8_i32_99 : i32 to vector<32x1xi32>
    %324 = arith.addi %241, %323 : vector<32x1xi32>
    %325 = vector.broadcast %324 : vector<32x1xi32> to vector<32x64xi32>
    %326 = arith.cmpi eq, %254, %325 : vector<32x64xi32>
    %327 = vector.broadcast %322 : vector<32x1xi1> to vector<32x64xi1>
    %328 = arith.andi %326, %327 : vector<32x64xi1>
    %cst_100 = arith.constant 0.000000e+00 : f32
    %329 = vector.shape_cast %252 : vector<32x1xf32> to vector<32x1xf32>
    %330 = vector.broadcast %329 : vector<32x1xf32> to vector<32x64xf32>
    %331 = vector.broadcast %cst_100 : f32 to vector<32x64xf32>
    %332 = arith.select %328, %330, %331 : vector<32x64xi1>, vector<32x64xf32>
    %333 = arith.addf %307, %332 : vector<32x64xf32>
    %c1_i32_101 = arith.constant 1 : i32
    %334 = vector.broadcast %c1_i32_101 : i32 to vector<32x1xi32>
    %335 = arith.addi %237, %334 : vector<32x1xi32>
    %c1_i32_102 = arith.constant 1 : i32
    %336 = vector.broadcast %c1_i32_102 : i32 to vector<32x1xi32>
    %337 = arith.addi %238, %336 : vector<32x1xi32>
    %c0_i32_103 = arith.constant 0 : i32
    %338 = vector.broadcast %c0_i32_103 : i32 to vector<32x1xi32>
    %339 = arith.cmpi sge, %335, %338 : vector<32x1xi32>
    %c8_i32_104 = arith.constant 8 : i32
    %340 = vector.broadcast %c8_i32_104 : i32 to vector<32x1xi32>
    %341 = arith.cmpi slt, %335, %340 : vector<32x1xi32>
    %342 = arith.andi %339, %341 : vector<32x1xi1>
    %c0_i32_105 = arith.constant 0 : i32
    %343 = vector.broadcast %c0_i32_105 : i32 to vector<32x1xi32>
    %344 = arith.cmpi sge, %337, %343 : vector<32x1xi32>
    %345 = arith.andi %342, %344 : vector<32x1xi1>
    %c8_i32_106 = arith.constant 8 : i32
    %346 = vector.broadcast %c8_i32_106 : i32 to vector<32x1xi32>
    %347 = arith.cmpi slt, %337, %346 : vector<32x1xi32>
    %348 = arith.andi %345, %347 : vector<32x1xi1>
    %c9_i32 = arith.constant 9 : i32
    %349 = vector.broadcast %c9_i32 : i32 to vector<32x1xi32>
    %350 = arith.addi %241, %349 : vector<32x1xi32>
    %351 = vector.broadcast %350 : vector<32x1xi32> to vector<32x64xi32>
    %352 = arith.cmpi eq, %254, %351 : vector<32x64xi32>
    %353 = vector.broadcast %348 : vector<32x1xi1> to vector<32x64xi1>
    %354 = arith.andi %352, %353 : vector<32x64xi1>
    %cst_107 = arith.constant 0.000000e+00 : f32
    %355 = vector.shape_cast %253 : vector<32x1xf32> to vector<32x1xf32>
    %356 = vector.broadcast %355 : vector<32x1xf32> to vector<32x64xf32>
    %357 = vector.broadcast %cst_107 : f32 to vector<32x64xf32>
    %358 = arith.select %354, %356, %357 : vector<32x64xi1>, vector<32x64xf32>
    %359 = arith.addf %333, %358 : vector<32x64xf32>
    %360 = vector.broadcast %232 : vector<32x1xf32> to vector<32x64xf32>
    %361 = arith.mulf %359, %360 : vector<32x64xf32>
    %362 = arith.truncf %361 : vector<32x64xf32> to vector<32x64xbf16>
    %363 = arith.truncf %189 : vector<64x8xf32> to vector<64x8xbf16>
    %cst_108 = arith.constant dense<0.000000e+00> : vector<32x8xf32>
    %364 = tpu.matmul %362, %363, %cst_108 {dimension_numbers = #tpu.dot_dimension_numbers<[1], [0], [0], [1], [0, 0, 1, 1], [], []>} : vector<32x64xbf16>, vector<64x8xbf16>, vector<32x8xf32> -> vector<32x8xf32>
    %c0_109 = arith.constant 0 : index
    %c0_110 = arith.constant 0 : index
    %365 = vector.load %arg14[%c0_109, %c0_110] : memref<32x8xf32, #tpu.memory_space<vmem>>, vector<32x8xf32>
    %366 = arith.addf %365, %364 : vector<32x8xf32>
    %c0_111 = arith.constant 0 : index
    %c0_112 = arith.constant 0 : index
    %367 = vector.load %arg14[%c0_111, %c0_112] : memref<32x8xf32, #tpu.memory_space<vmem>>, vector<32x8xf32>
    tpu.vector_store %arg14[%c0_111, %c0_112], %366 {strides = array<i32>} : memref<32x8xf32, #tpu.memory_space<vmem>>, vector<32x8xf32>,
    %c0_113 = arith.constant 0 : index
    %c0_114 = arith.constant 0 : index
    %368 = vector.load %arg15[%c0_113, %c0_114] : memref<32x1xf32, #tpu.memory_space<vmem>>, vector<32x1xf32>
    %369 = arith.addf %368, %232 : vector<32x1xf32>
    %c0_115 = arith.constant 0 : index
    %c0_116 = arith.constant 0 : index
    %370 = vector.load %arg15[%c0_115, %c0_116] : memref<32x1xf32, #tpu.memory_space<vmem>>, vector<32x1xf32>
    tpu.vector_store %arg15[%c0_115, %c0_116], %369 {strides = array<i32>} : memref<32x1xf32, #tpu.memory_space<vmem>>, vector<32x1xf32>,
    %c1_i32_117 = arith.constant 1 : i32
    %371 = arith.cmpi eq, %arg2, %c1_i32_117 : i32
    %372 = arith.extui %371 : i1 to i32
    %c0_i32_118 = arith.constant 0 : i32
    %373 = arith.cmpi ne, %372, %c0_i32_118 : i32
    scf.if %373 {
      %c0_119 = arith.constant 0 : index
      %c0_120 = arith.constant 0 : index
      %374 = vector.load %arg14[%c0_119, %c0_120] : memref<32x8xf32, #tpu.memory_space<vmem>>, vector<32x8xf32>
      %c0_121 = arith.constant 0 : index
      %c0_122 = arith.constant 0 : index
      %375 = vector.load %arg15[%c0_121, %c0_122] : memref<32x1xf32, #tpu.memory_space<vmem>>, vector<32x1xf32>
      %cst_123 = arith.constant 9.99999997E-7 : f32
      %376 = vector.broadcast %cst_123 : f32 to vector<32x1xf32>
      %377 = arith.addf %375, %376 : vector<32x1xf32>
      %378 = tpu.reciprocal %377 {approx = true} : vector<32x1xf32> -> vector<32x1xf32>
      %379 = vector.broadcast %378 : vector<32x1xf32> to vector<32x8xf32>
      %380 = arith.mulf %374, %379 : vector<32x8xf32>
      %c0_124 = arith.constant 0 : index
      %c0_125 = arith.constant 0 : index
      %381 = vector.load %arg8[%c0_124, %c0_125] : memref<8x128xf32, #tpu.memory_space<vmem>>, vector<8x128xf32>
      %cst_126 = arith.constant dense<0.000000e+00> : vector<32x128xf32>
      %382 = tpu.matmul %380, %381, %cst_126 {dimension_numbers = #tpu.dot_dimension_numbers<[1], [0], [0], [1], [0, 0, 1, 1], [], []>} : vector<32x8xf32>, vector<8x128xf32>, vector<32x128xf32> -> vector<32x128xf32>
      %c0_127 = arith.constant 0 : index
      %c0_128 = arith.constant 0 : index
      %383 = vector.load %arg9[%c0_127, %c0_128] : memref<1x128xf32, #tpu.memory_space<vmem>>, vector<1x128xf32>
      %384 = vector.broadcast %383 : vector<1x128xf32> to vector<32x128xf32>
      %385 = arith.addf %382, %384 : vector<32x128xf32>
      %c0_129 = arith.constant 0 : index
      %c0_130 = arith.constant 0 : index
      %c0_131 = arith.constant 0 : index
      %386 = vector.load %arg4[%c0_129, %c0_130, %c0_131] : memref<1x32x128xf32, #tpu.memory_space<vmem>>, vector<1x32x128xf32>
      %387 = vector.shape_cast %386 : vector<1x32x128xf32> to vector<32x128xf32>
      %388 = arith.addf %387, %0 : vector<32x128xf32>
      %389 = arith.addf %388, %385 : vector<32x128xf32>
      %c0_132 = arith.constant 0 : index
      %c0_133 = arith.constant 0 : index
      %c0_134 = arith.constant 0 : index
      %390 = vector.load %arg12[%c0_132, %c0_133, %c0_134] : memref<1x32x128xf32, #tpu.memory_space<vmem>>, vector<1x32x128xf32>
      %391 = vector.shape_cast %390 : vector<1x32x128xf32> to vector<32x128xf32>
      %392 = vector.shape_cast %389 : vector<32x128xf32> to vector<1x32x128xf32>
      tpu.vector_store %arg12[%c0_132, %c0_133, %c0_134], %392 {strides = array<i32>} : memref<1x32x128xf32, #tpu.memory_space<vmem>>, vector<1x32x128xf32>,
    } else {
    }
    return
  }
  func.func @transform_0(%arg0: i32, %arg1: i32, %arg2: i32) -> (i32, i32) {
    %c0_i32 = arith.constant 0 : i32
    %c0_i32_0 = arith.constant 0 : i32
    return %arg1, %c0_i32 : i32, i32
  }
  func.func @transform_1(%arg0: i32, %arg1: i32, %arg2: i32) -> (i32, i32, i32) {
    %c0_i32 = arith.constant 0 : i32
    %c0_i32_0 = arith.constant 0 : i32
    return %arg0, %arg1, %c0_i32 : i32, i32, i32
  }
  func.func @transform_2(%arg0: i32, %arg1: i32, %arg2: i32) -> (i32, i32, i32, i32, i32) {
    %c0_i32 = arith.constant 0 : i32
    %c0_i32_0 = arith.constant 0 : i32
    %c0_i32_1 = arith.constant 0 : i32
    %c0_i32_2 = arith.constant 0 : i32
    return %arg0, %arg2, %c0_i32, %c0_i32_0, %c0_i32_1 : i32, i32, i32, i32, i32
  }
  func.func @transform_3(%arg0: i32, %arg1: i32, %arg2: i32) -> (i32, i32) {
    %c0_i32 = arith.constant 0 : i32
    %c0_i32_0 = arith.constant 0 : i32
    %c0_i32_1 = arith.constant 0 : i32
    return %c0_i32, %c0_i32_0 : i32, i32
  }
  func.func @transform_4(%arg0: i32, %arg1: i32, %arg2: i32) -> (i32, i32) {
    %c0_i32 = arith.constant 0 : i32
    %c0_i32_0 = arith.constant 0 : i32
    %c0_i32_1 = arith.constant 0 : i32
    return %c0_i32, %c0_i32_0 : i32, i32
  }
  func.func @transform_5(%arg0: i32, %arg1: i32, %arg2: i32) -> (i32, i32) {
    %c0_i32 = arith.constant 0 : i32
    %c0_i32_0 = arith.constant 0 : i32
    %c0_i32_1 = arith.constant 0 : i32
    return %c0_i32, %c0_i32_0 : i32, i32
  }
  func.func @transform_6(%arg0: i32, %arg1: i32, %arg2: i32) -> (i32, i32) {
    %c0_i32 = arith.constant 0 : i32
    %c0_i32_0 = arith.constant 0 : i32
    %c0_i32_1 = arith.constant 0 : i32
    return %c0_i32, %c0_i32_0 : i32, i32
  }
  func.func @transform_7(%arg0: i32, %arg1: i32, %arg2: i32) -> (i32, i32, i32) {
    %c2_i32 = arith.constant 2 : i32
    %0 = arith.muli %arg0, %c2_i32 : i32
    %1 = arith.addi %0, %arg2 : i32
    %c0_i32 = arith.constant 0 : i32
    %c0_i32_0 = arith.constant 0 : i32
    %c0_i32_1 = arith.constant 0 : i32
    return %1, %c0_i32, %c0_i32_0 : i32, i32, i32
  }
  func.func @transform_8(%arg0: i32, %arg1: i32, %arg2: i32) -> (i32, i32, i32) {
    %c2_i32 = arith.constant 2 : i32
    %0 = arith.muli %arg0, %c2_i32 : i32
    %1 = arith.addi %0, %arg2 : i32
    %c0_i32 = arith.constant 0 : i32
    %c0_i32_0 = arith.constant 0 : i32
    %c0_i32_1 = arith.constant 0 : i32
    return %1, %c0_i32, %c0_i32_0 : i32, i32, i32
  }
  func.func @transform_9(%arg0: i32, %arg1: i32, %arg2: i32) -> (i32, i32, i32) {
    %c0_i32 = arith.constant 0 : i32
    %c0_i32_0 = arith.constant 0 : i32
    return %arg0, %arg1, %c0_i32 : i32, i32, i32
  }
  func.func @transform_10(%arg0: i32, %arg1: i32, %arg2: i32) -> (i32, i32, i32) {
    %c0_i32 = arith.constant 0 : i32
    %c0_i32_0 = arith.constant 0 : i32
    return %arg0, %arg1, %c0_i32 : i32, i32, i32
  }
}

</mosaic_0001>

<llo_original>
// kernel: tpu_custom_call.1
$region0: #{tpu_custom_call.1}
  #allocation0 [shape = 'u32[]', space=smem, size = 0x4, offset = 0x4, fixed_abs, tag = 'smem constant byte address 0x4 - core index']
  #allocation1 [shape = 'u32[72,128]{1,0:T(1,128)}', space=vmem, size = 0x9000, scoped, tag = 'internal scratch']
  #allocation2 [shape = 'f32[32,8]{1,0:T(8,128)}', space=vmem, size = 0x4000, scoped, tag = 'scratch operand']
  #allocation3 [shape = 'f32[32,1]{1,0:T(8,128)}', space=vmem, size = 0x4000, scoped, tag = 'scratch operand']
  #allocation4 [shape = 'f32[32,3]{1,0:T(8,128)}', space=vmem, size = 0x4000, scoped, tag = 'scratch operand']
  %s0 = inlined_call_operand.vmem [shape: f32[64,128], index: 0, kind: input, shape index: {}]
  %s1 = inlined_call_operand.vmem [shape: f32[2,64,128], index: 1, kind: input, shape index: {}]
  %s2 = inlined_call_operand.vmem [shape: f32[2,2,2,4,4], index: 2, kind: input, shape index: {}]
  %s3 = inlined_call_operand.vmem [shape: f32[128,128], index: 3, kind: input, shape index: {}]
  %s4 = inlined_call_operand.vmem [shape: f32[1,128], index: 4, kind: input, shape index: {}]
  %s5 = inlined_call_operand.vmem [shape: f32[8,128], index: 5, kind: input, shape index: {}]
  %s6 = inlined_call_operand.vmem [shape: f32[1,128], index: 6, kind: input, shape index: {}]
  %s7 = inlined_call_operand.vmem [shape: f32[4,256,8], index: 7, kind: input, shape index: {}]
  %s8 = inlined_call_operand.vmem [shape: f32[4,64,8], index: 8, kind: input, shape index: {}]
  %s9 = inlined_call_operand.hbm [shape: f32[2,64,128], index: 9, kind: output, shape index: {0}]
  %s10 = inlined_call_operand.hbm [shape: f32[2,64,128], index: 10, kind: output, shape index: {1}]
  %11 = xla_tuple %s9, %s10
  %s12 = sld [smem:[#allocation0]]
  $region85: #{tpu_custom_call.1} parent=0
    _
  %s14 = ssub.s32 1, %s12
  %s15 = scalar_select 0, %s14, %s12
  $region1: #{tpu_custom_call.1} parent=0
    #allocation5 [shape = 'u8[32768]{0}', space=vmem, size = 0x8000, scoped, tag = 'output window, operand 0']
    #allocation6 [shape = 's32[2]{0}', space=sflag, size = 0x8, scoped, tag = 'scoped memory for tpu_custom_call.1']
    #allocation7 [shape = 'u8[32768]{0}', space=vmem, size = 0x8000, scoped, tag = 'output window, operand 1']
    #allocation8 [shape = 's32[2]{0}', space=sflag, size = 0x8, scoped, tag = 'scoped memory for tpu_custom_call.1']
    %16 = vsyncpa [#allocation6], 0
    %s17 = scalar_lea.sflag [#allocation6], 1
    %18 = vsyncpa %s17, 0
    %19 = vsyncpa [#allocation8], 0
    %s20 = scalar_lea.sflag [#allocation8], 1
    %21 = vsyncpa %s20, 0
    loop: start=0, step=1, limit=10
    $region2: #{tpu_custom_call.1} parent=1 // loop_pre_header
      _
    $region3: #{tpu_custom_call.1} parent=1 // loop_header
      %s23 = sphi 0, %s27
      %p24 = scmp.ge.s32.totalorder %s23, 10
      %s30 = sphi 0, %s49
      %s31 = sphi 0, %s45
      %s32 = sphi 0, %s41
      %s33 = sphi 0, %s30
      %s34 = sphi 0, %s31
      %s35 = sphi 0, %s32
      %s36 = sphi 0, %s33
      %s37 = sphi 0, %s34
      %s38 = sphi 0, %s35
      %s52 = sphi 0, %s54
      %s55 = sphi 0, %s52
      %s56 = sphi 0, %s55
      %s72 = sphi 0, %s56
      %s80 = sphi 0, %s82
      %s83 = sphi 0, %s80
      %s84 = sphi 0, %s83
      %s100 = sphi 0, %s84
      %s108 = sphi 0, %s110
      %s111 = sphi 0, %s108
      %s112 = sphi 0, %s111
      %s128 = sphi 0, %s112
      %s132 = sphi 0, %s132
      %s134 = sphi 0, %s132
      %s135 = sphi 0, %s134
      %s149 = sphi 0, %s135
      %s153 = sphi 0, %s153
      %s155 = sphi 0, %s153
      %s156 = sphi 0, %s155
      %s170 = sphi 0, %s156
      %s174 = sphi 0, %s174
      %s176 = sphi 0, %s174
      %s177 = sphi 0, %s176
      %s191 = sphi 0, %s177
      %s195 = sphi 0, %s195
      %s197 = sphi 0, %s195
      %s198 = sphi 0, %s197
      %s212 = sphi 0, %s198
      %s222 = sphi 0, %s224
      %s225 = sphi 0, %s222
      %s226 = sphi 0, %s225
      %s242 = sphi 0, %s226
      %s252 = sphi 0, %s254
      %s255 = sphi 0, %s252
      %s256 = sphi 0, %s255
      %s272 = sphi 0, %s256
      %s280 = sphi 0, %s282
      %s283 = sphi 0, %s280
      %s284 = sphi 0, %s283
      %s300 = sphi 0, %s284
      %s308 = sphi 0, %s310
      %s311 = sphi 0, %s308
      %s312 = sphi 0, %s311
      %s328 = sphi 0, %s312
    $region4: #{tpu_custom_call.1} parent=1 // loop_header_branch
      %26 = sbr.rel (%p24) target = $region8
    $region5: #{tpu_custom_call.1} parent=1 // loop_body
      %s28 = ssub.s32 %s23, 1
      %s29 = ssub.s32 %s23, 2
      %s39 = sadd.s32 1, %s32
      %p40 = scmp.ge.s32.totalorder %s39, 2
      %s41 = scalar_select %p40, 0, %s39
      %s42 = sadd.s32 1, %s31
      %s43 = scalar_select %p40, %s42, %s31
      %p44 = scmp.ge.s32.totalorder %s43, 2
      %s45 = scalar_select %p44, 0, %s43
      %s46 = sadd.s32 1, %s30
      %s47 = scalar_select %p44, %s46, %s30
      %p48 = scmp.ge.s32.totalorder %s47, 2
      %s49 = scalar_select %p48, 0, %s47
      %s50 = ssub.s32 %s31, %s45
      %p51 = scmp.eq.s32.totalorder %s50, 0
      %s53 = sadd.s32 %s52, 1
      %s54 = scalar_select %p51, %s52, %s53
      %p57 = pneg %p51
      %p58 = scmp.eq.s32.totalorder %s23, 7
      %p59 = por %p57, %p58
      %p60 = scmp.ne.s32.totalorder %s52, %s55
      %p61 = scmp.eq.s32.totalorder %s23, 0
      %p62 = por %p60, %p61
      %p63 = scmp.ne.s32.totalorder %s52, %s55
      %p64 = scmp.eq.s32.totalorder %s28, 7
      %p65 = por %p63, %p64
      %p66 = scmp.ne.s32.totalorder %s55, %s56
      %p67 = scmp.eq.s32.totalorder %s28, 0
      %p68 = por %p66, %p67
      %p69 = scmp.ne.s32.totalorder %s55, %s56
      %p70 = scmp.eq.s32.totalorder %s29, 7
      %p71 = por %p69, %p70
      %p73 = scmp.ne.s32.totalorder %s56, %s72
      %p74 = scmp.eq.s32.totalorder %s29, 0
      %p75 = por %p73, %p74
      %s76 = ssub.s32 %s30, %s49
      %s77 = ssub.s32 %s31, %s45
      %s78 = sor.u32 %s76, %s77
      %p79 = scmp.eq.s32.totalorder %s78, 0
      %s81 = sadd.s32 %s80, 1
      %s82 = scalar_select %p79, %s80, %s81
      %p85 = pneg %p79
      %p86 = scmp.eq.s32.totalorder %s23, 7
      %p87 = por %p85, %p86
      %p88 = scmp.ne.s32.totalorder %s80, %s83
      %p89 = scmp.eq.s32.totalorder %s23, 0
      %p90 = por %p88, %p89
      %p91 = scmp.ne.s32.totalorder %s80, %s83
      %p92 = scmp.eq.s32.totalorder %s28, 7
      %p93 = por %p91, %p92
      %p94 = scmp.ne.s32.totalorder %s83, %s84
      %p95 = scmp.eq.s32.totalorder %s28, 0
      %p96 = por %p94, %p95
      %p97 = scmp.ne.s32.totalorder %s83, %s84
      %p98 = scmp.eq.s32.totalorder %s29, 7
      %p99 = por %p97, %p98
      %p101 = scmp.ne.s32.totalorder %s84, %s100
      %p102 = scmp.eq.s32.totalorder %s29, 0
      %p103 = por %p101, %p102
      %s104 = ssub.s32 %s30, %s49
      %s105 = ssub.s32 %s32, %s41
      %s106 = sor.u32 %s104, %s105
      %p107 = scmp.eq.s32.totalorder %s106, 0
      %s109 = sadd.s32 %s108, 1
      %s110 = scalar_select %p107, %s108, %s109
      %p113 = pneg %p107
      %p114 = scmp.eq.s32.totalorder %s23, 7
      %p115 = por %p113, %p114
      %p116 = scmp.ne.s32.totalorder %s108, %s111
      %p117 = scmp.eq.s32.totalorder %s23, 0
      %p118 = por %p116, %p117
      %p119 = scmp.ne.s32.totalorder %s108, %s111
      %p120 = scmp.eq.s32.totalorder %s28, 7
      %p121 = por %p119, %p120
      %p122 = scmp.ne.s32.totalorder %s111, %s112
      %p123 = scmp.eq.s32.totalorder %s28, 0
      %p124 = por %p122, %p123
      %p125 = scmp.ne.s32.totalorder %s111, %s112
      %p126 = scmp.eq.s32.totalorder %s29, 7
      %p127 = por %p125, %p126
      %p129 = scmp.ne.s32.totalorder %s112, %s128
      %p130 = scmp.eq.s32.totalorder %s29, 0
      %p131 = por %p129, %p130
      %s133 = sadd.s32 %s132, 1
      %p136 = scmp.eq.s32.totalorder %s23, 7
      %p137 = scmp.ne.s32.totalorder %s132, %s134
      %p138 = scmp.eq.s32.totalorder %s23, 0
      %p139 = por %p137, %p138
      %p140 = scmp.ne.s32.totalorder %s132, %s134
      %p141 = scmp.eq.s32.totalorder %s28, 7
      %p142 = por %p140, %p141
      %p143 = scmp.ne.s32.totalorder %s134, %s135
      %p144 = scmp.eq.s32.totalorder %s28, 0
      %p145 = por %p143, %p144
      %p146 = scmp.ne.s32.totalorder %s134, %s135
      %p147 = scmp.eq.s32.totalorder %s29, 7
      %p148 = por %p146, %p147
      %p150 = scmp.ne.s32.totalorder %s135, %s149
      %p151 = scmp.eq.s32.totalorder %s29, 0
      %p152 = por %p150, %p151
      %s154 = sadd.s32 %s153, 1
      %p157 = scmp.eq.s32.totalorder %s23, 7
      %p158 = scmp.ne.s32.totalorder %s153, %s155
      %p159 = scmp.eq.s32.totalorder %s23, 0
      %p160 = por %p158, %p159
      %p161 = scmp.ne.s32.totalorder %s153, %s155
      %p162 = scmp.eq.s32.totalorder %s28, 7
      %p163 = por %p161, %p162
      %p164 = scmp.ne.s32.totalorder %s155, %s156
      %p165 = scmp.eq.s32.totalorder %s28, 0
      %p166 = por %p164, %p165
      %p167 = scmp.ne.s32.totalorder %s155, %s156
      %p168 = scmp.eq.s32.totalorder %s29, 7
      %p169 = por %p167, %p168
      %p171 = scmp.ne.s32.totalorder %s156, %s170
      %p172 = scmp.eq.s32.totalorder %s29, 0
      %p173 = por %p171, %p172
      %s175 = sadd.s32 %s174, 1
      %p178 = scmp.eq.s32.totalorder %s23, 7
      %p179 = scmp.ne.s32.totalorder %s174, %s176
      %p180 = scmp.eq.s32.totalorder %s23, 0
      %p181 = por %p179, %p180
      %p182 = scmp.ne.s32.totalorder %s174, %s176
      %p183 = scmp.eq.s32.totalorder %s28, 7
      %p184 = por %p182, %p183
      %p185 = scmp.ne.s32.totalorder %s176, %s177
      %p186 = scmp.eq.s32.totalorder %s28, 0
      %p187 = por %p185, %p186
      %p188 = scmp.ne.s32.totalorder %s176, %s177
      %p189 = scmp.eq.s32.totalorder %s29, 7
      %p190 = por %p188, %p189
      %p192 = scmp.ne.s32.totalorder %s177, %s191
      %p193 = scmp.eq.s32.totalorder %s29, 0
      %p194 = por %p192, %p193
      %s196 = sadd.s32 %s195, 1
      %p199 = scmp.eq.s32.totalorder %s23, 7
      %p200 = scmp.ne.s32.totalorder %s195, %s197
      %p201 = scmp.eq.s32.totalorder %s23, 0
      %p202 = por %p200, %p201
      %p203 = scmp.ne.s32.totalorder %s195, %s197
      %p204 = scmp.eq.s32.totalorder %s28, 7
      %p205 = por %p203, %p204
      %p206 = scmp.ne.s32.totalorder %s197, %s198
      %p207 = scmp.eq.s32.totalorder %s28, 0
      %p208 = por %p206, %p207
      %p209 = scmp.ne.s32.totalorder %s197, %s198
      %p210 = scmp.eq.s32.totalorder %s29, 7
      %p211 = por %p209, %p210
      %p213 = scmp.ne.s32.totalorder %s198, %s212
      %p214 = scmp.eq.s32.totalorder %s29, 0
      %p215 = por %p213, %p214
      %s216 = smul.u32 %s30, 2
      %s217 = sadd.s32 %s216, %s32
      %s218 = smul.u32 %s49, 2
      %s219 = sadd.s32 %s218, %s41
      %s220 = ssub.s32 %s217, %s219
      %p221 = scmp.eq.s32.totalorder %s220, 0
      %s223 = sadd.s32 %s222, 1
      %s224 = scalar_select %p221, %s222, %s223
      %p227 = pneg %p221
      %p228 = scmp.eq.s32.totalorder %s23, 7
      %p229 = por %p227, %p228
      %p230 = scmp.ne.s32.totalorder %s222, %s225
      %p231 = scmp.eq.s32.totalorder %s23, 0
      %p232 = por %p230, %p231
      %p233 = scmp.ne.s32.totalorder %s222, %s225
      %p234 = scmp.eq.s32.totalorder %s28, 7
      %p235 = por %p233, %p234
      %p236 = scmp.ne.s32.totalorder %s225, %s226
      %p237 = scmp.eq.s32.totalorder %s28, 0
      %p238 = por %p236, %p237
      %p239 = scmp.ne.s32.totalorder %s225, %s226
      %p240 = scmp.eq.s32.totalorder %s29, 7
      %p241 = por %p239, %p240
      %p243 = scmp.ne.s32.totalorder %s226, %s242
      %p244 = scmp.eq.s32.totalorder %s29, 0
      %p245 = por %p243, %p244
      %s246 = smul.u32 %s30, 2
      %s247 = sadd.s32 %s246, %s32
      %s248 = smul.u32 %s49, 2
      %s249 = sadd.s32 %s248, %s41
      %s250 = ssub.s32 %s247, %s249
      %p251 = scmp.eq.s32.totalorder %s250, 0
      %s253 = sadd.s32 %s252, 1
      %s254 = scalar_select %p251, %s252, %s253
      %p257 = pneg %p251
      %p258 = scmp.eq.s32.totalorder %s23, 7
      %p259 = por %p257, %p258
      %p260 = scmp.ne.s32.totalorder %s252, %s255
      %p261 = scmp.eq.s32.totalorder %s23, 0
      %p262 = por %p260, %p261
      %p263 = scmp.ne.s32.totalorder %s252, %s255
      %p264 = scmp.eq.s32.totalorder %s28, 7
      %p265 = por %p263, %p264
      %p266 = scmp.ne.s32.totalorder %s255, %s256
      %p267 = scmp.eq.s32.totalorder %s28, 0
      %p268 = por %p266, %p267
      %p269 = scmp.ne.s32.totalorder %s255, %s256
      %p270 = scmp.eq.s32.totalorder %s29, 7
      %p271 = por %p269, %p270
      %p273 = scmp.ne.s32.totalorder %s256, %s272
      %p274 = scmp.eq.s32.totalorder %s29, 0
      %p275 = por %p273, %p274
      %s276 = ssub.s32 %s30, %s49
      %s277 = ssub.s32 %s31, %s45
      %s278 = sor.u32 %s276, %s277
      %p279 = scmp.eq.s32.totalorder %s278, 0
      %s281 = sadd.s32 %s280, 1
      %s282 = scalar_select %p279, %s280, %s281
      %p285 = pneg %p279
      %p286 = scmp.eq.s32.totalorder %s23, 7
      %p287 = por %p285, %p286
      %p288 = scmp.ne.s32.totalorder %s280, %s283
      %p289 = scmp.eq.s32.totalorder %s23, 0
      %p290 = por %p288, %p289
      %p291 = scmp.ne.s32.totalorder %s280, %s283
      %p292 = scmp.eq.s32.totalorder %s28, 7
      %p293 = por %p291, %p292
      %p294 = scmp.ne.s32.totalorder %s283, %s284
      %p295 = scmp.eq.s32.totalorder %s28, 0
      %p296 = por %p294, %p295
      %p297 = scmp.ne.s32.totalorder %s283, %s284
      %p298 = scmp.eq.s32.totalorder %s29, 7
      %p299 = por %p297, %p298
      %p301 = scmp.ne.s32.totalorder %s284, %s300
      %p302 = scmp.eq.s32.totalorder %s29, 0
      %p303 = por %p301, %p302
      %s304 = ssub.s32 %s30, %s49
      %s305 = ssub.s32 %s31, %s45
      %s306 = sor.u32 %s304, %s305
      %p307 = scmp.eq.s32.totalorder %s306, 0
      %s309 = sadd.s32 %s308, 1
      %s310 = scalar_select %p307, %s308, %s309
      %p313 = pneg %p307
      %p314 = scmp.eq.s32.totalorder %s23, 7
      %p315 = por %p313, %p314
      %p316 = scmp.ne.s32.totalorder %s308, %s311
      %p317 = scmp.eq.s32.totalorder %s23, 0
      %p318 = por %p316, %p317
      %p319 = scmp.ne.s32.totalorder %s308, %s311
      %p320 = scmp.eq.s32.totalorder %s28, 7
      %p321 = por %p319, %p320
      %p322 = scmp.ne.s32.totalorder %s311, %s312
      %p323 = scmp.eq.s32.totalorder %s28, 0
      %p324 = por %p322, %p323
      %p325 = scmp.ne.s32.totalorder %s311, %s312
      %p326 = scmp.eq.s32.totalorder %s29, 7
      %p327 = por %p325, %p326
      %p329 = scmp.ne.s32.totalorder %s312, %s328
      %p330 = scmp.eq.s32.totalorder %s29, 0
      %p331 = por %p329, %p330
      %p332 = scmp.le.s32.totalorder 1, %s23
      %p333 = scmp.lt.s32.totalorder %s23, 9
      %p334 = pnand %p332, %p333
      %p335 = pneg %p334
      // Predicated region
      $region9: #{tpu_custom_call.1} parent=5 // pred_check
        _
      $region10: #{tpu_custom_call.1} parent=5 // pred_check_branch
        %337 = sbr.rel (%p334) target = $region12
      $region11: #{tpu_custom_call.1} parent=5 // pred_region
        %s338 = ssub.s32 %s23, 1
        // Predicated region
        $region13: #{tpu_custom_call.1} parent=11 // pred_check
          %p339 = pneg %p145
        $region14: #{tpu_custom_call.1} parent=11 // pred_check_branch
          %341 = sbr.rel (%p339) target = $region16
        $region15: #{tpu_custom_call.1} parent=11 // pred_region
          _
        $region16: #{tpu_custom_call.1} parent=11 // pred_fallthru
          _
        // Predicated region
        $region17: #{tpu_custom_call.1} parent=11 // pred_check
          %p342 = pneg %p166
        $region18: #{tpu_custom_call.1} parent=11 // pred_check_branch
          %344 = sbr.rel (%p342) target = $region20
        $region19: #{tpu_custom_call.1} parent=11 // pred_region
          _
        $region20: #{tpu_custom_call.1} parent=11 // pred_fallthru
          _
        // Predicated region
        $region21: #{tpu_custom_call.1} parent=11 // pred_check
          %p345 = pneg %p187
        $region22: #{tpu_custom_call.1} parent=11 // pred_check_branch
          %347 = sbr.rel (%p345) target = $region24
        $region23: #{tpu_custom_call.1} parent=11 // pred_region
          _
        $region24: #{tpu_custom_call.1} parent=11 // pred_fallthru
          _
        // Predicated region
        $region25: #{tpu_custom_call.1} parent=11 // pred_check
          %p348 = pneg %p208
        $region26: #{tpu_custom_call.1} parent=11 // pred_check_branch
          %350 = sbr.rel (%p348) target = $region28
        $region27: #{tpu_custom_call.1} parent=11 // pred_region
          _
        $region28: #{tpu_custom_call.1} parent=11 // pred_fallthru
          _
      $region12: #{tpu_custom_call.1} parent=5 // pred_fallthru
        _
      %p351 = scmp.lt.s32.totalorder %s23, 8
      // Predicated region
      $region29: #{tpu_custom_call.1} parent=5 // pred_check
        %p352 = pneg %p351
      $region30: #{tpu_custom_call.1} parent=5 // pred_check_branch
        %354 = sbr.rel (%p352) target = $region32
      $region31: #{tpu_custom_call.1} parent=5 // pred_region
        // Predicated region
        $region33: #{tpu_custom_call.1} parent=31 // pred_check
          %p355 = pneg %p62
        $region34: #{tpu_custom_call.1} parent=31 // pred_check_branch
          %357 = sbr.rel (%p355) target = $region36
        $region35: #{tpu_custom_call.1} parent=31 // pred_region
          %s358 = smul.u32 4, %s31
          %p359 = scmp.lt.s32.totalorder %s358, 7
          %s360 = scalar_select %p359, %s358, 7
          %s361 = smul.addr %s360, 8
          %s362 = scalar_lea.vmem %s0, %s361
          %s363 = smul.u32 4, %s31
        $region36: #{tpu_custom_call.1} parent=31 // pred_fallthru
          _
        // Predicated region
        $region37: #{tpu_custom_call.1} parent=31 // pred_check
          %p364 = pneg %p90
        $region38: #{tpu_custom_call.1} parent=31 // pred_check_branch
          %366 = sbr.rel (%p364) target = $region40
        $region39: #{tpu_custom_call.1} parent=31 // pred_region
          %s367 = smul.u32 4, %s31
          %p368 = scmp.lt.s32.totalorder %s30, 1
          %s369 = scalar_select %p368, %s30, 1
          %p370 = scmp.lt.s32.totalorder %s367, 7
          %s371 = scalar_select %p370, %s367, 7
          %s372 = smul.addr %s369, 8
          %s373 = sadd.s32 %s371, %s372
          %s374 = smul.addr %s373, 8
          %s375 = scalar_lea.vmem %s1, %s374
          %s376 = smul.u32 4, %s31
        $region40: #{tpu_custom_call.1} parent=31 // pred_fallthru
          _
        // Predicated region
        $region41: #{tpu_custom_call.1} parent=31 // pred_check
          %p377 = pneg %p118
        $region42: #{tpu_custom_call.1} parent=31 // pred_check_branch
          %379 = sbr.rel (%p377) target = $region44
        $region43: #{tpu_custom_call.1} parent=31 // pred_region
          %p380 = scmp.lt.s32.totalorder %s30, 1
          %s381 = scalar_select %p380, %s30, 1
          %p382 = scmp.lt.s32.totalorder %s32, 1
          %s383 = scalar_select %p382, %s32, 1
          %s384 = smul.addr %s383, 2
          %s385 = smul.addr %s381, 4
          %s386 = sadd.s32 %s384, %s385
          %s387 = smul.addr %s386, 4
          %s388 = scalar_lea.vmem %s2, %s387
        $region44: #{tpu_custom_call.1} parent=31 // pred_fallthru
          _
        // Predicated region
        $region45: #{tpu_custom_call.1} parent=31 // pred_check
          %p389 = pneg %p232
        $region46: #{tpu_custom_call.1} parent=31 // pred_check_branch
          %391 = sbr.rel (%p389) target = $region48
        $region47: #{tpu_custom_call.1} parent=31 // pred_region
          %s392 = smul.u32 %s30, 2
          %s393 = sadd.s32 %s392, %s32
          %p394 = scmp.lt.s32.totalorder %s393, 3
          %s395 = scalar_select %p394, %s393, 3
          %s396 = smul.addr %s395, 32
          %s397 = smul.addr %s396, 8
          %s398 = scalar_lea.vmem %s7, %s397
          %s399 = smul.u32 %s30, 2
          %s400 = sadd.s32 %s399, %s32
        $region48: #{tpu_custom_call.1} parent=31 // pred_fallthru
          _
        // Predicated region
        $region49: #{tpu_custom_call.1} parent=31 // pred_check
          %p401 = pneg %p262
        $region50: #{tpu_custom_call.1} parent=31 // pred_check_branch
          %403 = sbr.rel (%p401) target = $region52
        $region51: #{tpu_custom_call.1} parent=31 // pred_region
          %s404 = smul.u32 %s30, 2
          %s405 = sadd.s32 %s404, %s32
          %p406 = scmp.lt.s32.totalorder %s405, 3
          %s407 = scalar_select %p406, %s405, 3
          %s408 = smul.addr %s407, 8
          %s409 = smul.addr %s408, 8
          %s410 = scalar_lea.vmem %s8, %s409
          %s411 = smul.u32 %s30, 2
          %s412 = sadd.s32 %s411, %s32
        $region52: #{tpu_custom_call.1} parent=31 // pred_fallthru
          _
      $region32: #{tpu_custom_call.1} parent=5 // pred_fallthru
        _
      %p413 = scmp.le.s32.totalorder 1, %s23
      %p414 = scmp.lt.s32.totalorder %s23, 9
      %p415 = pnand %p413, %p414
      %p416 = pneg %p415
      // Predicated region
      $region53: #{tpu_custom_call.1} parent=5 // pred_check
        _
      $region54: #{tpu_custom_call.1} parent=5 // pred_check_branch
        %418 = sbr.rel (%p415) target = $region56
      $region55: #{tpu_custom_call.1} parent=5 // pred_region
        %s419 = ssub.s32 %s23, 1
        %s420 = smul.u32 4, %s34
        %p421 = scmp.lt.s32.totalorder %s420, 7
        %s422 = scalar_select %p421, %s420, 7
        %s423 = smul.addr %s422, 8
        %s424 = scalar_lea.vmem %s0, %s423
        %p425 = pneg %p68
        %p426 = pneg %p65
        %s427 = smul.u32 4, %s34
        %p428 = scmp.lt.s32.totalorder %s33, 1
        %s429 = scalar_select %p428, %s33, 1
        %p430 = scmp.lt.s32.totalorder %s427, 7
        %s431 = scalar_select %p430, %s427, 7
        %s432 = smul.addr %s429, 8
        %s433 = sadd.s32 %s431, %s432
        %s434 = smul.addr %s433, 8
        %s435 = scalar_lea.vmem %s1, %s434
        %p436 = pneg %p96
        %p437 = pneg %p93
        %p438 = scmp.lt.s32.totalorder %s33, 1
        %s439 = scalar_select %p438, %s33, 1
        %p440 = scmp.lt.s32.totalorder %s35, 1
        %s441 = scalar_select %p440, %s35, 1
        %s442 = smul.addr %s441, 2
        %s443 = smul.addr %s439, 4
        %s444 = sadd.s32 %s442, %s443
        %s445 = smul.addr %s444, 4
        %s446 = scalar_lea.vmem %s2, %s445
        %p447 = pneg %p124
        %p448 = pneg %p121
        %p449 = pneg %p145
        %p450 = pneg %p142
        %p451 = pneg %p166
        %p452 = pneg %p163
        %p453 = pneg %p187
        %p454 = pneg %p184
        %p455 = pneg %p208
        %p456 = pneg %p205
        %s457 = smul.u32 %s33, 2
        %s458 = sadd.s32 %s457, %s35
        %p459 = scmp.lt.s32.totalorder %s458, 3
        %s460 = scalar_select %p459, %s458, 3
        %s461 = smul.addr %s460, 32
        %s462 = smul.addr %s461, 8
        %s463 = scalar_lea.vmem %s7, %s462
        %p464 = pneg %p238
        %p465 = pneg %p235
        %s466 = smul.u32 %s33, 2
        %s467 = sadd.s32 %s466, %s35
        %p468 = scmp.lt.s32.totalorder %s467, 3
        %s469 = scalar_select %p468, %s467, 3
        %s470 = smul.addr %s469, 8
        %s471 = smul.addr %s470, 8
        %s472 = scalar_lea.vmem %s8, %s471
        %p473 = pneg %p268
        %p474 = pneg %p265
        %p475 = pneg %p296
        %p476 = pneg %p293
        %s477 = sand.u32 %s283, 1
        %s478 = scalar_lea.sflag [#allocation6], %s477
        %s479 = sand.u32 %s283, 1
        %s480 = smul.addr %s479, 32
        %s481 = scalar_lea.vmem [#allocation5], %s480
        %p482 = pneg %p324
        %p483 = pneg %p321
        %s484 = sand.u32 %s311, 1
        %s485 = scalar_lea.sflag [#allocation8], %s484
        %s486 = sand.u32 %s311, 1
        %s487 = smul.addr %s486, 32
        %s488 = scalar_lea.vmem [#allocation7], %s487
        %s489 = smul.u32 4, %s34
        %p490 = scmp.lt.s32.totalorder %s489, 7
        %s491 = scalar_select %p490, %s489, 7
        %s492 = smul.addr %s491, 8
        %s493 = scalar_lea.vmem %s0, %s492
        %s494 = smul.u32 4, %s34
        %s495 = smul.u32 4, %s34
        %p496 = scmp.lt.s32.totalorder %s33, 1
        %s497 = scalar_select %p496, %s33, 1
        %p498 = scmp.lt.s32.totalorder %s495, 7
        %s499 = scalar_select %p498, %s495, 7
        %s500 = smul.addr %s497, 8
        %s501 = sadd.s32 %s499, %s500
        %s502 = smul.addr %s501, 8
        %s503 = scalar_lea.vmem %s1, %s502
        %s504 = smul.u32 4, %s34
        %p505 = scmp.lt.s32.totalorder %s33, 1
        %s506 = scalar_select %p505, %s33, 1
        %p507 = scmp.lt.s32.totalorder %s35, 1
        %s508 = scalar_select %p507, %s35, 1
        %s509 = smul.addr %s508, 2
        %s510 = smul.addr %s506, 4
        %s511 = sadd.s32 %s509, %s510
        %s512 = smul.addr %s511, 4
        %s513 = scalar_lea.vmem %s2, %s512
        %s514 = smul.u32 %s33, 2
        %s515 = sadd.s32 %s514, %s35
        %p516 = scmp.lt.s32.totalorder %s515, 3
        %s517 = scalar_select %p516, %s515, 3
        %s518 = smul.addr %s517, 32
        %s519 = smul.addr %s518, 8
        %s520 = scalar_lea.vmem %s7, %s519
        %s521 = smul.u32 %s33, 2
        %s522 = sadd.s32 %s521, %s35
        %s523 = smul.u32 %s33, 2
        %s524 = sadd.s32 %s523, %s35
        %p525 = scmp.lt.s32.totalorder %s524, 3
        %s526 = scalar_select %p525, %s524, 3
        %s527 = smul.addr %s526, 8
        %s528 = smul.addr %s527, 8
        %s529 = scalar_lea.vmem %s8, %s528
        %s530 = smul.u32 %s33, 2
        %s531 = sadd.s32 %s530, %s35
        %s532 = smul.u32 4, %s34
        %s533 = smul.u32 4, %s34
        %v535 = vld [vmem:[%s493] sm:$0xff]
        %v536 = vld [vmem:[%s493 + $0x8] sm:$0xff]
        %v537 = vld [vmem:[%s493 + $0x10] sm:$0xff]
        %v538 = vld [vmem:[%s493 + $0x18] sm:$0xff]
        %p539 = scmp.eq.s32.totalorder %s35, 0
        // Predicated region
        $region57: #{tpu_custom_call.1} parent=55 // pred_check
          %p540 = pneg %p539
        $region58: #{tpu_custom_call.1} parent=55 // pred_check_branch
          %542 = sbr.rel (%p540) target = $region60
        $region59: #{tpu_custom_call.1} parent=55 // pred_region
          %v543 = vld [vmem:[%s3] sm:$0xff]
          %v544 = vld [vmem:[%s3 + $0x8] sm:$0xff]
          %v545 = vld [vmem:[%s3 + $0x10] sm:$0xff]
          %v546 = vld [vmem:[%s3 + $0x18] sm:$0xff]
          %v547 = vld [vmem:[%s3 + $0x20] sm:$0xff]
          %v548 = vld [vmem:[%s3 + $0x28] sm:$0xff]
          %v549 = vld [vmem:[%s3 + $0x30] sm:$0xff]
          %v550 = vld [vmem:[%s3 + $0x38] sm:$0xff]
          %v551 = vld [vmem:[%s3 + $0x40] sm:$0xff]
          %v552 = vld [vmem:[%s3 + $0x48] sm:$0xff]
          %v553 = vld [vmem:[%s3 + $0x50] sm:$0xff]
          %v554 = vld [vmem:[%s3 + $0x58] sm:$0xff]
          %v555 = vld [vmem:[%s3 + $0x60] sm:$0xff]
          %v556 = vld [vmem:[%s3 + $0x68] sm:$0xff]
          %v557 = vld [vmem:[%s3 + $0x70] sm:$0xff]
          %v558 = vld [vmem:[%s3 + $0x78] sm:$0xff]
          %v559 = vld [vmem:[%s4] sm:$0x1]
          %v561 = vperm.slane %v559, 0
          %563 = vmatpush.msra.mxu0 %v558
          %564 = vmatpush.msra.mxu0 %v557
          %565 = vmatpush.msra.mxu0 %v556
          %566 = vmatpush.msra.mxu0 %v555
          %567 = vmatpush.msra.mxu0 %v554
          %568 = vmatpush.msra.mxu0 %v553
          %569 = vmatpush.msra.mxu0 %v552
          %570 = vmatpush.msra.mxu0 %v551
          %571 = vmatpush.msra.mxu0 %v550
          %572 = vmatpush.msra.mxu0 %v549
          %573 = vmatpush.msra.mxu0 %v548
          %574 = vmatpush.msra.mxu0 %v547
          %575 = vmatpush.msra.mxu0 %v546
          %576 = vmatpush.msra.mxu0 %v545
          %577 = vmatpush.msra.mxu0 %v544
          %578 = vmatpush.msra.mxu0 %v543
          %579 = vmatmul.f32.gmra.mxu0 %v535
          %v580 = vpop.f32.mrf.mxu0
          %v581 = vadd.f32 %v561, %v580
          %582 = vmatmul.f32.gmra.mxu0 %v536
          %v583 = vpop.f32.mrf.mxu0
          %v584 = vadd.f32 %v561, %v583
          %585 = vmatmul.f32.gmra.mxu0 %v537
          %v586 = vpop.f32.mrf.mxu0
          %v587 = vadd.f32 %v561, %v586
          %588 = vmatmul.f32.gmra.mxu0 %v538
          %v589 = vpop.f32.mrf.mxu0
          %v590 = vadd.f32 %v561, %v589
          %591 = vdwg.mxu0
          %592 = vst [vmem:[%s488] sm:$0xff] %v581
          %593 = vst [vmem:[%s488 + $0x8] sm:$0xff] %v584
          %594 = vst [vmem:[%s488 + $0x10] sm:$0xff] %v587
          %595 = vst [vmem:[%s488 + $0x18] sm:$0xff] %v590
          %v596 = vsub.f32 0.0, %v581
          %v597 = vsub.f32 0.0, %v584
          %v598 = vsub.f32 0.0, %v587
          %v599 = vsub.f32 0.0, %v590
          %v600 = vmul.f32 %v596, 1.442695
          %v601 = vpow.pop %v600
          %v602 = vmul.f32 %v597, 1.442695
          %v603 = vpow.pop %v602
          %v604 = vmul.f32 %v598, 1.442695
          %v605 = vpow.pop %v604
          %v606 = vmul.f32 %v599, 1.442695
          %v607 = vpow.pop %v606
          %v608 = vadd.f32 %v601, 1.0
          %v609 = vadd.f32 %v603, 1.0
          %v610 = vadd.f32 %v605, 1.0
          %v611 = vadd.f32 %v607, 1.0
          %v612 = vrcp.pop %v608
          %v613 = vrcp.pop %v609
          %v614 = vrcp.pop %v610
          %v615 = vrcp.pop %v611
          %vm616 = vcmask 23552
          %617 = vst.msk [vmem:[#allocation4] sm:$0xff] %vm616, %v612
          %618 = vst.msk [vmem:[#allocation4 + $0x8] sm:$0xff] %vm616, %v613
          %619 = vst.msk [vmem:[#allocation4 + $0x10] sm:$0xff] %vm616, %v614
          %620 = vst.msk [vmem:[#allocation4 + $0x18] sm:$0xff] %vm616, %v615
          %vm621 = vcmask 64512
          %622 = vst.msk [vmem:[#allocation2] sm:$0xff] %vm621, 0.0
          %623 = vst.msk [vmem:[#allocation2 + $0x8] sm:$0xff] %vm621, 0.0
          %624 = vst.msk [vmem:[#allocation2 + $0x10] sm:$0xff] %vm621, 0.0
          %625 = vst.msk [vmem:[#allocation2 + $0x18] sm:$0xff] %vm621, 0.0
          %vm626 = vcmask 7168
          %627 = vst.msk [vmem:[#allocation3] sm:$0xff] %vm626, 0.0
          %628 = vst.msk [vmem:[#allocation3 + $0x8] sm:$0xff] %vm626, 0.0
          %629 = vst.msk [vmem:[#allocation3 + $0x10] sm:$0xff] %vm626, 0.0
          %630 = vst.msk [vmem:[#allocation3 + $0x18] sm:$0xff] %vm626, 0.0
        $region60: #{tpu_custom_call.1} parent=55 // pred_fallthru
          _
        %v631 = vld [vmem:[#allocation4] sm:$0xff]
        %v632 = vld [vmem:[#allocation4 + $0x8] sm:$0xff]
        %v633 = vld [vmem:[#allocation4 + $0x10] sm:$0xff]
        %v634 = vld [vmem:[#allocation4 + $0x18] sm:$0xff]
        %v635 = vld [vmem:[%s520] sm:$0xff]
        %v636 = vld [vmem:[%s520 + $0x8] sm:$0xff]
        %v637 = vld [vmem:[%s520 + $0x10] sm:$0xff]
        %v638 = vld [vmem:[%s520 + $0x18] sm:$0xff]
        %v639 = vld [vmem:[%s520 + $0x20] sm:$0xff]
        %v640 = vld [vmem:[%s520 + $0x28] sm:$0xff]
        %v641 = vld [vmem:[%s520 + $0x30] sm:$0xff]
        %v642 = vld [vmem:[%s520 + $0x38] sm:$0xff]
        %v643 = vld [vmem:[%s520 + $0x40] sm:$0xff]
        %v644 = vld [vmem:[%s520 + $0x48] sm:$0xff]
        %v645 = vld [vmem:[%s520 + $0x50] sm:$0xff]
        %v646 = vld [vmem:[%s520 + $0x58] sm:$0xff]
        %v647 = vld [vmem:[%s520 + $0x60] sm:$0xff]
        %v648 = vld [vmem:[%s520 + $0x68] sm:$0xff]
        %v649 = vld [vmem:[%s520 + $0x70] sm:$0xff]
        %v650 = vld [vmem:[%s520 + $0x78] sm:$0xff]
        %v651 = vld [vmem:[%s520 + $0x80] sm:$0xff]
        %v652 = vld [vmem:[%s520 + $0x88] sm:$0xff]
        %v653 = vld [vmem:[%s520 + $0x90] sm:$0xff]
        %v654 = vld [vmem:[%s520 + $0x98] sm:$0xff]
        %v655 = vld [vmem:[%s520 + $0xa0] sm:$0xff]
        %v656 = vld [vmem:[%s520 + $0xa8] sm:$0xff]
        %v657 = vld [vmem:[%s520 + $0xb0] sm:$0xff]
        %v658 = vld [vmem:[%s520 + $0xb8] sm:$0xff]
        %v659 = vld [vmem:[%s520 + $0xc0] sm:$0xff]
        %v660 = vld [vmem:[%s520 + $0xc8] sm:$0xff]
        %v661 = vld [vmem:[%s520 + $0xd0] sm:$0xff]
        %v662 = vld [vmem:[%s520 + $0xd8] sm:$0xff]
        %v663 = vld [vmem:[%s520 + $0xe0] sm:$0xff]
        %v664 = vld [vmem:[%s520 + $0xe8] sm:$0xff]
        %v665 = vld [vmem:[%s520 + $0xf0] sm:$0xff]
        %v666 = vld [vmem:[%s520 + $0xf8] sm:$0xff]
        %v667 = vld [vmem:[%s513] sm:$0xf]
        %669 = vset.pattern.permute.xlu0 0
        %670 = vperm.xlu0 %669, %v631
        %v671 = vpop.permute.xlu0 %670
        %674 = vset.pattern.permute.xlu0 0
        %675 = vperm.xlu0 %674, %v632
        %v676 = vpop.permute.xlu0 %675
        %679 = vset.pattern.permute.xlu0 0
        %680 = vperm.xlu0 %679, %v633
        %v681 = vpop.permute.xlu0 %680
        %684 = vset.pattern.permute.xlu0 0
        %685 = vperm.xlu0 %684, %v634
        %v686 = vpop.permute.xlu0 %685
        %v688 = vperm.slane %v667, 0
        %v689 = vmul.f32 %v671, %v688
        %v690 = vmul.f32 %v676, %v688
        %v691 = vmul.f32 %v681, %v688
        %v692 = vmul.f32 %v686, %v688
        %693 = vset.pattern.permute.xlu0 1
        %694 = vperm.xlu0 %693, %v631
        %v695 = vpop.permute.xlu0 %694
        %697 = vset.pattern.permute.xlu0 1
        %698 = vperm.xlu0 %697, %v632
        %v699 = vpop.permute.xlu0 %698
        %701 = vset.pattern.permute.xlu0 1
        %702 = vperm.xlu0 %701, %v633
        %v703 = vpop.permute.xlu0 %702
        %705 = vset.pattern.permute.xlu0 1
        %706 = vperm.xlu0 %705, %v634
        %v707 = vpop.permute.xlu0 %706
        %v709 = vperm.slane %v667, 1
        %v710 = vmul.f32 %v695, %v709
        %v711 = vmul.f32 %v699, %v709
        %v712 = vmul.f32 %v703, %v709
        %v713 = vmul.f32 %v707, %v709
        %v714 = vadd.f32 %v689, %v710
        %v715 = vadd.f32 %v690, %v711
        %v716 = vadd.f32 %v691, %v712
        %v717 = vadd.f32 %v692, %v713
        %718 = vset.pattern.permute.xlu0 2
        %719 = vperm.xlu0 %718, %v631
        %v720 = vpop.permute.xlu0 %719
        %722 = vset.pattern.permute.xlu0 2
        %723 = vperm.xlu0 %722, %v632
        %v724 = vpop.permute.xlu0 %723
        %726 = vset.pattern.permute.xlu0 2
        %727 = vperm.xlu0 %726, %v633
        %v728 = vpop.permute.xlu0 %727
        %730 = vset.pattern.permute.xlu0 2
        %731 = vperm.xlu0 %730, %v634
        %v732 = vpop.permute.xlu0 %731
        %v734 = vperm.slane %v667, 2
        %v735 = vmul.f32 %v720, %v734
        %v736 = vmul.f32 %v724, %v734
        %v737 = vmul.f32 %v728, %v734
        %v738 = vmul.f32 %v732, %v734
        %v739 = vadd.f32 %v714, %v735
        %v740 = vadd.f32 %v715, %v736
        %v741 = vadd.f32 %v716, %v737
        %v742 = vadd.f32 %v717, %v738
        %v743 = vperm.slane %v667, 3
        %v744 = vadd.f32 %v739, %v743
        %v745 = vadd.f32 %v740, %v743
        %v746 = vadd.f32 %v741, %v743
        %v747 = vadd.f32 %v742, %v743
        %v748 = vmax.f32 %v744, 0.05
        %v749 = vmax.f32 %v745, 0.05
        %v750 = vmax.f32 %v746, 0.05
        %v751 = vmax.f32 %v747, 0.05
        %v752 = vrcp.pop %v748
        %v753 = vrcp.pop %v749
        %v754 = vrcp.pop %v750
        %v755 = vrcp.pop %v751
        %760 = vrot.lane.b32.xlu0 %v752, 126
        %v761 = vpop.permute.xlu0 %760
        %762 = vrot.lane.b32.xlu0 %v753, 126
        %v763 = vpop.permute.xlu0 %762
        %764 = vrot.lane.b32.xlu0 %v754, 126
        %v765 = vpop.permute.xlu0 %764
        %766 = vrot.lane.b32.xlu0 %v755, 126
        %v767 = vpop.permute.xlu0 %766
        %v772 = vmul.f32 %v744, %v761
        %v773 = vmul.f32 %v745, %v763
        %v774 = vmul.f32 %v746, %v765
        %v775 = vmul.f32 %v747, %v767
        %776 = vrot.lane.b32.xlu0 %v752, 127
        %v777 = vpop.permute.xlu0 %776
        %778 = vrot.lane.b32.xlu0 %v753, 127
        %v779 = vpop.permute.xlu0 %778
        %780 = vrot.lane.b32.xlu0 %v754, 127
        %v781 = vpop.permute.xlu0 %780
        %782 = vrot.lane.b32.xlu0 %v755, 127
        %v783 = vpop.permute.xlu0 %782
        %v788 = vmul.f32 %v744, %v777
        %v789 = vmul.f32 %v745, %v779
        %v790 = vmul.f32 %v746, %v781
        %v791 = vmul.f32 %v747, %v783
        %vm792 = vcmp.ge.f32.partialorder %v772, 0.0
        %vm793 = vcmp.ge.f32.partialorder %v773, 0.0
        %vm794 = vcmp.ge.f32.partialorder %v774, 0.0
        %vm795 = vcmp.ge.f32.partialorder %v775, 0.0
        %vm796 = vcmp.lt.f32.partialorder %v772, 16.0
        %vm797 = vcmp.lt.f32.partialorder %v773, 16.0
        %vm798 = vcmp.lt.f32.partialorder %v774, 16.0
        %vm799 = vcmp.lt.f32.partialorder %v775, 16.0
        %vm800 = vmand %vm792, %vm796
        %vm801 = vmand %vm793, %vm797
        %vm802 = vmand %vm794, %vm798
        %vm803 = vmand %vm795, %vm799
        %vm804 = vcmp.ge.f32.partialorder %v788, 0.0
        %vm805 = vcmp.ge.f32.partialorder %v789, 0.0
        %vm806 = vcmp.ge.f32.partialorder %v790, 0.0
        %vm807 = vcmp.ge.f32.partialorder %v791, 0.0
        %v808 = vsel %vm804, 1, 0
        %v809 = vsel %vm805, 1, 0
        %v810 = vsel %vm806, 1, 0
        %v811 = vsel %vm807, 1, 0
        %812 = vrot.lane.b32.xlu0 %v808, 127
        %v813 = vpop.permute.xlu0 %812
        %814 = vrot.lane.b32.xlu0 %v809, 127
        %v815 = vpop.permute.xlu0 %814
        %816 = vrot.lane.b32.xlu0 %v810, 127
        %v817 = vpop.permute.xlu0 %816
        %818 = vrot.lane.b32.xlu0 %v811, 127
        %v819 = vpop.permute.xlu0 %818
        %vm820 = vcmp.ne.s32.totalorder %v813, 0
        %vm821 = vcmp.ne.s32.totalorder %v815, 0
        %vm822 = vcmp.ne.s32.totalorder %v817, 0
        %vm823 = vcmp.ne.s32.totalorder %v819, 0
        %vm824 = vmand %vm800, %vm820
        %vm825 = vmand %vm801, %vm821
        %vm826 = vmand %vm802, %vm822
        %vm827 = vmand %vm803, %vm823
        %vm828 = vcmp.lt.f32.partialorder %v788, 16.0
        %vm829 = vcmp.lt.f32.partialorder %v789, 16.0
        %vm830 = vcmp.lt.f32.partialorder %v790, 16.0
        %vm831 = vcmp.lt.f32.partialorder %v791, 16.0
        %v832 = vsel %vm828, 1, 0
        %v833 = vsel %vm829, 1, 0
        %v834 = vsel %vm830, 1, 0
        %v835 = vsel %vm831, 1, 0
        %836 = vrot.lane.b32.xlu0 %v832, 127
        %v837 = vpop.permute.xlu0 %836
        %838 = vrot.lane.b32.xlu0 %v833, 127
        %v839 = vpop.permute.xlu0 %838
        %840 = vrot.lane.b32.xlu0 %v834, 127
        %v841 = vpop.permute.xlu0 %840
        %842 = vrot.lane.b32.xlu0 %v835, 127
        %v843 = vpop.permute.xlu0 %842
        %vm844 = vcmp.ne.s32.totalorder %v837, 0
        %vm845 = vcmp.ne.s32.totalorder %v839, 0
        %vm846 = vcmp.ne.s32.totalorder %v841, 0
        %vm847 = vcmp.ne.s32.totalorder %v843, 0
        %vm848 = vmand %vm824, %vm844
        %vm849 = vmand %vm825, %vm845
        %vm850 = vmand %vm826, %vm846
        %vm851 = vmand %vm827, %vm847
        %v852 = vsel %vm848, 1, 0
        %v853 = vsel %vm849, 1, 0
        %v854 = vsel %vm850, 1, 0
        %v855 = vsel %vm851, 1, 0
        %v856 = vcvt.s32.f32 %v852
        %v857 = vcvt.s32.f32 %v853
        %v858 = vcvt.s32.f32 %v854
        %v859 = vcvt.s32.f32 %v855
        %v860 = vfloor.f32 %v772
        %v861 = vfloor.f32 %v773
        %v862 = vfloor.f32 %v774
        %v863 = vfloor.f32 %v775
        %v864 = vfloor.f32 %v788
        %v865 = vfloor.f32 %v789
        %v866 = vfloor.f32 %v790
        %v867 = vfloor.f32 %v791
        %v868 = vsub.f32 %v772, %v860
        %v869 = vsub.f32 %v773, %v861
        %v870 = vsub.f32 %v774, %v862
        %v871 = vsub.f32 %v775, %v863
        %v872 = vsub.f32 %v788, %v864
        %v873 = vsub.f32 %v789, %v865
        %v874 = vsub.f32 %v790, %v866
        %v875 = vsub.f32 %v791, %v867
        %v876 = vcvt.f32.s32.to.zero.pseudo %v860
        %v877 = vcvt.f32.s32.to.zero.pseudo %v861
        %v878 = vcvt.f32.s32.to.zero.pseudo %v862
        %v879 = vcvt.f32.s32.to.zero.pseudo %v863
        %v880 = vcvt.f32.s32.to.zero.pseudo %v864
        %v881 = vcvt.f32.s32.to.zero.pseudo %v865
        %v882 = vcvt.f32.s32.to.zero.pseudo %v866
        %v883 = vcvt.f32.s32.to.zero.pseudo %v867
        %v884 = vmul.u32 %v880, 16
        %v885 = vmul.u32 %v881, 16
        %v886 = vmul.u32 %v882, 16
        %v887 = vmul.u32 %v883, 16
        %888 = vrot.lane.b32.xlu0 %v876, 1
        %v889 = vpop.permute.xlu0 %888
        %890 = vrot.lane.b32.xlu0 %v877, 1
        %v891 = vpop.permute.xlu0 %890
        %892 = vrot.lane.b32.xlu0 %v878, 1
        %v893 = vpop.permute.xlu0 %892
        %894 = vrot.lane.b32.xlu0 %v879, 1
        %v895 = vpop.permute.xlu0 %894
        %v896 = vadd.s32 %v884, %v889
        %v897 = vadd.s32 %v885, %v891
        %v898 = vadd.s32 %v886, %v893
        %v899 = vadd.s32 %v887, %v895
        %v900 = vsub.f32 1.0, %v868
        %v901 = vsub.f32 1.0, %v869
        %v902 = vsub.f32 1.0, %v870
        %v903 = vsub.f32 1.0, %v871
        %v904 = vsub.f32 1.0, %v872
        %v905 = vsub.f32 1.0, %v873
        %v906 = vsub.f32 1.0, %v874
        %v907 = vsub.f32 1.0, %v875
        %912 = vrot.lane.b32.xlu0 %v904, 127
        %v913 = vpop.permute.xlu0 %912
        %914 = vrot.lane.b32.xlu0 %v905, 127
        %v915 = vpop.permute.xlu0 %914
        %916 = vrot.lane.b32.xlu0 %v906, 127
        %v917 = vpop.permute.xlu0 %916
        %918 = vrot.lane.b32.xlu0 %v907, 127
        %v919 = vpop.permute.xlu0 %918
        %v924 = vmul.f32 %v900, %v913
        %v925 = vmul.f32 %v901, %v915
        %v926 = vmul.f32 %v902, %v917
        %v927 = vmul.f32 %v903, %v919
        %v928 = vmul.f32 %v868, %v913
        %v929 = vmul.f32 %v869, %v915
        %v930 = vmul.f32 %v870, %v917
        %v931 = vmul.f32 %v871, %v919
        %936 = vrot.lane.b32.xlu0 %v872, 127
        %v937 = vpop.permute.xlu0 %936
        %938 = vrot.lane.b32.xlu0 %v873, 127
        %v939 = vpop.permute.xlu0 %938
        %940 = vrot.lane.b32.xlu0 %v874, 127
        %v941 = vpop.permute.xlu0 %940
        %942 = vrot.lane.b32.xlu0 %v875, 127
        %v943 = vpop.permute.xlu0 %942
        %v948 = vmul.f32 %v900, %v937
        %v949 = vmul.f32 %v901, %v939
        %v950 = vmul.f32 %v902, %v941
        %v951 = vmul.f32 %v903, %v943
        %v952 = vmul.f32 %v868, %v937
        %v953 = vmul.f32 %v869, %v939
        %v954 = vmul.f32 %v870, %v941
        %v955 = vmul.f32 %v871, %v943
        %v956 = vlaneseq
        %v957 = vand.u32 %v956, 127
        %v958 = vadd.s32 %v957, 128
        %vm959 = vcmp.ge.s32.totalorder %v876, 0
        %vm960 = vcmp.ge.s32.totalorder %v877, 0
        %vm961 = vcmp.ge.s32.totalorder %v878, 0
        %vm962 = vcmp.ge.s32.totalorder %v879, 0
        %vm963 = vcmp.lt.s32.totalorder %v876, 16
        %vm964 = vcmp.lt.s32.totalorder %v877, 16
        %vm965 = vcmp.lt.s32.totalorder %v878, 16
        %vm966 = vcmp.lt.s32.totalorder %v879, 16
        %vm967 = vmand %vm959, %vm963
        %vm968 = vmand %vm960, %vm964
        %vm969 = vmand %vm961, %vm965
        %vm970 = vmand %vm962, %vm966
        %vm971 = vcmp.ge.s32.totalorder %v880, 0
        %vm972 = vcmp.ge.s32.totalorder %v881, 0
        %vm973 = vcmp.ge.s32.totalorder %v882, 0
        %vm974 = vcmp.ge.s32.totalorder %v883, 0
        %v975 = vsel %vm971, 1, 0
        %v976 = vsel %vm972, 1, 0
        %v977 = vsel %vm973, 1, 0
        %v978 = vsel %vm974, 1, 0
        %979 = vrot.lane.b32.xlu0 %v975, 127
        %v980 = vpop.permute.xlu0 %979
        %981 = vrot.lane.b32.xlu0 %v976, 127
        %v982 = vpop.permute.xlu0 %981
        %983 = vrot.lane.b32.xlu0 %v977, 127
        %v984 = vpop.permute.xlu0 %983
        %985 = vrot.lane.b32.xlu0 %v978, 127
        %v986 = vpop.permute.xlu0 %985
        %vm987 = vcmp.ne.s32.totalorder %v980, 0
        %vm988 = vcmp.ne.s32.totalorder %v982, 0
        %vm989 = vcmp.ne.s32.totalorder %v984, 0
        %vm990 = vcmp.ne.s32.totalorder %v986, 0
        %vm991 = vmand %vm967, %vm987
        %vm992 = vmand %vm968, %vm988
        %vm993 = vmand %vm969, %vm989
        %vm994 = vmand %vm970, %vm990
        %vm995 = vcmp.lt.s32.totalorder %v880, 16
        %vm996 = vcmp.lt.s32.totalorder %v881, 16
        %vm997 = vcmp.lt.s32.totalorder %v882, 16
        %vm998 = vcmp.lt.s32.totalorder %v883, 16
        %v999 = vsel %vm995, 1, 0
        %v1000 = vsel %vm996, 1, 0
        %v1001 = vsel %vm997, 1, 0
        %v1002 = vsel %vm998, 1, 0
        %1003 = vrot.lane.b32.xlu0 %v999, 127
        %v1004 = vpop.permute.xlu0 %1003
        %1005 = vrot.lane.b32.xlu0 %v1000, 127
        %v1006 = vpop.permute.xlu0 %1005
        %1007 = vrot.lane.b32.xlu0 %v1001, 127
        %v1008 = vpop.permute.xlu0 %1007
        %1009 = vrot.lane.b32.xlu0 %v1002, 127
        %v1010 = vpop.permute.xlu0 %1009
        %vm1011 = vcmp.ne.s32.totalorder %v1004, 0
        %vm1012 = vcmp.ne.s32.totalorder %v1006, 0
        %vm1013 = vcmp.ne.s32.totalorder %v1008, 0
        %vm1014 = vcmp.ne.s32.totalorder %v1010, 0
        %vm1015 = vmand %vm991, %vm1011
        %vm1016 = vmand %vm992, %vm1012
        %vm1017 = vmand %vm993, %vm1013
        %vm1018 = vmand %vm994, %vm1014
        %1019 = vset.pattern.permute.xlu0 1
        %1020 = vperm.xlu0 %1019, %v896
        %v1021 = vpop.permute.xlu0 %1020
        %1022 = vset.pattern.permute.xlu0 1
        %1023 = vperm.xlu0 %1022, %v897
        %v1024 = vpop.permute.xlu0 %1023
        %1025 = vset.pattern.permute.xlu0 1
        %1026 = vperm.xlu0 %1025, %v898
        %v1027 = vpop.permute.xlu0 %1026
        %1028 = vset.pattern.permute.xlu0 1
        %1029 = vperm.xlu0 %1028, %v899
        %v1030 = vpop.permute.xlu0 %1029
        %vm1031 = vcmp.eq.s32.totalorder %v957, %v1021
        %vm1032 = vcmp.eq.s32.totalorder %v958, %v1021
        %vm1033 = vcmp.eq.s32.totalorder %v957, %v1024
        %vm1034 = vcmp.eq.s32.totalorder %v958, %v1024
        %vm1035 = vcmp.eq.s32.totalorder %v957, %v1027
        %vm1036 = vcmp.eq.s32.totalorder %v958, %v1027
        %vm1037 = vcmp.eq.s32.totalorder %v957, %v1030
        %vm1038 = vcmp.eq.s32.totalorder %v958, %v1030
        %v1039 = vsel %vm1015, 1, 0
        %v1040 = vsel %vm1016, 1, 0
        %v1041 = vsel %vm1017, 1, 0
        %v1042 = vsel %vm1018, 1, 0
        %1043 = vset.pattern.permute.xlu0 0
        %1044 = vperm.xlu0 %1043, %v1039
        %v1045 = vpop.permute.xlu0 %1044
        %1046 = vset.pattern.permute.xlu0 0
        %1047 = vperm.xlu0 %1046, %v1040
        %v1048 = vpop.permute.xlu0 %1047
        %1049 = vset.pattern.permute.xlu0 0
        %1050 = vperm.xlu0 %1049, %v1041
        %v1051 = vpop.permute.xlu0 %1050
        %1052 = vset.pattern.permute.xlu0 0
        %1053 = vperm.xlu0 %1052, %v1042
        %v1054 = vpop.permute.xlu0 %1053
        %vm1055 = vcmp.eq.s32.totalorder %v1045, 1
        %vm1056 = vcmp.eq.s32.totalorder %v1048, 1
        %vm1057 = vcmp.eq.s32.totalorder %v1051, 1
        %vm1058 = vcmp.eq.s32.totalorder %v1054, 1
        %vm1059 = vmand %vm1031, %vm1055
        %vm1060 = vmand %vm1032, %vm1055
        %vm1061 = vmand %vm1033, %vm1056
        %vm1062 = vmand %vm1034, %vm1056
        %vm1063 = vmand %vm1035, %vm1057
        %vm1064 = vmand %vm1036, %vm1057
        %vm1065 = vmand %vm1037, %vm1058
        %vm1066 = vmand %vm1038, %vm1058
        %1068 = vset.pattern.permute.xlu0 0
        %1069 = vperm.xlu0 %1068, %v924
        %v1070 = vpop.permute.xlu0 %1069
        %1073 = vset.pattern.permute.xlu0 0
        %1074 = vperm.xlu0 %1073, %v925
        %v1075 = vpop.permute.xlu0 %1074
        %1078 = vset.pattern.permute.xlu0 0
        %1079 = vperm.xlu0 %1078, %v926
        %v1080 = vpop.permute.xlu0 %1079
        %1083 = vset.pattern.permute.xlu0 0
        %1084 = vperm.xlu0 %1083, %v927
        %v1085 = vpop.permute.xlu0 %1084
        %v1087 = vsel %vm1059, %v1070, 0.0
        %v1088 = vsel %vm1060, %v1070, 0.0
        %v1089 = vsel %vm1061, %v1075, 0.0
        %v1090 = vsel %vm1062, %v1075, 0.0
        %v1091 = vsel %vm1063, %v1080, 0.0
        %v1092 = vsel %vm1064, %v1080, 0.0
        %v1093 = vsel %vm1065, %v1085, 0.0
        %v1094 = vsel %vm1066, %v1085, 0.0
        %v1095 = vadd.f32 %v1087, 0.0
        %v1096 = vadd.f32 %v1088, 0.0
        %v1097 = vadd.f32 %v1089, 0.0
        %v1098 = vadd.f32 %v1090, 0.0
        %v1099 = vadd.f32 %v1091, 0.0
        %v1100 = vadd.f32 %v1092, 0.0
        %v1101 = vadd.f32 %v1093, 0.0
        %v1102 = vadd.f32 %v1094, 0.0
        %v1103 = vadd.s32 %v876, 1
        %v1104 = vadd.s32 %v877, 1
        %v1105 = vadd.s32 %v878, 1
        %v1106 = vadd.s32 %v879, 1
        %vm1107 = vcmp.ge.s32.totalorder %v1103, 0
        %vm1108 = vcmp.ge.s32.totalorder %v1104, 0
        %vm1109 = vcmp.ge.s32.totalorder %v1105, 0
        %vm1110 = vcmp.ge.s32.totalorder %v1106, 0
        %vm1111 = vcmp.lt.s32.totalorder %v1103, 16
        %vm1112 = vcmp.lt.s32.totalorder %v1104, 16
        %vm1113 = vcmp.lt.s32.totalorder %v1105, 16
        %vm1114 = vcmp.lt.s32.totalorder %v1106, 16
        %vm1115 = vmand %vm1107, %vm1111
        %vm1116 = vmand %vm1108, %vm1112
        %vm1117 = vmand %vm1109, %vm1113
        %vm1118 = vmand %vm1110, %vm1114
        %vm1119 = vmand %vm1115, %vm987
        %vm1120 = vmand %vm1116, %vm988
        %vm1121 = vmand %vm1117, %vm989
        %vm1122 = vmand %vm1118, %vm990
        %vm1123 = vmand %vm1119, %vm1011
        %vm1124 = vmand %vm1120, %vm1012
        %vm1125 = vmand %vm1121, %vm1013
        %vm1126 = vmand %vm1122, %vm1014
        %v1127 = vadd.s32 %v896, 1
        %v1128 = vadd.s32 %v897, 1
        %v1129 = vadd.s32 %v898, 1
        %v1130 = vadd.s32 %v899, 1
        %1131 = vset.pattern.permute.xlu0 1
        %1132 = vperm.xlu0 %1131, %v1127
        %v1133 = vpop.permute.xlu0 %1132
        %1134 = vset.pattern.permute.xlu0 1
        %1135 = vperm.xlu0 %1134, %v1128
        %v1136 = vpop.permute.xlu0 %1135
        %1137 = vset.pattern.permute.xlu0 1
        %1138 = vperm.xlu0 %1137, %v1129
        %v1139 = vpop.permute.xlu0 %1138
        %1140 = vset.pattern.permute.xlu0 1
        %1141 = vperm.xlu0 %1140, %v1130
        %v1142 = vpop.permute.xlu0 %1141
        %vm1143 = vcmp.eq.s32.totalorder %v957, %v1133
        %vm1144 = vcmp.eq.s32.totalorder %v958, %v1133
        %vm1145 = vcmp.eq.s32.totalorder %v957, %v1136
        %vm1146 = vcmp.eq.s32.totalorder %v958, %v1136
        %vm1147 = vcmp.eq.s32.totalorder %v957, %v1139
        %vm1148 = vcmp.eq.s32.totalorder %v958, %v1139
        %vm1149 = vcmp.eq.s32.totalorder %v957, %v1142
        %vm1150 = vcmp.eq.s32.totalorder %v958, %v1142
        %v1151 = vsel %vm1123, 1, 0
        %v1152 = vsel %vm1124, 1, 0
        %v1153 = vsel %vm1125, 1, 0
        %v1154 = vsel %vm1126, 1, 0
        %1155 = vset.pattern.permute.xlu0 0
        %1156 = vperm.xlu0 %1155, %v1151
        %v1157 = vpop.permute.xlu0 %1156
        %1158 = vset.pattern.permute.xlu0 0
        %1159 = vperm.xlu0 %1158, %v1152
        %v1160 = vpop.permute.xlu0 %1159
        %1161 = vset.pattern.permute.xlu0 0
        %1162 = vperm.xlu0 %1161, %v1153
        %v1163 = vpop.permute.xlu0 %1162
        %1164 = vset.pattern.permute.xlu0 0
        %1165 = vperm.xlu0 %1164, %v1154
        %v1166 = vpop.permute.xlu0 %1165
        %vm1167 = vcmp.eq.s32.totalorder %v1157, 1
        %vm1168 = vcmp.eq.s32.totalorder %v1160, 1
        %vm1169 = vcmp.eq.s32.totalorder %v1163, 1
        %vm1170 = vcmp.eq.s32.totalorder %v1166, 1
        %vm1171 = vmand %vm1143, %vm1167
        %vm1172 = vmand %vm1144, %vm1167
        %vm1173 = vmand %vm1145, %vm1168
        %vm1174 = vmand %vm1146, %vm1168
        %vm1175 = vmand %vm1147, %vm1169
        %vm1176 = vmand %vm1148, %vm1169
        %vm1177 = vmand %vm1149, %vm1170
        %vm1178 = vmand %vm1150, %vm1170
        %1180 = vset.pattern.permute.xlu0 0
        %1181 = vperm.xlu0 %1180, %v928
        %v1182 = vpop.permute.xlu0 %1181
        %1185 = vset.pattern.permute.xlu0 0
        %1186 = vperm.xlu0 %1185, %v929
        %v1187 = vpop.permute.xlu0 %1186
        %1190 = vset.pattern.permute.xlu0 0
        %1191 = vperm.xlu0 %1190, %v930
        %v1192 = vpop.permute.xlu0 %1191
        %1195 = vset.pattern.permute.xlu0 0
        %1196 = vperm.xlu0 %1195, %v931
        %v1197 = vpop.permute.xlu0 %1196
        %v1199 = vsel %vm1171, %v1182, 0.0
        %v1200 = vsel %vm1172, %v1182, 0.0
        %v1201 = vsel %vm1173, %v1187, 0.0
        %v1202 = vsel %vm1174, %v1187, 0.0
        %v1203 = vsel %vm1175, %v1192, 0.0
        %v1204 = vsel %vm1176, %v1192, 0.0
        %v1205 = vsel %vm1177, %v1197, 0.0
        %v1206 = vsel %vm1178, %v1197, 0.0
        %v1207 = vadd.f32 %v1095, %v1199
        %v1208 = vadd.f32 %v1096, %v1200
        %v1209 = vadd.f32 %v1097, %v1201
        %v1210 = vadd.f32 %v1098, %v1202
        %v1211 = vadd.f32 %v1099, %v1203
        %v1212 = vadd.f32 %v1100, %v1204
        %v1213 = vadd.f32 %v1101, %v1205
        %v1214 = vadd.f32 %v1102, %v1206
        %v1215 = vadd.s32 %v880, 1
        %v1216 = vadd.s32 %v881, 1
        %v1217 = vadd.s32 %v882, 1
        %v1218 = vadd.s32 %v883, 1
        %vm1219 = vcmp.ge.s32.totalorder %v1215, 0
        %vm1220 = vcmp.ge.s32.totalorder %v1216, 0
        %vm1221 = vcmp.ge.s32.totalorder %v1217, 0
        %vm1222 = vcmp.ge.s32.totalorder %v1218, 0
        %v1223 = vsel %vm1219, 1, 0
        %v1224 = vsel %vm1220, 1, 0
        %v1225 = vsel %vm1221, 1, 0
        %v1226 = vsel %vm1222, 1, 0
        %1227 = vrot.lane.b32.xlu0 %v1223, 127
        %v1228 = vpop.permute.xlu0 %1227
        %1229 = vrot.lane.b32.xlu0 %v1224, 127
        %v1230 = vpop.permute.xlu0 %1229
        %1231 = vrot.lane.b32.xlu0 %v1225, 127
        %v1232 = vpop.permute.xlu0 %1231
        %1233 = vrot.lane.b32.xlu0 %v1226, 127
        %v1234 = vpop.permute.xlu0 %1233
        %vm1235 = vcmp.ne.s32.totalorder %v1228, 0
        %vm1236 = vcmp.ne.s32.totalorder %v1230, 0
        %vm1237 = vcmp.ne.s32.totalorder %v1232, 0
        %vm1238 = vcmp.ne.s32.totalorder %v1234, 0
        %vm1239 = vmand %vm967, %vm1235
        %vm1240 = vmand %vm968, %vm1236
        %vm1241 = vmand %vm969, %vm1237
        %vm1242 = vmand %vm970, %vm1238
        %vm1243 = vcmp.lt.s32.totalorder %v1215, 16
        %vm1244 = vcmp.lt.s32.totalorder %v1216, 16
        %vm1245 = vcmp.lt.s32.totalorder %v1217, 16
        %vm1246 = vcmp.lt.s32.totalorder %v1218, 16
        %v1247 = vsel %vm1243, 1, 0
        %v1248 = vsel %vm1244, 1, 0
        %v1249 = vsel %vm1245, 1, 0
        %v1250 = vsel %vm1246, 1, 0
        %1251 = vrot.lane.b32.xlu0 %v1247, 127
        %v1252 = vpop.permute.xlu0 %1251
        %1253 = vrot.lane.b32.xlu0 %v1248, 127
        %v1254 = vpop.permute.xlu0 %1253
        %1255 = vrot.lane.b32.xlu0 %v1249, 127
        %v1256 = vpop.permute.xlu0 %1255
        %1257 = vrot.lane.b32.xlu0 %v1250, 127
        %v1258 = vpop.permute.xlu0 %1257
        %vm1259 = vcmp.ne.s32.totalorder %v1252, 0
        %vm1260 = vcmp.ne.s32.totalorder %v1254, 0
        %vm1261 = vcmp.ne.s32.totalorder %v1256, 0
        %vm1262 = vcmp.ne.s32.totalorder %v1258, 0
        %vm1263 = vmand %vm1239, %vm1259
        %vm1264 = vmand %vm1240, %vm1260
        %vm1265 = vmand %vm1241, %vm1261
        %vm1266 = vmand %vm1242, %vm1262
        %v1267 = vadd.s32 %v896, 16
        %v1268 = vadd.s32 %v897, 16
        %v1269 = vadd.s32 %v898, 16
        %v1270 = vadd.s32 %v899, 16
        %1271 = vset.pattern.permute.xlu0 1
        %1272 = vperm.xlu0 %1271, %v1267
        %v1273 = vpop.permute.xlu0 %1272
        %1274 = vset.pattern.permute.xlu0 1
        %1275 = vperm.xlu0 %1274, %v1268
        %v1276 = vpop.permute.xlu0 %1275
        %1277 = vset.pattern.permute.xlu0 1
        %1278 = vperm.xlu0 %1277, %v1269
        %v1279 = vpop.permute.xlu0 %1278
        %1280 = vset.pattern.permute.xlu0 1
        %1281 = vperm.xlu0 %1280, %v1270
        %v1282 = vpop.permute.xlu0 %1281
        %vm1283 = vcmp.eq.s32.totalorder %v957, %v1273
        %vm1284 = vcmp.eq.s32.totalorder %v958, %v1273
        %vm1285 = vcmp.eq.s32.totalorder %v957, %v1276
        %vm1286 = vcmp.eq.s32.totalorder %v958, %v1276
        %vm1287 = vcmp.eq.s32.totalorder %v957, %v1279
        %vm1288 = vcmp.eq.s32.totalorder %v958, %v1279
        %vm1289 = vcmp.eq.s32.totalorder %v957, %v1282
        %vm1290 = vcmp.eq.s32.totalorder %v958, %v1282
        %v1291 = vsel %vm1263, 1, 0
        %v1292 = vsel %vm1264, 1, 0
        %v1293 = vsel %vm1265, 1, 0
        %v1294 = vsel %vm1266, 1, 0
        %1295 = vset.pattern.permute.xlu0 0
        %1296 = vperm.xlu0 %1295, %v1291
        %v1297 = vpop.permute.xlu0 %1296
        %1298 = vset.pattern.permute.xlu0 0
        %1299 = vperm.xlu0 %1298, %v1292
        %v1300 = vpop.permute.xlu0 %1299
        %1301 = vset.pattern.permute.xlu0 0
        %1302 = vperm.xlu0 %1301, %v1293
        %v1303 = vpop.permute.xlu0 %1302
        %1304 = vset.pattern.permute.xlu0 0
        %1305 = vperm.xlu0 %1304, %v1294
        %v1306 = vpop.permute.xlu0 %1305
        %vm1307 = vcmp.eq.s32.totalorder %v1297, 1
        %vm1308 = vcmp.eq.s32.totalorder %v1300, 1
        %vm1309 = vcmp.eq.s32.totalorder %v1303, 1
        %vm1310 = vcmp.eq.s32.totalorder %v1306, 1
        %vm1311 = vmand %vm1283, %vm1307
        %vm1312 = vmand %vm1284, %vm1307
        %vm1313 = vmand %vm1285, %vm1308
        %vm1314 = vmand %vm1286, %vm1308
        %vm1315 = vmand %vm1287, %vm1309
        %vm1316 = vmand %vm1288, %vm1309
        %vm1317 = vmand %vm1289, %vm1310
        %vm1318 = vmand %vm1290, %vm1310
        %1320 = vset.pattern.permute.xlu0 0
        %1321 = vperm.xlu0 %1320, %v948
        %v1322 = vpop.permute.xlu0 %1321
        %1325 = vset.pattern.permute.xlu0 0
        %1326 = vperm.xlu0 %1325, %v949
        %v1327 = vpop.permute.xlu0 %1326
        %1330 = vset.pattern.permute.xlu0 0
        %1331 = vperm.xlu0 %1330, %v950
        %v1332 = vpop.permute.xlu0 %1331
        %1335 = vset.pattern.permute.xlu0 0
        %1336 = vperm.xlu0 %1335, %v951
        %v1337 = vpop.permute.xlu0 %1336
        %v1339 = vsel %vm1311, %v1322, 0.0
        %v1340 = vsel %vm1312, %v1322, 0.0
        %v1341 = vsel %vm1313, %v1327, 0.0
        %v1342 = vsel %vm1314, %v1327, 0.0
        %v1343 = vsel %vm1315, %v1332, 0.0
        %v1344 = vsel %vm1316, %v1332, 0.0
        %v1345 = vsel %vm1317, %v1337, 0.0
        %v1346 = vsel %vm1318, %v1337, 0.0
        %v1347 = vadd.f32 %v1207, %v1339
        %v1348 = vadd.f32 %v1208, %v1340
        %v1349 = vadd.f32 %v1209, %v1341
        %v1350 = vadd.f32 %v1210, %v1342
        %v1351 = vadd.f32 %v1211, %v1343
        %v1352 = vadd.f32 %v1212, %v1344
        %v1353 = vadd.f32 %v1213, %v1345
        %v1354 = vadd.f32 %v1214, %v1346
        %vm1355 = vmand %vm1115, %vm1235
        %vm1356 = vmand %vm1116, %vm1236
        %vm1357 = vmand %vm1117, %vm1237
        %vm1358 = vmand %vm1118, %vm1238
        %vm1359 = vmand %vm1355, %vm1259
        %vm1360 = vmand %vm1356, %vm1260
        %vm1361 = vmand %vm1357, %vm1261
        %vm1362 = vmand %vm1358, %vm1262
        %v1363 = vadd.s32 %v896, 17
        %v1364 = vadd.s32 %v897, 17
        %v1365 = vadd.s32 %v898, 17
        %v1366 = vadd.s32 %v899, 17
        %1367 = vset.pattern.permute.xlu0 1
        %1368 = vperm.xlu0 %1367, %v1363
        %v1369 = vpop.permute.xlu0 %1368
        %1370 = vset.pattern.permute.xlu0 1
        %1371 = vperm.xlu0 %1370, %v1364
        %v1372 = vpop.permute.xlu0 %1371
        %1373 = vset.pattern.permute.xlu0 1
        %1374 = vperm.xlu0 %1373, %v1365
        %v1375 = vpop.permute.xlu0 %1374
        %1376 = vset.pattern.permute.xlu0 1
        %1377 = vperm.xlu0 %1376, %v1366
        %v1378 = vpop.permute.xlu0 %1377
        %vm1379 = vcmp.eq.s32.totalorder %v957, %v1369
        %vm1380 = vcmp.eq.s32.totalorder %v958, %v1369
        %vm1381 = vcmp.eq.s32.totalorder %v957, %v1372
        %vm1382 = vcmp.eq.s32.totalorder %v958, %v1372
        %vm1383 = vcmp.eq.s32.totalorder %v957, %v1375
        %vm1384 = vcmp.eq.s32.totalorder %v958, %v1375
        %vm1385 = vcmp.eq.s32.totalorder %v957, %v1378
        %vm1386 = vcmp.eq.s32.totalorder %v958, %v1378
        %v1387 = vsel %vm1359, 1, 0
        %v1388 = vsel %vm1360, 1, 0
        %v1389 = vsel %vm1361, 1, 0
        %v1390 = vsel %vm1362, 1, 0
        %1391 = vset.pattern.permute.xlu0 0
        %1392 = vperm.xlu0 %1391, %v1387
        %v1393 = vpop.permute.xlu0 %1392
        %1394 = vset.pattern.permute.xlu0 0
        %1395 = vperm.xlu0 %1394, %v1388
        %v1396 = vpop.permute.xlu0 %1395
        %1397 = vset.pattern.permute.xlu0 0
        %1398 = vperm.xlu0 %1397, %v1389
        %v1399 = vpop.permute.xlu0 %1398
        %1400 = vset.pattern.permute.xlu0 0
        %1401 = vperm.xlu0 %1400, %v1390
        %v1402 = vpop.permute.xlu0 %1401
        %vm1403 = vcmp.eq.s32.totalorder %v1393, 1
        %vm1404 = vcmp.eq.s32.totalorder %v1396, 1
        %vm1405 = vcmp.eq.s32.totalorder %v1399, 1
        %vm1406 = vcmp.eq.s32.totalorder %v1402, 1
        %vm1407 = vmand %vm1379, %vm1403
        %vm1408 = vmand %vm1380, %vm1403
        %vm1409 = vmand %vm1381, %vm1404
        %vm1410 = vmand %vm1382, %vm1404
        %vm1411 = vmand %vm1383, %vm1405
        %vm1412 = vmand %vm1384, %vm1405
        %vm1413 = vmand %vm1385, %vm1406
        %vm1414 = vmand %vm1386, %vm1406
        %1416 = vset.pattern.permute.xlu0 0
        %1417 = vperm.xlu0 %1416, %v952
        %v1418 = vpop.permute.xlu0 %1417
        %1421 = vset.pattern.permute.xlu0 0
        %1422 = vperm.xlu0 %1421, %v953
        %v1423 = vpop.permute.xlu0 %1422
        %1426 = vset.pattern.permute.xlu0 0
        %1427 = vperm.xlu0 %1426, %v954
        %v1428 = vpop.permute.xlu0 %1427
        %1431 = vset.pattern.permute.xlu0 0
        %1432 = vperm.xlu0 %1431, %v955
        %v1433 = vpop.permute.xlu0 %1432
        %v1435 = vsel %vm1407, %v1418, 0.0
        %v1436 = vsel %vm1408, %v1418, 0.0
        %v1437 = vsel %vm1409, %v1423, 0.0
        %v1438 = vsel %vm1410, %v1423, 0.0
        %v1439 = vsel %vm1411, %v1428, 0.0
        %v1440 = vsel %vm1412, %v1428, 0.0
        %v1441 = vsel %vm1413, %v1433, 0.0
        %v1442 = vsel %vm1414, %v1433, 0.0
        %v1443 = vadd.f32 %v1347, %v1435
        %v1444 = vadd.f32 %v1348, %v1436
        %v1445 = vadd.f32 %v1349, %v1437
        %v1446 = vadd.f32 %v1350, %v1438
        %v1447 = vadd.f32 %v1351, %v1439
        %v1448 = vadd.f32 %v1352, %v1440
        %v1449 = vadd.f32 %v1353, %v1441
        %v1450 = vadd.f32 %v1354, %v1442
        %1452 = vset.pattern.permute.xlu0 0
        %1453 = vperm.xlu0 %1452, %v856
        %v1454 = vpop.permute.xlu0 %1453
        %1457 = vset.pattern.permute.xlu0 0
        %1458 = vperm.xlu0 %1457, %v857
        %v1459 = vpop.permute.xlu0 %1458
        %1462 = vset.pattern.permute.xlu0 0
        %1463 = vperm.xlu0 %1462, %v858
        %v1464 = vpop.permute.xlu0 %1463
        %1467 = vset.pattern.permute.xlu0 0
        %1468 = vperm.xlu0 %1467, %v859
        %v1469 = vpop.permute.xlu0 %1468
        %v1471 = vmul.f32 %v1443, %v1454
        %v1472 = vmul.f32 %v1444, %v1454
        %v1473 = vmul.f32 %v1445, %v1459
        %v1474 = vmul.f32 %v1446, %v1459
        %v1475 = vmul.f32 %v1447, %v1464
        %v1476 = vmul.f32 %v1448, %v1464
        %v1477 = vmul.f32 %v1449, %v1469
        %v1478 = vmul.f32 %v1450, %v1469
        %v1479 = vpack.c.bf16 %v1473, %v1471
        %v1480 = vpack.c.bf16 %v1474, %v1472
        %v1481 = vpack.c.bf16 %v1477, %v1475
        %v1482 = vpack.c.bf16 %v1478, %v1476
        %v1483 = vpack.c.bf16 %v636, %v635
        %v1484 = vpack.c.bf16 %v638, %v637
        %v1485 = vpack.c.bf16 %v640, %v639
        %v1486 = vpack.c.bf16 %v642, %v641
        %v1487 = vpack.c.bf16 %v644, %v643
        %v1488 = vpack.c.bf16 %v646, %v645
        %v1489 = vpack.c.bf16 %v648, %v647
        %v1490 = vpack.c.bf16 %v650, %v649
        %v1491 = vpack.c.bf16 %v652, %v651
        %v1492 = vpack.c.bf16 %v654, %v653
        %v1493 = vpack.c.bf16 %v656, %v655
        %v1494 = vpack.c.bf16 %v658, %v657
        %v1495 = vpack.c.bf16 %v660, %v659
        %v1496 = vpack.c.bf16 %v662, %v661
        %v1497 = vpack.c.bf16 %v664, %v663
        %v1498 = vpack.c.bf16 %v666, %v665
        %1499 = vmatpush.bf16.msra.mxu0 %v1490
        %1500 = vmatpush.bf16.msra.mxu0 %v1489
        %1501 = vmatpush.bf16.msra.mxu0 %v1488
        %1502 = vmatpush.bf16.msra.mxu0 %v1487
        %1503 = vmatpush.bf16.msra.mxu0 %v1486
        %1504 = vmatpush.bf16.msra.mxu0 %v1485
        %1505 = vmatpush.bf16.msra.mxu0 %v1484
        %1506 = vmatpush.bf16.msra.mxu0 %v1483
        %1507 = vmatmul.bf16.gmra.mxu0 %v1479
        %v1508 = vpop.f32.mrf.mxu0
        %v1509 = vadd.f32 0.0, %v1508
        %v1510 = vpop.f32.mrf.mxu0
        %v1511 = vadd.f32 0.0, %v1510
        %1512 = vmatmul.bf16.gmra.mxu0 %v1481
        %v1513 = vpop.f32.mrf.mxu0
        %v1514 = vadd.f32 0.0, %v1513
        %v1515 = vpop.f32.mrf.mxu0
        %v1516 = vadd.f32 0.0, %v1515
        %1517 = vdwg.mxu0
        %1518 = vmatpush.bf16.msra.mxu0 %v1498
        %1519 = vmatpush.bf16.msra.mxu0 %v1497
        %1520 = vmatpush.bf16.msra.mxu0 %v1496
        %1521 = vmatpush.bf16.msra.mxu0 %v1495
        %1522 = vmatpush.bf16.msra.mxu0 %v1494
        %1523 = vmatpush.bf16.msra.mxu0 %v1493
        %1524 = vmatpush.bf16.msra.mxu0 %v1492
        %1525 = vmatpush.bf16.msra.mxu0 %v1491
        %1526 = vmatmul.bf16.gmra.mxu0 %v1480
        %v1527 = vpop.f32.mrf.mxu0
        %v1528 = vadd.f32 %v1509, %v1527
        %v1529 = vpop.f32.mrf.mxu0
        %v1530 = vadd.f32 %v1511, %v1529
        %1531 = vmatmul.bf16.gmra.mxu0 %v1482
        %v1532 = vpop.f32.mrf.mxu0
        %v1533 = vadd.f32 %v1514, %v1532
        %v1534 = vpop.f32.mrf.mxu0
        %v1535 = vadd.f32 %v1516, %v1534
        %1536 = vdwg.mxu0
        %v1537 = vld [vmem:[#allocation2] sm:$0xff]
        %v1538 = vld [vmem:[#allocation2 + $0x8] sm:$0xff]
        %v1539 = vld [vmem:[#allocation2 + $0x10] sm:$0xff]
        %v1540 = vld [vmem:[#allocation2 + $0x18] sm:$0xff]
        %v1541 = vadd.f32 %v1537, %v1528
        %v1542 = vadd.f32 %v1538, %v1530
        %v1543 = vadd.f32 %v1539, %v1533
        %v1544 = vadd.f32 %v1540, %v1535
        %vm1545 = vcmask 64512
        %1546 = vst.msk [vmem:[#allocation2] sm:$0xff] %vm1545, %v1541
        %1547 = vst.msk [vmem:[#allocation2 + $0x8] sm:$0xff] %vm1545, %v1542
        %1548 = vst.msk [vmem:[#allocation2 + $0x10] sm:$0xff] %vm1545, %v1543
        %1549 = vst.msk [vmem:[#allocation2 + $0x18] sm:$0xff] %vm1545, %v1544
        %v1550 = vld [vmem:[#allocation3] sm:$0xff]
        %v1551 = vld [vmem:[#allocation3 + $0x8] sm:$0xff]
        %v1552 = vld [vmem:[#allocation3 + $0x10] sm:$0xff]
        %v1553 = vld [vmem:[#allocation3 + $0x18] sm:$0xff]
        %v1554 = vadd.f32 %v1550, %v856
        %v1555 = vadd.f32 %v1551, %v857
        %v1556 = vadd.f32 %v1552, %v858
        %v1557 = vadd.f32 %v1553, %v859
        %vm1558 = vcmask 7168
        %1559 = vst.msk [vmem:[#allocation3] sm:$0xff] %vm1558, %v1554
        %1560 = vst.msk [vmem:[#allocation3 + $0x8] sm:$0xff] %vm1558, %v1555
        %1561 = vst.msk [vmem:[#allocation3 + $0x10] sm:$0xff] %vm1558, %v1556
        %1562 = vst.msk [vmem:[#allocation3 + $0x18] sm:$0xff] %vm1558, %v1557
        %v1563 = vld [vmem:[%s529] sm:$0xff]
        %v1564 = vld [vmem:[%s529 + $0x8] sm:$0xff]
        %v1565 = vld [vmem:[%s529 + $0x10] sm:$0xff]
        %v1566 = vld [vmem:[%s529 + $0x18] sm:$0xff]
        %v1567 = vld [vmem:[%s529 + $0x20] sm:$0xff]
        %v1568 = vld [vmem:[%s529 + $0x28] sm:$0xff]
        %v1569 = vld [vmem:[%s529 + $0x30] sm:$0xff]
        %v1570 = vld [vmem:[%s529 + $0x38] sm:$0xff]
        %s1571 = scalar_lea.vmem %s513, 4
        %v1572 = vld [vmem:[%s1571] sm:$0xf]
        %v1573 = vperm.slane %v1572, 0
        %v1574 = vmul.f32 %v671, %v1573
        %v1575 = vmul.f32 %v676, %v1573
        %v1576 = vmul.f32 %v681, %v1573
        %v1577 = vmul.f32 %v686, %v1573
        %v1578 = vperm.slane %v1572, 1
        %v1579 = vmul.f32 %v695, %v1578
        %v1580 = vmul.f32 %v699, %v1578
        %v1581 = vmul.f32 %v703, %v1578
        %v1582 = vmul.f32 %v707, %v1578
        %v1583 = vadd.f32 %v1574, %v1579
        %v1584 = vadd.f32 %v1575, %v1580
        %v1585 = vadd.f32 %v1576, %v1581
        %v1586 = vadd.f32 %v1577, %v1582
        %v1587 = vperm.slane %v1572, 2
        %v1588 = vmul.f32 %v720, %v1587
        %v1589 = vmul.f32 %v724, %v1587
        %v1590 = vmul.f32 %v728, %v1587
        %v1591 = vmul.f32 %v732, %v1587
        %v1592 = vadd.f32 %v1583, %v1588
        %v1593 = vadd.f32 %v1584, %v1589
        %v1594 = vadd.f32 %v1585, %v1590
        %v1595 = vadd.f32 %v1586, %v1591
        %v1596 = vperm.slane %v1572, 3
        %v1597 = vadd.f32 %v1592, %v1596
        %v1598 = vadd.f32 %v1593, %v1596
        %v1599 = vadd.f32 %v1594, %v1596
        %v1600 = vadd.f32 %v1595, %v1596
        %v1601 = vmax.f32 %v1597, 0.05
        %v1602 = vmax.f32 %v1598, 0.05
        %v1603 = vmax.f32 %v1599, 0.05
        %v1604 = vmax.f32 %v1600, 0.05
        %v1605 = vrcp.pop %v1601
        %v1606 = vrcp.pop %v1602
        %v1607 = vrcp.pop %v1603
        %v1608 = vrcp.pop %v1604
        %1613 = vrot.lane.b32.xlu0 %v1605, 126
        %v1614 = vpop.permute.xlu0 %1613
        %1615 = vrot.lane.b32.xlu0 %v1606, 126
        %v1616 = vpop.permute.xlu0 %1615
        %1617 = vrot.lane.b32.xlu0 %v1607, 126
        %v1618 = vpop.permute.xlu0 %1617
        %1619 = vrot.lane.b32.xlu0 %v1608, 126
        %v1620 = vpop.permute.xlu0 %1619
        %v1625 = vmul.f32 %v1597, %v1614
        %v1626 = vmul.f32 %v1598, %v1616
        %v1627 = vmul.f32 %v1599, %v1618
        %v1628 = vmul.f32 %v1600, %v1620
        %1629 = vrot.lane.b32.xlu0 %v1605, 127
        %v1630 = vpop.permute.xlu0 %1629
        %1631 = vrot.lane.b32.xlu0 %v1606, 127
        %v1632 = vpop.permute.xlu0 %1631
        %1633 = vrot.lane.b32.xlu0 %v1607, 127
        %v1634 = vpop.permute.xlu0 %1633
        %1635 = vrot.lane.b32.xlu0 %v1608, 127
        %v1636 = vpop.permute.xlu0 %1635
        %v1641 = vmul.f32 %v1597, %v1630
        %v1642 = vmul.f32 %v1598, %v1632
        %v1643 = vmul.f32 %v1599, %v1634
        %v1644 = vmul.f32 %v1600, %v1636
        %vm1645 = vcmp.ge.f32.partialorder %v1625, 0.0
        %vm1646 = vcmp.ge.f32.partialorder %v1626, 0.0
        %vm1647 = vcmp.ge.f32.partialorder %v1627, 0.0
        %vm1648 = vcmp.ge.f32.partialorder %v1628, 0.0
        %vm1649 = vcmp.lt.f32.partialorder %v1625, 8.0
        %vm1650 = vcmp.lt.f32.partialorder %v1626, 8.0
        %vm1651 = vcmp.lt.f32.partialorder %v1627, 8.0
        %vm1652 = vcmp.lt.f32.partialorder %v1628, 8.0
        %vm1653 = vmand %vm1645, %vm1649
        %vm1654 = vmand %vm1646, %vm1650
        %vm1655 = vmand %vm1647, %vm1651
        %vm1656 = vmand %vm1648, %vm1652
        %vm1657 = vcmp.ge.f32.partialorder %v1641, 0.0
        %vm1658 = vcmp.ge.f32.partialorder %v1642, 0.0
        %vm1659 = vcmp.ge.f32.partialorder %v1643, 0.0
        %vm1660 = vcmp.ge.f32.partialorder %v1644, 0.0
        %v1661 = vsel %vm1657, 1, 0
        %v1662 = vsel %vm1658, 1, 0
        %v1663 = vsel %vm1659, 1, 0
        %v1664 = vsel %vm1660, 1, 0
        %1665 = vrot.lane.b32.xlu0 %v1661, 127
        %v1666 = vpop.permute.xlu0 %1665
        %1667 = vrot.lane.b32.xlu0 %v1662, 127
        %v1668 = vpop.permute.xlu0 %1667
        %1669 = vrot.lane.b32.xlu0 %v1663, 127
        %v1670 = vpop.permute.xlu0 %1669
        %1671 = vrot.lane.b32.xlu0 %v1664, 127
        %v1672 = vpop.permute.xlu0 %1671
        %vm1673 = vcmp.ne.s32.totalorder %v1666, 0
        %vm1674 = vcmp.ne.s32.totalorder %v1668, 0
        %vm1675 = vcmp.ne.s32.totalorder %v1670, 0
        %vm1676 = vcmp.ne.s32.totalorder %v1672, 0
        %vm1677 = vmand %vm1653, %vm1673
        %vm1678 = vmand %vm1654, %vm1674
        %vm1679 = vmand %vm1655, %vm1675
        %vm1680 = vmand %vm1656, %vm1676
        %vm1681 = vcmp.lt.f32.partialorder %v1641, 8.0
        %vm1682 = vcmp.lt.f32.partialorder %v1642, 8.0
        %vm1683 = vcmp.lt.f32.partialorder %v1643, 8.0
        %vm1684 = vcmp.lt.f32.partialorder %v1644, 8.0
        %v1685 = vsel %vm1681, 1, 0
        %v1686 = vsel %vm1682, 1, 0
        %v1687 = vsel %vm1683, 1, 0
        %v1688 = vsel %vm1684, 1, 0
        %1689 = vrot.lane.b32.xlu0 %v1685, 127
        %v1690 = vpop.permute.xlu0 %1689
        %1691 = vrot.lane.b32.xlu0 %v1686, 127
        %v1692 = vpop.permute.xlu0 %1691
        %1693 = vrot.lane.b32.xlu0 %v1687, 127
        %v1694 = vpop.permute.xlu0 %1693
        %1695 = vrot.lane.b32.xlu0 %v1688, 127
        %v1696 = vpop.permute.xlu0 %1695
        %vm1697 = vcmp.ne.s32.totalorder %v1690, 0
        %vm1698 = vcmp.ne.s32.totalorder %v1692, 0
        %vm1699 = vcmp.ne.s32.totalorder %v1694, 0
        %vm1700 = vcmp.ne.s32.totalorder %v1696, 0
        %vm1701 = vmand %vm1677, %vm1697
        %vm1702 = vmand %vm1678, %vm1698
        %vm1703 = vmand %vm1679, %vm1699
        %vm1704 = vmand %vm1680, %vm1700
        %v1705 = vsel %vm1701, 1, 0
        %v1706 = vsel %vm1702, 1, 0
        %v1707 = vsel %vm1703, 1, 0
        %v1708 = vsel %vm1704, 1, 0
        %v1709 = vcvt.s32.f32 %v1705
        %v1710 = vcvt.s32.f32 %v1706
        %v1711 = vcvt.s32.f32 %v1707
        %v1712 = vcvt.s32.f32 %v1708
        %v1713 = vfloor.f32 %v1625
        %v1714 = vfloor.f32 %v1626
        %v1715 = vfloor.f32 %v1627
        %v1716 = vfloor.f32 %v1628
        %v1717 = vfloor.f32 %v1641
        %v1718 = vfloor.f32 %v1642
        %v1719 = vfloor.f32 %v1643
        %v1720 = vfloor.f32 %v1644
        %v1721 = vsub.f32 %v1625, %v1713
        %v1722 = vsub.f32 %v1626, %v1714
        %v1723 = vsub.f32 %v1627, %v1715
        %v1724 = vsub.f32 %v1628, %v1716
        %v1725 = vsub.f32 %v1641, %v1717
        %v1726 = vsub.f32 %v1642, %v1718
        %v1727 = vsub.f32 %v1643, %v1719
        %v1728 = vsub.f32 %v1644, %v1720
        %v1729 = vcvt.f32.s32.to.zero.pseudo %v1713
        %v1730 = vcvt.f32.s32.to.zero.pseudo %v1714
        %v1731 = vcvt.f32.s32.to.zero.pseudo %v1715
        %v1732 = vcvt.f32.s32.to.zero.pseudo %v1716
        %v1733 = vcvt.f32.s32.to.zero.pseudo %v1717
        %v1734 = vcvt.f32.s32.to.zero.pseudo %v1718
        %v1735 = vcvt.f32.s32.to.zero.pseudo %v1719
        %v1736 = vcvt.f32.s32.to.zero.pseudo %v1720
        %v1737 = vmul.u32 %v1733, 8
        %v1738 = vmul.u32 %v1734, 8
        %v1739 = vmul.u32 %v1735, 8
        %v1740 = vmul.u32 %v1736, 8
        %1741 = vrot.lane.b32.xlu0 %v1729, 1
        %v1742 = vpop.permute.xlu0 %1741
        %1743 = vrot.lane.b32.xlu0 %v1730, 1
        %v1744 = vpop.permute.xlu0 %1743
        %1745 = vrot.lane.b32.xlu0 %v1731, 1
        %v1746 = vpop.permute.xlu0 %1745
        %1747 = vrot.lane.b32.xlu0 %v1732, 1
        %v1748 = vpop.permute.xlu0 %1747
        %v1749 = vadd.s32 %v1737, %v1742
        %v1750 = vadd.s32 %v1738, %v1744
        %v1751 = vadd.s32 %v1739, %v1746
        %v1752 = vadd.s32 %v1740, %v1748
        %v1753 = vsub.f32 1.0, %v1721
        %v1754 = vsub.f32 1.0, %v1722
        %v1755 = vsub.f32 1.0, %v1723
        %v1756 = vsub.f32 1.0, %v1724
        %v1757 = vsub.f32 1.0, %v1725
        %v1758 = vsub.f32 1.0, %v1726
        %v1759 = vsub.f32 1.0, %v1727
        %v1760 = vsub.f32 1.0, %v1728
        %1765 = vrot.lane.b32.xlu0 %v1757, 127
        %v1766 = vpop.permute.xlu0 %1765
        %1767 = vrot.lane.b32.xlu0 %v1758, 127
        %v1768 = vpop.permute.xlu0 %1767
        %1769 = vrot.lane.b32.xlu0 %v1759, 127
        %v1770 = vpop.permute.xlu0 %1769
        %1771 = vrot.lane.b32.xlu0 %v1760, 127
        %v1772 = vpop.permute.xlu0 %1771
        %v1777 = vmul.f32 %v1753, %v1766
        %v1778 = vmul.f32 %v1754, %v1768
        %v1779 = vmul.f32 %v1755, %v1770
        %v1780 = vmul.f32 %v1756, %v1772
        %v1781 = vmul.f32 %v1721, %v1766
        %v1782 = vmul.f32 %v1722, %v1768
        %v1783 = vmul.f32 %v1723, %v1770
        %v1784 = vmul.f32 %v1724, %v1772
        %1789 = vrot.lane.b32.xlu0 %v1725, 127
        %v1790 = vpop.permute.xlu0 %1789
        %1791 = vrot.lane.b32.xlu0 %v1726, 127
        %v1792 = vpop.permute.xlu0 %1791
        %1793 = vrot.lane.b32.xlu0 %v1727, 127
        %v1794 = vpop.permute.xlu0 %1793
        %1795 = vrot.lane.b32.xlu0 %v1728, 127
        %v1796 = vpop.permute.xlu0 %1795
        %v1801 = vmul.f32 %v1753, %v1790
        %v1802 = vmul.f32 %v1754, %v1792
        %v1803 = vmul.f32 %v1755, %v1794
        %v1804 = vmul.f32 %v1756, %v1796
        %v1805 = vmul.f32 %v1721, %v1790
        %v1806 = vmul.f32 %v1722, %v1792
        %v1807 = vmul.f32 %v1723, %v1794
        %v1808 = vmul.f32 %v1724, %v1796
        %vm1809 = vcmp.ge.s32.totalorder %v1729, 0
        %vm1810 = vcmp.ge.s32.totalorder %v1730, 0
        %vm1811 = vcmp.ge.s32.totalorder %v1731, 0
        %vm1812 = vcmp.ge.s32.totalorder %v1732, 0
        %vm1813 = vcmp.lt.s32.totalorder %v1729, 8
        %vm1814 = vcmp.lt.s32.totalorder %v1730, 8
        %vm1815 = vcmp.lt.s32.totalorder %v1731, 8
        %vm1816 = vcmp.lt.s32.totalorder %v1732, 8
        %vm1817 = vmand %vm1809, %vm1813
        %vm1818 = vmand %vm1810, %vm1814
        %vm1819 = vmand %vm1811, %vm1815
        %vm1820 = vmand %vm1812, %vm1816
        %vm1821 = vcmp.ge.s32.totalorder %v1733, 0
        %vm1822 = vcmp.ge.s32.totalorder %v1734, 0
        %vm1823 = vcmp.ge.s32.totalorder %v1735, 0
        %vm1824 = vcmp.ge.s32.totalorder %v1736, 0
        %v1825 = vsel %vm1821, 1, 0
        %v1826 = vsel %vm1822, 1, 0
        %v1827 = vsel %vm1823, 1, 0
        %v1828 = vsel %vm1824, 1, 0
        %1829 = vrot.lane.b32.xlu0 %v1825, 127
        %v1830 = vpop.permute.xlu0 %1829
        %1831 = vrot.lane.b32.xlu0 %v1826, 127
        %v1832 = vpop.permute.xlu0 %1831
        %1833 = vrot.lane.b32.xlu0 %v1827, 127
        %v1834 = vpop.permute.xlu0 %1833
        %1835 = vrot.lane.b32.xlu0 %v1828, 127
        %v1836 = vpop.permute.xlu0 %1835
        %vm1837 = vcmp.ne.s32.totalorder %v1830, 0
        %vm1838 = vcmp.ne.s32.totalorder %v1832, 0
        %vm1839 = vcmp.ne.s32.totalorder %v1834, 0
        %vm1840 = vcmp.ne.s32.totalorder %v1836, 0
        %vm1841 = vmand %vm1817, %vm1837
        %vm1842 = vmand %vm1818, %vm1838
        %vm1843 = vmand %vm1819, %vm1839
        %vm1844 = vmand %vm1820, %vm1840
        %vm1845 = vcmp.lt.s32.totalorder %v1733, 8
        %vm1846 = vcmp.lt.s32.totalorder %v1734, 8
        %vm1847 = vcmp.lt.s32.totalorder %v1735, 8
        %vm1848 = vcmp.lt.s32.totalorder %v1736, 8
        %v1849 = vsel %vm1845, 1, 0
        %v1850 = vsel %vm1846, 1, 0
        %v1851 = vsel %vm1847, 1, 0
        %v1852 = vsel %vm1848, 1, 0
        %1853 = vrot.lane.b32.xlu0 %v1849, 127
        %v1854 = vpop.permute.xlu0 %1853
        %1855 = vrot.lane.b32.xlu0 %v1850, 127
        %v1856 = vpop.permute.xlu0 %1855
        %1857 = vrot.lane.b32.xlu0 %v1851, 127
        %v1858 = vpop.permute.xlu0 %1857
        %1859 = vrot.lane.b32.xlu0 %v1852, 127
        %v1860 = vpop.permute.xlu0 %1859
        %vm1861 = vcmp.ne.s32.totalorder %v1854, 0
        %vm1862 = vcmp.ne.s32.totalorder %v1856, 0
        %vm1863 = vcmp.ne.s32.totalorder %v1858, 0
        %vm1864 = vcmp.ne.s32.totalorder %v1860, 0
        %vm1865 = vmand %vm1841, %vm1861
        %vm1866 = vmand %vm1842, %vm1862
        %vm1867 = vmand %vm1843, %vm1863
        %vm1868 = vmand %vm1844, %vm1864
        %1869 = vset.pattern.permute.xlu0 1
        %1870 = vperm.xlu0 %1869, %v1749
        %v1871 = vpop.permute.xlu0 %1870
        %1872 = vset.pattern.permute.xlu0 1
        %1873 = vperm.xlu0 %1872, %v1750
        %v1874 = vpop.permute.xlu0 %1873
        %1875 = vset.pattern.permute.xlu0 1
        %1876 = vperm.xlu0 %1875, %v1751
        %v1877 = vpop.permute.xlu0 %1876
        %1878 = vset.pattern.permute.xlu0 1
        %1879 = vperm.xlu0 %1878, %v1752
        %v1880 = vpop.permute.xlu0 %1879
        %vm1881 = vcmp.eq.s32.totalorder %v957, %v1871
        %vm1882 = vcmp.eq.s32.totalorder %v957, %v1874
        %vm1883 = vcmp.eq.s32.totalorder %v957, %v1877
        %vm1884 = vcmp.eq.s32.totalorder %v957, %v1880
        %v1885 = vsel %vm1865, 1, 0
        %v1886 = vsel %vm1866, 1, 0
        %v1887 = vsel %vm1867, 1, 0
        %v1888 = vsel %vm1868, 1, 0
        %1889 = vset.pattern.permute.xlu0 0
        %1890 = vperm.xlu0 %1889, %v1885
        %v1891 = vpop.permute.xlu0 %1890
        %1892 = vset.pattern.permute.xlu0 0
        %1893 = vperm.xlu0 %1892, %v1886
        %v1894 = vpop.permute.xlu0 %1893
        %1895 = vset.pattern.permute.xlu0 0
        %1896 = vperm.xlu0 %1895, %v1887
        %v1897 = vpop.permute.xlu0 %1896
        %1898 = vset.pattern.permute.xlu0 0
        %1899 = vperm.xlu0 %1898, %v1888
        %v1900 = vpop.permute.xlu0 %1899
        %vm1901 = vcmp.eq.s32.totalorder %v1891, 1
        %vm1902 = vcmp.eq.s32.totalorder %v1894, 1
        %vm1903 = vcmp.eq.s32.totalorder %v1897, 1
        %vm1904 = vcmp.eq.s32.totalorder %v1900, 1
        %vm1905 = vmand %vm1881, %vm1901
        %vm1906 = vmand %vm1882, %vm1902
        %vm1907 = vmand %vm1883, %vm1903
        %vm1908 = vmand %vm1884, %vm1904
        %1910 = vset.pattern.permute.xlu0 0
        %1911 = vperm.xlu0 %1910, %v1777
        %v1912 = vpop.permute.xlu0 %1911
        %1915 = vset.pattern.permute.xlu0 0
        %1916 = vperm.xlu0 %1915, %v1778
        %v1917 = vpop.permute.xlu0 %1916
        %1920 = vset.pattern.permute.xlu0 0
        %1921 = vperm.xlu0 %1920, %v1779
        %v1922 = vpop.permute.xlu0 %1921
        %1925 = vset.pattern.permute.xlu0 0
        %1926 = vperm.xlu0 %1925, %v1780
        %v1927 = vpop.permute.xlu0 %1926
        %v1929 = vsel %vm1905, %v1912, 0.0
        %v1930 = vsel %vm1906, %v1917, 0.0
        %v1931 = vsel %vm1907, %v1922, 0.0
        %v1932 = vsel %vm1908, %v1927, 0.0
        %v1933 = vadd.f32 %v1929, 0.0
        %v1934 = vadd.f32 %v1930, 0.0
        %v1935 = vadd.f32 %v1931, 0.0
        %v1936 = vadd.f32 %v1932, 0.0
        %v1937 = vadd.s32 %v1729, 1
        %v1938 = vadd.s32 %v1730, 1
        %v1939 = vadd.s32 %v1731, 1
        %v1940 = vadd.s32 %v1732, 1
        %vm1941 = vcmp.ge.s32.totalorder %v1937, 0
        %vm1942 = vcmp.ge.s32.totalorder %v1938, 0
        %vm1943 = vcmp.ge.s32.totalorder %v1939, 0
        %vm1944 = vcmp.ge.s32.totalorder %v1940, 0
        %vm1945 = vcmp.lt.s32.totalorder %v1937, 8
        %vm1946 = vcmp.lt.s32.totalorder %v1938, 8
        %vm1947 = vcmp.lt.s32.totalorder %v1939, 8
        %vm1948 = vcmp.lt.s32.totalorder %v1940, 8
        %vm1949 = vmand %vm1941, %vm1945
        %vm1950 = vmand %vm1942, %vm1946
        %vm1951 = vmand %vm1943, %vm1947
        %vm1952 = vmand %vm1944, %vm1948
        %vm1953 = vmand %vm1949, %vm1837
        %vm1954 = vmand %vm1950, %vm1838
        %vm1955 = vmand %vm1951, %vm1839
        %vm1956 = vmand %vm1952, %vm1840
        %vm1957 = vmand %vm1953, %vm1861
        %vm1958 = vmand %vm1954, %vm1862
        %vm1959 = vmand %vm1955, %vm1863
        %vm1960 = vmand %vm1956, %vm1864
        %v1961 = vadd.s32 %v1749, 1
        %v1962 = vadd.s32 %v1750, 1
        %v1963 = vadd.s32 %v1751, 1
        %v1964 = vadd.s32 %v1752, 1
        %1965 = vset.pattern.permute.xlu0 1
        %1966 = vperm.xlu0 %1965, %v1961
        %v1967 = vpop.permute.xlu0 %1966
        %1968 = vset.pattern.permute.xlu0 1
        %1969 = vperm.xlu0 %1968, %v1962
        %v1970 = vpop.permute.xlu0 %1969
        %1971 = vset.pattern.permute.xlu0 1
        %1972 = vperm.xlu0 %1971, %v1963
        %v1973 = vpop.permute.xlu0 %1972
        %1974 = vset.pattern.permute.xlu0 1
        %1975 = vperm.xlu0 %1974, %v1964
        %v1976 = vpop.permute.xlu0 %1975
        %vm1977 = vcmp.eq.s32.totalorder %v957, %v1967
        %vm1978 = vcmp.eq.s32.totalorder %v957, %v1970
        %vm1979 = vcmp.eq.s32.totalorder %v957, %v1973
        %vm1980 = vcmp.eq.s32.totalorder %v957, %v1976
        %v1981 = vsel %vm1957, 1, 0
        %v1982 = vsel %vm1958, 1, 0
        %v1983 = vsel %vm1959, 1, 0
        %v1984 = vsel %vm1960, 1, 0
        %1985 = vset.pattern.permute.xlu0 0
        %1986 = vperm.xlu0 %1985, %v1981
        %v1987 = vpop.permute.xlu0 %1986
        %1988 = vset.pattern.permute.xlu0 0
        %1989 = vperm.xlu0 %1988, %v1982
        %v1990 = vpop.permute.xlu0 %1989
        %1991 = vset.pattern.permute.xlu0 0
        %1992 = vperm.xlu0 %1991, %v1983
        %v1993 = vpop.permute.xlu0 %1992
        %1994 = vset.pattern.permute.xlu0 0
        %1995 = vperm.xlu0 %1994, %v1984
        %v1996 = vpop.permute.xlu0 %1995
        %vm1997 = vcmp.eq.s32.totalorder %v1987, 1
        %vm1998 = vcmp.eq.s32.totalorder %v1990, 1
        %vm1999 = vcmp.eq.s32.totalorder %v1993, 1
        %vm2000 = vcmp.eq.s32.totalorder %v1996, 1
        %vm2001 = vmand %vm1977, %vm1997
        %vm2002 = vmand %vm1978, %vm1998
        %vm2003 = vmand %vm1979, %vm1999
        %vm2004 = vmand %vm1980, %vm2000
        %2006 = vset.pattern.permute.xlu0 0
        %2007 = vperm.xlu0 %2006, %v1781
        %v2008 = vpop.permute.xlu0 %2007
        %2011 = vset.pattern.permute.xlu0 0
        %2012 = vperm.xlu0 %2011, %v1782
        %v2013 = vpop.permute.xlu0 %2012
        %2016 = vset.pattern.permute.xlu0 0
        %2017 = vperm.xlu0 %2016, %v1783
        %v2018 = vpop.permute.xlu0 %2017
        %2021 = vset.pattern.permute.xlu0 0
        %2022 = vperm.xlu0 %2021, %v1784
        %v2023 = vpop.permute.xlu0 %2022
        %v2025 = vsel %vm2001, %v2008, 0.0
        %v2026 = vsel %vm2002, %v2013, 0.0
        %v2027 = vsel %vm2003, %v2018, 0.0
        %v2028 = vsel %vm2004, %v2023, 0.0
        %v2029 = vadd.f32 %v1933, %v2025
        %v2030 = vadd.f32 %v1934, %v2026
        %v2031 = vadd.f32 %v1935, %v2027
        %v2032 = vadd.f32 %v1936, %v2028
        %v2033 = vadd.s32 %v1733, 1
        %v2034 = vadd.s32 %v1734, 1
        %v2035 = vadd.s32 %v1735, 1
        %v2036 = vadd.s32 %v1736, 1
        %vm2037 = vcmp.ge.s32.totalorder %v2033, 0
        %vm2038 = vcmp.ge.s32.totalorder %v2034, 0
        %vm2039 = vcmp.ge.s32.totalorder %v2035, 0
        %vm2040 = vcmp.ge.s32.totalorder %v2036, 0
        %v2041 = vsel %vm2037, 1, 0
        %v2042 = vsel %vm2038, 1, 0
        %v2043 = vsel %vm2039, 1, 0
        %v2044 = vsel %vm2040, 1, 0
        %2045 = vrot.lane.b32.xlu0 %v2041, 127
        %v2046 = vpop.permute.xlu0 %2045
        %2047 = vrot.lane.b32.xlu0 %v2042, 127
        %v2048 = vpop.permute.xlu0 %2047
        %2049 = vrot.lane.b32.xlu0 %v2043, 127
        %v2050 = vpop.permute.xlu0 %2049
        %2051 = vrot.lane.b32.xlu0 %v2044, 127
        %v2052 = vpop.permute.xlu0 %2051
        %vm2053 = vcmp.ne.s32.totalorder %v2046, 0
        %vm2054 = vcmp.ne.s32.totalorder %v2048, 0
        %vm2055 = vcmp.ne.s32.totalorder %v2050, 0
        %vm2056 = vcmp.ne.s32.totalorder %v2052, 0
        %vm2057 = vmand %vm1817, %vm2053
        %vm2058 = vmand %vm1818, %vm2054
        %vm2059 = vmand %vm1819, %vm2055
        %vm2060 = vmand %vm1820, %vm2056
        %vm2061 = vcmp.lt.s32.totalorder %v2033, 8
        %vm2062 = vcmp.lt.s32.totalorder %v2034, 8
        %vm2063 = vcmp.lt.s32.totalorder %v2035, 8
        %vm2064 = vcmp.lt.s32.totalorder %v2036, 8
        %v2065 = vsel %vm2061, 1, 0
        %v2066 = vsel %vm2062, 1, 0
        %v2067 = vsel %vm2063, 1, 0
        %v2068 = vsel %vm2064, 1, 0
        %2069 = vrot.lane.b32.xlu0 %v2065, 127
        %v2070 = vpop.permute.xlu0 %2069
        %2071 = vrot.lane.b32.xlu0 %v2066, 127
        %v2072 = vpop.permute.xlu0 %2071
        %2073 = vrot.lane.b32.xlu0 %v2067, 127
        %v2074 = vpop.permute.xlu0 %2073
        %2075 = vrot.lane.b32.xlu0 %v2068, 127
        %v2076 = vpop.permute.xlu0 %2075
        %vm2077 = vcmp.ne.s32.totalorder %v2070, 0
        %vm2078 = vcmp.ne.s32.totalorder %v2072, 0
        %vm2079 = vcmp.ne.s32.totalorder %v2074, 0
        %vm2080 = vcmp.ne.s32.totalorder %v2076, 0
        %vm2081 = vmand %vm2057, %vm2077
        %vm2082 = vmand %vm2058, %vm2078
        %vm2083 = vmand %vm2059, %vm2079
        %vm2084 = vmand %vm2060, %vm2080
        %v2085 = vadd.s32 %v1749, 8
        %v2086 = vadd.s32 %v1750, 8
        %v2087 = vadd.s32 %v1751, 8
        %v2088 = vadd.s32 %v1752, 8
        %2089 = vset.pattern.permute.xlu0 1
        %2090 = vperm.xlu0 %2089, %v2085
        %v2091 = vpop.permute.xlu0 %2090
        %2092 = vset.pattern.permute.xlu0 1
        %2093 = vperm.xlu0 %2092, %v2086
        %v2094 = vpop.permute.xlu0 %2093
        %2095 = vset.pattern.permute.xlu0 1
        %2096 = vperm.xlu0 %2095, %v2087
        %v2097 = vpop.permute.xlu0 %2096
        %2098 = vset.pattern.permute.xlu0 1
        %2099 = vperm.xlu0 %2098, %v2088
        %v2100 = vpop.permute.xlu0 %2099
        %vm2101 = vcmp.eq.s32.totalorder %v957, %v2091
        %vm2102 = vcmp.eq.s32.totalorder %v957, %v2094
        %vm2103 = vcmp.eq.s32.totalorder %v957, %v2097
        %vm2104 = vcmp.eq.s32.totalorder %v957, %v2100
        %v2105 = vsel %vm2081, 1, 0
        %v2106 = vsel %vm2082, 1, 0
        %v2107 = vsel %vm2083, 1, 0
        %v2108 = vsel %vm2084, 1, 0
        %2109 = vset.pattern.permute.xlu0 0
        %2110 = vperm.xlu0 %2109, %v2105
        %v2111 = vpop.permute.xlu0 %2110
        %2112 = vset.pattern.permute.xlu0 0
        %2113 = vperm.xlu0 %2112, %v2106
        %v2114 = vpop.permute.xlu0 %2113
        %2115 = vset.pattern.permute.xlu0 0
        %2116 = vperm.xlu0 %2115, %v2107
        %v2117 = vpop.permute.xlu0 %2116
        %2118 = vset.pattern.permute.xlu0 0
        %2119 = vperm.xlu0 %2118, %v2108
        %v2120 = vpop.permute.xlu0 %2119
        %vm2121 = vcmp.eq.s32.totalorder %v2111, 1
        %vm2122 = vcmp.eq.s32.totalorder %v2114, 1
        %vm2123 = vcmp.eq.s32.totalorder %v2117, 1
        %vm2124 = vcmp.eq.s32.totalorder %v2120, 1
        %vm2125 = vmand %vm2101, %vm2121
        %vm2126 = vmand %vm2102, %vm2122
        %vm2127 = vmand %vm2103, %vm2123
        %vm2128 = vmand %vm2104, %vm2124
        %2130 = vset.pattern.permute.xlu0 0
        %2131 = vperm.xlu0 %2130, %v1801
        %v2132 = vpop.permute.xlu0 %2131
        %2135 = vset.pattern.permute.xlu0 0
        %2136 = vperm.xlu0 %2135, %v1802
        %v2137 = vpop.permute.xlu0 %2136
        %2140 = vset.pattern.permute.xlu0 0
        %2141 = vperm.xlu0 %2140, %v1803
        %v2142 = vpop.permute.xlu0 %2141
        %2145 = vset.pattern.permute.xlu0 0
        %2146 = vperm.xlu0 %2145, %v1804
        %v2147 = vpop.permute.xlu0 %2146
        %v2149 = vsel %vm2125, %v2132, 0.0
        %v2150 = vsel %vm2126, %v2137, 0.0
        %v2151 = vsel %vm2127, %v2142, 0.0
        %v2152 = vsel %vm2128, %v2147, 0.0
        %v2153 = vadd.f32 %v2029, %v2149
        %v2154 = vadd.f32 %v2030, %v2150
        %v2155 = vadd.f32 %v2031, %v2151
        %v2156 = vadd.f32 %v2032, %v2152
        %vm2157 = vmand %vm1949, %vm2053
        %vm2158 = vmand %vm1950, %vm2054
        %vm2159 = vmand %vm1951, %vm2055
        %vm2160 = vmand %vm1952, %vm2056
        %vm2161 = vmand %vm2157, %vm2077
        %vm2162 = vmand %vm2158, %vm2078
        %vm2163 = vmand %vm2159, %vm2079
        %vm2164 = vmand %vm2160, %vm2080
        %v2165 = vadd.s32 %v1749, 9
        %v2166 = vadd.s32 %v1750, 9
        %v2167 = vadd.s32 %v1751, 9
        %v2168 = vadd.s32 %v1752, 9
        %2169 = vset.pattern.permute.xlu0 1
        %2170 = vperm.xlu0 %2169, %v2165
        %v2171 = vpop.permute.xlu0 %2170
        %2172 = vset.pattern.permute.xlu0 1
        %2173 = vperm.xlu0 %2172, %v2166
        %v2174 = vpop.permute.xlu0 %2173
        %2175 = vset.pattern.permute.xlu0 1
        %2176 = vperm.xlu0 %2175, %v2167
        %v2177 = vpop.permute.xlu0 %2176
        %2178 = vset.pattern.permute.xlu0 1
        %2179 = vperm.xlu0 %2178, %v2168
        %v2180 = vpop.permute.xlu0 %2179
        %vm2181 = vcmp.eq.s32.totalorder %v957, %v2171
        %vm2182 = vcmp.eq.s32.totalorder %v957, %v2174
        %vm2183 = vcmp.eq.s32.totalorder %v957, %v2177
        %vm2184 = vcmp.eq.s32.totalorder %v957, %v2180
        %v2185 = vsel %vm2161, 1, 0
        %v2186 = vsel %vm2162, 1, 0
        %v2187 = vsel %vm2163, 1, 0
        %v2188 = vsel %vm2164, 1, 0
        %2189 = vset.pattern.permute.xlu0 0
        %2190 = vperm.xlu0 %2189, %v2185
        %v2191 = vpop.permute.xlu0 %2190
        %2192 = vset.pattern.permute.xlu0 0
        %2193 = vperm.xlu0 %2192, %v2186
        %v2194 = vpop.permute.xlu0 %2193
        %2195 = vset.pattern.permute.xlu0 0
        %2196 = vperm.xlu0 %2195, %v2187
        %v2197 = vpop.permute.xlu0 %2196
        %2198 = vset.pattern.permute.xlu0 0
        %2199 = vperm.xlu0 %2198, %v2188
        %v2200 = vpop.permute.xlu0 %2199
        %vm2201 = vcmp.eq.s32.totalorder %v2191, 1
        %vm2202 = vcmp.eq.s32.totalorder %v2194, 1
        %vm2203 = vcmp.eq.s32.totalorder %v2197, 1
        %vm2204 = vcmp.eq.s32.totalorder %v2200, 1
        %vm2205 = vmand %vm2181, %vm2201
        %vm2206 = vmand %vm2182, %vm2202
        %vm2207 = vmand %vm2183, %vm2203
        %vm2208 = vmand %vm2184, %vm2204
        %2210 = vset.pattern.permute.xlu0 0
        %2211 = vperm.xlu0 %2210, %v1805
        %v2212 = vpop.permute.xlu0 %2211
        %2215 = vset.pattern.permute.xlu0 0
        %2216 = vperm.xlu0 %2215, %v1806
        %v2217 = vpop.permute.xlu0 %2216
        %2220 = vset.pattern.permute.xlu0 0
        %2221 = vperm.xlu0 %2220, %v1807
        %v2222 = vpop.permute.xlu0 %2221
        %2225 = vset.pattern.permute.xlu0 0
        %2226 = vperm.xlu0 %2225, %v1808
        %v2227 = vpop.permute.xlu0 %2226
        %v2229 = vsel %vm2205, %v2212, 0.0
        %v2230 = vsel %vm2206, %v2217, 0.0
        %v2231 = vsel %vm2207, %v2222, 0.0
        %v2232 = vsel %vm2208, %v2227, 0.0
        %v2233 = vadd.f32 %v2153, %v2229
        %v2234 = vadd.f32 %v2154, %v2230
        %v2235 = vadd.f32 %v2155, %v2231
        %v2236 = vadd.f32 %v2156, %v2232
        %2238 = vset.pattern.permute.xlu0 0
        %2239 = vperm.xlu0 %2238, %v1709
        %v2240 = vpop.permute.xlu0 %2239
        %2243 = vset.pattern.permute.xlu0 0
        %2244 = vperm.xlu0 %2243, %v1710
        %v2245 = vpop.permute.xlu0 %2244
        %2248 = vset.pattern.permute.xlu0 0
        %2249 = vperm.xlu0 %2248, %v1711
        %v2250 = vpop.permute.xlu0 %2249
        %2253 = vset.pattern.permute.xlu0 0
        %2254 = vperm.xlu0 %2253, %v1712
        %v2255 = vpop.permute.xlu0 %2254
        %v2257 = vmul.f32 %v2233, %v2240
        %v2258 = vmul.f32 %v2234, %v2245
        %v2259 = vmul.f32 %v2235, %v2250
        %v2260 = vmul.f32 %v2236, %v2255
        %v2261 = vpack.c.bf16 %v2258, %v2257
        %v2262 = vpack.c.bf16 %v2260, %v2259
        %v2263 = vpack.c.bf16 %v1564, %v1563
        %v2264 = vpack.c.bf16 %v1566, %v1565
        %v2265 = vpack.c.bf16 %v1568, %v1567
        %v2266 = vpack.c.bf16 %v1570, %v1569
        %vm2267 = vcmask 523264
        %v2269 = vsel %vm2267, %v2261, 0
        %v2272 = vsel %vm2267, %v2262, 0
        %2274 = vmatpush.bf16.msra.mxu0 0
        %2275 = vmatpush.bf16.msra.mxu0 0
        %2276 = vmatpush.bf16.msra.mxu0 0
        %2277 = vmatpush.bf16.msra.mxu0 0
        %2278 = vmatpush.bf16.msra.mxu0 %v2266
        %2279 = vmatpush.bf16.msra.mxu0 %v2265
        %2280 = vmatpush.bf16.msra.mxu0 %v2264
        %2281 = vmatpush.bf16.msra.mxu0 %v2263
        %2282 = vmatmul.bf16.gmra.mxu0 %v2269
        %v2283 = vpop.f32.mrf.mxu0
        %v2284 = vadd.f32 0.0, %v2283
        %v2285 = vpop.f32.mrf.mxu0
        %v2286 = vadd.f32 0.0, %v2285
        %2287 = vmatmul.bf16.gmra.mxu0 %v2272
        %v2288 = vpop.f32.mrf.mxu0
        %v2289 = vadd.f32 0.0, %v2288
        %v2290 = vpop.f32.mrf.mxu0
        %v2291 = vadd.f32 0.0, %v2290
        %2292 = vdwg.mxu0
        %v2293 = vld [vmem:[#allocation2] sm:$0xff]
        %v2294 = vld [vmem:[#allocation2 + $0x8] sm:$0xff]
        %v2295 = vld [vmem:[#allocation2 + $0x10] sm:$0xff]
        %v2296 = vld [vmem:[#allocation2 + $0x18] sm:$0xff]
        %v2297 = vadd.f32 %v2293, %v2284
        %v2298 = vadd.f32 %v2294, %v2286
        %v2299 = vadd.f32 %v2295, %v2289
        %v2300 = vadd.f32 %v2296, %v2291
        %2301 = vst.msk [vmem:[#allocation2] sm:$0xff] %vm1545, %v2297
        %2302 = vst.msk [vmem:[#allocation2 + $0x8] sm:$0xff] %vm1545, %v2298
        %2303 = vst.msk [vmem:[#allocation2 + $0x10] sm:$0xff] %vm1545, %v2299
        %2304 = vst.msk [vmem:[#allocation2 + $0x18] sm:$0xff] %vm1545, %v2300
        %v2305 = vld [vmem:[#allocation3] sm:$0xff]
        %v2306 = vld [vmem:[#allocation3 + $0x8] sm:$0xff]
        %v2307 = vld [vmem:[#allocation3 + $0x10] sm:$0xff]
        %v2308 = vld [vmem:[#allocation3 + $0x18] sm:$0xff]
        %v2309 = vadd.f32 %v2305, %v1709
        %v2310 = vadd.f32 %v2306, %v1710
        %v2311 = vadd.f32 %v2307, %v1711
        %v2312 = vadd.f32 %v2308, %v1712
        %2313 = vst.msk [vmem:[#allocation3] sm:$0xff] %vm1558, %v2309
        %2314 = vst.msk [vmem:[#allocation3 + $0x8] sm:$0xff] %vm1558, %v2310
        %2315 = vst.msk [vmem:[#allocation3 + $0x10] sm:$0xff] %vm1558, %v2311
        %2316 = vst.msk [vmem:[#allocation3 + $0x18] sm:$0xff] %vm1558, %v2312
        %p2317 = scmp.eq.s32.totalorder %s35, 1
        // Predicated region
        $region61: #{tpu_custom_call.1} parent=55 // pred_check
          %p2318 = pneg %p2317
        $region62: #{tpu_custom_call.1} parent=55 // pred_check_branch
          %2320 = sbr.rel (%p2318) target = $region64
        $region63: #{tpu_custom_call.1} parent=55 // pred_region
          %v2321 = vld [vmem:[#allocation2] sm:$0xff]
          %v2322 = vld [vmem:[#allocation2 + $0x8] sm:$0xff]
          %v2323 = vld [vmem:[#allocation2 + $0x10] sm:$0xff]
          %v2324 = vld [vmem:[#allocation2 + $0x18] sm:$0xff]
          %v2325 = vld [vmem:[#allocation3] sm:$0xff]
          %v2326 = vld [vmem:[#allocation3 + $0x8] sm:$0xff]
          %v2327 = vld [vmem:[#allocation3 + $0x10] sm:$0xff]
          %v2328 = vld [vmem:[#allocation3 + $0x18] sm:$0xff]
          %v2329 = vadd.f32 %v2325, 1e-06
          %v2330 = vadd.f32 %v2326, 1e-06
          %v2331 = vadd.f32 %v2327, 1e-06
          %v2332 = vadd.f32 %v2328, 1e-06
          %v2333 = vrcp.pop %v2329
          %v2334 = vrcp.pop %v2330
          %v2335 = vrcp.pop %v2331
          %v2336 = vrcp.pop %v2332
          %2338 = vset.pattern.permute.xlu0 0
          %2339 = vperm.xlu0 %2338, %v2333
          %v2340 = vpop.permute.xlu0 %2339
          %2343 = vset.pattern.permute.xlu0 0
          %2344 = vperm.xlu0 %2343, %v2334
          %v2345 = vpop.permute.xlu0 %2344
          %2348 = vset.pattern.permute.xlu0 0
          %2349 = vperm.xlu0 %2348, %v2335
          %v2350 = vpop.permute.xlu0 %2349
          %2353 = vset.pattern.permute.xlu0 0
          %2354 = vperm.xlu0 %2353, %v2336
          %v2355 = vpop.permute.xlu0 %2354
          %v2357 = vmul.f32 %v2321, %v2340
          %v2358 = vmul.f32 %v2322, %v2345
          %v2359 = vmul.f32 %v2323, %v2350
          %v2360 = vmul.f32 %v2324, %v2355
          %v2361 = vld [vmem:[%s5] sm:$0xff]
          %v2362 = vld [vmem:[%s6] sm:$0x1]
          %v2364 = vperm.slane %v2362, 0
          %v2367 = vsel %vm1545, %v2357, 0
          %v2370 = vsel %vm1545, %v2358, 0
          %v2373 = vsel %vm1545, %v2359, 0
          %v2376 = vsel %vm1545, %v2360, 0
          %2378 = vmatpush.msra.mxu0 0.0
          %2379 = vmatpush.msra.mxu0 0.0
          %2380 = vmatpush.msra.mxu0 0.0
          %2381 = vmatpush.msra.mxu0 0.0
          %2382 = vmatpush.msra.mxu0 0.0
          %2383 = vmatpush.msra.mxu0 0.0
          %2384 = vmatpush.msra.mxu0 0.0
          %2385 = vmatpush.msra.mxu0 0.0
          %2386 = vmatpush.msra.mxu0 0.0
          %2387 = vmatpush.msra.mxu0 0.0
          %2388 = vmatpush.msra.mxu0 0.0
          %2389 = vmatpush.msra.mxu0 0.0
          %2390 = vmatpush.msra.mxu0 0.0
          %2391 = vmatpush.msra.mxu0 0.0
          %2392 = vmatpush.msra.mxu0 0.0
          %2393 = vmatpush.msra.mxu0 %v2361
          %2394 = vmatmul.f32.gmra.mxu0 %v2367
          %v2395 = vpop.f32.mrf.mxu0
          %v2396 = vadd.f32 %v2364, %v2395
          %2397 = vmatmul.f32.gmra.mxu0 %v2370
          %v2398 = vpop.f32.mrf.mxu0
          %v2399 = vadd.f32 %v2364, %v2398
          %2400 = vmatmul.f32.gmra.mxu0 %v2373
          %v2401 = vpop.f32.mrf.mxu0
          %v2402 = vadd.f32 %v2364, %v2401
          %2403 = vmatmul.f32.gmra.mxu0 %v2376
          %v2404 = vpop.f32.mrf.mxu0
          %v2405 = vadd.f32 %v2364, %v2404
          %2406 = vdwg.mxu0
          %v2407 = vld [vmem:[%s503] sm:$0xff]
          %v2408 = vld [vmem:[%s503 + $0x8] sm:$0xff]
          %v2409 = vld [vmem:[%s503 + $0x10] sm:$0xff]
          %v2410 = vld [vmem:[%s503 + $0x18] sm:$0xff]
          %v2411 = vadd.f32 %v2407, %v535
          %v2412 = vadd.f32 %v2408, %v536
          %v2413 = vadd.f32 %v2409, %v537
          %v2414 = vadd.f32 %v2410, %v538
          %v2415 = vadd.f32 %v2411, %v2396
          %v2416 = vadd.f32 %v2412, %v2399
          %v2417 = vadd.f32 %v2413, %v2402
          %v2418 = vadd.f32 %v2414, %v2405
          %2419 = vst [vmem:[%s481] sm:$0xff] %v2415
          %2420 = vst [vmem:[%s481 + $0x8] sm:$0xff] %v2416
          %2421 = vst [vmem:[%s481 + $0x10] sm:$0xff] %v2417
          %2422 = vst [vmem:[%s481 + $0x18] sm:$0xff] %v2418
        $region64: #{tpu_custom_call.1} parent=55 // pred_fallthru
          _
        %s2423 = sand.u32 %s283, 1
        %s2424 = scalar_lea.sflag [#allocation6], %s2423
        %s2425 = sand.u32 %s283, 1
        %s2426 = smul.addr %s2425, 32
        %s2427 = scalar_lea.vmem [#allocation5], %s2426
        %s2428 = sand.u32 %s311, 1
        %s2429 = scalar_lea.sflag [#allocation8], %s2428
        %s2430 = sand.u32 %s311, 1
        %s2431 = smul.addr %s2430, 32
        %s2432 = scalar_lea.vmem [#allocation7], %s2431
        // Predicated region
        $region65: #{tpu_custom_call.1} parent=55 // pred_check
          %p2433 = pneg %p293
        $region66: #{tpu_custom_call.1} parent=55 // pred_check_branch
          %2435 = sbr.rel (%p2433) target = $region68
        $region67: #{tpu_custom_call.1} parent=55 // pred_region
          %s2436 = smul.u32 4, %s34
          %2438 = vsyncadd %s2424, 0
          %s2439 = smul.addr %s33, 8
          %s2440 = sadd.s32 %s2436, %s2439
          %s2441 = smul.addr %s2440, 8
          %s2442 = scalar_lea.hbm %s9, %s2441
          %s2443 = sshll.u32 %s2427, 4
          %s2444 = int_to_ptr.vmem [resolvable:$true] %s2443
          %s2445 = sshll.u32 %s2442, 4
          %s2446 = int_to_ptr.hbm [resolvable:$true] %s2445
          %2451 = dma.vmem_to_hbm [thread:$0]  %s2444, 512, %s2446, %s2424, 128, 128, 8
        $region68: #{tpu_custom_call.1} parent=55 // pred_fallthru
          _
        // Predicated region
        $region69: #{tpu_custom_call.1} parent=55 // pred_check
          %p2452 = pneg %p321
        $region70: #{tpu_custom_call.1} parent=55 // pred_check_branch
          %2454 = sbr.rel (%p2452) target = $region72
        $region71: #{tpu_custom_call.1} parent=55 // pred_region
          %s2455 = smul.u32 4, %s34
          %2457 = vsyncadd %s2429, 0
          %s2458 = smul.addr %s33, 8
          %s2459 = sadd.s32 %s2455, %s2458
          %s2460 = smul.addr %s2459, 8
          %s2461 = scalar_lea.hbm %s10, %s2460
          %s2462 = sshll.u32 %s2432, 4
          %s2463 = int_to_ptr.vmem [resolvable:$true] %s2462
          %s2464 = sshll.u32 %s2461, 4
          %s2465 = int_to_ptr.hbm [resolvable:$true] %s2464
          %2470 = dma.vmem_to_hbm [thread:$0]  %s2463, 512, %s2465, %s2429, 128, 128, 8
        $region72: #{tpu_custom_call.1} parent=55 // pred_fallthru
          _
      $region56: #{tpu_custom_call.1} parent=5 // pred_fallthru
        _
      %p2471 = scmp.le.s32.totalorder 2, %s23
      // Predicated region
      $region73: #{tpu_custom_call.1} parent=5 // pred_check
        %p2472 = pneg %p2471
      $region74: #{tpu_custom_call.1} parent=5 // pred_check_branch
        %2474 = sbr.rel (%p2472) target = $region76
      $region75: #{tpu_custom_call.1} parent=5 // pred_region
        %s2475 = ssub.s32 %s23, 2
        // Predicated region
        $region77: #{tpu_custom_call.1} parent=75 // pred_check
          %p2476 = pneg %p299
        $region78: #{tpu_custom_call.1} parent=75 // pred_check_branch
          %2478 = sbr.rel (%p2476) target = $region80
        $region79: #{tpu_custom_call.1} parent=75 // pred_region
          %s2479 = sand.u32 %s284, 1
          %s2480 = scalar_lea.sflag [#allocation6], %s2479
          %s2481 = sand.u32 %s284, 1
          %s2482 = smul.addr %s2481, 32
          %s2483 = scalar_lea.vmem [#allocation5], %s2482
          %2485 = dma.done %s2480, 512
        $region80: #{tpu_custom_call.1} parent=75 // pred_fallthru
          _
        // Predicated region
        $region81: #{tpu_custom_call.1} parent=75 // pred_check
          %p2486 = pneg %p327
        $region82: #{tpu_custom_call.1} parent=75 // pred_check_branch
          %2488 = sbr.rel (%p2486) target = $region84
        $region83: #{tpu_custom_call.1} parent=75 // pred_region
          %s2489 = sand.u32 %s312, 1
          %s2490 = scalar_lea.sflag [#allocation8], %s2489
          %s2491 = sand.u32 %s312, 1
          %s2492 = smul.addr %s2491, 32
          %s2493 = scalar_lea.vmem [#allocation7], %s2492
          %2495 = dma.done %s2490, 512
        $region84: #{tpu_custom_call.1} parent=75 // pred_fallthru
          _
      $region76: #{tpu_custom_call.1} parent=5 // pred_fallthru
        _
    $region6: #{tpu_custom_call.1} parent=1 // loop_footer
      %s27 = sadd.s32 1, %s23
    $region7: #{tpu_custom_call.1} parent=1 // loop_footer_branch
      %22 = sbr.rel target = $region3
    $region8: #{tpu_custom_call.1} parent=1 // loop_exit
      _
    %2496 = vsyncpa [#allocation6], 1
    %s2497 = scalar_lea.sflag [#allocation6], 1
    %2498 = vsyncpa %s2497, 1
    %2499 = vsyncpa [#allocation8], 1
    %s2500 = scalar_lea.sflag [#allocation8], 1
    %2501 = vsyncpa %s2500, 1

// kernel: tpu_custom_call.1
$region0: #{tpu_custom_call.1}
  #allocation0 [shape = 'u32[]', space=smem, size = 0x4, offset = 0x4, fixed_abs, tag = 'smem constant byte address 0x4 - core index']
  #allocation1 [shape = 'u32[72,128]{1,0:T(1,128)}', space=vmem, size = 0x9000, scoped, tag = 'internal scratch']
  #allocation2 [shape = 'f32[32,8]{1,0:T(8,128)}', space=vmem, size = 0x4000, scoped, tag = 'scratch operand']
  #allocation3 [shape = 'f32[32,1]{1,0:T(8,128)}', space=vmem, size = 0x4000, scoped, tag = 'scratch operand']
  #allocation4 [shape = 'f32[32,3]{1,0:T(8,128)}', space=vmem, size = 0x4000, scoped, tag = 'scratch operand']
  %s0 = inlined_call_operand.vmem [shape: f32[64,128], index: 0, kind: input, shape index: {}]
  %s1 = inlined_call_operand.vmem [shape: f32[2,64,128], index: 1, kind: input, shape index: {}]
  %s2 = inlined_call_operand.vmem [shape: f32[2,2,2,4,4], index: 2, kind: input, shape index: {}]
  %s3 = inlined_call_operand.vmem [shape: f32[128,128], index: 3, kind: input, shape index: {}]
  %s4 = inlined_call_operand.vmem [shape: f32[1,128], index: 4, kind: input, shape index: {}]
  %s5 = inlined_call_operand.vmem [shape: f32[8,128], index: 5, kind: input, shape index: {}]
  %s6 = inlined_call_operand.vmem [shape: f32[1,128], index: 6, kind: input, shape index: {}]
  %s7 = inlined_call_operand.vmem [shape: f32[4,256,8], index: 7, kind: input, shape index: {}]
  %s8 = inlined_call_operand.vmem [shape: f32[4,64,8], index: 8, kind: input, shape index: {}]
  %s9 = inlined_call_operand.hbm [shape: f32[2,64,128], index: 9, kind: output, shape index: {0}]
  %s10 = inlined_call_operand.hbm [shape: f32[2,64,128], index: 10, kind: output, shape index: {1}]
  %11 = xla_tuple %s9, %s10
  %s12 = sld [smem:[#allocation0]]
  $region85: #{tpu_custom_call.1} parent=0
    _
  %s14 = ssub.s32 1, %s12
  %s15 = scalar_select 0, %s14, %s12
  $region1: #{tpu_custom_call.1} parent=0
    #allocation5 [shape = 'u8[32768]{0}', space=vmem, size = 0x8000, scoped, tag = 'output window, operand 0']
    #allocation6 [shape = 's32[2]{0}', space=sflag, size = 0x8, scoped, tag = 'scoped memory for tpu_custom_call.1']
    #allocation7 [shape = 'u8[32768]{0}', space=vmem, size = 0x8000, scoped, tag = 'output window, operand 1']
    #allocation8 [shape = 's32[2]{0}', space=sflag, size = 0x8, scoped, tag = 'scoped memory for tpu_custom_call.1']
    %16 = vsyncpa [#allocation6], 0
    %s17 = scalar_lea.sflag [#allocation6], 1
    %18 = vsyncpa %s17, 0
    %19 = vsyncpa [#allocation8], 0
    %s20 = scalar_lea.sflag [#allocation8], 1
    %21 = vsyncpa %s20, 0
    loop: start=0, step=1, limit=10
    $region2: #{tpu_custom_call.1} parent=1 // loop_pre_header
      _
    $region3: #{tpu_custom_call.1} parent=1 // loop_header
      %s23 = sphi 0, %s27
      %p24 = scmp.ge.s32.totalorder %s23, 10
      %s30 = sphi 0, %s49
      %s31 = sphi 0, %s45
      %s32 = sphi 0, %s41
      %s33 = sphi 0, %s30
      %s34 = sphi 0, %s31
      %s35 = sphi 0, %s32
      %s36 = sphi 0, %s33
      %s37 = sphi 0, %s34
      %s38 = sphi 0, %s35
      %s52 = sphi 0, %s54
      %s55 = sphi 0, %s52
      %s56 = sphi 0, %s55
      %s72 = sphi 0, %s56
      %s80 = sphi 0, %s82
      %s83 = sphi 0, %s80
      %s84 = sphi 0, %s83
      %s100 = sphi 0, %s84
      %s108 = sphi 0, %s110
      %s111 = sphi 0, %s108
      %s112 = sphi 0, %s111
      %s128 = sphi 0, %s112
      %s132 = sphi 0, %s132
      %s134 = sphi 0, %s132
      %s135 = sphi 0, %s134
      %s149 = sphi 0, %s135
      %s153 = sphi 0, %s153
      %s155 = sphi 0, %s153
      %s156 = sphi 0, %s155
      %s170 = sphi 0, %s156
      %s174 = sphi 0, %s174
      %s176 = sphi 0, %s174
      %s177 = sphi 0, %s176
      %s191 = sphi 0, %s177
      %s195 = sphi 0, %s195
      %s197 = sphi 0, %s195
      %s198 = sphi 0, %s197
      %s212 = sphi 0, %s198
      %s222 = sphi 0, %s224
      %s225 = sphi 0, %s222
      %s226 = sphi 0, %s225
      %s242 = sphi 0, %s226
      %s252 = sphi 0, %s254
      %s255 = sphi 0, %s252
      %s256 = sphi 0, %s255
      %s272 = sphi 0, %s256
      %s280 = sphi 0, %s282
      %s283 = sphi 0, %s280
      %s284 = sphi 0, %s283
      %s300 = sphi 0, %s284
      %s308 = sphi 0, %s310
      %s311 = sphi 0, %s308
      %s312 = sphi 0, %s311
      %s328 = sphi 0, %s312
    $region4: #{tpu_custom_call.1} parent=1 // loop_header_branch
      %26 = sbr.rel (%p24) target = $region8
    $region5: #{tpu_custom_call.1} parent=1 // loop_body
      %s28 = ssub.s32 %s23, 1
      %s29 = ssub.s32 %s23, 2
      %s39 = sadd.s32 1, %s32
      %p40 = scmp.ge.s32.totalorder %s39, 2
      %s41 = scalar_select %p40, 0, %s39
      %s42 = sadd.s32 1, %s31
      %s43 = scalar_select %p40, %s42, %s31
      %p44 = scmp.ge.s32.totalorder %s43, 2
      %s45 = scalar_select %p44, 0, %s43
      %s46 = sadd.s32 1, %s30
      %s47 = scalar_select %p44, %s46, %s30
      %p48 = scmp.ge.s32.totalorder %s47, 2
      %s49 = scalar_select %p48, 0, %s47
      %s50 = ssub.s32 %s31, %s45
      %p51 = scmp.eq.s32.totalorder %s50, 0
      %s53 = sadd.s32 %s52, 1
      %s54 = scalar_select %p51, %s52, %s53
      %p57 = pneg %p51
      %p58 = scmp.eq.s32.totalorder %s23, 7
      %p59 = por %p57, %p58
      %p60 = scmp.ne.s32.totalorder %s52, %s55
      %p61 = scmp.eq.s32.totalorder %s23, 0
      %p62 = por %p60, %p61
      %p63 = scmp.ne.s32.totalorder %s52, %s55
      %p64 = scmp.eq.s32.totalorder %s28, 7
      %p65 = por %p63, %p64
      %p66 = scmp.ne.s32.totalorder %s55, %s56
      %p67 = scmp.eq.s32.totalorder %s28, 0
      %p68 = por %p66, %p67
      %p69 = scmp.ne.s32.totalorder %s55, %s56
      %p70 = scmp.eq.s32.totalorder %s29, 7
      %p71 = por %p69, %p70
      %p73 = scmp.ne.s32.totalorder %s56, %s72
      %p74 = scmp.eq.s32.totalorder %s29, 0
      %p75 = por %p73, %p74
      %s76 = ssub.s32 %s30, %s49
      %s77 = ssub.s32 %s31, %s45
      %s78 = sor.u32 %s76, %s77
      %p79 = scmp.eq.s32.totalorder %s78, 0
      %s81 = sadd.s32 %s80, 1
      %s82 = scalar_select %p79, %s80, %s81
      %p85 = pneg %p79
      %p86 = scmp.eq.s32.totalorder %s23, 7
      %p87 = por %p85, %p86
      %p88 = scmp.ne.s32.totalorder %s80, %s83
      %p89 = scmp.eq.s32.totalorder %s23, 0
      %p90 = por %p88, %p89
      %p91 = scmp.ne.s32.totalorder %s80, %s83
      %p92 = scmp.eq.s32.totalorder %s28, 7
      %p93 = por %p91, %p92
      %p94 = scmp.ne.s32.totalorder %s83, %s84
      %p95 = scmp.eq.s32.totalorder %s28, 0
      %p96 = por %p94, %p95
      %p97 = scmp.ne.s32.totalorder %s83, %s84
      %p98 = scmp.eq.s32.totalorder %s29, 7
      %p99 = por %p97, %p98
      %p101 = scmp.ne.s32.totalorder %s84, %s100
      %p102 = scmp.eq.s32.totalorder %s29, 0
      %p103 = por %p101, %p102
      %s104 = ssub.s32 %s30, %s49
      %s105 = ssub.s32 %s32, %s41
      %s106 = sor.u32 %s104, %s105
      %p107 = scmp.eq.s32.totalorder %s106, 0
      %s109 = sadd.s32 %s108, 1
      %s110 = scalar_select %p107, %s108, %s109
      %p113 = pneg %p107
      %p114 = scmp.eq.s32.totalorder %s23, 7
      %p115 = por %p113, %p114
      %p116 = scmp.ne.s32.totalorder %s108, %s111
      %p117 = scmp.eq.s32.totalorder %s23, 0
      %p118 = por %p116, %p117
      %p119 = scmp.ne.s32.totalorder %s108, %s111
      %p120 = scmp.eq.s32.totalorder %s28, 7
      %p121 = por %p119, %p120
      %p122 = scmp.ne.s32.totalorder %s111, %s112
      %p123 = scmp.eq.s32.totalorder %s28, 0
      %p124 = por %p122, %p123
      %p125 = scmp.ne.s32.totalorder %s111, %s112
      %p126 = scmp.eq.s32.totalorder %s29, 7
      %p127 = por %p125, %p126
      %p129 = scmp.ne.s32.totalorder %s112, %s128
      %p130 = scmp.eq.s32.totalorder %s29, 0
      %p131 = por %p129, %p130
      %s133 = sadd.s32 %s132, 1
      %p136 = scmp.eq.s32.totalorder %s23, 7
      %p137 = scmp.ne.s32.totalorder %s132, %s134
      %p138 = scmp.eq.s32.totalorder %s23, 0
      %p139 = por %p137, %p138
      %p140 = scmp.ne.s32.totalorder %s132, %s134
      %p141 = scmp.eq.s32.totalorder %s28, 7
      %p142 = por %p140, %p141
      %p143 = scmp.ne.s32.totalorder %s134, %s135
      %p144 = scmp.eq.s32.totalorder %s28, 0
      %p145 = por %p143, %p144
      %p146 = scmp.ne.s32.totalorder %s134, %s135
      %p147 = scmp.eq.s32.totalorder %s29, 7
      %p148 = por %p146, %p147
      %p150 = scmp.ne.s32.totalorder %s135, %s149
      %p151 = scmp.eq.s32.totalorder %s29, 0
      %p152 = por %p150, %p151
      %s154 = sadd.s32 %s153, 1
      %p157 = scmp.eq.s32.totalorder %s23, 7
      %p158 = scmp.ne.s32.totalorder %s153, %s155
      %p159 = scmp.eq.s32.totalorder %s23, 0
      %p160 = por %p158, %p159
      %p161 = scmp.ne.s32.totalorder %s153, %s155
      %p162 = scmp.eq.s32.totalorder %s28, 7
      %p163 = por %p161, %p162
      %p164 = scmp.ne.s32.totalorder %s155, %s156
      %p165 = scmp.eq.s32.totalorder %s28, 0
      %p166 = por %p164, %p165
      %p167 = scmp.ne.s32.totalorder %s155, %s156
      %p168 = scmp.eq.s32.totalorder %s29, 7
      %p169 = por %p167, %p168
      %p171 = scmp.ne.s32.totalorder %s156, %s170
      %p172 = scmp.eq.s32.totalorder %s29, 0
      %p173 = por %p171, %p172
      %s175 = sadd.s32 %s174, 1
      %p178 = scmp.eq.s32.totalorder %s23, 7
      %p179 = scmp.ne.s32.totalorder %s174, %s176
      %p180 = scmp.eq.s32.totalorder %s23, 0
      %p181 = por %p179, %p180
      %p182 = scmp.ne.s32.totalorder %s174, %s176
      %p183 = scmp.eq.s32.totalorder %s28, 7
      %p184 = por %p182, %p183
      %p185 = scmp.ne.s32.totalorder %s176, %s177
      %p186 = scmp.eq.s32.totalorder %s28, 0
      %p187 = por %p185, %p186
      %p188 = scmp.ne.s32.totalorder %s176, %s177
      %p189 = scmp.eq.s32.totalorder %s29, 7
      %p190 = por %p188, %p189
      %p192 = scmp.ne.s32.totalorder %s177, %s191
      %p193 = scmp.eq.s32.totalorder %s29, 0
      %p194 = por %p192, %p193
      %s196 = sadd.s32 %s195, 1
      %p199 = scmp.eq.s32.totalorder %s23, 7
      %p200 = scmp.ne.s32.totalorder %s195, %s197
      %p201 = scmp.eq.s32.totalorder %s23, 0
      %p202 = por %p200, %p201
      %p203 = scmp.ne.s32.totalorder %s195, %s197
      %p204 = scmp.eq.s32.totalorder %s28, 7
      %p205 = por %p203, %p204
      %p206 = scmp.ne.s32.totalorder %s197, %s198
      %p207 = scmp.eq.s32.totalorder %s28, 0
      %p208 = por %p206, %p207
      %p209 = scmp.ne.s32.totalorder %s197, %s198
      %p210 = scmp.eq.s32.totalorder %s29, 7
      %p211 = por %p209, %p210
      %p213 = scmp.ne.s32.totalorder %s198, %s212
      %p214 = scmp.eq.s32.totalorder %s29, 0
      %p215 = por %p213, %p214
      %s216 = smul.u32 %s30, 2
      %s217 = sadd.s32 %s216, %s32
      %s218 = smul.u32 %s49, 2
      %s219 = sadd.s32 %s218, %s41
      %s220 = ssub.s32 %s217, %s219
      %p221 = scmp.eq.s32.totalorder %s220, 0
      %s223 = sadd.s32 %s222, 1
      %s224 = scalar_select %p221, %s222, %s223
      %p227 = pneg %p221
      %p228 = scmp.eq.s32.totalorder %s23, 7
      %p229 = por %p227, %p228
      %p230 = scmp.ne.s32.totalorder %s222, %s225
      %p231 = scmp.eq.s32.totalorder %s23, 0
      %p232 = por %p230, %p231
      %p233 = scmp.ne.s32.totalorder %s222, %s225
      %p234 = scmp.eq.s32.totalorder %s28, 7
      %p235 = por %p233, %p234
      %p236 = scmp.ne.s32.totalorder %s225, %s226
      %p237 = scmp.eq.s32.totalorder %s28, 0
      %p238 = por %p236, %p237
      %p239 = scmp.ne.s32.totalorder %s225, %s226
      %p240 = scmp.eq.s32.totalorder %s29, 7
      %p241 = por %p239, %p240
      %p243 = scmp.ne.s32.totalorder %s226, %s242
      %p244 = scmp.eq.s32.totalorder %s29, 0
      %p245 = por %p243, %p244
      %s246 = smul.u32 %s30, 2
      %s247 = sadd.s32 %s246, %s32
      %s248 = smul.u32 %s49, 2
      %s249 = sadd.s32 %s248, %s41
      %s250 = ssub.s32 %s247, %s249
      %p251 = scmp.eq.s32.totalorder %s250, 0
      %s253 = sadd.s32 %s252, 1
      %s254 = scalar_select %p251, %s252, %s253
      %p257 = pneg %p251
      %p258 = scmp.eq.s32.totalorder %s23, 7
      %p259 = por %p257, %p258
      %p260 = scmp.ne.s32.totalorder %s252, %s255
      %p261 = scmp.eq.s32.totalorder %s23, 0
      %p262 = por %p260, %p261
      %p263 = scmp.ne.s32.totalorder %s252, %s255
      %p264 = scmp.eq.s32.totalorder %s28, 7
      %p265 = por %p263, %p264
      %p266 = scmp.ne.s32.totalorder %s255, %s256
      %p267 = scmp.eq.s32.totalorder %s28, 0
      %p268 = por %p266, %p267
      %p269 = scmp.ne.s32.totalorder %s255, %s256
      %p270 = scmp.eq.s32.totalorder %s29, 7
      %p271 = por %p269, %p270
      %p273 = scmp.ne.s32.totalorder %s256, %s272
      %p274 = scmp.eq.s32.totalorder %s29, 0
      %p275 = por %p273, %p274
      %s276 = ssub.s32 %s30, %s49
      %s277 = ssub.s32 %s31, %s45
      %s278 = sor.u32 %s276, %s277
      %p279 = scmp.eq.s32.totalorder %s278, 0
      %s281 = sadd.s32 %s280, 1
      %s282 = scalar_select %p279, %s280, %s281
      %p285 = pneg %p279
      %p286 = scmp.eq.s32.totalorder %s23, 7
      %p287 = por %p285, %p286
      %p288 = scmp.ne.s32.totalorder %s280, %s283
      %p289 = scmp.eq.s32.totalorder %s23, 0
      %p290 = por %p288, %p289
      %p291 = scmp.ne.s32.totalorder %s280, %s283
      %p292 = scmp.eq.s32.totalorder %s28, 7
      %p293 = por %p291, %p292
      %p294 = scmp.ne.s32.totalorder %s283, %s284
      %p295 = scmp.eq.s32.totalorder %s28, 0
      %p296 = por %p294, %p295
      %p297 = scmp.ne.s32.totalorder %s283, %s284
      %p298 = scmp.eq.s32.totalorder %s29, 7
      %p299 = por %p297, %p298
      %p301 = scmp.ne.s32.totalorder %s284, %s300
      %p302 = scmp.eq.s32.totalorder %s29, 0
      %p303 = por %p301, %p302
      %s304 = ssub.s32 %s30, %s49
      %s305 = ssub.s32 %s31, %s45
      %s306 = sor.u32 %s304, %s305
      %p307 = scmp.eq.s32.totalorder %s306, 0
      %s309 = sadd.s32 %s308, 1
      %s310 = scalar_select %p307, %s308, %s309
      %p313 = pneg %p307
      %p314 = scmp.eq.s32.totalorder %s23, 7
      %p315 = por %p313, %p314
      %p316 = scmp.ne.s32.totalorder %s308, %s311
      %p317 = scmp.eq.s32.totalorder %s23, 0
      %p318 = por %p316, %p317
      %p319 = scmp.ne.s32.totalorder %s308, %s311
      %p320 = scmp.eq.s32.totalorder %s28, 7
      %p321 = por %p319, %p320
      %p322 = scmp.ne.s32.totalorder %s311, %s312
      %p323 = scmp.eq.s32.totalorder %s28, 0
      %p324 = por %p322, %p323
      %p325 = scmp.ne.s32.totalorder %s311, %s312
      %p326 = scmp.eq.s32.totalorder %s29, 7
      %p327 = por %p325, %p326
      %p329 = scmp.ne.s32.totalorder %s312, %s328
      %p330 = scmp.eq.s32.totalorder %s29, 0
      %p331 = por %p329, %p330
      %p332 = scmp.le.s32.totalorder 1, %s23
      %p333 = scmp.lt.s32.totalorder %s23, 9
      %p334 = pnand %p332, %p333
      %p335 = pneg %p334
      // Predicated region
      $region9: #{tpu_custom_call.1} parent=5 // pred_check
        _
      $region10: #{tpu_custom_call.1} parent=5 // pred_check_branch
        %337 = sbr.rel (%p334) target = $region12
      $region11: #{tpu_custom_call.1} parent=5 // pred_region
        %s338 = ssub.s32 %s23, 1
        // Predicated region
        $region13: #{tpu_custom_call.1} parent=11 // pred_check
          %p339 = pneg %p145
        $region14: #{tpu_custom_call.1} parent=11 // pred_check_branch
          %341 = sbr.rel (%p339) target = $region16
        $region15: #{tpu_custom_call.1} parent=11 // pred_region
          _
        $region16: #{tpu_custom_call.1} parent=11 // pred_fallthru
          _
        // Predicated region
        $region17: #{tpu_custom_call.1} parent=11 // pred_check
          %p342 = pneg %p166
        $region18: #{tpu_custom_call.1} parent=11 // pred_check_branch
          %344 = sbr.rel (%p342) target = $region20
        $region19: #{tpu_custom_call.1} parent=11 // pred_region
          _
        $region20: #{tpu_custom_call.1} parent=11 // pred_fallthru
          _
        // Predicated region
        $region21: #{tpu_custom_call.1} parent=11 // pred_check
          %p345 = pneg %p187
        $region22: #{tpu_custom_call.1} parent=11 // pred_check_branch
          %347 = sbr.rel (%p345) target = $region24
        $region23: #{tpu_custom_call.1} parent=11 // pred_region
          _
        $region24: #{tpu_custom_call.1} parent=11 // pred_fallthru
          _
        // Predicated region
        $region25: #{tpu_custom_call.1} parent=11 // pred_check
          %p348 = pneg %p208
        $region26: #{tpu_custom_call.1} parent=11 // pred_check_branch
          %350 = sbr.rel (%p348) target = $region28
        $region27: #{tpu_custom_call.1} parent=11 // pred_region
          _
        $region28: #{tpu_custom_call.1} parent=11 // pred_fallthru
          _
      $region12: #{tpu_custom_call.1} parent=5 // pred_fallthru
        _
      %p351 = scmp.lt.s32.totalorder %s23, 8
      // Predicated region
      $region29: #{tpu_custom_call.1} parent=5 // pred_check
        %p352 = pneg %p351
      $region30: #{tpu_custom_call.1} parent=5 // pred_check_branch
        %354 = sbr.rel (%p352) target = $region32
      $region31: #{tpu_custom_call.1} parent=5 // pred_region
        // Predicated region
        $region33: #{tpu_custom_call.1} parent=31 // pred_check
          %p355 = pneg %p62
        $region34: #{tpu_custom_call.1} parent=31 // pred_check_branch
          %357 = sbr.rel (%p355) target = $region36
        $region35: #{tpu_custom_call.1} parent=31 // pred_region
          %s358 = smul.u32 4, %s31
          %p359 = scmp.lt.s32.totalorder %s358, 7
          %s360 = scalar_select %p359, %s358, 7
          %s361 = smul.addr %s360, 8
          %s362 = scalar_lea.vmem %s0, %s361
          %s363 = smul.u32 4, %s31
        $region36: #{tpu_custom_call.1} parent=31 // pred_fallthru
          _
        // Predicated region
        $region37: #{tpu_custom_call.1} parent=31 // pred_check
          %p364 = pneg %p90
        $region38: #{tpu_custom_call.1} parent=31 // pred_check_branch
          %366 = sbr.rel (%p364) target = $region40
        $region39: #{tpu_custom_call.1} parent=31 // pred_region
          %s367 = smul.u32 4, %s31
          %p368 = scmp.lt.s32.totalorder %s30, 1
          %s369 = scalar_select %p368, %s30, 1
          %p370 = scmp.lt.s32.totalorder %s367, 7
          %s371 = scalar_select %p370, %s367, 7
          %s372 = smul.addr %s369, 8
          %s373 = sadd.s32 %s371, %s372
          %s374 = smul.addr %s373, 8
          %s375 = scalar_lea.vmem %s1, %s374
          %s376 = smul.u32 4, %s31
        $region40: #{tpu_custom_call.1} parent=31 // pred_fallthru
          _
        // Predicated region
        $region41: #{tpu_custom_call.1} parent=31 // pred_check
          %p377 = pneg %p118
        $region42: #{tpu_custom_call.1} parent=31 // pred_check_branch
          %379 = sbr.rel (%p377) target = $region44
        $region43: #{tpu_custom_call.1} parent=31 // pred_region
          %p380 = scmp.lt.s32.totalorder %s30, 1
          %s381 = scalar_select %p380, %s30, 1
          %p382 = scmp.lt.s32.totalorder %s32, 1
          %s383 = scalar_select %p382, %s32, 1
          %s384 = smul.addr %s383, 2
          %s385 = smul.addr %s381, 4
          %s386 = sadd.s32 %s384, %s385
          %s387 = smul.addr %s386, 4
          %s388 = scalar_lea.vmem %s2, %s387
        $region44: #{tpu_custom_call.1} parent=31 // pred_fallthru
          _
        // Predicated region
        $region45: #{tpu_custom_call.1} parent=31 // pred_check
          %p389 = pneg %p232
        $region46: #{tpu_custom_call.1} parent=31 // pred_check_branch
          %391 = sbr.rel (%p389) target = $region48
        $region47: #{tpu_custom_call.1} parent=31 // pred_region
          %s392 = smul.u32 %s30, 2
          %s393 = sadd.s32 %s392, %s32
          %p394 = scmp.lt.s32.totalorder %s393, 3
          %s395 = scalar_select %p394, %s393, 3
          %s396 = smul.addr %s395, 32
          %s397 = smul.addr %s396, 8
          %s398 = scalar_lea.vmem %s7, %s397
          %s399 = smul.u32 %s30, 2
          %s400 = sadd.s32 %s399, %s32
        $region48: #{tpu_custom_call.1} parent=31 // pred_fallthru
          _
        // Predicated region
        $region49: #{tpu_custom_call.1} parent=31 // pred_check
          %p401 = pneg %p262
        $region50: #{tpu_custom_call.1} parent=31 // pred_check_branch
          %403 = sbr.rel (%p401) target = $region52
        $region51: #{tpu_custom_call.1} parent=31 // pred_region
          %s404 = smul.u32 %s30, 2
          %s405 = sadd.s32 %s404, %s32
          %p406 = scmp.lt.s32.totalorder %s405, 3
          %s407 = scalar_select %p406, %s405, 3
          %s408 = smul.addr %s407, 8
          %s409 = smul.addr %s408, 8
          %s410 = scalar_lea.vmem %s8, %s409
          %s411 = smul.u32 %s30, 2
          %s412 = sadd.s32 %s411, %s32
        $region52: #{tpu_custom_call.1} parent=31 // pred_fallthru
          _
      $region32: #{tpu_custom_call.1} parent=5 // pred_fallthru
        _
      %p413 = scmp.le.s32.totalorder 1, %s23
      %p414 = scmp.lt.s32.totalorder %s23, 9
      %p415 = pnand %p413, %p414
      %p416 = pneg %p415
      // Predicated region
      $region53: #{tpu_custom_call.1} parent=5 // pred_check
        _
      $region54: #{tpu_custom_call.1} parent=5 // pred_check_branch
        %418 = sbr.rel (%p415) target = $region56
      $region55: #{tpu_custom_call.1} parent=5 // pred_region
        %s419 = ssub.s32 %s23, 1
        %s420 = smul.u32 4, %s34
        %p421 = scmp.lt.s32.totalorder %s420, 7
        %s422 = scalar_select %p421, %s420, 7
        %s423 = smul.addr %s422, 8
        %s424 = scalar_lea.vmem %s0, %s423
        %p425 = pneg %p68
        %p426 = pneg %p65
        %s427 = smul.u32 4, %s34
        %p428 = scmp.lt.s32.totalorder %s33, 1
        %s429 = scalar_select %p428, %s33, 1
        %p430 = scmp.lt.s32.totalorder %s427, 7
        %s431 = scalar_select %p430, %s427, 7
        %s432 = smul.addr %s429, 8
        %s433 = sadd.s32 %s431, %s432
        %s434 = smul.addr %s433, 8
        %s435 = scalar_lea.vmem %s1, %s434
        %p436 = pneg %p96
        %p437 = pneg %p93
        %p438 = scmp.lt.s32.totalorder %s33, 1
        %s439 = scalar_select %p438, %s33, 1
        %p440 = scmp.lt.s32.totalorder %s35, 1
        %s441 = scalar_select %p440, %s35, 1
        %s442 = smul.addr %s441, 2
        %s443 = smul.addr %s439, 4
        %s444 = sadd.s32 %s442, %s443
        %s445 = smul.addr %s444, 4
        %s446 = scalar_lea.vmem %s2, %s445
        %p447 = pneg %p124
        %p448 = pneg %p121
        %p449 = pneg %p145
        %p450 = pneg %p142
        %p451 = pneg %p166
        %p452 = pneg %p163
        %p453 = pneg %p187
        %p454 = pneg %p184
        %p455 = pneg %p208
        %p456 = pneg %p205
        %s457 = smul.u32 %s33, 2
        %s458 = sadd.s32 %s457, %s35
        %p459 = scmp.lt.s32.totalorder %s458, 3
        %s460 = scalar_select %p459, %s458, 3
        %s461 = smul.addr %s460, 32
        %s462 = smul.addr %s461, 8
        %s463 = scalar_lea.vmem %s7, %s462
        %p464 = pneg %p238
        %p465 = pneg %p235
        %s466 = smul.u32 %s33, 2
        %s467 = sadd.s32 %s466, %s35
        %p468 = scmp.lt.s32.totalorder %s467, 3
        %s469 = scalar_select %p468, %s467, 3
        %s470 = smul.addr %s469, 8
        %s471 = smul.addr %s470, 8
        %s472 = scalar_lea.vmem %s8, %s471
        %p473 = pneg %p268
        %p474 = pneg %p265
        %p475 = pneg %p296
        %p476 = pneg %p293
        %s477 = sand.u32 %s283, 1
        %s478 = scalar_lea.sflag [#allocation6], %s477
        %s479 = sand.u32 %s283, 1
        %s480 = smul.addr %s479, 32
        %s481 = scalar_lea.vmem [#allocation5], %s480
        %p482 = pneg %p324
        %p483 = pneg %p321
        %s484 = sand.u32 %s311, 1
        %s485 = scalar_lea.sflag [#allocation8], %s484
        %s486 = sand.u32 %s311, 1
        %s487 = smul.addr %s486, 32
        %s488 = scalar_lea.vmem [#allocation7], %s487
        %s489 = smul.u32 4, %s34
        %p490 = scmp.lt.s32.totalorder %s489, 7
        %s491 = scalar_select %p490, %s489, 7
        %s492 = smul.addr %s491, 8
        %s493 = scalar_lea.vmem %s0, %s492
        %s494 = smul.u32 4, %s34
        %s495 = smul.u32 4, %s34
        %p496 = scmp.lt.s32.totalorder %s33, 1
        %s497 = scalar_select %p496, %s33, 1
        %p498 = scmp.lt.s32.totalorder %s495, 7
        %s499 = scalar_select %p498, %s495, 7
        %s500 = smul.addr %s497, 8
        %s501 = sadd.s32 %s499, %s500
        %s502 = smul.addr %s501, 8
        %s503 = scalar_lea.vmem %s1, %s502
        %s504 = smul.u32 4, %s34
        %p505 = scmp.lt.s32.totalorder %s33, 1
        %s506 = scalar_select %p505, %s33, 1
        %p507 = scmp.lt.s32.totalorder %s35, 1
        %s508 = scalar_select %p507, %s35, 1
        %s509 = smul.addr %s508, 2
        %s510 = smul.addr %s506, 4
        %s511 = sadd.s32 %s509, %s510
        %s512 = smul.addr %s511, 4
        %s513 = scalar_lea.vmem %s2, %s512
        %s514 = smul.u32 %s33, 2
        %s515 = sadd.s32 %s514, %s35
        %p516 = scmp.lt.s32.totalorder %s515, 3
        %s517 = scalar_select %p516, %s515, 3
        %s518 = smul.addr %s517, 32
        %s519 = smul.addr %s518, 8
        %s520 = scalar_lea.vmem %s7, %s519
        %s521 = smul.u32 %s33, 2
        %s522 = sadd.s32 %s521, %s35
        %s523 = smul.u32 %s33, 2
        %s524 = sadd.s32 %s523, %s35
        %p525 = scmp.lt.s32.totalorder %s524, 3
        %s526 = scalar_select %p525, %s524, 3
        %s527 = smul.addr %s526, 8
        %s528 = smul.addr %s527, 8
        %s529 = scalar_lea.vmem %s8, %s528
        %s530 = smul.u32 %s33, 2
        %s531 = sadd.s32 %s530, %s35
        %s532 = smul.u32 4, %s34
        %s533 = smul.u32 4, %s34
        %v535 = vld [vmem:[%s493] sm:$0xff]
        %v536 = vld [vmem:[%s493 + $0x8] sm:$0xff]
        %v537 = vld [vmem:[%s493 + $0x10] sm:$0xff]
        %v538 = vld [vmem:[%s493 + $0x18] sm:$0xff]
        %p539 = scmp.eq.s32.totalorder %s35, 0
        // Predicated region
        $region57: #{tpu_custom_call.1} parent=55 // pred_check
          %p540 = pneg %p539
        $region58: #{tpu_custom_call.1} parent=55 // pred_check_branch
          %542 = sbr.rel (%p540) target = $region60
        $region59: #{tpu_custom_call.1} parent=55 // pred_region
          %v543 = vld [vmem:[%s3] sm:$0xff]
          %v544 = vld [vmem:[%s3 + $0x8] sm:$0xff]
          %v545 = vld [vmem:[%s3 + $0x10] sm:$0xff]
          %v546 = vld [vmem:[%s3 + $0x18] sm:$0xff]
          %v547 = vld [vmem:[%s3 + $0x20] sm:$0xff]
          %v548 = vld [vmem:[%s3 + $0x28] sm:$0xff]
          %v549 = vld [vmem:[%s3 + $0x30] sm:$0xff]
          %v550 = vld [vmem:[%s3 + $0x38] sm:$0xff]
          %v551 = vld [vmem:[%s3 + $0x40] sm:$0xff]
          %v552 = vld [vmem:[%s3 + $0x48] sm:$0xff]
          %v553 = vld [vmem:[%s3 + $0x50] sm:$0xff]
          %v554 = vld [vmem:[%s3 + $0x58] sm:$0xff]
          %v555 = vld [vmem:[%s3 + $0x60] sm:$0xff]
          %v556 = vld [vmem:[%s3 + $0x68] sm:$0xff]
          %v557 = vld [vmem:[%s3 + $0x70] sm:$0xff]
          %v558 = vld [vmem:[%s3 + $0x78] sm:$0xff]
          %v559 = vld [vmem:[%s4] sm:$0x1]
          %v561 = vperm.slane %v559, 0
          %563 = vmatpush.msra.mxu0 %v558
          %564 = vmatpush.msra.mxu0 %v557
          %565 = vmatpush.msra.mxu0 %v556
          %566 = vmatpush.msra.mxu0 %v555
          %567 = vmatpush.msra.mxu0 %v554
          %568 = vmatpush.msra.mxu0 %v553
          %569 = vmatpush.msra.mxu0 %v552
          %570 = vmatpush.msra.mxu0 %v551
          %571 = vmatpush.msra.mxu0 %v550
          %572 = vmatpush.msra.mxu0 %v549
          %573 = vmatpush.msra.mxu0 %v548
          %574 = vmatpush.msra.mxu0 %v547
          %575 = vmatpush.msra.mxu0 %v546
          %576 = vmatpush.msra.mxu0 %v545
          %577 = vmatpush.msra.mxu0 %v544
          %578 = vmatpush.msra.mxu0 %v543
          %579 = vmatmul.f32.gmra.mxu0 %v535
          %v580 = vpop.f32.mrf.mxu0
          %v581 = vadd.f32 %v561, %v580
          %582 = vmatmul.f32.gmra.mxu0 %v536
          %v583 = vpop.f32.mrf.mxu0
          %v584 = vadd.f32 %v561, %v583
          %585 = vmatmul.f32.gmra.mxu0 %v537
          %v586 = vpop.f32.mrf.mxu0
          %v587 = vadd.f32 %v561, %v586
          %588 = vmatmul.f32.gmra.mxu0 %v538
          %v589 = vpop.f32.mrf.mxu0
          %v590 = vadd.f32 %v561, %v589
          %591 = vdwg.mxu0
          %592 = vst [vmem:[%s488] sm:$0xff] %v581
          %593 = vst [vmem:[%s488 + $0x8] sm:$0xff] %v584
          %594 = vst [vmem:[%s488 + $0x10] sm:$0xff] %v587
          %595 = vst [vmem:[%s488 + $0x18] sm:$0xff] %v590
          %v596 = vsub.f32 0.0, %v581
          %v597 = vsub.f32 0.0, %v584
          %v598 = vsub.f32 0.0, %v587
          %v599 = vsub.f32 0.0, %v590
          %v600 = vmul.f32 %v596, 1.442695
          %v601 = vpow.pop %v600
          %v602 = vmul.f32 %v597, 1.442695
          %v603 = vpow.pop %v602
          %v604 = vmul.f32 %v598, 1.442695
          %v605 = vpow.pop %v604
          %v606 = vmul.f32 %v599, 1.442695
          %v607 = vpow.pop %v606
          %v608 = vadd.f32 %v601, 1.0
          %v609 = vadd.f32 %v603, 1.0
          %v610 = vadd.f32 %v605, 1.0
          %v611 = vadd.f32 %v607, 1.0
          %v612 = vrcp.pop %v608
          %v613 = vrcp.pop %v609
          %v614 = vrcp.pop %v610
          %v615 = vrcp.pop %v611
          %vm616 = vcmask 23552
          %617 = vst.msk [vmem:[#allocation4] sm:$0xff] %vm616, %v612
          %618 = vst.msk [vmem:[#allocation4 + $0x8] sm:$0xff] %vm616, %v613
          %619 = vst.msk [vmem:[#allocation4 + $0x10] sm:$0xff] %vm616, %v614
          %620 = vst.msk [vmem:[#allocation4 + $0x18] sm:$0xff] %vm616, %v615
          %vm621 = vcmask 64512
          %622 = vst.msk [vmem:[#allocation2] sm:$0xff] %vm621, 0.0
          %623 = vst.msk [vmem:[#allocation2 + $0x8] sm:$0xff] %vm621, 0.0
          %624 = vst.msk [vmem:[#allocation2 + $0x10] sm:$0xff] %vm621, 0.0
          %625 = vst.msk [vmem:[#allocation2 + $0x18] sm:$0xff] %vm621, 0.0
          %vm626 = vcmask 7168
          %627 = vst.msk [vmem:[#allocation3] sm:$0xff] %vm626, 0.0
          %628 = vst.msk [vmem:[#allocation3 + $0x8] sm:$0xff] %vm626, 0.0
          %629 = vst.msk [vmem:[#allocation3 + $0x10] sm:$0xff] %vm626, 0.0
          %630 = vst.msk [vmem:[#allocation3 + $0x18] sm:$0xff] %vm626, 0.0
        $region60: #{tpu_custom_call.1} parent=55 // pred_fallthru
          _
        %v631 = vld [vmem:[#allocation4] sm:$0xff]
        %v632 = vld [vmem:[#allocation4 + $0x8] sm:$0xff]
        %v633 = vld [vmem:[#allocation4 + $0x10] sm:$0xff]
        %v634 = vld [vmem:[#allocation4 + $0x18] sm:$0xff]
        %v635 = vld [vmem:[%s520] sm:$0xff]
        %v636 = vld [vmem:[%s520 + $0x8] sm:$0xff]
        %v637 = vld [vmem:[%s520 + $0x10] sm:$0xff]
        %v638 = vld [vmem:[%s520 + $0x18] sm:$0xff]
        %v639 = vld [vmem:[%s520 + $0x20] sm:$0xff]
        %v640 = vld [vmem:[%s520 + $0x28] sm:$0xff]
        %v641 = vld [vmem:[%s520 + $0x30] sm:$0xff]
        %v642 = vld [vmem:[%s520 + $0x38] sm:$0xff]
        %v643 = vld [vmem:[%s520 + $0x40] sm:$0xff]
        %v644 = vld [vmem:[%s520 + $0x48] sm:$0xff]
        %v645 = vld [vmem:[%s520 + $0x50] sm:$0xff]
        %v646 = vld [vmem:[%s520 + $0x58] sm:$0xff]
        %v647 = vld [vmem:[%s520 + $0x60] sm:$0xff]
        %v648 = vld [vmem:[%s520 + $0x68] sm:$0xff]
        %v649 = vld [vmem:[%s520 + $0x70] sm:$0xff]
        %v650 = vld [vmem:[%s520 + $0x78] sm:$0xff]
        %v651 = vld [vmem:[%s520 + $0x80] sm:$0xff]
        %v652 = vld [vmem:[%s520 + $0x88] sm:$0xff]
        %v653 = vld [vmem:[%s520 + $0x90] sm:$0xff]
        %v654 = vld [vmem:[%s520 + $0x98] sm:$0xff]
        %v655 = vld [vmem:[%s520 + $0xa0] sm:$0xff]
        %v656 = vld [vmem:[%s520 + $0xa8] sm:$0xff]
        %v657 = vld [vmem:[%s520 + $0xb0] sm:$0xff]
        %v658 = vld [vmem:[%s520 + $0xb8] sm:$0xff]
        %v659 = vld [vmem:[%s520 + $0xc0] sm:$0xff]
        %v660 = vld [vmem:[%s520 + $0xc8] sm:$0xff]
        %v661 = vld [vmem:[%s520 + $0xd0] sm:$0xff]
        %v662 = vld [vmem:[%s520 + $0xd8] sm:$0xff]
        %v663 = vld [vmem:[%s520 + $0xe0] sm:$0xff]
        %v664 = vld [vmem:[%s520 + $0xe8] sm:$0xff]
        %v665 = vld [vmem:[%s520 + $0xf0] sm:$0xff]
        %v666 = vld [vmem:[%s520 + $0xf8] sm:$0xff]
        %v667 = vld [vmem:[%s513] sm:$0xf]
        %669 = vset.pattern.permute.xlu0 0
        %670 = vperm.xlu0 %669, %v631
        %v671 = vpop.permute.xlu0 %670
        %674 = vset.pattern.permute.xlu0 0
        %675 = vperm.xlu0 %674, %v632
        %v676 = vpop.permute.xlu0 %675
        %679 = vset.pattern.permute.xlu0 0
        %680 = vperm.xlu0 %679, %v633
        %v681 = vpop.permute.xlu0 %680
        %684 = vset.pattern.permute.xlu0 0
        %685 = vperm.xlu0 %684, %v634
        %v686 = vpop.permute.xlu0 %685
        %v688 = vperm.slane %v667, 0
        %v689 = vmul.f32 %v671, %v688
        %v690 = vmul.f32 %v676, %v688
        %v691 = vmul.f32 %v681, %v688
        %v692 = vmul.f32 %v686, %v688
        %693 = vset.pattern.permute.xlu0 1
        %694 = vperm.xlu0 %693, %v631
        %v695 = vpop.permute.xlu0 %694
        %697 = vset.pattern.permute.xlu0 1
        %698 = vperm.xlu0 %697, %v632
        %v699 = vpop.permute.xlu0 %698
        %701 = vset.pattern.permute.xlu0 1
        %702 = vperm.xlu0 %701, %v633
        %v703 = vpop.permute.xlu0 %702
        %705 = vset.pattern.permute.xlu0 1
        %706 = vperm.xlu0 %705, %v634
        %v707 = vpop.permute.xlu0 %706
        %v709 = vperm.slane %v667, 1
        %v710 = vmul.f32 %v695, %v709
        %v711 = vmul.f32 %v699, %v709
        %v712 = vmul.f32 %v703, %v709
        %v713 = vmul.f32 %v707, %v709
        %v714 = vadd.f32 %v689, %v710
        %v715 = vadd.f32 %v690, %v711
        %v716 = vadd.f32 %v691, %v712
        %v717 = vadd.f32 %v692, %v713
        %718 = vset.pattern.permute.xlu0 2
        %719 = vperm.xlu0 %718, %v631
        %v720 = vpop.permute.xlu0 %719
        %722 = vset.pattern.permute.xlu0 2
        %723 = vperm.xlu0 %722, %v632
        %v724 = vpop.permute.xlu0 %723
        %726 = vset.pattern.permute.xlu0 2
        %727 = vperm.xlu0 %726, %v633
        %v728 = vpop.permute.xlu0 %727
        %730 = vset.pattern.permute.xlu0 2
        %731 = vperm.xlu0 %730, %v634
        %v732 = vpop.permute.xlu0 %731
        %v734 = vperm.slane %v667, 2
        %v735 = vmul.f32 %v720, %v734
        %v736 = vmul.f32 %v724, %v734
        %v737 = vmul.f32 %v728, %v734
        %v738 = vmul.f32 %v732, %v734
        %v739 = vadd.f32 %v714, %v735
        %v740 = vadd.f32 %v715, %v736
        %v741 = vadd.f32 %v716, %v737
        %v742 = vadd.f32 %v717, %v738
        %v743 = vperm.slane %v667, 3
        %v744 = vadd.f32 %v739, %v743
        %v745 = vadd.f32 %v740, %v743
        %v746 = vadd.f32 %v741, %v743
        %v747 = vadd.f32 %v742, %v743
        %v748 = vmax.f32 %v744, 0.05
        %v749 = vmax.f32 %v745, 0.05
        %v750 = vmax.f32 %v746, 0.05
        %v751 = vmax.f32 %v747, 0.05
        %v752 = vrcp.pop %v748
        %v753 = vrcp.pop %v749
        %v754 = vrcp.pop %v750
        %v755 = vrcp.pop %v751
        %760 = vrot.lane.b32.xlu0 %v752, 126
        %v761 = vpop.permute.xlu0 %760
        %762 = vrot.lane.b32.xlu0 %v753, 126
        %v763 = vpop.permute.xlu0 %762
        %764 = vrot.lane.b32.xlu0 %v754, 126
        %v765 = vpop.permute.xlu0 %764
        %766 = vrot.lane.b32.xlu0 %v755, 126
        %v767 = vpop.permute.xlu0 %766
        %v772 = vmul.f32 %v744, %v761
        %v773 = vmul.f32 %v745, %v763
        %v774 = vmul.f32 %v746, %v765
        %v775 = vmul.f32 %v747, %v767
        %776 = vrot.lane.b32.xlu0 %v752, 127
        %v777 = vpop.permute.xlu0 %776
        %778 = vrot.lane.b32.xlu0 %v753, 127
        %v779 = vpop.permute.xlu0 %778
        %780 = vrot.lane.b32.xlu0 %v754, 127
        %v781 = vpop.permute.xlu0 %780
        %782 = vrot.lane.b32.xlu0 %v755, 127
        %v783 = vpop.permute.xlu0 %782
        %v788 = vmul.f32 %v744, %v777
        %v789 = vmul.f32 %v745, %v779
        %v790 = vmul.f32 %v746, %v781
        %v791 = vmul.f32 %v747, %v783
        %vm792 = vcmp.ge.f32.partialorder %v772, 0.0
        %vm793 = vcmp.ge.f32.partialorder %v773, 0.0
        %vm794 = vcmp.ge.f32.partialorder %v774, 0.0
        %vm795 = vcmp.ge.f32.partialorder %v775, 0.0
        %vm796 = vcmp.lt.f32.partialorder %v772, 16.0
        %vm797 = vcmp.lt.f32.partialorder %v773, 16.0
        %vm798 = vcmp.lt.f32.partialorder %v774, 16.0
        %vm799 = vcmp.lt.f32.partialorder %v775, 16.0
        %vm800 = vmand %vm792, %vm796
        %vm801 = vmand %vm793, %vm797
        %vm802 = vmand %vm794, %vm798
        %vm803 = vmand %vm795, %vm799
        %vm804 = vcmp.ge.f32.partialorder %v788, 0.0
        %vm805 = vcmp.ge.f32.partialorder %v789, 0.0
        %vm806 = vcmp.ge.f32.partialorder %v790, 0.0
        %vm807 = vcmp.ge.f32.partialorder %v791, 0.0
        %v808 = vsel %vm804, 1, 0
        %v809 = vsel %vm805, 1, 0
        %v810 = vsel %vm806, 1, 0
        %v811 = vsel %vm807, 1, 0
        %812 = vrot.lane.b32.xlu0 %v808, 127
        %v813 = vpop.permute.xlu0 %812
        %814 = vrot.lane.b32.xlu0 %v809, 127
        %v815 = vpop.permute.xlu0 %814
        %816 = vrot.lane.b32.xlu0 %v810, 127
        %v817 = vpop.permute.xlu0 %816
        %818 = vrot.lane.b32.xlu0 %v811, 127
        %v819 = vpop.permute.xlu0 %818
        %vm820 = vcmp.ne.s32.totalorder %v813, 0
        %vm821 = vcmp.ne.s32.totalorder %v815, 0
        %vm822 = vcmp.ne.s32.totalorder %v817, 0
        %vm823 = vcmp.ne.s32.totalorder %v819, 0
        %vm824 = vmand %vm800, %vm820
        %vm825 = vmand %vm801, %vm821
        %vm826 = vmand %vm802, %vm822
        %vm827 = vmand %vm803, %vm823
        %vm828 = vcmp.lt.f32.partialorder %v788, 16.0
        %vm829 = vcmp.lt.f32.partialorder %v789, 16.0
        %vm830 = vcmp.lt.f32.partialorder %v790, 16.0
        %vm831 = vcmp.lt.f32.partialorder %v791, 16.0
        %v832 = vsel %vm828, 1, 0
        %v833 = vsel %vm829, 1, 0
        %v834 = vsel %vm830, 1, 0
        %v835 = vsel %vm831, 1, 0
        %836 = vrot.lane.b32.xlu0 %v832, 127
        %v837 = vpop.permute.xlu0 %836
        %838 = vrot.lane.b32.xlu0 %v833, 127
        %v839 = vpop.permute.xlu0 %838
        %840 = vrot.lane.b32.xlu0 %v834, 127
        %v841 = vpop.permute.xlu0 %840
        %842 = vrot.lane.b32.xlu0 %v835, 127
        %v843 = vpop.permute.xlu0 %842
        %vm844 = vcmp.ne.s32.totalorder %v837, 0
        %vm845 = vcmp.ne.s32.totalorder %v839, 0
        %vm846 = vcmp.ne.s32.totalorder %v841, 0
        %vm847 = vcmp.ne.s32.totalorder %v843, 0
        %vm848 = vmand %vm824, %vm844
        %vm849 = vmand %vm825, %vm845
        %vm850 = vmand %vm826, %vm846
        %vm851 = vmand %vm827, %vm847
        %v852 = vsel %vm848, 1, 0
        %v853 = vsel %vm849, 1, 0
        %v854 = vsel %vm850, 1, 0
        %v855 = vsel %vm851, 1, 0
        %v856 = vcvt.s32.f32 %v852
        %v857 = vcvt.s32.f32 %v853
        %v858 = vcvt.s32.f32 %v854
        %v859 = vcvt.s32.f32 %v855
        %v860 = vfloor.f32 %v772
        %v861 = vfloor.f32 %v773
        %v862 = vfloor.f32 %v774
        %v863 = vfloor.f32 %v775
        %v864 = vfloor.f32 %v788
        %v865 = vfloor.f32 %v789
        %v866 = vfloor.f32 %v790
        %v867 = vfloor.f32 %v791
        %v868 = vsub.f32 %v772, %v860
        %v869 = vsub.f32 %v773, %v861
        %v870 = vsub.f32 %v774, %v862
        %v871 = vsub.f32 %v775, %v863
        %v872 = vsub.f32 %v788, %v864
        %v873 = vsub.f32 %v789, %v865
        %v874 = vsub.f32 %v790, %v866
        %v875 = vsub.f32 %v791, %v867
        %v876 = vcvt.f32.s32.to.zero.pseudo %v860
        %v877 = vcvt.f32.s32.to.zero.pseudo %v861
        %v878 = vcvt.f32.s32.to.zero.pseudo %v862
        %v879 = vcvt.f32.s32.to.zero.pseudo %v863
        %v880 = vcvt.f32.s32.to.zero.pseudo %v864
        %v881 = vcvt.f32.s32.to.zero.pseudo %v865
        %v882 = vcvt.f32.s32.to.zero.pseudo %v866
        %v883 = vcvt.f32.s32.to.zero.pseudo %v867
        %v884 = vmul.u32 %v880, 16
        %v885 = vmul.u32 %v881, 16
        %v886 = vmul.u32 %v882, 16
        %v887 = vmul.u32 %v883, 16
        %888 = vrot.lane.b32.xlu0 %v876, 1
        %v889 = vpop.permute.xlu0 %888
        %890 = vrot.lane.b32.xlu0 %v877, 1
        %v891 = vpop.permute.xlu0 %890
        %892 = vrot.lane.b32.xlu0 %v878, 1
        %v893 = vpop.permute.xlu0 %892
        %894 = vrot.lane.b32.xlu0 %v879, 1
        %v895 = vpop.permute.xlu0 %894
        %v896 = vadd.s32 %v884, %v889
        %v897 = vadd.s32 %v885, %v891
        %v898 = vadd.s32 %v886, %v893
        %v899 = vadd.s32 %v887, %v895
        %v900 = vsub.f32 1.0, %v868
        %v901 = vsub.f32 1.0, %v869
        %v902 = vsub.f32 1.0, %v870
        %v903 = vsub.f32 1.0, %v871
        %v904 = vsub.f32 1.0, %v872
        %v905 = vsub.f32 1.0, %v873
        %v906 = vsub.f32 1.0, %v874
        %v907 = vsub.f32 1.0, %v875
        %912 = vrot.lane.b32.xlu0 %v904, 127
        %v913 = vpop.permute.xlu0 %912
        %914 = vrot.lane.b32.xlu0 %v905, 127
        %v915 = vpop.permute.xlu0 %914
        %916 = vrot.lane.b32.xlu0 %v906, 127
        %v917 = vpop.permute.xlu0 %916
        %918 = vrot.lane.b32.xlu0 %v907, 127
        %v919 = vpop.permute.xlu0 %918
        %v924 = vmul.f32 %v900, %v913
        %v925 = vmul.f32 %v901, %v915
        %v926 = vmul.f32 %v902, %v917
        %v927 = vmul.f32 %v903, %v919
        %v928 = vmul.f32 %v868, %v913
        %v929 = vmul.f32 %v869, %v915
        %v930 = vmul.f32 %v870, %v917
        %v931 = vmul.f32 %v871, %v919
        %936 = vrot.lane.b32.xlu0 %v872, 127
        %v937 = vpop.permute.xlu0 %936
        %938 = vrot.lane.b32.xlu0 %v873, 127
        %v939 = vpop.permute.xlu0 %938
        %940 = vrot.lane.b32.xlu0 %v874, 127
        %v941 = vpop.permute.xlu0 %940
        %942 = vrot.lane.b32.xlu0 %v875, 127
        %v943 = vpop.permute.xlu0 %942
        %v948 = vmul.f32 %v900, %v937
        %v949 = vmul.f32 %v901, %v939
        %v950 = vmul.f32 %v902, %v941
        %v951 = vmul.f32 %v903, %v943
        %v952 = vmul.f32 %v868, %v937
        %v953 = vmul.f32 %v869, %v939
        %v954 = vmul.f32 %v870, %v941
        %v955 = vmul.f32 %v871, %v943
        %v956 = vlaneseq
        %v957 = vand.u32 %v956, 127
        %v958 = vadd.s32 %v957, 128
        %vm959 = vcmp.ge.s32.totalorder %v876, 0
        %vm960 = vcmp.ge.s32.totalorder %v877, 0
        %vm961 = vcmp.ge.s32.totalorder %v878, 0
        %vm962 = vcmp.ge.s32.totalorder %v879, 0
        %vm963 = vcmp.lt.s32.totalorder %v876, 16
        %vm964 = vcmp.lt.s32.totalorder %v877, 16
        %vm965 = vcmp.lt.s32.totalorder %v878, 16
        %vm966 = vcmp.lt.s32.totalorder %v879, 16
        %vm967 = vmand %vm959, %vm963
        %vm968 = vmand %vm960, %vm964
        %vm969 = vmand %vm961, %vm965
        %vm970 = vmand %vm962, %vm966
        %vm971 = vcmp.ge.s32.totalorder %v880, 0
        %vm972 = vcmp.ge.s32.totalorder %v881, 0
        %vm973 = vcmp.ge.s32.totalorder %v882, 0
        %vm974 = vcmp.ge.s32.totalorder %v883, 0
        %v975 = vsel %vm971, 1, 0
        %v976 = vsel %vm972, 1, 0
        %v977 = vsel %vm973, 1, 0
        %v978 = vsel %vm974, 1, 0
        %979 = vrot.lane.b32.xlu0 %v975, 127
        %v980 = vpop.permute.xlu0 %979
        %981 = vrot.lane.b32.xlu0 %v976, 127
        %v982 = vpop.permute.xlu0 %981
        %983 = vrot.lane.b32.xlu0 %v977, 127
        %v984 = vpop.permute.xlu0 %983
        %985 = vrot.lane.b32.xlu0 %v978, 127
        %v986 = vpop.permute.xlu0 %985
        %vm987 = vcmp.ne.s32.totalorder %v980, 0
        %vm988 = vcmp.ne.s32.totalorder %v982, 0
        %vm989 = vcmp.ne.s32.totalorder %v984, 0
        %vm990 = vcmp.ne.s32.totalorder %v986, 0
        %vm991 = vmand %vm967, %vm987
        %vm992 = vmand %vm968, %vm988
        %vm993 = vmand %vm969, %vm989
        %vm994 = vmand %vm970, %vm990
        %vm995 = vcmp.lt.s32.totalorder %v880, 16
        %vm996 = vcmp.lt.s32.totalorder %v881, 16
        %vm997 = vcmp.lt.s32.totalorder %v882, 16
        %vm998 = vcmp.lt.s32.totalorder %v883, 16
        %v999 = vsel %vm995, 1, 0
        %v1000 = vsel %vm996, 1, 0
        %v1001 = vsel %vm997, 1, 0
        %v1002 = vsel %vm998, 1, 0
        %1003 = vrot.lane.b32.xlu0 %v999, 127
        %v1004 = vpop.permute.xlu0 %1003
        %1005 = vrot.lane.b32.xlu0 %v1000, 127
        %v1006 = vpop.permute.xlu0 %1005
        %1007 = vrot.lane.b32.xlu0 %v1001, 127
        %v1008 = vpop.permute.xlu0 %1007
        %1009 = vrot.lane.b32.xlu0 %v1002, 127
        %v1010 = vpop.permute.xlu0 %1009
        %vm1011 = vcmp.ne.s32.totalorder %v1004, 0
        %vm1012 = vcmp.ne.s32.totalorder %v1006, 0
        %vm1013 = vcmp.ne.s32.totalorder %v1008, 0
        %vm1014 = vcmp.ne.s32.totalorder %v1010, 0
        %vm1015 = vmand %vm991, %vm1011
        %vm1016 = vmand %vm992, %vm1012
        %vm1017 = vmand %vm993, %vm1013
        %vm1018 = vmand %vm994, %vm1014
        %1019 = vset.pattern.permute.xlu0 1
        %1020 = vperm.xlu0 %1019, %v896
        %v1021 = vpop.permute.xlu0 %1020
        %1022 = vset.pattern.permute.xlu0 1
        %1023 = vperm.xlu0 %1022, %v897
        %v1024 = vpop.permute.xlu0 %1023
        %1025 = vset.pattern.permute.xlu0 1
        %1026 = vperm.xlu0 %1025, %v898
        %v1027 = vpop.permute.xlu0 %1026
        %1028 = vset.pattern.permute.xlu0 1
        %1029 = vperm.xlu0 %1028, %v899
        %v1030 = vpop.permute.xlu0 %1029
        %vm1031 = vcmp.eq.s32.totalorder %v957, %v1021
        %vm1032 = vcmp.eq.s32.totalorder %v958, %v1021
        %vm1033 = vcmp.eq.s32.totalorder %v957, %v1024
        %vm1034 = vcmp.eq.s32.totalorder %v958, %v1024
        %vm1035 = vcmp.eq.s32.totalorder %v957, %v1027
        %vm1036 = vcmp.eq.s32.totalorder %v958, %v1027
        %vm1037 = vcmp.eq.s32.totalorder %v957, %v1030
        %vm1038 = vcmp.eq.s32.totalorder %v958, %v1030
        %v1039 = vsel %vm1015, 1, 0
        %v1040 = vsel %vm1016, 1, 0
        %v1041 = vsel %vm1017, 1, 0
        %v1042 = vsel %vm1018, 1, 0
        %1043 = vset.pattern.permute.xlu0 0
        %1044 = vperm.xlu0 %1043, %v1039
        %v1045 = vpop.permute.xlu0 %1044
        %1046 = vset.pattern.permute.xlu0 0
        %1047 = vperm.xlu0 %1046, %v1040
        %v1048 = vpop.permute.xlu0 %1047
        %1049 = vset.pattern.permute.xlu0 0
        %1050 = vperm.xlu0 %1049, %v1041
        %v1051 = vpop.permute.xlu0 %1050
        %1052 = vset.pattern.permute.xlu0 0
        %1053 = vperm.xlu0 %1052, %v1042
        %v1054 = vpop.permute.xlu0 %1053
        %vm1055 = vcmp.eq.s32.totalorder %v1045, 1
        %vm1056 = vcmp.eq.s32.totalorder %v1048, 1
        %vm1057 = vcmp.eq.s32.totalorder %v1051, 1
        %vm1058 = vcmp.eq.s32.totalorder %v1054, 1
        %vm1059 = vmand %vm1031, %vm1055
        %vm1060 = vmand %vm1032, %vm1055
        %vm1061 = vmand %vm1033, %vm1056
        %vm1062 = vmand %vm1034, %vm1056
        %vm1063 = vmand %vm1035, %vm1057
        %vm1064 = vmand %vm1036, %vm1057
        %vm1065 = vmand %vm1037, %vm1058
        %vm1066 = vmand %vm1038, %vm1058
        %1068 = vset.pattern.permute.xlu0 0
        %1069 = vperm.xlu0 %1068, %v924
        %v1070 = vpop.permute.xlu0 %1069
        %1073 = vset.pattern.permute.xlu0 0
        %1074 = vperm.xlu0 %1073, %v925
        %v1075 = vpop.permute.xlu0 %1074
        %1078 = vset.pattern.permute.xlu0 0
        %1079 = vperm.xlu0 %1078, %v926
        %v1080 = vpop.permute.xlu0 %1079
        %1083 = vset.pattern.permute.xlu0 0
        %1084 = vperm.xlu0 %1083, %v927
        %v1085 = vpop.permute.xlu0 %1084
        %v1087 = vsel %vm1059, %v1070, 0.0
        %v1088 = vsel %vm1060, %v1070, 0.0
        %v1089 = vsel %vm1061, %v1075, 0.0
        %v1090 = vsel %vm1062, %v1075, 0.0
        %v1091 = vsel %vm1063, %v1080, 0.0
        %v1092 = vsel %vm1064, %v1080, 0.0
        %v1093 = vsel %vm1065, %v1085, 0.0
        %v1094 = vsel %vm1066, %v1085, 0.0
        %v1095 = vadd.f32 %v1087, 0.0
        %v1096 = vadd.f32 %v1088, 0.0
        %v1097 = vadd.f32 %v1089, 0.0
        %v1098 = vadd.f32 %v1090, 0.0
        %v1099 = vadd.f32 %v1091, 0.0
        %v1100 = vadd.f32 %v1092, 0.0
        %v1101 = vadd.f32 %v1093, 0.0
        %v1102 = vadd.f32 %v1094, 0.0
        %v1103 = vadd.s32 %v876, 1
        %v1104 = vadd.s32 %v877, 1
        %v1105 = vadd.s32 %v878, 1
        %v1106 = vadd.s32 %v879, 1
        %vm1107 = vcmp.ge.s32.totalorder %v1103, 0
        %vm1108 = vcmp.ge.s32.totalorder %v1104, 0
        %vm1109 = vcmp.ge.s32.totalorder %v1105, 0
        %vm1110 = vcmp.ge.s32.totalorder %v1106, 0
        %vm1111 = vcmp.lt.s32.totalorder %v1103, 16
        %vm1112 = vcmp.lt.s32.totalorder %v1104, 16
        %vm1113 = vcmp.lt.s32.totalorder %v1105, 16
        %vm1114 = vcmp.lt.s32.totalorder %v1106, 16
        %vm1115 = vmand %vm1107, %vm1111
        %vm1116 = vmand %vm1108, %vm1112
        %vm1117 = vmand %vm1109, %vm1113
        %vm1118 = vmand %vm1110, %vm1114
        %vm1119 = vmand %vm1115, %vm987
        %vm1120 = vmand %vm1116, %vm988
        %vm1121 = vmand %vm1117, %vm989
        %vm1122 = vmand %vm1118, %vm990
        %vm1123 = vmand %vm1119, %vm1011
        %vm1124 = vmand %vm1120, %vm1012
        %vm1125 = vmand %vm1121, %vm1013
        %vm1126 = vmand %vm1122, %vm1014
        %v1127 = vadd.s32 %v896, 1
        %v1128 = vadd.s32 %v897, 1
        %v1129 = vadd.s32 %v898, 1
        %v1130 = vadd.s32 %v899, 1
        %1131 = vset.pattern.permute.xlu0 1
        %1132 = vperm.xlu0 %1131, %v1127
        %v1133 = vpop.permute.xlu0 %1132
        %1134 = vset.pattern.permute.xlu0 1
        %1135 = vperm.xlu0 %1134, %v1128
        %v1136 = vpop.permute.xlu0 %1135
        %1137 = vset.pattern.permute.xlu0 1
        %1138 = vperm.xlu0 %1137, %v1129
        %v1139 = vpop.permute.xlu0 %1138
        %1140 = vset.pattern.permute.xlu0 1
        %1141 = vperm.xlu0 %1140, %v1130
        %v1142 = vpop.permute.xlu0 %1141
        %vm1143 = vcmp.eq.s32.totalorder %v957, %v1133
        %vm1144 = vcmp.eq.s32.totalorder %v958, %v1133
        %vm1145 = vcmp.eq.s32.totalorder %v957, %v1136
        %vm1146 = vcmp.eq.s32.totalorder %v958, %v1136
        %vm1147 = vcmp.eq.s32.totalorder %v957, %v1139
        %vm1148 = vcmp.eq.s32.totalorder %v958, %v1139
        %vm1149 = vcmp.eq.s32.totalorder %v957, %v1142
        %vm1150 = vcmp.eq.s32.totalorder %v958, %v1142
        %v1151 = vsel %vm1123, 1, 0
        %v1152 = vsel %vm1124, 1, 0
        %v1153 = vsel %vm1125, 1, 0
        %v1154 = vsel %vm1126, 1, 0
        %1155 = vset.pattern.permute.xlu0 0
        %1156 = vperm.xlu0 %1155, %v1151
        %v1157 = vpop.permute.xlu0 %1156
        %1158 = vset.pattern.permute.xlu0 0
        %1159 = vperm.xlu0 %1158, %v1152
        %v1160 = vpop.permute.xlu0 %1159
        %1161 = vset.pattern.permute.xlu0 0
        %1162 = vperm.xlu0 %1161, %v1153
        %v1163 = vpop.permute.xlu0 %1162
        %1164 = vset.pattern.permute.xlu0 0
        %1165 = vperm.xlu0 %1164, %v1154
        %v1166 = vpop.permute.xlu0 %1165
        %vm1167 = vcmp.eq.s32.totalorder %v1157, 1
        %vm1168 = vcmp.eq.s32.totalorder %v1160, 1
        %vm1169 = vcmp.eq.s32.totalorder %v1163, 1
        %vm1170 = vcmp.eq.s32.totalorder %v1166, 1
        %vm1171 = vmand %vm1143, %vm1167
        %vm1172 = vmand %vm1144, %vm1167
        %vm1173 = vmand %vm1145, %vm1168
        %vm1174 = vmand %vm1146, %vm1168
        %vm1175 = vmand %vm1147, %vm1169
        %vm1176 = vmand %vm1148, %vm1169
        %vm1177 = vmand %vm1149, %vm1170
        %vm1178 = vmand %vm1150, %vm1170
        %1180 = vset.pattern.permute.xlu0 0
        %1181 = vperm.xlu0 %1180, %v928
        %v1182 = vpop.permute.xlu0 %1181
        %1185 = vset.pattern.permute.xlu0 0
        %1186 = vperm.xlu0 %1185, %v929
        %v1187 = vpop.permute.xlu0 %1186
        %1190 = vset.pattern.permute.xlu0 0
        %1191 = vperm.xlu0 %1190, %v930
        %v1192 = vpop.permute.xlu0 %1191
        %1195 = vset.pattern.permute.xlu0 0
        %1196 = vperm.xlu0 %1195, %v931
        %v1197 = vpop.permute.xlu0 %1196
        %v1199 = vsel %vm1171, %v1182, 0.0
        %v1200 = vsel %vm1172, %v1182, 0.0
        %v1201 = vsel %vm1173, %v1187, 0.0
        %v1202 = vsel %vm1174, %v1187, 0.0
        %v1203 = vsel %vm1175, %v1192, 0.0
        %v1204 = vsel %vm1176, %v1192, 0.0
        %v1205 = vsel %vm1177, %v1197, 0.0
        %v1206 = vsel %vm1178, %v1197, 0.0
        %v1207 = vadd.f32 %v1095, %v1199
        %v1208 = vadd.f32 %v1096, %v1200
        %v1209 = vadd.f32 %v1097, %v1201
        %v1210 = vadd.f32 %v1098, %v1202
        %v1211 = vadd.f32 %v1099, %v1203
        %v1212 = vadd.f32 %v1100, %v1204
        %v1213 = vadd.f32 %v1101, %v1205
        %v1214 = vadd.f32 %v1102, %v1206
        %v1215 = vadd.s32 %v880, 1
        %v1216 = vadd.s32 %v881, 1
        %v1217 = vadd.s32 %v882, 1
        %v1218 = vadd.s32 %v883, 1
        %vm1219 = vcmp.ge.s32.totalorder %v1215, 0
        %vm1220 = vcmp.ge.s32.totalorder %v1216, 0
        %vm1221 = vcmp.ge.s32.totalorder %v1217, 0
        %vm1222 = vcmp.ge.s32.totalorder %v1218, 0
        %v1223 = vsel %vm1219, 1, 0
        %v1224 = vsel %vm1220, 1, 0
        %v1225 = vsel %vm1221, 1, 0
        %v1226 = vsel %vm1222, 1, 0
        %1227 = vrot.lane.b32.xlu0 %v1223, 127
        %v1228 = vpop.permute.xlu0 %1227
        %1229 = vrot.lane.b32.xlu0 %v1224, 127
        %v1230 = vpop.permute.xlu0 %1229
        %1231 = vrot.lane.b32.xlu0 %v1225, 127
        %v1232 = vpop.permute.xlu0 %1231
        %1233 = vrot.lane.b32.xlu0 %v1226, 127
        %v1234 = vpop.permute.xlu0 %1233
        %vm1235 = vcmp.ne.s32.totalorder %v1228, 0
        %vm1236 = vcmp.ne.s32.totalorder %v1230, 0
        %vm1237 = vcmp.ne.s32.totalorder %v1232, 0
        %vm1238 = vcmp.ne.s32.totalorder %v1234, 0
        %vm1239 = vmand %vm967, %vm1235
        %vm1240 = vmand %vm968, %vm1236
        %vm1241 = vmand %vm969, %vm1237
        %vm1242 = vmand %vm970, %vm1238
        %vm1243 = vcmp.lt.s32.totalorder %v1215, 16
        %vm1244 = vcmp.lt.s32.totalorder %v1216, 16
        %vm1245 = vcmp.lt.s32.totalorder %v1217, 16
        %vm1246 = vcmp.lt.s32.totalorder %v1218, 16
        %v1247 = vsel %vm1243, 1, 0
        %v1248 = vsel %vm1244, 1, 0
        %v1249 = vsel %vm1245, 1, 0
        %v1250 = vsel %vm1246, 1, 0
        %1251 = vrot.lane.b32.xlu0 %v1247, 127
        %v1252 = vpop.permute.xlu0 %1251
        %1253 = vrot.lane.b32.xlu0 %v1248, 127
        %v1254 = vpop.permute.xlu0 %1253
        %1255 = vrot.lane.b32.xlu0 %v1249, 127
        %v1256 = vpop.permute.xlu0 %1255
        %1257 = vrot.lane.b32.xlu0 %v1250, 127
        %v1258 = vpop.permute.xlu0 %1257
        %vm1259 = vcmp.ne.s32.totalorder %v1252, 0
        %vm1260 = vcmp.ne.s32.totalorder %v1254, 0
        %vm1261 = vcmp.ne.s32.totalorder %v1256, 0
        %vm1262 = vcmp.ne.s32.totalorder %v1258, 0
        %vm1263 = vmand %vm1239, %vm1259
        %vm1264 = vmand %vm1240, %vm1260
        %vm1265 = vmand %vm1241, %vm1261
        %vm1266 = vmand %vm1242, %vm1262
        %v1267 = vadd.s32 %v896, 16
        %v1268 = vadd.s32 %v897, 16
        %v1269 = vadd.s32 %v898, 16
        %v1270 = vadd.s32 %v899, 16
        %1271 = vset.pattern.permute.xlu0 1
        %1272 = vperm.xlu0 %1271, %v1267
        %v1273 = vpop.permute.xlu0 %1272
        %1274 = vset.pattern.permute.xlu0 1
        %1275 = vperm.xlu0 %1274, %v1268
        %v1276 = vpop.permute.xlu0 %1275
        %1277 = vset.pattern.permute.xlu0 1
        %1278 = vperm.xlu0 %1277, %v1269
        %v1279 = vpop.permute.xlu0 %1278
        %1280 = vset.pattern.permute.xlu0 1
        %1281 = vperm.xlu0 %1280, %v1270
        %v1282 = vpop.permute.xlu0 %1281
        %vm1283 = vcmp.eq.s32.totalorder %v957, %v1273
        %vm1284 = vcmp.eq.s32.totalorder %v958, %v1273
        %vm1285 = vcmp.eq.s32.totalorder %v957, %v1276
        %vm1286 = vcmp.eq.s32.totalorder %v958, %v1276
        %vm1287 = vcmp.eq.s32.totalorder %v957, %v1279
        %vm1288 = vcmp.eq.s32.totalorder %v958, %v1279
        %vm1289 = vcmp.eq.s32.totalorder %v957, %v1282
        %vm1290 = vcmp.eq.s32.totalorder %v958, %v1282
        %v1291 = vsel %vm1263, 1, 0
        %v1292 = vsel %vm1264, 1, 0
        %v1293 = vsel %vm1265, 1, 0
        %v1294 = vsel %vm1266, 1, 0
        %1295 = vset.pattern.permute.xlu0 0
        %1296 = vperm.xlu0 %1295, %v1291
        %v1297 = vpop.permute.xlu0 %1296
        %1298 = vset.pattern.permute.xlu0 0
        %1299 = vperm.xlu0 %1298, %v1292
        %v1300 = vpop.permute.xlu0 %1299
        %1301 = vset.pattern.permute.xlu0 0
        %1302 = vperm.xlu0 %1301, %v1293
        %v1303 = vpop.permute.xlu0 %1302
        %1304 = vset.pattern.permute.xlu0 0
        %1305 = vperm.xlu0 %1304, %v1294
        %v1306 = vpop.permute.xlu0 %1305
        %vm1307 = vcmp.eq.s32.totalorder %v1297, 1
        %vm1308 = vcmp.eq.s32.totalorder %v1300, 1
        %vm1309 = vcmp.eq.s32.totalorder %v1303, 1
        %vm1310 = vcmp.eq.s32.totalorder %v1306, 1
        %vm1311 = vmand %vm1283, %vm1307
        %vm1312 = vmand %vm1284, %vm1307
        %vm1313 = vmand %vm1285, %vm1308
        %vm1314 = vmand %vm1286, %vm1308
        %vm1315 = vmand %vm1287, %vm1309
        %vm1316 = vmand %vm1288, %vm1309
        %vm1317 = vmand %vm1289, %vm1310
        %vm1318 = vmand %vm1290, %vm1310
        %1320 = vset.pattern.permute.xlu0 0
        %1321 = vperm.xlu0 %1320, %v948
        %v1322 = vpop.permute.xlu0 %1321
        %1325 = vset.pattern.permute.xlu0 0
        %1326 = vperm.xlu0 %1325, %v949
        %v1327 = vpop.permute.xlu0 %1326
        %1330 = vset.pattern.permute.xlu0 0
        %1331 = vperm.xlu0 %1330, %v950
        %v1332 = vpop.permute.xlu0 %1331
        %1335 = vset.pattern.permute.xlu0 0
        %1336 = vperm.xlu0 %1335, %v951
        %v1337 = vpop.permute.xlu0 %1336
        %v1339 = vsel %vm1311, %v1322, 0.0
        %v1340 = vsel %vm1312, %v1322, 0.0
        %v1341 = vsel %vm1313, %v1327, 0.0
        %v1342 = vsel %vm1314, %v1327, 0.0
        %v1343 = vsel %vm1315, %v1332, 0.0
        %v1344 = vsel %vm1316, %v1332, 0.0
        %v1345 = vsel %vm1317, %v1337, 0.0
        %v1346 = vsel %vm1318, %v1337, 0.0
        %v1347 = vadd.f32 %v1207, %v1339
        %v1348 = vadd.f32 %v1208, %v1340
        %v1349 = vadd.f32 %v1209, %v1341
        %v1350 = vadd.f32 %v1210, %v1342
        %v1351 = vadd.f32 %v1211, %v1343
        %v1352 = vadd.f32 %v1212, %v1344
        %v1353 = vadd.f32 %v1213, %v1345
        %v1354 = vadd.f32 %v1214, %v1346
        %vm1355 = vmand %vm1115, %vm1235
        %vm1356 = vmand %vm1116, %vm1236
        %vm1357 = vmand %vm1117, %vm1237
        %vm1358 = vmand %vm1118, %vm1238
        %vm1359 = vmand %vm1355, %vm1259
        %vm1360 = vmand %vm1356, %vm1260
        %vm1361 = vmand %vm1357, %vm1261
        %vm1362 = vmand %vm1358, %vm1262
        %v1363 = vadd.s32 %v896, 17
        %v1364 = vadd.s32 %v897, 17
        %v1365 = vadd.s32 %v898, 17
        %v1366 = vadd.s32 %v899, 17
        %1367 = vset.pattern.permute.xlu0 1
        %1368 = vperm.xlu0 %1367, %v1363
        %v1369 = vpop.permute.xlu0 %1368
        %1370 = vset.pattern.permute.xlu0 1
        %1371 = vperm.xlu0 %1370, %v1364
        %v1372 = vpop.permute.xlu0 %1371
        %1373 = vset.pattern.permute.xlu0 1
        %1374 = vperm.xlu0 %1373, %v1365
        %v1375 = vpop.permute.xlu0 %1374
        %1376 = vset.pattern.permute.xlu0 1
        %1377 = vperm.xlu0 %1376, %v1366
        %v1378 = vpop.permute.xlu0 %1377
        %vm1379 = vcmp.eq.s32.totalorder %v957, %v1369
        %vm1380 = vcmp.eq.s32.totalorder %v958, %v1369
        %vm1381 = vcmp.eq.s32.totalorder %v957, %v1372
        %vm1382 = vcmp.eq.s32.totalorder %v958, %v1372
        %vm1383 = vcmp.eq.s32.totalorder %v957, %v1375
        %vm1384 = vcmp.eq.s32.totalorder %v958, %v1375
        %vm1385 = vcmp.eq.s32.totalorder %v957, %v1378
        %vm1386 = vcmp.eq.s32.totalorder %v958, %v1378
        %v1387 = vsel %vm1359, 1, 0
        %v1388 = vsel %vm1360, 1, 0
        %v1389 = vsel %vm1361, 1, 0
        %v1390 = vsel %vm1362, 1, 0
        %1391 = vset.pattern.permute.xlu0 0
        %1392 = vperm.xlu0 %1391, %v1387
        %v1393 = vpop.permute.xlu0 %1392
        %1394 = vset.pattern.permute.xlu0 0
        %1395 = vperm.xlu0 %1394, %v1388
        %v1396 = vpop.permute.xlu0 %1395
        %1397 = vset.pattern.permute.xlu0 0
        %1398 = vperm.xlu0 %1397, %v1389
        %v1399 = vpop.permute.xlu0 %1398
        %1400 = vset.pattern.permute.xlu0 0
        %1401 = vperm.xlu0 %1400, %v1390
        %v1402 = vpop.permute.xlu0 %1401
        %vm1403 = vcmp.eq.s32.totalorder %v1393, 1
        %vm1404 = vcmp.eq.s32.totalorder %v1396, 1
        %vm1405 = vcmp.eq.s32.totalorder %v1399, 1
        %vm1406 = vcmp.eq.s32.totalorder %v1402, 1
        %vm1407 = vmand %vm1379, %vm1403
        %vm1408 = vmand %vm1380, %vm1403
        %vm1409 = vmand %vm1381, %vm1404
        %vm1410 = vmand %vm1382, %vm1404
        %vm1411 = vmand %vm1383, %vm1405
        %vm1412 = vmand %vm1384, %vm1405
        %vm1413 = vmand %vm1385, %vm1406
        %vm1414 = vmand %vm1386, %vm1406
        %1416 = vset.pattern.permute.xlu0 0
        %1417 = vperm.xlu0 %1416, %v952
        %v1418 = vpop.permute.xlu0 %1417
        %1421 = vset.pattern.permute.xlu0 0
        %1422 = vperm.xlu0 %1421, %v953
        %v1423 = vpop.permute.xlu0 %1422
        %1426 = vset.pattern.permute.xlu0 0
        %1427 = vperm.xlu0 %1426, %v954
        %v1428 = vpop.permute.xlu0 %1427
        %1431 = vset.pattern.permute.xlu0 0
        %1432 = vperm.xlu0 %1431, %v955
        %v1433 = vpop.permute.xlu0 %1432
        %v1435 = vsel %vm1407, %v1418, 0.0
        %v1436 = vsel %vm1408, %v1418, 0.0
        %v1437 = vsel %vm1409, %v1423, 0.0
        %v1438 = vsel %vm1410, %v1423, 0.0
        %v1439 = vsel %vm1411, %v1428, 0.0
        %v1440 = vsel %vm1412, %v1428, 0.0
        %v1441 = vsel %vm1413, %v1433, 0.0
        %v1442 = vsel %vm1414, %v1433, 0.0
        %v1443 = vadd.f32 %v1347, %v1435
        %v1444 = vadd.f32 %v1348, %v1436
        %v1445 = vadd.f32 %v1349, %v1437
        %v1446 = vadd.f32 %v1350, %v1438
        %v1447 = vadd.f32 %v1351, %v1439
        %v1448 = vadd.f32 %v1352, %v1440
        %v1449 = vadd.f32 %v1353, %v1441
        %v1450 = vadd.f32 %v1354, %v1442
        %1452 = vset.pattern.permute.xlu0 0
        %1453 = vperm.xlu0 %1452, %v856
        %v1454 = vpop.permute.xlu0 %1453
        %1457 = vset.pattern.permute.xlu0 0
        %1458 = vperm.xlu0 %1457, %v857
        %v1459 = vpop.permute.xlu0 %1458
        %1462 = vset.pattern.permute.xlu0 0
        %1463 = vperm.xlu0 %1462, %v858
        %v1464 = vpop.permute.xlu0 %1463
        %1467 = vset.pattern.permute.xlu0 0
        %1468 = vperm.xlu0 %1467, %v859
        %v1469 = vpop.permute.xlu0 %1468
        %v1471 = vmul.f32 %v1443, %v1454
        %v1472 = vmul.f32 %v1444, %v1454
        %v1473 = vmul.f32 %v1445, %v1459
        %v1474 = vmul.f32 %v1446, %v1459
        %v1475 = vmul.f32 %v1447, %v1464
        %v1476 = vmul.f32 %v1448, %v1464
        %v1477 = vmul.f32 %v1449, %v1469
        %v1478 = vmul.f32 %v1450, %v1469
        %v1479 = vpack.c.bf16 %v1473, %v1471
        %v1480 = vpack.c.bf16 %v1474, %v1472
        %v1481 = vpack.c.bf16 %v1477, %v1475
        %v1482 = vpack.c.bf16 %v1478, %v1476
        %v1483 = vpack.c.bf16 %v636, %v635
        %v1484 = vpack.c.bf16 %v638, %v637
        %v1485 = vpack.c.bf16 %v640, %v639
        %v1486 = vpack.c.bf16 %v642, %v641
        %v1487 = vpack.c.bf16 %v644, %v643
        %v1488 = vpack.c.bf16 %v646, %v645
        %v1489 = vpack.c.bf16 %v648, %v647
        %v1490 = vpack.c.bf16 %v650, %v649
        %v1491 = vpack.c.bf16 %v652, %v651
        %v1492 = vpack.c.bf16 %v654, %v653
        %v1493 = vpack.c.bf16 %v656, %v655
        %v1494 = vpack.c.bf16 %v658, %v657
        %v1495 = vpack.c.bf16 %v660, %v659
        %v1496 = vpack.c.bf16 %v662, %v661
        %v1497 = vpack.c.bf16 %v664, %v663
        %v1498 = vpack.c.bf16 %v666, %v665
        %1499 = vmatpush.bf16.msra.mxu0 %v1490
        %1500 = vmatpush.bf16.msra.mxu0 %v1489
        %1501 = vmatpush.bf16.msra.mxu0 %v1488
        %1502 = vmatpush.bf16.msra.mxu0 %v1487
        %1503 = vmatpush.bf16.msra.mxu0 %v1486
        %1504 = vmatpush.bf16.msra.mxu0 %v1485
        %1505 = vmatpush.bf16.msra.mxu0 %v1484
        %1506 = vmatpush.bf16.msra.mxu0 %v1483
        %1507 = vmatmul.bf16.gmra.mxu0 %v1479
        %v1508 = vpop.f32.mrf.mxu0
        %v1509 = vadd.f32 0.0, %v1508
        %v1510 = vpop.f32.mrf.mxu0
        %v1511 = vadd.f32 0.0, %v1510
        %1512 = vmatmul.bf16.gmra.mxu0 %v1481
        %v1513 = vpop.f32.mrf.mxu0
        %v1514 = vadd.f32 0.0, %v1513
        %v1515 = vpop.f32.mrf.mxu0
        %v1516 = vadd.f32 0.0, %v1515
        %1517 = vdwg.mxu0
        %1518 = vmatpush.bf16.msra.mxu0 %v1498
        %1519 = vmatpush.bf16.msra.mxu0 %v1497
        %1520 = vmatpush.bf16.msra.mxu0 %v1496
        %1521 = vmatpush.bf16.msra.mxu0 %v1495
        %1522 = vmatpush.bf16.msra.mxu0 %v1494
        %1523 = vmatpush.bf16.msra.mxu0 %v1493
        %1524 = vmatpush.bf16.msra.mxu0 %v1492
        %1525 = vmatpush.bf16.msra.mxu0 %v1491
        %1526 = vmatmul.bf16.gmra.mxu0 %v1480
        %v1527 = vpop.f32.mrf.mxu0
        %v1528 = vadd.f32 %v1509, %v1527
        %v1529 = vpop.f32.mrf.mxu0
        %v1530 = vadd.f32 %v1511, %v1529
        %1531 = vmatmul.bf16.gmra.mxu0 %v1482
        %v1532 = vpop.f32.mrf.mxu0
        %v1533 = vadd.f32 %v1514, %v1532
        %v1534 = vpop.f32.mrf.mxu0
        %v1535 = vadd.f32 %v1516, %v1534
        %1536 = vdwg.mxu0
        %v1537 = vld [vmem:[#allocation2] sm:$0xff]
        %v1538 = vld [vmem:[#allocation2 + $0x8] sm:$0xff]
        %v1539 = vld [vmem:[#allocation2 + $0x10] sm:$0xff]
        %v1540 = vld [vmem:[#allocation2 + $0x18] sm:$0xff]
        %v1541 = vadd.f32 %v1537, %v1528
        %v1542 = vadd.f32 %v1538, %v1530
        %v1543 = vadd.f32 %v1539, %v1533
        %v1544 = vadd.f32 %v1540, %v1535
        %vm1545 = vcmask 64512
        %1546 = vst.msk [vmem:[#allocation2] sm:$0xff] %vm1545, %v1541
        %1547 = vst.msk [vmem:[#allocation2 + $0x8] sm:$0xff] %vm1545, %v1542
        %1548 = vst.msk [vmem:[#allocation2 + $0x10] sm:$0xff] %vm1545, %v1543
        %1549 = vst.msk [vmem:[#allocation2 + $0x18] sm:$0xff] %vm1545, %v1544
        %v1550 = vld [vmem:[#allocation3] sm:$0xff]
        %v1551 = vld [vmem:[#allocation3 + $0x8] sm:$0xff]
        %v1552 = vld [vmem:[#allocation3 + $0x10] sm:$0xff]
        %v1553 = vld [vmem:[#allocation3 + $0x18] sm:$0xff]
        %v1554 = vadd.f32 %v1550, %v856
        %v1555 = vadd.f32 %v1551, %v857
        %v1556 = vadd.f32 %v1552, %v858
        %v1557 = vadd.f32 %v1553, %v859
        %vm1558 = vcmask 7168
        %1559 = vst.msk [vmem:[#allocation3] sm:$0xff] %vm1558, %v1554
        %1560 = vst.msk [vmem:[#allocation3 + $0x8] sm:$0xff] %vm1558, %v1555
        %1561 = vst.msk [vmem:[#allocation3 + $0x10] sm:$0xff] %vm1558, %v1556
        %1562 = vst.msk [vmem:[#allocation3 + $0x18] sm:$0xff] %vm1558, %v1557
        %v1563 = vld [vmem:[%s529] sm:$0xff]
        %v1564 = vld [vmem:[%s529 + $0x8] sm:$0xff]
        %v1565 = vld [vmem:[%s529 + $0x10] sm:$0xff]
        %v1566 = vld [vmem:[%s529 + $0x18] sm:$0xff]
        %v1567 = vld [vmem:[%s529 + $0x20] sm:$0xff]
        %v1568 = vld [vmem:[%s529 + $0x28] sm:$0xff]
        %v1569 = vld [vmem:[%s529 + $0x30] sm:$0xff]
        %v1570 = vld [vmem:[%s529 + $0x38] sm:$0xff]
        %s1571 = scalar_lea.vmem %s513, 4
        %v1572 = vld [vmem:[%s1571] sm:$0xf]
        %v1573 = vperm.slane %v1572, 0
        %v1574 = vmul.f32 %v671, %v1573
        %v1575 = vmul.f32 %v676, %v1573
        %v1576 = vmul.f32 %v681, %v1573
        %v1577 = vmul.f32 %v686, %v1573
        %v1578 = vperm.slane %v1572, 1
        %v1579 = vmul.f32 %v695, %v1578
        %v1580 = vmul.f32 %v699, %v1578
        %v1581 = vmul.f32 %v703, %v1578
        %v1582 = vmul.f32 %v707, %v1578
        %v1583 = vadd.f32 %v1574, %v1579
        %v1584 = vadd.f32 %v1575, %v1580
        %v1585 = vadd.f32 %v1576, %v1581
        %v1586 = vadd.f32 %v1577, %v1582
        %v1587 = vperm.slane %v1572, 2
        %v1588 = vmul.f32 %v720, %v1587
        %v1589 = vmul.f32 %v724, %v1587
        %v1590 = vmul.f32 %v728, %v1587
        %v1591 = vmul.f32 %v732, %v1587
        %v1592 = vadd.f32 %v1583, %v1588
        %v1593 = vadd.f32 %v1584, %v1589
        %v1594 = vadd.f32 %v1585, %v1590
        %v1595 = vadd.f32 %v1586, %v1591
        %v1596 = vperm.slane %v1572, 3
        %v1597 = vadd.f32 %v1592, %v1596
        %v1598 = vadd.f32 %v1593, %v1596
        %v1599 = vadd.f32 %v1594, %v1596
        %v1600 = vadd.f32 %v1595, %v1596
        %v1601 = vmax.f32 %v1597, 0.05
        %v1602 = vmax.f32 %v1598, 0.05
        %v1603 = vmax.f32 %v1599, 0.05
        %v1604 = vmax.f32 %v1600, 0.05
        %v1605 = vrcp.pop %v1601
        %v1606 = vrcp.pop %v1602
        %v1607 = vrcp.pop %v1603
        %v1608 = vrcp.pop %v1604
        %1613 = vrot.lane.b32.xlu0 %v1605, 126
        %v1614 = vpop.permute.xlu0 %1613
        %1615 = vrot.lane.b32.xlu0 %v1606, 126
        %v1616 = vpop.permute.xlu0 %1615
        %1617 = vrot.lane.b32.xlu0 %v1607, 126
        %v1618 = vpop.permute.xlu0 %1617
        %1619 = vrot.lane.b32.xlu0 %v1608, 126
        %v1620 = vpop.permute.xlu0 %1619
        %v1625 = vmul.f32 %v1597, %v1614
        %v1626 = vmul.f32 %v1598, %v1616
        %v1627 = vmul.f32 %v1599, %v1618
        %v1628 = vmul.f32 %v1600, %v1620
        %1629 = vrot.lane.b32.xlu0 %v1605, 127
        %v1630 = vpop.permute.xlu0 %1629
        %1631 = vrot.lane.b32.xlu0 %v1606, 127
        %v1632 = vpop.permute.xlu0 %1631
        %1633 = vrot.lane.b32.xlu0 %v1607, 127
        %v1634 = vpop.permute.xlu0 %1633
        %1635 = vrot.lane.b32.xlu0 %v1608, 127
        %v1636 = vpop.permute.xlu0 %1635
        %v1641 = vmul.f32 %v1597, %v1630
        %v1642 = vmul.f32 %v1598, %v1632
        %v1643 = vmul.f32 %v1599, %v1634
        %v1644 = vmul.f32 %v1600, %v1636
        %vm1645 = vcmp.ge.f32.partialorder %v1625, 0.0
        %vm1646 = vcmp.ge.f32.partialorder %v1626, 0.0
        %vm1647 = vcmp.ge.f32.partialorder %v1627, 0.0
        %vm1648 = vcmp.ge.f32.partialorder %v1628, 0.0
        %vm1649 = vcmp.lt.f32.partialorder %v1625, 8.0
        %vm1650 = vcmp.lt.f32.partialorder %v1626, 8.0
        %vm1651 = vcmp.lt.f32.partialorder %v1627, 8.0
        %vm1652 = vcmp.lt.f32.partialorder %v1628, 8.0
        %vm1653 = vmand %vm1645, %vm1649
        %vm1654 = vmand %vm1646, %vm1650
        %vm1655 = vmand %vm1647, %vm1651
        %vm1656 = vmand %vm1648, %vm1652
        %vm1657 = vcmp.ge.f32.partialorder %v1641, 0.0
        %vm1658 = vcmp.ge.f32.partialorder %v1642, 0.0
        %vm1659 = vcmp.ge.f32.partialorder %v1643, 0.0
        %vm1660 = vcmp.ge.f32.partialorder %v1644, 0.0
        %v1661 = vsel %vm1657, 1, 0
        %v1662 = vsel %vm1658, 1, 0
        %v1663 = vsel %vm1659, 1, 0
        %v1664 = vsel %vm1660, 1, 0
        %1665 = vrot.lane.b32.xlu0 %v1661, 127
        %v1666 = vpop.permute.xlu0 %1665
        %1667 = vrot.lane.b32.xlu0 %v1662, 127
        %v1668 = vpop.permute.xlu0 %1667
        %1669 = vrot.lane.b32.xlu0 %v1663, 127
        %v1670 = vpop.permute.xlu0 %1669
        %1671 = vrot.lane.b32.xlu0 %v1664, 127
        %v1672 = vpop.permute.xlu0 %1671
        %vm1673 = vcmp.ne.s32.totalorder %v1666, 0
        %vm1674 = vcmp.ne.s32.totalorder %v1668, 0
        %vm1675 = vcmp.ne.s32.totalorder %v1670, 0
        %vm1676 = vcmp.ne.s32.totalorder %v1672, 0
        %vm1677 = vmand %vm1653, %vm1673
        %vm1678 = vmand %vm1654, %vm1674
        %vm1679 = vmand %vm1655, %vm1675
        %vm1680 = vmand %vm1656, %vm1676
        %vm1681 = vcmp.lt.f32.partialorder %v1641, 8.0
        %vm1682 = vcmp.lt.f32.partialorder %v1642, 8.0
        %vm1683 = vcmp.lt.f32.partialorder %v1643, 8.0
        %vm1684 = vcmp.lt.f32.partialorder %v1644, 8.0
        %v1685 = vsel %vm1681, 1, 0
        %v1686 = vsel %vm1682, 1, 0
        %v1687 = vsel %vm1683, 1, 0
        %v1688 = vsel %vm1684, 1, 0
        %1689 = vrot.lane.b32.xlu0 %v1685, 127
        %v1690 = vpop.permute.xlu0 %1689
        %1691 = vrot.lane.b32.xlu0 %v1686, 127
        %v1692 = vpop.permute.xlu0 %1691
        %1693 = vrot.lane.b32.xlu0 %v1687, 127
        %v1694 = vpop.permute.xlu0 %1693
        %1695 = vrot.lane.b32.xlu0 %v1688, 127
        %v1696 = vpop.permute.xlu0 %1695
        %vm1697 = vcmp.ne.s32.totalorder %v1690, 0
        %vm1698 = vcmp.ne.s32.totalorder %v1692, 0
        %vm1699 = vcmp.ne.s32.totalorder %v1694, 0
        %vm1700 = vcmp.ne.s32.totalorder %v1696, 0
        %vm1701 = vmand %vm1677, %vm1697
        %vm1702 = vmand %vm1678, %vm1698
        %vm1703 = vmand %vm1679, %vm1699
        %vm1704 = vmand %vm1680, %vm1700
        %v1705 = vsel %vm1701, 1, 0
        %v1706 = vsel %vm1702, 1, 0
        %v1707 = vsel %vm1703, 1, 0
        %v1708 = vsel %vm1704, 1, 0
        %v1709 = vcvt.s32.f32 %v1705
        %v1710 = vcvt.s32.f32 %v1706
        %v1711 = vcvt.s32.f32 %v1707
        %v1712 = vcvt.s32.f32 %v1708
        %v1713 = vfloor.f32 %v1625
        %v1714 = vfloor.f32 %v1626
        %v1715 = vfloor.f32 %v1627
        %v1716 = vfloor.f32 %v1628
        %v1717 = vfloor.f32 %v1641
        %v1718 = vfloor.f32 %v1642
        %v1719 = vfloor.f32 %v1643
        %v1720 = vfloor.f32 %v1644
        %v1721 = vsub.f32 %v1625, %v1713
        %v1722 = vsub.f32 %v1626, %v1714
        %v1723 = vsub.f32 %v1627, %v1715
        %v1724 = vsub.f32 %v1628, %v1716
        %v1725 = vsub.f32 %v1641, %v1717
        %v1726 = vsub.f32 %v1642, %v1718
        %v1727 = vsub.f32 %v1643, %v1719
        %v1728 = vsub.f32 %v1644, %v1720
        %v1729 = vcvt.f32.s32.to.zero.pseudo %v1713
        %v1730 = vcvt.f32.s32.to.zero.pseudo %v1714
        %v1731 = vcvt.f32.s32.to.zero.pseudo %v1715
        %v1732 = vcvt.f32.s32.to.zero.pseudo %v1716
        %v1733 = vcvt.f32.s32.to.zero.pseudo %v1717
        %v1734 = vcvt.f32.s32.to.zero.pseudo %v1718
        %v1735 = vcvt.f32.s32.to.zero.pseudo %v1719
        %v1736 = vcvt.f32.s32.to.zero.pseudo %v1720
        %v1737 = vmul.u32 %v1733, 8
        %v1738 = vmul.u32 %v1734, 8
        %v1739 = vmul.u32 %v1735, 8
        %v1740 = vmul.u32 %v1736, 8
        %1741 = vrot.lane.b32.xlu0 %v1729, 1
        %v1742 = vpop.permute.xlu0 %1741
        %1743 = vrot.lane.b32.xlu0 %v1730, 1
        %v1744 = vpop.permute.xlu0 %1743
        %1745 = vrot.lane.b32.xlu0 %v1731, 1
        %v1746 = vpop.permute.xlu0 %1745
        %1747 = vrot.lane.b32.xlu0 %v1732, 1
        %v1748 = vpop.permute.xlu0 %1747
        %v1749 = vadd.s32 %v1737, %v1742
        %v1750 = vadd.s32 %v1738, %v1744
        %v1751 = vadd.s32 %v1739, %v1746
        %v1752 = vadd.s32 %v1740, %v1748
        %v1753 = vsub.f32 1.0, %v1721
        %v1754 = vsub.f32 1.0, %v1722
        %v1755 = vsub.f32 1.0, %v1723
        %v1756 = vsub.f32 1.0, %v1724
        %v1757 = vsub.f32 1.0, %v1725
        %v1758 = vsub.f32 1.0, %v1726
        %v1759 = vsub.f32 1.0, %v1727
        %v1760 = vsub.f32 1.0, %v1728
        %1765 = vrot.lane.b32.xlu0 %v1757, 127
        %v1766 = vpop.permute.xlu0 %1765
        %1767 = vrot.lane.b32.xlu0 %v1758, 127
        %v1768 = vpop.permute.xlu0 %1767
        %1769 = vrot.lane.b32.xlu0 %v1759, 127
        %v1770 = vpop.permute.xlu0 %1769
        %1771 = vrot.lane.b32.xlu0 %v1760, 127
        %v1772 = vpop.permute.xlu0 %1771
        %v1777 = vmul.f32 %v1753, %v1766
        %v1778 = vmul.f32 %v1754, %v1768
        %v1779 = vmul.f32 %v1755, %v1770
        %v1780 = vmul.f32 %v1756, %v1772
        %v1781 = vmul.f32 %v1721, %v1766
        %v1782 = vmul.f32 %v1722, %v1768
        %v1783 = vmul.f32 %v1723, %v1770
        %v1784 = vmul.f32 %v1724, %v1772
        %1789 = vrot.lane.b32.xlu0 %v1725, 127
        %v1790 = vpop.permute.xlu0 %1789
        %1791 = vrot.lane.b32.xlu0 %v1726, 127
        %v1792 = vpop.permute.xlu0 %1791
        %1793 = vrot.lane.b32.xlu0 %v1727, 127
        %v1794 = vpop.permute.xlu0 %1793
        %1795 = vrot.lane.b32.xlu0 %v1728, 127
        %v1796 = vpop.permute.xlu0 %1795
        %v1801 = vmul.f32 %v1753, %v1790
        %v1802 = vmul.f32 %v1754, %v1792
        %v1803 = vmul.f32 %v1755, %v1794
        %v1804 = vmul.f32 %v1756, %v1796
        %v1805 = vmul.f32 %v1721, %v1790
        %v1806 = vmul.f32 %v1722, %v1792
        %v1807 = vmul.f32 %v1723, %v1794
        %v1808 = vmul.f32 %v1724, %v1796
        %vm1809 = vcmp.ge.s32.totalorder %v1729, 0
        %vm1810 = vcmp.ge.s32.totalorder %v1730, 0
        %vm1811 = vcmp.ge.s32.totalorder %v1731, 0
        %vm1812 = vcmp.ge.s32.totalorder %v1732, 0
        %vm1813 = vcmp.lt.s32.totalorder %v1729, 8
        %vm1814 = vcmp.lt.s32.totalorder %v1730, 8
        %vm1815 = vcmp.lt.s32.totalorder %v1731, 8
        %vm1816 = vcmp.lt.s32.totalorder %v1732, 8
        %vm1817 = vmand %vm1809, %vm1813
        %vm1818 = vmand %vm1810, %vm1814
        %vm1819 = vmand %vm1811, %vm1815
        %vm1820 = vmand %vm1812, %vm1816
        %vm1821 = vcmp.ge.s32.totalorder %v1733, 0
        %vm1822 = vcmp.ge.s32.totalorder %v1734, 0
        %vm1823 = vcmp.ge.s32.totalorder %v1735, 0
        %vm1824 = vcmp.ge.s32.totalorder %v1736, 0
        %v1825 = vsel %vm1821, 1, 0
        %v1826 = vsel %vm1822, 1, 0
        %v1827 = vsel %vm1823, 1, 0
        %v1828 = vsel %vm1824, 1, 0
        %1829 = vrot.lane.b32.xlu0 %v1825, 127
        %v1830 = vpop.permute.xlu0 %1829
        %1831 = vrot.lane.b32.xlu0 %v1826, 127
        %v1832 = vpop.permute.xlu0 %1831
        %1833 = vrot.lane.b32.xlu0 %v1827, 127
        %v1834 = vpop.permute.xlu0 %1833
        %1835 = vrot.lane.b32.xlu0 %v1828, 127
        %v1836 = vpop.permute.xlu0 %1835
        %vm1837 = vcmp.ne.s32.totalorder %v1830, 0
        %vm1838 = vcmp.ne.s32.totalorder %v1832, 0
        %vm1839 = vcmp.ne.s32.totalorder %v1834, 0
        %vm1840 = vcmp.ne.s32.totalorder %v1836, 0
        %vm1841 = vmand %vm1817, %vm1837
        %vm1842 = vmand %vm1818, %vm1838
        %vm1843 = vmand %vm1819, %vm1839
        %vm1844 = vmand %vm1820, %vm1840
        %vm1845 = vcmp.lt.s32.totalorder %v1733, 8
        %vm1846 = vcmp.lt.s32.totalorder %v1734, 8
        %vm1847 = vcmp.lt.s32.totalorder %v1735, 8
        %vm1848 = vcmp.lt.s32.totalorder %v1736, 8
        %v1849 = vsel %vm1845, 1, 0
        %v1850 = vsel %vm1846, 1, 0
        %v1851 = vsel %vm1847, 1, 0
        %v1852 = vsel %vm1848, 1, 0
        %1853 = vrot.lane.b32.xlu0 %v1849, 127
        %v1854 = vpop.permute.xlu0 %1853
        %1855 = vrot.lane.b32.xlu0 %v1850, 127
        %v1856 = vpop.permute.xlu0 %1855
        %1857 = vrot.lane.b32.xlu0 %v1851, 127
        %v1858 = vpop.permute.xlu0 %1857
        %1859 = vrot.lane.b32.xlu0 %v1852, 127
        %v1860 = vpop.permute.xlu0 %1859
        %vm1861 = vcmp.ne.s32.totalorder %v1854, 0
        %vm1862 = vcmp.ne.s32.totalorder %v1856, 0
        %vm1863 = vcmp.ne.s32.totalorder %v1858, 0
        %vm1864 = vcmp.ne.s32.totalorder %v1860, 0
        %vm1865 = vmand %vm1841, %vm1861
        %vm1866 = vmand %vm1842, %vm1862
        %vm1867 = vmand %vm1843, %vm1863
        %vm1868 = vmand %vm1844, %vm1864
        %1869 = vset.pattern.permute.xlu0 1
        %1870 = vperm.xlu0 %1869, %v1749
        %v1871 = vpop.permute.xlu0 %1870
        %1872 = vset.pattern.permute.xlu0 1
        %1873 = vperm.xlu0 %1872, %v1750
        %v1874 = vpop.permute.xlu0 %1873
        %1875 = vset.pattern.permute.xlu0 1
        %1876 = vperm.xlu0 %1875, %v1751
        %v1877 = vpop.permute.xlu0 %1876
        %1878 = vset.pattern.permute.xlu0 1
        %1879 = vperm.xlu0 %1878, %v1752
        %v1880 = vpop.permute.xlu0 %1879
        %vm1881 = vcmp.eq.s32.totalorder %v957, %v1871
        %vm1882 = vcmp.eq.s32.totalorder %v957, %v1874
        %vm1883 = vcmp.eq.s32.totalorder %v957, %v1877
        %vm1884 = vcmp.eq.s32.totalorder %v957, %v1880
        %v1885 = vsel %vm1865, 1, 0
        %v1886 = vsel %vm1866, 1, 0
        %v1887 = vsel %vm1867, 1, 0
        %v1888 = vsel %vm1868, 1, 0
        %1889 = vset.pattern.permute.xlu0 0
        %1890 = vperm.xlu0 %1889, %v1885
        %v1891 = vpop.permute.xlu0 %1890
        %1892 = vset.pattern.permute.xlu0 0
        %1893 = vperm.xlu0 %1892, %v1886
        %v1894 = vpop.permute.xlu0 %1893
        %1895 = vset.pattern.permute.xlu0 0
        %1896 = vperm.xlu0 %1895, %v1887
        %v1897 = vpop.permute.xlu0 %1896
        %1898 = vset.pattern.permute.xlu0 0
        %1899 = vperm.xlu0 %1898, %v1888
        %v1900 = vpop.permute.xlu0 %1899
        %vm1901 = vcmp.eq.s32.totalorder %v1891, 1
        %vm1902 = vcmp.eq.s32.totalorder %v1894, 1
        %vm1903 = vcmp.eq.s32.totalorder %v1897, 1
        %vm1904 = vcmp.eq.s32.totalorder %v1900, 1
        %vm1905 = vmand %vm1881, %vm1901
        %vm1906 = vmand %vm1882, %vm1902
        %vm1907 = vmand %vm1883, %vm1903
        %vm1908 = vmand %vm1884, %vm1904
        %1910 = vset.pattern.permute.xlu0 0
        %1911 = vperm.xlu0 %1910, %v1777
        %v1912 = vpop.permute.xlu0 %1911
        %1915 = vset.pattern.permute.xlu0 0
        %1916 = vperm.xlu0 %1915, %v1778
        %v1917 = vpop.permute.xlu0 %1916
        %1920 = vset.pattern.permute.xlu0 0
        %1921 = vperm.xlu0 %1920, %v1779
        %v1922 = vpop.permute.xlu0 %1921
        %1925 = vset.pattern.permute.xlu0 0
        %1926 = vperm.xlu0 %1925, %v1780
        %v1927 = vpop.permute.xlu0 %1926
        %v1929 = vsel %vm1905, %v1912, 0.0
        %v1930 = vsel %vm1906, %v1917, 0.0
        %v1931 = vsel %vm1907, %v1922, 0.0
        %v1932 = vsel %vm1908, %v1927, 0.0
        %v1933 = vadd.f32 %v1929, 0.0
        %v1934 = vadd.f32 %v1930, 0.0
        %v1935 = vadd.f32 %v1931, 0.0
        %v1936 = vadd.f32 %v1932, 0.0
        %v1937 = vadd.s32 %v1729, 1
        %v1938 = vadd.s32 %v1730, 1
        %v1939 = vadd.s32 %v1731, 1
        %v1940 = vadd.s32 %v1732, 1
        %vm1941 = vcmp.ge.s32.totalorder %v1937, 0
        %vm1942 = vcmp.ge.s32.totalorder %v1938, 0
        %vm1943 = vcmp.ge.s32.totalorder %v1939, 0
        %vm1944 = vcmp.ge.s32.totalorder %v1940, 0
        %vm1945 = vcmp.lt.s32.totalorder %v1937, 8
        %vm1946 = vcmp.lt.s32.totalorder %v1938, 8
        %vm1947 = vcmp.lt.s32.totalorder %v1939, 8
        %vm1948 = vcmp.lt.s32.totalorder %v1940, 8
        %vm1949 = vmand %vm1941, %vm1945
        %vm1950 = vmand %vm1942, %vm1946
        %vm1951 = vmand %vm1943, %vm1947
        %vm1952 = vmand %vm1944, %vm1948
        %vm1953 = vmand %vm1949, %vm1837
        %vm1954 = vmand %vm1950, %vm1838
        %vm1955 = vmand %vm1951, %vm1839
        %vm1956 = vmand %vm1952, %vm1840
        %vm1957 = vmand %vm1953, %vm1861
        %vm1958 = vmand %vm1954, %vm1862
        %vm1959 = vmand %vm1955, %vm1863
        %vm1960 = vmand %vm1956, %vm1864
        %v1961 = vadd.s32 %v1749, 1
        %v1962 = vadd.s32 %v1750, 1
        %v1963 = vadd.s32 %v1751, 1
        %v1964 = vadd.s32 %v1752, 1
        %1965 = vset.pattern.permute.xlu0 1
        %1966 = vperm.xlu0 %1965, %v1961
        %v1967 = vpop.permute.xlu0 %1966
        %1968 = vset.pattern.permute.xlu0 1
        %1969 = vperm.xlu0 %1968, %v1962
        %v1970 = vpop.permute.xlu0 %1969
        %1971 = vset.pattern.permute.xlu0 1
        %1972 = vperm.xlu0 %1971, %v1963
        %v1973 = vpop.permute.xlu0 %1972
        %1974 = vset.pattern.permute.xlu0 1
        %1975 = vperm.xlu0 %1974, %v1964
        %v1976 = vpop.permute.xlu0 %1975
        %vm1977 = vcmp.eq.s32.totalorder %v957, %v1967
        %vm1978 = vcmp.eq.s32.totalorder %v957, %v1970
        %vm1979 = vcmp.eq.s32.totalorder %v957, %v1973
        %vm1980 = vcmp.eq.s32.totalorder %v957, %v1976
        %v1981 = vsel %vm1957, 1, 0
        %v1982 = vsel %vm1958, 1, 0
        %v1983 = vsel %vm1959, 1, 0
        %v1984 = vsel %vm1960, 1, 0
        %1985 = vset.pattern.permute.xlu0 0
        %1986 = vperm.xlu0 %1985, %v1981
        %v1987 = vpop.permute.xlu0 %1986
        %1988 = vset.pattern.permute.xlu0 0
        %1989 = vperm.xlu0 %1988, %v1982
        %v1990 = vpop.permute.xlu0 %1989
        %1991 = vset.pattern.permute.xlu0 0
        %1992 = vperm.xlu0 %1991, %v1983
        %v1993 = vpop.permute.xlu0 %1992
        %1994 = vset.pattern.permute.xlu0 0
        %1995 = vperm.xlu0 %1994, %v1984
        %v1996 = vpop.permute.xlu0 %1995
        %vm1997 = vcmp.eq.s32.totalorder %v1987, 1
        %vm1998 = vcmp.eq.s32.totalorder %v1990, 1
        %vm1999 = vcmp.eq.s32.totalorder %v1993, 1
        %vm2000 = vcmp.eq.s32.totalorder %v1996, 1
        %vm2001 = vmand %vm1977, %vm1997
        %vm2002 = vmand %vm1978, %vm1998
        %vm2003 = vmand %vm1979, %vm1999
        %vm2004 = vmand %vm1980, %vm2000
        %2006 = vset.pattern.permute.xlu0 0
        %2007 = vperm.xlu0 %2006, %v1781
        %v2008 = vpop.permute.xlu0 %2007
        %2011 = vset.pattern.permute.xlu0 0
        %2012 = vperm.xlu0 %2011, %v1782
        %v2013 = vpop.permute.xlu0 %2012
        %2016 = vset.pattern.permute.xlu0 0
        %2017 = vperm.xlu0 %2016, %v1783
        %v2018 = vpop.permute.xlu0 %2017
        %2021 = vset.pattern.permute.xlu0 0
        %2022 = vperm.xlu0 %2021, %v1784
        %v2023 = vpop.permute.xlu0 %2022
        %v2025 = vsel %vm2001, %v2008, 0.0
        %v2026 = vsel %vm2002, %v2013, 0.0
        %v2027 = vsel %vm2003, %v2018, 0.0
        %v2028 = vsel %vm2004, %v2023, 0.0
        %v2029 = vadd.f32 %v1933, %v2025
        %v2030 = vadd.f32 %v1934, %v2026
        %v2031 = vadd.f32 %v1935, %v2027
        %v2032 = vadd.f32 %v1936, %v2028
        %v2033 = vadd.s32 %v1733, 1
        %v2034 = vadd.s32 %v1734, 1
        %v2035 = vadd.s32 %v1735, 1
        %v2036 = vadd.s32 %v1736, 1
        %vm2037 = vcmp.ge.s32.totalorder %v2033, 0
        %vm2038 = vcmp.ge.s32.totalorder %v2034, 0
        %vm2039 = vcmp.ge.s32.totalorder %v2035, 0
        %vm2040 = vcmp.ge.s32.totalorder %v2036, 0
        %v2041 = vsel %vm2037, 1, 0
        %v2042 = vsel %vm2038, 1, 0
        %v2043 = vsel %vm2039, 1, 0
        %v2044 = vsel %vm2040, 1, 0
        %2045 = vrot.lane.b32.xlu0 %v2041, 127
        %v2046 = vpop.permute.xlu0 %2045
        %2047 = vrot.lane.b32.xlu0 %v2042, 127
        %v2048 = vpop.permute.xlu0 %2047
        %2049 = vrot.lane.b32.xlu0 %v2043, 127
        %v2050 = vpop.permute.xlu0 %2049
        %2051 = vrot.lane.b32.xlu0 %v2044, 127
        %v2052 = vpop.permute.xlu0 %2051
        %vm2053 = vcmp.ne.s32.totalorder %v2046, 0
        %vm2054 = vcmp.ne.s32.totalorder %v2048, 0
        %vm2055 = vcmp.ne.s32.totalorder %v2050, 0
        %vm2056 = vcmp.ne.s32.totalorder %v2052, 0
        %vm2057 = vmand %vm1817, %vm2053
        %vm2058 = vmand %vm1818, %vm2054
        %vm2059 = vmand %vm1819, %vm2055
        %vm2060 = vmand %vm1820, %vm2056
        %vm2061 = vcmp.lt.s32.totalorder %v2033, 8
        %vm2062 = vcmp.lt.s32.totalorder %v2034, 8
        %vm2063 = vcmp.lt.s32.totalorder %v2035, 8
        %vm2064 = vcmp.lt.s32.totalorder %v2036, 8
        %v2065 = vsel %vm2061, 1, 0
        %v2066 = vsel %vm2062, 1, 0
        %v2067 = vsel %vm2063, 1, 0
        %v2068 = vsel %vm2064, 1, 0
        %2069 = vrot.lane.b32.xlu0 %v2065, 127
        %v2070 = vpop.permute.xlu0 %2069
        %2071 = vrot.lane.b32.xlu0 %v2066, 127
        %v2072 = vpop.permute.xlu0 %2071
        %2073 = vrot.lane.b32.xlu0 %v2067, 127
        %v2074 = vpop.permute.xlu0 %2073
        %2075 = vrot.lane.b32.xlu0 %v2068, 127
        %v2076 = vpop.permute.xlu0 %2075
        %vm2077 = vcmp.ne.s32.totalorder %v2070, 0
        %vm2078 = vcmp.ne.s32.totalorder %v2072, 0
        %vm2079 = vcmp.ne.s32.totalorder %v2074, 0
        %vm2080 = vcmp.ne.s32.totalorder %v2076, 0
        %vm2081 = vmand %vm2057, %vm2077
        %vm2082 = vmand %vm2058, %vm2078
        %vm2083 = vmand %vm2059, %vm2079
        %vm2084 = vmand %vm2060, %vm2080
        %v2085 = vadd.s32 %v1749, 8
        %v2086 = vadd.s32 %v1750, 8
        %v2087 = vadd.s32 %v1751, 8
        %v2088 = vadd.s32 %v1752, 8
        %2089 = vset.pattern.permute.xlu0 1
        %2090 = vperm.xlu0 %2089, %v2085
        %v2091 = vpop.permute.xlu0 %2090
        %2092 = vset.pattern.permute.xlu0 1
        %2093 = vperm.xlu0 %2092, %v2086
        %v2094 = vpop.permute.xlu0 %2093
        %2095 = vset.pattern.permute.xlu0 1
        %2096 = vperm.xlu0 %2095, %v2087
        %v2097 = vpop.permute.xlu0 %2096
        %2098 = vset.pattern.permute.xlu0 1
        %2099 = vperm.xlu0 %2098, %v2088
        %v2100 = vpop.permute.xlu0 %2099
        %vm2101 = vcmp.eq.s32.totalorder %v957, %v2091
        %vm2102 = vcmp.eq.s32.totalorder %v957, %v2094
        %vm2103 = vcmp.eq.s32.totalorder %v957, %v2097
        %vm2104 = vcmp.eq.s32.totalorder %v957, %v2100
        %v2105 = vsel %vm2081, 1, 0
        %v2106 = vsel %vm2082, 1, 0
        %v2107 = vsel %vm2083, 1, 0
        %v2108 = vsel %vm2084, 1, 0
        %2109 = vset.pattern.permute.xlu0 0
        %2110 = vperm.xlu0 %2109, %v2105
        %v2111 = vpop.permute.xlu0 %2110
        %2112 = vset.pattern.permute.xlu0 0
        %2113 = vperm.xlu0 %2112, %v2106
        %v2114 = vpop.permute.xlu0 %2113
        %2115 = vset.pattern.permute.xlu0 0
        %2116 = vperm.xlu0 %2115, %v2107
        %v2117 = vpop.permute.xlu0 %2116
        %2118 = vset.pattern.permute.xlu0 0
        %2119 = vperm.xlu0 %2118, %v2108
        %v2120 = vpop.permute.xlu0 %2119
        %vm2121 = vcmp.eq.s32.totalorder %v2111, 1
        %vm2122 = vcmp.eq.s32.totalorder %v2114, 1
        %vm2123 = vcmp.eq.s32.totalorder %v2117, 1
        %vm2124 = vcmp.eq.s32.totalorder %v2120, 1
        %vm2125 = vmand %vm2101, %vm2121
        %vm2126 = vmand %vm2102, %vm2122
        %vm2127 = vmand %vm2103, %vm2123
        %vm2128 = vmand %vm2104, %vm2124
        %2130 = vset.pattern.permute.xlu0 0
        %2131 = vperm.xlu0 %2130, %v1801
        %v2132 = vpop.permute.xlu0 %2131
        %2135 = vset.pattern.permute.xlu0 0
        %2136 = vperm.xlu0 %2135, %v1802
        %v2137 = vpop.permute.xlu0 %2136
        %2140 = vset.pattern.permute.xlu0 0
        %2141 = vperm.xlu0 %2140, %v1803
        %v2142 = vpop.permute.xlu0 %2141
        %2145 = vset.pattern.permute.xlu0 0
        %2146 = vperm.xlu0 %2145, %v1804
        %v2147 = vpop.permute.xlu0 %2146
        %v2149 = vsel %vm2125, %v2132, 0.0
        %v2150 = vsel %vm2126, %v2137, 0.0
        %v2151 = vsel %vm2127, %v2142, 0.0
        %v2152 = vsel %vm2128, %v2147, 0.0
        %v2153 = vadd.f32 %v2029, %v2149
        %v2154 = vadd.f32 %v2030, %v2150
        %v2155 = vadd.f32 %v2031, %v2151
        %v2156 = vadd.f32 %v2032, %v2152
        %vm2157 = vmand %vm1949, %vm2053
        %vm2158 = vmand %vm1950, %vm2054
        %vm2159 = vmand %vm1951, %vm2055
        %vm2160 = vmand %vm1952, %vm2056
        %vm2161 = vmand %vm2157, %vm2077
        %vm2162 = vmand %vm2158, %vm2078
        %vm2163 = vmand %vm2159, %vm2079
        %vm2164 = vmand %vm2160, %vm2080
        %v2165 = vadd.s32 %v1749, 9
        %v2166 = vadd.s32 %v1750, 9
        %v2167 = vadd.s32 %v1751, 9
        %v2168 = vadd.s32 %v1752, 9
        %2169 = vset.pattern.permute.xlu0 1
        %2170 = vperm.xlu0 %2169, %v2165
        %v2171 = vpop.permute.xlu0 %2170
        %2172 = vset.pattern.permute.xlu0 1
        %2173 = vperm.xlu0 %2172, %v2166
        %v2174 = vpop.permute.xlu0 %2173
        %2175 = vset.pattern.permute.xlu0 1
        %2176 = vperm.xlu0 %2175, %v2167
        %v2177 = vpop.permute.xlu0 %2176
        %2178 = vset.pattern.permute.xlu0 1
        %2179 = vperm.xlu0 %2178, %v2168
        %v2180 = vpop.permute.xlu0 %2179
        %vm2181 = vcmp.eq.s32.totalorder %v957, %v2171
        %vm2182 = vcmp.eq.s32.totalorder %v957, %v2174
        %vm2183 = vcmp.eq.s32.totalorder %v957, %v2177
        %vm2184 = vcmp.eq.s32.totalorder %v957, %v2180
        %v2185 = vsel %vm2161, 1, 0
        %v2186 = vsel %vm2162, 1, 0
        %v2187 = vsel %vm2163, 1, 0
        %v2188 = vsel %vm2164, 1, 0
        %2189 = vset.pattern.permute.xlu0 0
        %2190 = vperm.xlu0 %2189, %v2185
        %v2191 = vpop.permute.xlu0 %2190
        %2192 = vset.pattern.permute.xlu0 0
        %2193 = vperm.xlu0 %2192, %v2186
        %v2194 = vpop.permute.xlu0 %2193
        %2195 = vset.pattern.permute.xlu0 0
        %2196 = vperm.xlu0 %2195, %v2187
        %v2197 = vpop.permute.xlu0 %2196
        %2198 = vset.pattern.permute.xlu0 0
        %2199 = vperm.xlu0 %2198, %v2188
        %v2200 = vpop.permute.xlu0 %2199
        %vm2201 = vcmp.eq.s32.totalorder %v2191, 1
        %vm2202 = vcmp.eq.s32.totalorder %v2194, 1
        %vm2203 = vcmp.eq.s32.totalorder %v2197, 1
        %vm2204 = vcmp.eq.s32.totalorder %v2200, 1
        %vm2205 = vmand %vm2181, %vm2201
        %vm2206 = vmand %vm2182, %vm2202
        %vm2207 = vmand %vm2183, %vm2203
        %vm2208 = vmand %vm2184, %vm2204
        %2210 = vset.pattern.permute.xlu0 0
        %2211 = vperm.xlu0 %2210, %v1805
        %v2212 = vpop.permute.xlu0 %2211
        %2215 = vset.pattern.permute.xlu0 0
        %2216 = vperm.xlu0 %2215, %v1806
        %v2217 = vpop.permute.xlu0 %2216
        %2220 = vset.pattern.permute.xlu0 0
        %2221 = vperm.xlu0 %2220, %v1807
        %v2222 = vpop.permute.xlu0 %2221
        %2225 = vset.pattern.permute.xlu0 0
        %2226 = vperm.xlu0 %2225, %v1808
        %v2227 = vpop.permute.xlu0 %2226
        %v2229 = vsel %vm2205, %v2212, 0.0
        %v2230 = vsel %vm2206, %v2217, 0.0
        %v2231 = vsel %vm2207, %v2222, 0.0
        %v2232 = vsel %vm2208, %v2227, 0.0
        %v2233 = vadd.f32 %v2153, %v2229
        %v2234 = vadd.f32 %v2154, %v2230
        %v2235 = vadd.f32 %v2155, %v2231
        %v2236 = vadd.f32 %v2156, %v2232
        %2238 = vset.pattern.permute.xlu0 0
        %2239 = vperm.xlu0 %2238, %v1709
        %v2240 = vpop.permute.xlu0 %2239
        %2243 = vset.pattern.permute.xlu0 0
        %2244 = vperm.xlu0 %2243, %v1710
        %v2245 = vpop.permute.xlu0 %2244
        %2248 = vset.pattern.permute.xlu0 0
        %2249 = vperm.xlu0 %2248, %v1711
        %v2250 = vpop.permute.xlu0 %2249
        %2253 = vset.pattern.permute.xlu0 0
        %2254 = vperm.xlu0 %2253, %v1712
        %v2255 = vpop.permute.xlu0 %2254
        %v2257 = vmul.f32 %v2233, %v2240
        %v2258 = vmul.f32 %v2234, %v2245
        %v2259 = vmul.f32 %v2235, %v2250
        %v2260 = vmul.f32 %v2236, %v2255
        %v2261 = vpack.c.bf16 %v2258, %v2257
        %v2262 = vpack.c.bf16 %v2260, %v2259
        %v2263 = vpack.c.bf16 %v1564, %v1563
        %v2264 = vpack.c.bf16 %v1566, %v1565
        %v2265 = vpack.c.bf16 %v1568, %v1567
        %v2266 = vpack.c.bf16 %v1570, %v1569
        %vm2267 = vcmask 523264
        %v2269 = vsel %vm2267, %v2261, 0
        %v2272 = vsel %vm2267, %v2262, 0
        %2274 = vmatpush.bf16.msra.mxu0 0
        %2275 = vmatpush.bf16.msra.mxu0 0
        %2276 = vmatpush.bf16.msra.mxu0 0
        %2277 = vmatpush.bf16.msra.mxu0 0
        %2278 = vmatpush.bf16.msra.mxu0 %v2266
        %2279 = vmatpush.bf16.msra.mxu0 %v2265
        %2280 = vmatpush.bf16.msra.mxu0 %v2264
        %2281 = vmatpush.bf16.msra.mxu0 %v2263
        %2282 = vmatmul.bf16.gmra.mxu0 %v2269
        %v2283 = vpop.f32.mrf.mxu0
        %v2284 = vadd.f32 0.0, %v2283
        %v2285 = vpop.f32.mrf.mxu0
        %v2286 = vadd.f32 0.0, %v2285
        %2287 = vmatmul.bf16.gmra.mxu0 %v2272
        %v2288 = vpop.f32.mrf.mxu0
        %v2289 = vadd.f32 0.0, %v2288
        %v2290 = vpop.f32.mrf.mxu0
        %v2291 = vadd.f32 0.0, %v2290
        %2292 = vdwg.mxu0
        %v2293 = vld [vmem:[#allocation2] sm:$0xff]
        %v2294 = vld [vmem:[#allocation2 + $0x8] sm:$0xff]
        %v2295 = vld [vmem:[#allocation2 + $0x10] sm:$0xff]
        %v2296 = vld [vmem:[#allocation2 + $0x18] sm:$0xff]
        %v2297 = vadd.f32 %v2293, %v2284
        %v2298 = vadd.f32 %v2294, %v2286
        %v2299 = vadd.f32 %v2295, %v2289
        %v2300 = vadd.f32 %v2296, %v2291
        %2301 = vst.msk [vmem:[#allocation2] sm:$0xff] %vm1545, %v2297
        %2302 = vst.msk [vmem:[#allocation2 + $0x8] sm:$0xff] %vm1545, %v2298
        %2303 = vst.msk [vmem:[#allocation2 + $0x10] sm:$0xff] %vm1545, %v2299
        %2304 = vst.msk [vmem:[#allocation2 + $0x18] sm:$0xff] %vm1545, %v2300
        %v2305 = vld [vmem:[#allocation3] sm:$0xff]
        %v2306 = vld [vmem:[#allocation3 + $0x8] sm:$0xff]
        %v2307 = vld [vmem:[#allocation3 + $0x10] sm:$0xff]
        %v2308 = vld [vmem:[#allocation3 + $0x18] sm:$0xff]
        %v2309 = vadd.f32 %v2305, %v1709
        %v2310 = vadd.f32 %v2306, %v1710
        %v2311 = vadd.f32 %v2307, %v1711
        %v2312 = vadd.f32 %v2308, %v1712
        %2313 = vst.msk [vmem:[#allocation3] sm:$0xff] %vm1558, %v2309
        %2314 = vst.msk [vmem:[#allocation3 + $0x8] sm:$0xff] %vm1558, %v2310
        %2315 = vst.msk [vmem:[#allocation3 + $0x10] sm:$0xff] %vm1558, %v2311
        %2316 = vst.msk [vmem:[#allocation3 + $0x18] sm:$0xff] %vm1558, %v2312
        %p2317 = scmp.eq.s32.totalorder %s35, 1
        // Predicated region
        $region61: #{tpu_custom_call.1} parent=55 // pred_check
          %p2318 = pneg %p2317
        $region62: #{tpu_custom_call.1} parent=55 // pred_check_branch
          %2320 = sbr.rel (%p2318) target = $region64
        $region63: #{tpu_custom_call.1} parent=55 // pred_region
          %v2321 = vld [vmem:[#allocation2] sm:$0xff]
          %v2322 = vld [vmem:[#allocation2 + $0x8] sm:$0xff]
          %v2323 = vld [vmem:[#allocation2 + $0x10] sm:$0xff]
          %v2324 = vld [vmem:[#allocation2 + $0x18] sm:$0xff]
          %v2325 = vld [vmem:[#allocation3] sm:$0xff]
          %v2326 = vld [vmem:[#allocation3 + $0x8] sm:$0xff]
          %v2327 = vld [vmem:[#allocation3 + $0x10] sm:$0xff]
          %v2328 = vld [vmem:[#allocation3 + $0x18] sm:$0xff]
          %v2329 = vadd.f32 %v2325, 1e-06
          %v2330 = vadd.f32 %v2326, 1e-06
          %v2331 = vadd.f32 %v2327, 1e-06
          %v2332 = vadd.f32 %v2328, 1e-06
          %v2333 = vrcp.pop %v2329
          %v2334 = vrcp.pop %v2330
          %v2335 = vrcp.pop %v2331
          %v2336 = vrcp.pop %v2332
          %2338 = vset.pattern.permute.xlu0 0
          %2339 = vperm.xlu0 %2338, %v2333
          %v2340 = vpop.permute.xlu0 %2339
          %2343 = vset.pattern.permute.xlu0 0
          %2344 = vperm.xlu0 %2343, %v2334
          %v2345 = vpop.permute.xlu0 %2344
          %2348 = vset.pattern.permute.xlu0 0
          %2349 = vperm.xlu0 %2348, %v2335
          %v2350 = vpop.permute.xlu0 %2349
          %2353 = vset.pattern.permute.xlu0 0
          %2354 = vperm.xlu0 %2353, %v2336
          %v2355 = vpop.permute.xlu0 %2354
          %v2357 = vmul.f32 %v2321, %v2340
          %v2358 = vmul.f32 %v2322, %v2345
          %v2359 = vmul.f32 %v2323, %v2350
          %v2360 = vmul.f32 %v2324, %v2355
          %v2361 = vld [vmem:[%s5] sm:$0xff]
          %v2362 = vld [vmem:[%s6] sm:$0x1]
          %v2364 = vperm.slane %v2362, 0
          %v2367 = vsel %vm1545, %v2357, 0
          %v2370 = vsel %vm1545, %v2358, 0
          %v2373 = vsel %vm1545, %v2359, 0
          %v2376 = vsel %vm1545, %v2360, 0
          %2378 = vmatpush.msra.mxu0 0.0
          %2379 = vmatpush.msra.mxu0 0.0
          %2380 = vmatpush.msra.mxu0 0.0
          %2381 = vmatpush.msra.mxu0 0.0
          %2382 = vmatpush.msra.mxu0 0.0
          %2383 = vmatpush.msra.mxu0 0.0
          %2384 = vmatpush.msra.mxu0 0.0
          %2385 = vmatpush.msra.mxu0 0.0
          %2386 = vmatpush.msra.mxu0 0.0
          %2387 = vmatpush.msra.mxu0 0.0
          %2388 = vmatpush.msra.mxu0 0.0
          %2389 = vmatpush.msra.mxu0 0.0
          %2390 = vmatpush.msra.mxu0 0.0
          %2391 = vmatpush.msra.mxu0 0.0
          %2392 = vmatpush.msra.mxu0 0.0
          %2393 = vmatpush.msra.mxu0 %v2361
          %2394 = vmatmul.f32.gmra.mxu0 %v2367
          %v2395 = vpop.f32.mrf.mxu0
          %v2396 = vadd.f32 %v2364, %v2395
          %2397 = vmatmul.f32.gmra.mxu0 %v2370
          %v2398 = vpop.f32.mrf.mxu0
          %v2399 = vadd.f32 %v2364, %v2398
          %2400 = vmatmul.f32.gmra.mxu0 %v2373
          %v2401 = vpop.f32.mrf.mxu0
          %v2402 = vadd.f32 %v2364, %v2401
          %2403 = vmatmul.f32.gmra.mxu0 %v2376
          %v2404 = vpop.f32.mrf.mxu0
          %v2405 = vadd.f32 %v2364, %v2404
          %2406 = vdwg.mxu0
          %v2407 = vld [vmem:[%s503] sm:$0xff]
          %v2408 = vld [vmem:[%s503 + $0x8] sm:$0xff]
          %v2409 = vld [vmem:[%s503 + $0x10] sm:$0xff]
          %v2410 = vld [vmem:[%s503 + $0x18] sm:$0xff]
          %v2411 = vadd.f32 %v2407, %v535
          %v2412 = vadd.f32 %v2408, %v536
          %v2413 = vadd.f32 %v2409, %v537
          %v2414 = vadd.f32 %v2410, %v538
          %v2415 = vadd.f32 %v2411, %v2396
          %v2416 = vadd.f32 %v2412, %v2399
          %v2417 = vadd.f32 %v2413, %v2402
          %v2418 = vadd.f32 %v2414, %v2405
          %2419 = vst [vmem:[%s481] sm:$0xff] %v2415
          %2420 = vst [vmem:[%s481 + $0x8] sm:$0xff] %v2416
          %2421 = vst [vmem:[%s481 + $0x10] sm:$0xff] %v2417
          %2422 = vst [vmem:[%s481 + $0x18] sm:$0xff] %v2418
        $region64: #{tpu_custom_call.1} parent=55 // pred_fallthru
          _
        %s2423 = sand.u32 %s283, 1
        %s2424 = scalar_lea.sflag [#allocation6], %s2423
        %s2425 = sand.u32 %s283, 1
        %s2426 = smul.addr %s2425, 32
        %s2427 = scalar_lea.vmem [#allocation5], %s2426
        %s2428 = sand.u32 %s311, 1
        %s2429 = scalar_lea.sflag [#allocation8], %s2428
        %s2430 = sand.u32 %s311, 1
        %s2431 = smul.addr %s2430, 32
        %s2432 = scalar_lea.vmem [#allocation7], %s2431
        // Predicated region
        $region65: #{tpu_custom_call.1} parent=55 // pred_check
          %p2433 = pneg %p293
        $region66: #{tpu_custom_call.1} parent=55 // pred_check_branch
          %2435 = sbr.rel (%p2433) target = $region68
        $region67: #{tpu_custom_call.1} parent=55 // pred_region
          %s2436 = smul.u32 4, %s34
          %2438 = vsyncadd %s2424, 0
          %s2439 = smul.addr %s33, 8
          %s2440 = sadd.s32 %s2436, %s2439
          %s2441 = smul.addr %s2440, 8
          %s2442 = scalar_lea.hbm %s9, %s2441
          %s2443 = sshll.u32 %s2427, 4
          %s2444 = int_to_ptr.vmem [resolvable:$true] %s2443
          %s2445 = sshll.u32 %s2442, 4
          %s2446 = int_to_ptr.hbm [resolvable:$true] %s2445
          %2451 = dma.vmem_to_hbm [thread:$0]  %s2444, 512, %s2446, %s2424, 128, 128, 8
        $region68: #{tpu_custom_call.1} parent=55 // pred_fallthru
          _
        // Predicated region
        $region69: #{tpu_custom_call.1} parent=55 // pred_check
          %p2452 = pneg %p321
        $region70: #{tpu_custom_call.1} parent=55 // pred_check_branch
          %2454 = sbr.rel (%p2452) target = $region72
        $region71: #{tpu_custom_call.1} parent=55 // pred_region
          %s2455 = smul.u32 4, %s34
          %2457 = vsyncadd %s2429, 0
          %s2458 = smul.addr %s33, 8
          %s2459 = sadd.s32 %s2455, %s2458
          %s2460 = smul.addr %s2459, 8
          %s2461 = scalar_lea.hbm %s10, %s2460
          %s2462 = sshll.u32 %s2432, 4
          %s2463 = int_to_ptr.vmem [resolvable:$true] %s2462
          %s2464 = sshll.u32 %s2461, 4
          %s2465 = int_to_ptr.hbm [resolvable:$true] %s2464
          %2470 = dma.vmem_to_hbm [thread:$0]  %s2463, 512, %s2465, %s2429, 128, 128, 8
        $region72: #{tpu_custom_call.1} parent=55 // pred_fallthru
          _
      $region56: #{tpu_custom_call.1} parent=5 // pred_fallthru
        _
      %p2471 = scmp.le.s32.totalorder 2, %s23
      // Predicated region
      $region73: #{tpu_custom_call.1} parent=5 // pred_check
        %p2472 = pneg %p2471
      $region74: #{tpu_custom_call.1} parent=5 // pred_check_branch
        %2474 = sbr.rel (%p2472) target = $region76
      $region75: #{tpu_custom_call.1} parent=5 // pred_region
        %s2475 = ssub.s32 %s23, 2
        // Predicated region
        $region77: #{tpu_custom_call.1} parent=75 // pred_check
          %p2476 = pneg %p299
        $region78: #{tpu_custom_call.1} parent=75 // pred_check_branch
          %2478 = sbr.rel (%p2476) target = $region80
        $region79: #{tpu_custom_call.1} parent=75 // pred_region
          %s2479 = sand.u32 %s284, 1
          %s2480 = scalar_lea.sflag [#allocation6], %s2479
          %s2481 = sand.u32 %s284, 1
          %s2482 = smul.addr %s2481, 32
          %s2483 = scalar_lea.vmem [#allocation5], %s2482
          %2485 = dma.done %s2480, 512
        $region80: #{tpu_custom_call.1} parent=75 // pred_fallthru
          _
        // Predicated region
        $region81: #{tpu_custom_call.1} parent=75 // pred_check
          %p2486 = pneg %p327
        $region82: #{tpu_custom_call.1} parent=75 // pred_check_branch
          %2488 = sbr.rel (%p2486) target = $region84
        $region83: #{tpu_custom_call.1} parent=75 // pred_region
          %s2489 = sand.u32 %s312, 1
          %s2490 = scalar_lea.sflag [#allocation8], %s2489
          %s2491 = sand.u32 %s312, 1
          %s2492 = smul.addr %s2491, 32
          %s2493 = scalar_lea.vmem [#allocation7], %s2492
          %2495 = dma.done %s2490, 512
        $region84: #{tpu_custom_call.1} parent=75 // pred_fallthru
          _
      $region76: #{tpu_custom_call.1} parent=5 // pred_fallthru
        _
    $region6: #{tpu_custom_call.1} parent=1 // loop_footer
      %s27 = sadd.s32 1, %s23
    $region7: #{tpu_custom_call.1} parent=1 // loop_footer_branch
      %22 = sbr.rel target = $region3
    $region8: #{tpu_custom_call.1} parent=1 // loop_exit
      _
    %2496 = vsyncpa [#allocation6], 1
    %s2497 = scalar_lea.sflag [#allocation6], 1
    %2498 = vsyncpa %s2497, 1
    %2499 = vsyncpa [#allocation8], 1
    %s2500 = scalar_lea.sflag [#allocation8], 1
    %2501 = vsyncpa %s2500, 1

</llo_original>
